<compile_context>
chip_gen: v6e
topology: v6e:2x2x1
jax: 0.10.0
libtpu: 0.0.40
codegen_flags: <defaults>
</compile_context>

<pallas_src>
import functools
import math

import jax
import jax.numpy as jnp
from jax.experimental import pallas as pl
from jax.experimental.pallas import tpu as pltpu

# ---------------- synthetic GPT-2 (small) config ----------------
VOCAB = 64
VOCAB_PAD = 128          # lane-dense LM-head output (unmasked vst)
MAX_POS = 16
N_LAYER = 2
N_HEAD = 4
D_MODEL = 32
HEAD_DIM = D_MODEL // N_HEAD
D_FF = 4 * D_MODEL       # 128
LN_EPS = 1e-5

# row layout of the packed "vecs" array: 8 rows per layer (+2 final-LN rows)
_ROWS_PER_LAYER = 8
_R_LN1G, _R_LN1B, _R_LN2G, _R_LN2B, _R_BPROJ, _R_BOUT, _R_BFC = range(7)


def _vmem():
    # whole-array block resident in VMEM (total footprint is < 1 MiB here)
    return pl.BlockSpec(memory_space=pltpu.MemorySpace.VMEM)


# ---------------- fused model kernel ----------------
def _gpt2_fused_kernel(
    ids_ref,      # (B, S, 1) int32 token ids
    mask_ref,     # (B, 1, S) f32 attention mask (1 = attend, 0 = pad)
    emb_ref,      # (VOCAB + MAX_POS, D) f32 = [wte ; wpe]
    vecs_ref,     # (8*L + 2, D_FF) f32 packed LN gains/biases + bias vectors
    w_qkv_ref,    # (L, 3, H, D, hd) f32 per-head Q/K/V weights
    b_qkv_ref,    # (L, 3, H, 1, hd) f32 per-head Q/K/V biases
    w_proj_ref,   # (L, H, hd, D) f32 output projection split per head
    w_fc_ref,     # (L, D, D_FF) f32
    w_out_ref,    # (L, D_FF, D) f32
    wte_t_ref,    # (D, VOCAB_PAD) f32 tied LM head (transposed, lane-padded)
    o_ref,        # (M, VOCAB_PAD) f32
    *, batch, seq,
):
    f32 = jnp.float32
    M = batch * seq
    EMB_ROWS = VOCAB + MAX_POS

    # ---- fused embedding: (token one-hot | position one-hot) @ [wte ; wpe] ----
    col = jax.lax.broadcasted_iota(jnp.int32, (batch, seq, EMB_ROWS), 2)
    pos = jax.lax.broadcasted_iota(jnp.int32, (batch, seq, EMB_ROWS), 1)
    sel = jnp.logical_or(col == ids_ref[...], col == VOCAB + pos)
    x = jnp.dot(sel.astype(f32).reshape(M, EMB_ROWS), emb_ref[...],
                preferred_element_type=f32)                          # (M, D)

    # ---- additive attention bias: causal + HF padding mask, one (B,S,S) array ----
    qi = jax.lax.broadcasted_iota(jnp.int32, (batch, seq, seq), 1)
    kj = jax.lax.broadcasted_iota(jnp.int32, (batch, seq, seq), 2)
    keep = jnp.logical_and(kj <= qi, mask_ref[...] > 0.5)            # (B, S, S)
    bias = jnp.where(keep, 0.0, -1e4).astype(f32)

    def vec_row(r, width):
        return vecs_ref[r:r + 1, :width]                             # (1, width)

    def layer_norm(h, g, beta):
        mean = jnp.mean(h, axis=-1, keepdims=True)
        hc = h - mean
        var = jnp.mean(hc * hc, axis=-1, keepdims=True)
        return hc * jax.lax.rsqrt(var + LN_EPS) * g + beta

    scale = 1.0 / math.sqrt(HEAD_DIM)

    for l in range(N_LAYER):                 # static unroll (N_LAYER = 2)
        r0 = l * _ROWS_PER_LAYER
        # ---------------- attention sub-block ----------------
        ln1 = layer_norm(x, vec_row(r0 + _R_LN1G, D_MODEL),
                         vec_row(r0 + _R_LN1B, D_MODEL))
        proj = None
        for h in range(N_HEAD):              # static unroll over heads
            q = jnp.dot(ln1, w_qkv_ref[l, 0, h],
                        preferred_element_type=f32) + b_qkv_ref[l, 0, h]
            k = jnp.dot(ln1, w_qkv_ref[l, 1, h],
                        preferred_element_type=f32) + b_qkv_ref[l, 1, h]
            v = jnp.dot(ln1, w_qkv_ref[l, 2, h],
                        preferred_element_type=f32) + b_qkv_ref[l, 2, h]
            # tile-preserving reshapes (split sublane dim M -> (B, S); lanes unchanged)
            q3 = q.reshape(batch, seq, HEAD_DIM)
            k3 = k.reshape(batch, seq, HEAD_DIM)
            v3 = v.reshape(batch, seq, HEAD_DIM)
            # batched over batch, contracting head_dim: no transpose materialized
            s = jnp.einsum('bqd,bkd->bqk', q3, k3,
                           preferred_element_type=f32) * scale + bias
            m = jnp.max(s, axis=-1, keepdims=True)
            p = jnp.exp(s - m)
            p = p * pl.reciprocal(jnp.sum(p, axis=-1, keepdims=True), approx=True)
            o = jnp.einsum('bqk,bkd->bqd', p, v3, preferred_element_type=f32)
            contrib = jnp.dot(o.reshape(M, HEAD_DIM), w_proj_ref[l, h],
                              preferred_element_type=f32)            # (M, D)
            proj = contrib if proj is None else proj + contrib
        x = x + proj + vec_row(r0 + _R_BPROJ, D_MODEL)

        # ---------------- MLP sub-block ----------------
        ln2 = layer_norm(x, vec_row(r0 + _R_LN2G, D_MODEL),
                         vec_row(r0 + _R_LN2B, D_MODEL))
        ff = jnp.dot(ln2, w_fc_ref[l],
                     preferred_element_type=f32) + vec_row(r0 + _R_BFC, D_FF)
        # GPT-2 "gelu_new" (tanh approximation), matching HF GPT2MLP.
        ff = 0.5 * ff * (1.0 + jnp.tanh(0.7978845608028654 *
                                        (ff + 0.044715 * ff * ff * ff)))
        x = x + jnp.dot(ff, w_out_ref[l],
                        preferred_element_type=f32) + vec_row(r0 + _R_BOUT, D_MODEL)

    # -------- final LN + tied LM head (lane-padded to VOCAB_PAD = 128) --------
    rf = N_LAYER * _ROWS_PER_LAYER
    xf = layer_norm(x, vec_row(rf + 0, D_MODEL), vec_row(rf + 1, D_MODEL))
    o_ref[...] = jnp.dot(xf, wte_t_ref[...],
                         preferred_element_type=f32).astype(o_ref.dtype)


# ---------------- parameter init (deterministic, synthetic, pre-packed) ----------------
def init_params(key):
    def normal(k, shape, std=0.02):
        return jax.random.normal(k, shape, jnp.float32) * std

    L, H, D, hd = N_LAYER, N_HEAD, D_MODEL, HEAD_DIM
    keys = jax.random.split(key, 2 + L)
    wte = normal(keys[0], (VOCAB, D))
    wpe = normal(keys[1], (MAX_POS, D))

    w_qkv, w_proj, w_fc, w_out = [], [], [], []
    for l in range(L):
        kk = jax.random.split(keys[2 + l], 4)
        w_qkv.append(normal(kk[0], (D, 3 * D)))
        w_proj.append(normal(kk[1], (D, D)))
        w_fc.append(normal(kk[2], (D, D_FF)))
        w_out.append(normal(kk[3], (D_FF, D)))
    w_qkv = jnp.stack(w_qkv)         # (L, D, 3D), columns = [Q | K | V]
    w_proj = jnp.stack(w_proj)       # (L, D, D)

    ln1_g = jnp.ones((L, D), jnp.float32); ln1_b = jnp.zeros((L, D), jnp.float32)
    ln2_g = jnp.ones((L, D), jnp.float32); ln2_b = jnp.zeros((L, D), jnp.float32)
    lnf_g = jnp.ones((D,), jnp.float32);   lnf_b = jnp.zeros((D,), jnp.float32)
    b_qkv = jnp.zeros((L, 3 * D), jnp.float32)
    b_proj = jnp.zeros((L, D), jnp.float32)
    b_fc = jnp.zeros((L, D_FF), jnp.float32)
    b_out = jnp.zeros((L, D), jnp.float32)

    # ---- pack once here (init-time), so the jitted forward does no re-layout ----
    def pad_row(v):
        return jnp.zeros((D_FF,), jnp.float32).at[:v.shape[0]].set(v)

    rows = []
    for l in range(L):
        rows += [pad_row(ln1_g[l]), pad_row(ln1_b[l]),
                 pad_row(ln2_g[l]), pad_row(ln2_b[l]),
                 pad_row(b_proj[l]), pad_row(b_out[l]), pad_row(b_fc[l]),
                 jnp.zeros((D_FF,), jnp.float32)]    # pad to 8 rows / layer
    rows += [pad_row(lnf_g), pad_row(lnf_b)]
    vecs = jnp.stack(rows)                           # (8L+2, 128)

    return {
        "emb": jnp.concatenate([wte, wpe], axis=0),                        # (V+P, D)
        "vecs": vecs,
        "w_qkv_h": w_qkv.reshape(L, D, 3, H, hd).transpose(0, 2, 3, 1, 4),  # (L,3,H,D,hd)
        "b_qkv_h": b_qkv.reshape(L, 3, H, 1, hd),
        "w_proj_h": w_proj.reshape(L, H, hd, D),
        "w_fc": jnp.stack(w_fc),                                            # (L, D, 4D)
        "w_out": jnp.stack(w_out),                                          # (L, 4D, D)
        # tied LM head: transposed + lane-padded to 128, computed once here
        "wte_t_pad": jnp.zeros((D, VOCAB_PAD), jnp.float32).at[:, :VOCAB].set(wte.T),
    }


# ---------------- GPT2Decoder.forward ----------------
@jax.jit
def gpt2_decoder_forward(params, input_ids, attn_mask):
    """logits = GPT2LMHeadModel(input_ids, attention_mask=attn_mask)[0]"""
    B, S = input_ids.shape
    M = B * S

    ids = input_ids.astype(jnp.int32).reshape(B, S, 1)
    mask = attn_mask.astype(jnp.float32).reshape(B, 1, S)

    kernel = functools.partial(_gpt2_fused_kernel, batch=B, seq=S)
    logits_pad = pl.pallas_call(
        kernel,
        out_shape=jax.ShapeDtypeStruct((M, VOCAB_PAD), jnp.float32),
        in_specs=[_vmem()] * 10,
        out_specs=_vmem(),
    )(
        ids, mask, params["emb"], params["vecs"],
        params["w_qkv_h"], params["b_qkv_h"], params["w_proj_h"],
        params["w_fc"], params["w_out"], params["wte_t_pad"],
    )
    return logits_pad[:, :VOCAB].reshape(B, S, VOCAB)


if __name__ == "__main__":
    key = jax.random.PRNGKey(0)
    pkey, dkey = jax.random.split(key)
    params = init_params(pkey)

    B, S = 2, 8
    input_ids = jax.random.randint(dkey, (B, S), 0, VOCAB, dtype=jnp.int32)
    # attention mask like HF: 1 = attend, 0 = pad (zero out last 2 tokens of row 1)
    attn_mask = jnp.ones((B, S), jnp.int32).at[1, S - 2:].set(0)

    logits = gpt2_decoder_forward(params, input_ids, attn_mask)
    jax.block_until_ready(logits)
    assert logits.shape == (B, S, VOCAB)
    assert bool(jnp.all(jnp.isfinite(logits)))
    print("KERNEL_OK")
</pallas_src>

<mosaic_0001>
module attributes {stable_mosaic.version = 11 : i64} {
  func.func @_gpt2_fused_kernel(%arg0: memref<2x8x1xi32, #tpu.memory_space<vmem>>, %arg1: memref<2x1x8xf32, #tpu.memory_space<vmem>>, %arg2: memref<80x32xf32, #tpu.memory_space<vmem>>, %arg3: memref<18x128xf32, #tpu.memory_space<vmem>>, %arg4: memref<2x3x4x32x8xf32, #tpu.memory_space<vmem>>, %arg5: memref<2x3x4x1x8xf32, #tpu.memory_space<vmem>>, %arg6: memref<2x4x8x32xf32, #tpu.memory_space<vmem>>, %arg7: memref<2x32x128xf32, #tpu.memory_space<vmem>>, %arg8: memref<2x128x32xf32, #tpu.memory_space<vmem>>, %arg9: memref<32x128xf32, #tpu.memory_space<vmem>>, %arg10: memref<16x128xf32, #tpu.memory_space<vmem>>) attributes {dimension_semantics = [], scalar_prefetch = 0 : i64, scratch_operands = 0 : i64, tpu.core_type = #tpu.core_type<tc>} {
    %0 = tpu.iota {dimensions = array<i32: 2>} : vector<2x8x80xi32>
    %1 = tpu.iota {dimensions = array<i32: 1>} : vector<2x8x80xi32>
    %c0 = arith.constant 0 : index
    %c0_0 = arith.constant 0 : index
    %c0_1 = arith.constant 0 : index
    %2 = vector.load %arg0[%c0, %c0_0, %c0_1] : memref<2x8x1xi32, #tpu.memory_space<vmem>>, vector<2x8x1xi32>
    %3 = vector.broadcast %2 : vector<2x8x1xi32> to vector<2x8x80xi32>
    %4 = arith.cmpi eq, %0, %3 : vector<2x8x80xi32>
    %c64_i32 = arith.constant 64 : i32
    %5 = vector.broadcast %c64_i32 : i32 to vector<2x8x80xi32>
    %6 = arith.addi %5, %1 : vector<2x8x80xi32>
    %7 = arith.cmpi eq, %0, %6 : vector<2x8x80xi32>
    %8 = arith.ori %4, %7 : vector<2x8x80xi1>
    %9 = arith.extui %8 : vector<2x8x80xi1> to vector<2x8x80xi32>
    %10 = arith.sitofp %9 : vector<2x8x80xi32> to vector<2x8x80xf32>
    %11 = vector.shape_cast %10 : vector<2x8x80xf32> to vector<16x80xf32>
    %c0_2 = arith.constant 0 : index
    %c0_3 = arith.constant 0 : index
    %12 = vector.load %arg2[%c0_2, %c0_3] : memref<80x32xf32, #tpu.memory_space<vmem>>, vector<80x32xf32>
    %cst = arith.constant dense<0.000000e+00> : vector<16x32xf32>
    %13 = tpu.matmul %11, %12, %cst {dimension_numbers = #tpu.dot_dimension_numbers<[1], [0], [0], [1], [0, 0, 1, 1], [], []>} : vector<16x80xf32>, vector<80x32xf32>, vector<16x32xf32> -> vector<16x32xf32>
    %14 = tpu.iota {dimensions = array<i32: 1>} : vector<2x8x8xi32>
    %15 = tpu.iota {dimensions = array<i32: 2>} : vector<2x8x8xi32>
    %16 = arith.cmpi sle, %15, %14 : vector<2x8x8xi32>
    %c0_4 = arith.constant 0 : index
    %c0_5 = arith.constant 0 : index
    %c0_6 = arith.constant 0 : index
    %17 = vector.load %arg1[%c0_4, %c0_5, %c0_6] : memref<2x1x8xf32, #tpu.memory_space<vmem>>, vector<2x1x8xf32>
    %cst_7 = arith.constant 5.000000e-01 : f32
    %18 = vector.broadcast %cst_7 : f32 to vector<2x1x8xf32>
    %19 = arith.cmpf ogt, %17, %18 : vector<2x1x8xf32>
    %20 = vector.broadcast %19 : vector<2x1x8xi1> to vector<2x8x8xi1>
    %21 = arith.andi %16, %20 : vector<2x8x8xi1>
    %cst_8 = arith.constant 0.000000e+00 : f32
    %cst_9 = arith.constant -1.000000e+04 : f32
    %22 = vector.broadcast %cst_8 : f32 to vector<2x8x8xf32>
    %23 = vector.broadcast %cst_9 : f32 to vector<2x8x8xf32>
    %24 = arith.select %21, %22, %23 : vector<2x8x8xi1>, vector<2x8x8xf32>
    %c0_10 = arith.constant 0 : index
    %c0_11 = arith.constant 0 : index
    %25 = vector.load %arg3[%c0_10, %c0_11] : memref<18x128xf32, #tpu.memory_space<vmem>>, vector<1x32xf32>
    %c1 = arith.constant 1 : index
    %c0_12 = arith.constant 0 : index
    %26 = vector.load %arg3[%c1, %c0_12] : memref<18x128xf32, #tpu.memory_space<vmem>>, vector<1x32xf32>
    %cst_13 = arith.constant dense<0.000000e+00> : vector<16xf32>
    %27 = vector.multi_reduction <add>, %13, %cst_13 [1] : vector<16x32xf32> to vector<16xf32>
    %28 = vector.shape_cast %27 : vector<16xf32> to vector<16x1xf32>
    %cst_14 = arith.constant 3.200000e+01 : f32
    %29 = vector.broadcast %cst_14 : f32 to vector<16x1xf32>
    %30 = arith.divf %28, %29 : vector<16x1xf32>
    %31 = vector.broadcast %30 : vector<16x1xf32> to vector<16x32xf32>
    %32 = arith.subf %13, %31 : vector<16x32xf32>
    %33 = arith.mulf %32, %32 : vector<16x32xf32>
    %cst_15 = arith.constant dense<0.000000e+00> : vector<16xf32>
    %34 = vector.multi_reduction <add>, %33, %cst_15 [1] : vector<16x32xf32> to vector<16xf32>
    %35 = vector.shape_cast %34 : vector<16xf32> to vector<16x1xf32>
    %cst_16 = arith.constant 3.200000e+01 : f32
    %36 = vector.broadcast %cst_16 : f32 to vector<16x1xf32>
    %37 = arith.divf %35, %36 : vector<16x1xf32>
    %cst_17 = arith.constant 9.99999974E-6 : f32
    %38 = vector.broadcast %cst_17 : f32 to vector<16x1xf32>
    %39 = arith.addf %37, %38 : vector<16x1xf32>
    %40 = math.rsqrt %39 : vector<16x1xf32>
    %41 = vector.broadcast %40 : vector<16x1xf32> to vector<16x32xf32>
    %42 = arith.mulf %32, %41 : vector<16x32xf32>
    %43 = vector.broadcast %25 : vector<1x32xf32> to vector<16x32xf32>
    %44 = arith.mulf %42, %43 : vector<16x32xf32>
    %45 = vector.broadcast %26 : vector<1x32xf32> to vector<16x32xf32>
    %46 = arith.addf %44, %45 : vector<16x32xf32>
    %c0_18 = arith.constant 0 : index
    %c0_19 = arith.constant 0 : index
    %c0_20 = arith.constant 0 : index
    %c0_21 = arith.constant 0 : index
    %c0_22 = arith.constant 0 : index
    %47 = vector.load %arg4[%c0_18, %c0_19, %c0_20, %c0_21, %c0_22] : memref<2x3x4x32x8xf32, #tpu.memory_space<vmem>>, vector<1x1x1x32x8xf32>
    %48 = vector.shape_cast %47 : vector<1x1x1x32x8xf32> to vector<32x8xf32>
    %cst_23 = arith.constant dense<0.000000e+00> : vector<16x8xf32>
    %49 = tpu.matmul %46, %48, %cst_23 {dimension_numbers = #tpu.dot_dimension_numbers<[1], [0], [0], [1], [0, 0, 1, 1], [], []>} : vector<16x32xf32>, vector<32x8xf32>, vector<16x8xf32> -> vector<16x8xf32>
    %c0_24 = arith.constant 0 : index
    %c0_25 = arith.constant 0 : index
    %c0_26 = arith.constant 0 : index
    %c0_27 = arith.constant 0 : index
    %c0_28 = arith.constant 0 : index
    %50 = vector.load %arg5[%c0_24, %c0_25, %c0_26, %c0_27, %c0_28] : memref<2x3x4x1x8xf32, #tpu.memory_space<vmem>>, vector<1x1x1x1x8xf32>
    %51 = vector.shape_cast %50 : vector<1x1x1x1x8xf32> to vector<1x8xf32>
    %52 = vector.broadcast %51 : vector<1x8xf32> to vector<16x8xf32>
    %53 = arith.addf %49, %52 : vector<16x8xf32>
    %c0_29 = arith.constant 0 : index
    %c1_30 = arith.constant 1 : index
    %c0_31 = arith.constant 0 : index
    %c0_32 = arith.constant 0 : index
    %c0_33 = arith.constant 0 : index
    %54 = vector.load %arg4[%c0_29, %c1_30, %c0_31, %c0_32, %c0_33] : memref<2x3x4x32x8xf32, #tpu.memory_space<vmem>>, vector<1x1x1x32x8xf32>
    %55 = vector.shape_cast %54 : vector<1x1x1x32x8xf32> to vector<32x8xf32>
    %cst_34 = arith.constant dense<0.000000e+00> : vector<16x8xf32>
    %56 = tpu.matmul %46, %55, %cst_34 {dimension_numbers = #tpu.dot_dimension_numbers<[1], [0], [0], [1], [0, 0, 1, 1], [], []>} : vector<16x32xf32>, vector<32x8xf32>, vector<16x8xf32> -> vector<16x8xf32>
    %c0_35 = arith.constant 0 : index
    %c1_36 = arith.constant 1 : index
    %c0_37 = arith.constant 0 : index
    %c0_38 = arith.constant 0 : index
    %c0_39 = arith.constant 0 : index
    %57 = vector.load %arg5[%c0_35, %c1_36, %c0_37, %c0_38, %c0_39] : memref<2x3x4x1x8xf32, #tpu.memory_space<vmem>>, vector<1x1x1x1x8xf32>
    %58 = vector.shape_cast %57 : vector<1x1x1x1x8xf32> to vector<1x8xf32>
    %59 = vector.broadcast %58 : vector<1x8xf32> to vector<16x8xf32>
    %60 = arith.addf %56, %59 : vector<16x8xf32>
    %c0_40 = arith.constant 0 : index
    %c2 = arith.constant 2 : index
    %c0_41 = arith.constant 0 : index
    %c0_42 = arith.constant 0 : index
    %c0_43 = arith.constant 0 : index
    %61 = vector.load %arg4[%c0_40, %c2, %c0_41, %c0_42, %c0_43] : memref<2x3x4x32x8xf32, #tpu.memory_space<vmem>>, vector<1x1x1x32x8xf32>
    %62 = vector.shape_cast %61 : vector<1x1x1x32x8xf32> to vector<32x8xf32>
    %cst_44 = arith.constant dense<0.000000e+00> : vector<16x8xf32>
    %63 = tpu.matmul %46, %62, %cst_44 {dimension_numbers = #tpu.dot_dimension_numbers<[1], [0], [0], [1], [0, 0, 1, 1], [], []>} : vector<16x32xf32>, vector<32x8xf32>, vector<16x8xf32> -> vector<16x8xf32>
    %c0_45 = arith.constant 0 : index
    %c2_46 = arith.constant 2 : index
    %c0_47 = arith.constant 0 : index
    %c0_48 = arith.constant 0 : index
    %c0_49 = arith.constant 0 : index
    %64 = vector.load %arg5[%c0_45, %c2_46, %c0_47, %c0_48, %c0_49] : memref<2x3x4x1x8xf32, #tpu.memory_space<vmem>>, vector<1x1x1x1x8xf32>
    %65 = vector.shape_cast %64 : vector<1x1x1x1x8xf32> to vector<1x8xf32>
    %66 = vector.broadcast %65 : vector<1x8xf32> to vector<16x8xf32>
    %67 = arith.addf %63, %66 : vector<16x8xf32>
    %68 = vector.shape_cast %53 : vector<16x8xf32> to vector<2x8x8xf32>
    %69 = vector.shape_cast %60 : vector<16x8xf32> to vector<2x8x8xf32>
    %70 = vector.shape_cast %67 : vector<16x8xf32> to vector<2x8x8xf32>
    "tpu.trace_start"() <{level = 10 : i32, message = "bqd,bkd->bqk"}> : () -> ()
    %cst_50 = arith.constant dense<0.000000e+00> : vector<2x8x8xf32>
    %71 = tpu.matmul %68, %69, %cst_50 {dimension_numbers = #tpu.dot_dimension_numbers<[2], [2], [1], [1], [0, 0, 0, 1, 1, 1], [0], [0]>} : vector<2x8x8xf32>, vector<2x8x8xf32>, vector<2x8x8xf32> -> vector<2x8x8xf32>
    "tpu.trace_stop"() : () -> ()
    %cst_51 = arith.constant 0.353553385 : f32
    %72 = vector.broadcast %cst_51 : f32 to vector<2x8x8xf32>
    %73 = arith.mulf %71, %72 : vector<2x8x8xf32>
    %74 = arith.addf %73, %24 : vector<2x8x8xf32>
    %cst_52 = arith.constant dense<0xFF800000> : vector<2x8xf32>
    %75 = vector.multi_reduction <maximumf>, %74, %cst_52 [2] : vector<2x8x8xf32> to vector<2x8xf32>
    %76 = vector.shape_cast %75 : vector<2x8xf32> to vector<2x8x1xf32>
    %77 = vector.broadcast %76 : vector<2x8x1xf32> to vector<2x8x8xf32>
    %78 = arith.subf %74, %77 : vector<2x8x8xf32>
    %79 = math.exp %78 : vector<2x8x8xf32>
    %cst_53 = arith.constant dense<0.000000e+00> : vector<2x8xf32>
    %80 = vector.multi_reduction <add>, %79, %cst_53 [2] : vector<2x8x8xf32> to vector<2x8xf32>
    %81 = vector.shape_cast %80 : vector<2x8xf32> to vector<2x8x1xf32>
    %82 = tpu.reciprocal %81 {approx = true} : vector<2x8x1xf32> -> vector<2x8x1xf32>
    %83 = vector.broadcast %82 : vector<2x8x1xf32> to vector<2x8x8xf32>
    %84 = arith.mulf %79, %83 : vector<2x8x8xf32>
    "tpu.trace_start"() <{level = 10 : i32, message = "bqk,bkd->bqd"}> : () -> ()
    %cst_54 = arith.constant dense<0.000000e+00> : vector<2x8x8xf32>
    %85 = tpu.matmul %84, %70, %cst_54 {dimension_numbers = #tpu.dot_dimension_numbers<[2], [1], [1], [2], [0, 0, 0, 1, 1, 2], [0], [0]>} : vector<2x8x8xf32>, vector<2x8x8xf32>, vector<2x8x8xf32> -> vector<2x8x8xf32>
    "tpu.trace_stop"() : () -> ()
    %86 = vector.shape_cast %85 : vector<2x8x8xf32> to vector<16x8xf32>
    %c0_55 = arith.constant 0 : index
    %c0_56 = arith.constant 0 : index
    %c0_57 = arith.constant 0 : index
    %c0_58 = arith.constant 0 : index
    %87 = vector.load %arg6[%c0_55, %c0_56, %c0_57, %c0_58] : memref<2x4x8x32xf32, #tpu.memory_space<vmem>>, vector<1x1x8x32xf32>
    %88 = vector.shape_cast %87 : vector<1x1x8x32xf32> to vector<8x32xf32>
    %cst_59 = arith.constant dense<0.000000e+00> : vector<16x32xf32>
    %89 = tpu.matmul %86, %88, %cst_59 {dimension_numbers = #tpu.dot_dimension_numbers<[1], [0], [0], [1], [0, 0, 1, 1], [], []>} : vector<16x8xf32>, vector<8x32xf32>, vector<16x32xf32> -> vector<16x32xf32>
    %c0_60 = arith.constant 0 : index
    %c0_61 = arith.constant 0 : index
    %c1_62 = arith.constant 1 : index
    %c0_63 = arith.constant 0 : index
    %c0_64 = arith.constant 0 : index
    %90 = vector.load %arg4[%c0_60, %c0_61, %c1_62, %c0_63, %c0_64] : memref<2x3x4x32x8xf32, #tpu.memory_space<vmem>>, vector<1x1x1x32x8xf32>
    %91 = vector.shape_cast %90 : vector<1x1x1x32x8xf32> to vector<32x8xf32>
    %cst_65 = arith.constant dense<0.000000e+00> : vector<16x8xf32>
    %92 = tpu.matmul %46, %91, %cst_65 {dimension_numbers = #tpu.dot_dimension_numbers<[1], [0], [0], [1], [0, 0, 1, 1], [], []>} : vector<16x32xf32>, vector<32x8xf32>, vector<16x8xf32> -> vector<16x8xf32>
    %c0_66 = arith.constant 0 : index
    %c0_67 = arith.constant 0 : index
    %c1_68 = arith.constant 1 : index
    %c0_69 = arith.constant 0 : index
    %c0_70 = arith.constant 0 : index
    %93 = vector.load %arg5[%c0_66, %c0_67, %c1_68, %c0_69, %c0_70] : memref<2x3x4x1x8xf32, #tpu.memory_space<vmem>>, vector<1x1x1x1x8xf32>
    %94 = vector.shape_cast %93 : vector<1x1x1x1x8xf32> to vector<1x8xf32>
    %95 = vector.broadcast %94 : vector<1x8xf32> to vector<16x8xf32>
    %96 = arith.addf %92, %95 : vector<16x8xf32>
    %c0_71 = arith.constant 0 : index
    %c1_72 = arith.constant 1 : index
    %c1_73 = arith.constant 1 : index
    %c0_74 = arith.constant 0 : index
    %c0_75 = arith.constant 0 : index
    %97 = vector.load %arg4[%c0_71, %c1_72, %c1_73, %c0_74, %c0_75] : memref<2x3x4x32x8xf32, #tpu.memory_space<vmem>>, vector<1x1x1x32x8xf32>
    %98 = vector.shape_cast %97 : vector<1x1x1x32x8xf32> to vector<32x8xf32>
    %cst_76 = arith.constant dense<0.000000e+00> : vector<16x8xf32>
    %99 = tpu.matmul %46, %98, %cst_76 {dimension_numbers = #tpu.dot_dimension_numbers<[1], [0], [0], [1], [0, 0, 1, 1], [], []>} : vector<16x32xf32>, vector<32x8xf32>, vector<16x8xf32> -> vector<16x8xf32>
    %c0_77 = arith.constant 0 : index
    %c1_78 = arith.constant 1 : index
    %c1_79 = arith.constant 1 : index
    %c0_80 = arith.constant 0 : index
    %c0_81 = arith.constant 0 : index
    %100 = vector.load %arg5[%c0_77, %c1_78, %c1_79, %c0_80, %c0_81] : memref<2x3x4x1x8xf32, #tpu.memory_space<vmem>>, vector<1x1x1x1x8xf32>
    %101 = vector.shape_cast %100 : vector<1x1x1x1x8xf32> to vector<1x8xf32>
    %102 = vector.broadcast %101 : vector<1x8xf32> to vector<16x8xf32>
    %103 = arith.addf %99, %102 : vector<16x8xf32>
    %c0_82 = arith.constant 0 : index
    %c2_83 = arith.constant 2 : index
    %c1_84 = arith.constant 1 : index
    %c0_85 = arith.constant 0 : index
    %c0_86 = arith.constant 0 : index
    %104 = vector.load %arg4[%c0_82, %c2_83, %c1_84, %c0_85, %c0_86] : memref<2x3x4x32x8xf32, #tpu.memory_space<vmem>>, vector<1x1x1x32x8xf32>
    %105 = vector.shape_cast %104 : vector<1x1x1x32x8xf32> to vector<32x8xf32>
    %cst_87 = arith.constant dense<0.000000e+00> : vector<16x8xf32>
    %106 = tpu.matmul %46, %105, %cst_87 {dimension_numbers = #tpu.dot_dimension_numbers<[1], [0], [0], [1], [0, 0, 1, 1], [], []>} : vector<16x32xf32>, vector<32x8xf32>, vector<16x8xf32> -> vector<16x8xf32>
    %c0_88 = arith.constant 0 : index
    %c2_89 = arith.constant 2 : index
    %c1_90 = arith.constant 1 : index
    %c0_91 = arith.constant 0 : index
    %c0_92 = arith.constant 0 : index
    %107 = vector.load %arg5[%c0_88, %c2_89, %c1_90, %c0_91, %c0_92] : memref<2x3x4x1x8xf32, #tpu.memory_space<vmem>>, vector<1x1x1x1x8xf32>
    %108 = vector.shape_cast %107 : vector<1x1x1x1x8xf32> to vector<1x8xf32>
    %109 = vector.broadcast %108 : vector<1x8xf32> to vector<16x8xf32>
    %110 = arith.addf %106, %109 : vector<16x8xf32>
    %111 = vector.shape_cast %96 : vector<16x8xf32> to vector<2x8x8xf32>
    %112 = vector.shape_cast %103 : vector<16x8xf32> to vector<2x8x8xf32>
    %113 = vector.shape_cast %110 : vector<16x8xf32> to vector<2x8x8xf32>
    "tpu.trace_start"() <{level = 10 : i32, message = "bqd,bkd->bqk"}> : () -> ()
    %cst_93 = arith.constant dense<0.000000e+00> : vector<2x8x8xf32>
    %114 = tpu.matmul %111, %112, %cst_93 {dimension_numbers = #tpu.dot_dimension_numbers<[2], [2], [1], [1], [0, 0, 0, 1, 1, 1], [0], [0]>} : vector<2x8x8xf32>, vector<2x8x8xf32>, vector<2x8x8xf32> -> vector<2x8x8xf32>
    "tpu.trace_stop"() : () -> ()
    %cst_94 = arith.constant 0.353553385 : f32
    %115 = vector.broadcast %cst_94 : f32 to vector<2x8x8xf32>
    %116 = arith.mulf %114, %115 : vector<2x8x8xf32>
    %117 = arith.addf %116, %24 : vector<2x8x8xf32>
    %cst_95 = arith.constant dense<0xFF800000> : vector<2x8xf32>
    %118 = vector.multi_reduction <maximumf>, %117, %cst_95 [2] : vector<2x8x8xf32> to vector<2x8xf32>
    %119 = vector.shape_cast %118 : vector<2x8xf32> to vector<2x8x1xf32>
    %120 = vector.broadcast %119 : vector<2x8x1xf32> to vector<2x8x8xf32>
    %121 = arith.subf %117, %120 : vector<2x8x8xf32>
    %122 = math.exp %121 : vector<2x8x8xf32>
    %cst_96 = arith.constant dense<0.000000e+00> : vector<2x8xf32>
    %123 = vector.multi_reduction <add>, %122, %cst_96 [2] : vector<2x8x8xf32> to vector<2x8xf32>
    %124 = vector.shape_cast %123 : vector<2x8xf32> to vector<2x8x1xf32>
    %125 = tpu.reciprocal %124 {approx = true} : vector<2x8x1xf32> -> vector<2x8x1xf32>
    %126 = vector.broadcast %125 : vector<2x8x1xf32> to vector<2x8x8xf32>
    %127 = arith.mulf %122, %126 : vector<2x8x8xf32>
    "tpu.trace_start"() <{level = 10 : i32, message = "bqk,bkd->bqd"}> : () -> ()
    %cst_97 = arith.constant dense<0.000000e+00> : vector<2x8x8xf32>
    %128 = tpu.matmul %127, %113, %cst_97 {dimension_numbers = #tpu.dot_dimension_numbers<[2], [1], [1], [2], [0, 0, 0, 1, 1, 2], [0], [0]>} : vector<2x8x8xf32>, vector<2x8x8xf32>, vector<2x8x8xf32> -> vector<2x8x8xf32>
    "tpu.trace_stop"() : () -> ()
    %129 = vector.shape_cast %128 : vector<2x8x8xf32> to vector<16x8xf32>
    %c0_98 = arith.constant 0 : index
    %c1_99 = arith.constant 1 : index
    %c0_100 = arith.constant 0 : index
    %c0_101 = arith.constant 0 : index
    %130 = vector.load %arg6[%c0_98, %c1_99, %c0_100, %c0_101] : memref<2x4x8x32xf32, #tpu.memory_space<vmem>>, vector<1x1x8x32xf32>
    %131 = vector.shape_cast %130 : vector<1x1x8x32xf32> to vector<8x32xf32>
    %cst_102 = arith.constant dense<0.000000e+00> : vector<16x32xf32>
    %132 = tpu.matmul %129, %131, %cst_102 {dimension_numbers = #tpu.dot_dimension_numbers<[1], [0], [0], [1], [0, 0, 1, 1], [], []>} : vector<16x8xf32>, vector<8x32xf32>, vector<16x32xf32> -> vector<16x32xf32>
    %133 = arith.addf %89, %132 : vector<16x32xf32>
    %c0_103 = arith.constant 0 : index
    %c0_104 = arith.constant 0 : index
    %c2_105 = arith.constant 2 : index
    %c0_106 = arith.constant 0 : index
    %c0_107 = arith.constant 0 : index
    %134 = vector.load %arg4[%c0_103, %c0_104, %c2_105, %c0_106, %c0_107] : memref<2x3x4x32x8xf32, #tpu.memory_space<vmem>>, vector<1x1x1x32x8xf32>
    %135 = vector.shape_cast %134 : vector<1x1x1x32x8xf32> to vector<32x8xf32>
    %cst_108 = arith.constant dense<0.000000e+00> : vector<16x8xf32>
    %136 = tpu.matmul %46, %135, %cst_108 {dimension_numbers = #tpu.dot_dimension_numbers<[1], [0], [0], [1], [0, 0, 1, 1], [], []>} : vector<16x32xf32>, vector<32x8xf32>, vector<16x8xf32> -> vector<16x8xf32>
    %c0_109 = arith.constant 0 : index
    %c0_110 = arith.constant 0 : index
    %c2_111 = arith.constant 2 : index
    %c0_112 = arith.constant 0 : index
    %c0_113 = arith.constant 0 : index
    %137 = vector.load %arg5[%c0_109, %c0_110, %c2_111, %c0_112, %c0_113] : memref<2x3x4x1x8xf32, #tpu.memory_space<vmem>>, vector<1x1x1x1x8xf32>
    %138 = vector.shape_cast %137 : vector<1x1x1x1x8xf32> to vector<1x8xf32>
    %139 = vector.broadcast %138 : vector<1x8xf32> to vector<16x8xf32>
    %140 = arith.addf %136, %139 : vector<16x8xf32>
    %c0_114 = arith.constant 0 : index
    %c1_115 = arith.constant 1 : index
    %c2_116 = arith.constant 2 : index
    %c0_117 = arith.constant 0 : index
    %c0_118 = arith.constant 0 : index
    %141 = vector.load %arg4[%c0_114, %c1_115, %c2_116, %c0_117, %c0_118] : memref<2x3x4x32x8xf32, #tpu.memory_space<vmem>>, vector<1x1x1x32x8xf32>
    %142 = vector.shape_cast %141 : vector<1x1x1x32x8xf32> to vector<32x8xf32>
    %cst_119 = arith.constant dense<0.000000e+00> : vector<16x8xf32>
    %143 = tpu.matmul %46, %142, %cst_119 {dimension_numbers = #tpu.dot_dimension_numbers<[1], [0], [0], [1], [0, 0, 1, 1], [], []>} : vector<16x32xf32>, vector<32x8xf32>, vector<16x8xf32> -> vector<16x8xf32>
    %c0_120 = arith.constant 0 : index
    %c1_121 = arith.constant 1 : index
    %c2_122 = arith.constant 2 : index
    %c0_123 = arith.constant 0 : index
    %c0_124 = arith.constant 0 : index
    %144 = vector.load %arg5[%c0_120, %c1_121, %c2_122, %c0_123, %c0_124] : memref<2x3x4x1x8xf32, #tpu.memory_space<vmem>>, vector<1x1x1x1x8xf32>
    %145 = vector.shape_cast %144 : vector<1x1x1x1x8xf32> to vector<1x8xf32>
    %146 = vector.broadcast %145 : vector<1x8xf32> to vector<16x8xf32>
    %147 = arith.addf %143, %146 : vector<16x8xf32>
    %c0_125 = arith.constant 0 : index
    %c2_126 = arith.constant 2 : index
    %c2_127 = arith.constant 2 : index
    %c0_128 = arith.constant 0 : index
    %c0_129 = arith.constant 0 : index
    %148 = vector.load %arg4[%c0_125, %c2_126, %c2_127, %c0_128, %c0_129] : memref<2x3x4x32x8xf32, #tpu.memory_space<vmem>>, vector<1x1x1x32x8xf32>
    %149 = vector.shape_cast %148 : vector<1x1x1x32x8xf32> to vector<32x8xf32>
    %cst_130 = arith.constant dense<0.000000e+00> : vector<16x8xf32>
    %150 = tpu.matmul %46, %149, %cst_130 {dimension_numbers = #tpu.dot_dimension_numbers<[1], [0], [0], [1], [0, 0, 1, 1], [], []>} : vector<16x32xf32>, vector<32x8xf32>, vector<16x8xf32> -> vector<16x8xf32>
    %c0_131 = arith.constant 0 : index
    %c2_132 = arith.constant 2 : index
    %c2_133 = arith.constant 2 : index
    %c0_134 = arith.constant 0 : index
    %c0_135 = arith.constant 0 : index
    %151 = vector.load %arg5[%c0_131, %c2_132, %c2_133, %c0_134, %c0_135] : memref<2x3x4x1x8xf32, #tpu.memory_space<vmem>>, vector<1x1x1x1x8xf32>
    %152 = vector.shape_cast %151 : vector<1x1x1x1x8xf32> to vector<1x8xf32>
    %153 = vector.broadcast %152 : vector<1x8xf32> to vector<16x8xf32>
    %154 = arith.addf %150, %153 : vector<16x8xf32>
    %155 = vector.shape_cast %140 : vector<16x8xf32> to vector<2x8x8xf32>
    %156 = vector.shape_cast %147 : vector<16x8xf32> to vector<2x8x8xf32>
    %157 = vector.shape_cast %154 : vector<16x8xf32> to vector<2x8x8xf32>
    "tpu.trace_start"() <{level = 10 : i32, message = "bqd,bkd->bqk"}> : () -> ()
    %cst_136 = arith.constant dense<0.000000e+00> : vector<2x8x8xf32>
    %158 = tpu.matmul %155, %156, %cst_136 {dimension_numbers = #tpu.dot_dimension_numbers<[2], [2], [1], [1], [0, 0, 0, 1, 1, 1], [0], [0]>} : vector<2x8x8xf32>, vector<2x8x8xf32>, vector<2x8x8xf32> -> vector<2x8x8xf32>
    "tpu.trace_stop"() : () -> ()
    %cst_137 = arith.constant 0.353553385 : f32
    %159 = vector.broadcast %cst_137 : f32 to vector<2x8x8xf32>
    %160 = arith.mulf %158, %159 : vector<2x8x8xf32>
    %161 = arith.addf %160, %24 : vector<2x8x8xf32>
    %cst_138 = arith.constant dense<0xFF800000> : vector<2x8xf32>
    %162 = vector.multi_reduction <maximumf>, %161, %cst_138 [2] : vector<2x8x8xf32> to vector<2x8xf32>
    %163 = vector.shape_cast %162 : vector<2x8xf32> to vector<2x8x1xf32>
    %164 = vector.broadcast %163 : vector<2x8x1xf32> to vector<2x8x8xf32>
    %165 = arith.subf %161, %164 : vector<2x8x8xf32>
    %166 = math.exp %165 : vector<2x8x8xf32>
    %cst_139 = arith.constant dense<0.000000e+00> : vector<2x8xf32>
    %167 = vector.multi_reduction <add>, %166, %cst_139 [2] : vector<2x8x8xf32> to vector<2x8xf32>
    %168 = vector.shape_cast %167 : vector<2x8xf32> to vector<2x8x1xf32>
    %169 = tpu.reciprocal %168 {approx = true} : vector<2x8x1xf32> -> vector<2x8x1xf32>
    %170 = vector.broadcast %169 : vector<2x8x1xf32> to vector<2x8x8xf32>
    %171 = arith.mulf %166, %170 : vector<2x8x8xf32>
    "tpu.trace_start"() <{level = 10 : i32, message = "bqk,bkd->bqd"}> : () -> ()
    %cst_140 = arith.constant dense<0.000000e+00> : vector<2x8x8xf32>
    %172 = tpu.matmul %171, %157, %cst_140 {dimension_numbers = #tpu.dot_dimension_numbers<[2], [1], [1], [2], [0, 0, 0, 1, 1, 2], [0], [0]>} : vector<2x8x8xf32>, vector<2x8x8xf32>, vector<2x8x8xf32> -> vector<2x8x8xf32>
    "tpu.trace_stop"() : () -> ()
    %173 = vector.shape_cast %172 : vector<2x8x8xf32> to vector<16x8xf32>
    %c0_141 = arith.constant 0 : index
    %c2_142 = arith.constant 2 : index
    %c0_143 = arith.constant 0 : index
    %c0_144 = arith.constant 0 : index
    %174 = vector.load %arg6[%c0_141, %c2_142, %c0_143, %c0_144] : memref<2x4x8x32xf32, #tpu.memory_space<vmem>>, vector<1x1x8x32xf32>
    %175 = vector.shape_cast %174 : vector<1x1x8x32xf32> to vector<8x32xf32>
    %cst_145 = arith.constant dense<0.000000e+00> : vector<16x32xf32>
    %176 = tpu.matmul %173, %175, %cst_145 {dimension_numbers = #tpu.dot_dimension_numbers<[1], [0], [0], [1], [0, 0, 1, 1], [], []>} : vector<16x8xf32>, vector<8x32xf32>, vector<16x32xf32> -> vector<16x32xf32>
    %177 = arith.addf %133, %176 : vector<16x32xf32>
    %c0_146 = arith.constant 0 : index
    %c0_147 = arith.constant 0 : index
    %c3 = arith.constant 3 : index
    %c0_148 = arith.constant 0 : index
    %c0_149 = arith.constant 0 : index
    %178 = vector.load %arg4[%c0_146, %c0_147, %c3, %c0_148, %c0_149] : memref<2x3x4x32x8xf32, #tpu.memory_space<vmem>>, vector<1x1x1x32x8xf32>
    %179 = vector.shape_cast %178 : vector<1x1x1x32x8xf32> to vector<32x8xf32>
    %cst_150 = arith.constant dense<0.000000e+00> : vector<16x8xf32>
    %180 = tpu.matmul %46, %179, %cst_150 {dimension_numbers = #tpu.dot_dimension_numbers<[1], [0], [0], [1], [0, 0, 1, 1], [], []>} : vector<16x32xf32>, vector<32x8xf32>, vector<16x8xf32> -> vector<16x8xf32>
    %c0_151 = arith.constant 0 : index
    %c0_152 = arith.constant 0 : index
    %c3_153 = arith.constant 3 : index
    %c0_154 = arith.constant 0 : index
    %c0_155 = arith.constant 0 : index
    %181 = vector.load %arg5[%c0_151, %c0_152, %c3_153, %c0_154, %c0_155] : memref<2x3x4x1x8xf32, #tpu.memory_space<vmem>>, vector<1x1x1x1x8xf32>
    %182 = vector.shape_cast %181 : vector<1x1x1x1x8xf32> to vector<1x8xf32>
    %183 = vector.broadcast %182 : vector<1x8xf32> to vector<16x8xf32>
    %184 = arith.addf %180, %183 : vector<16x8xf32>
    %c0_156 = arith.constant 0 : index
    %c1_157 = arith.constant 1 : index
    %c3_158 = arith.constant 3 : index
    %c0_159 = arith.constant 0 : index
    %c0_160 = arith.constant 0 : index
    %185 = vector.load %arg4[%c0_156, %c1_157, %c3_158, %c0_159, %c0_160] : memref<2x3x4x32x8xf32, #tpu.memory_space<vmem>>, vector<1x1x1x32x8xf32>
    %186 = vector.shape_cast %185 : vector<1x1x1x32x8xf32> to vector<32x8xf32>
    %cst_161 = arith.constant dense<0.000000e+00> : vector<16x8xf32>
    %187 = tpu.matmul %46, %186, %cst_161 {dimension_numbers = #tpu.dot_dimension_numbers<[1], [0], [0], [1], [0, 0, 1, 1], [], []>} : vector<16x32xf32>, vector<32x8xf32>, vector<16x8xf32> -> vector<16x8xf32>
    %c0_162 = arith.constant 0 : index
    %c1_163 = arith.constant 1 : index
    %c3_164 = arith.constant 3 : index
    %c0_165 = arith.constant 0 : index
    %c0_166 = arith.constant 0 : index
    %188 = vector.load %arg5[%c0_162, %c1_163, %c3_164, %c0_165, %c0_166] : memref<2x3x4x1x8xf32, #tpu.memory_space<vmem>>, vector<1x1x1x1x8xf32>
    %189 = vector.shape_cast %188 : vector<1x1x1x1x8xf32> to vector<1x8xf32>
    %190 = vector.broadcast %189 : vector<1x8xf32> to vector<16x8xf32>
    %191 = arith.addf %187, %190 : vector<16x8xf32>
    %c0_167 = arith.constant 0 : index
    %c2_168 = arith.constant 2 : index
    %c3_169 = arith.constant 3 : index
    %c0_170 = arith.constant 0 : index
    %c0_171 = arith.constant 0 : index
    %192 = vector.load %arg4[%c0_167, %c2_168, %c3_169, %c0_170, %c0_171] : memref<2x3x4x32x8xf32, #tpu.memory_space<vmem>>, vector<1x1x1x32x8xf32>
    %193 = vector.shape_cast %192 : vector<1x1x1x32x8xf32> to vector<32x8xf32>
    %cst_172 = arith.constant dense<0.000000e+00> : vector<16x8xf32>
    %194 = tpu.matmul %46, %193, %cst_172 {dimension_numbers = #tpu.dot_dimension_numbers<[1], [0], [0], [1], [0, 0, 1, 1], [], []>} : vector<16x32xf32>, vector<32x8xf32>, vector<16x8xf32> -> vector<16x8xf32>
    %c0_173 = arith.constant 0 : index
    %c2_174 = arith.constant 2 : index
    %c3_175 = arith.constant 3 : index
    %c0_176 = arith.constant 0 : index
    %c0_177 = arith.constant 0 : index
    %195 = vector.load %arg5[%c0_173, %c2_174, %c3_175, %c0_176, %c0_177] : memref<2x3x4x1x8xf32, #tpu.memory_space<vmem>>, vector<1x1x1x1x8xf32>
    %196 = vector.shape_cast %195 : vector<1x1x1x1x8xf32> to vector<1x8xf32>
    %197 = vector.broadcast %196 : vector<1x8xf32> to vector<16x8xf32>
    %198 = arith.addf %194, %197 : vector<16x8xf32>
    %199 = vector.shape_cast %184 : vector<16x8xf32> to vector<2x8x8xf32>
    %200 = vector.shape_cast %191 : vector<16x8xf32> to vector<2x8x8xf32>
    %201 = vector.shape_cast %198 : vector<16x8xf32> to vector<2x8x8xf32>
    "tpu.trace_start"() <{level = 10 : i32, message = "bqd,bkd->bqk"}> : () -> ()
    %cst_178 = arith.constant dense<0.000000e+00> : vector<2x8x8xf32>
    %202 = tpu.matmul %199, %200, %cst_178 {dimension_numbers = #tpu.dot_dimension_numbers<[2], [2], [1], [1], [0, 0, 0, 1, 1, 1], [0], [0]>} : vector<2x8x8xf32>, vector<2x8x8xf32>, vector<2x8x8xf32> -> vector<2x8x8xf32>
    "tpu.trace_stop"() : () -> ()
    %cst_179 = arith.constant 0.353553385 : f32
    %203 = vector.broadcast %cst_179 : f32 to vector<2x8x8xf32>
    %204 = arith.mulf %202, %203 : vector<2x8x8xf32>
    %205 = arith.addf %204, %24 : vector<2x8x8xf32>
    %cst_180 = arith.constant dense<0xFF800000> : vector<2x8xf32>
    %206 = vector.multi_reduction <maximumf>, %205, %cst_180 [2] : vector<2x8x8xf32> to vector<2x8xf32>
    %207 = vector.shape_cast %206 : vector<2x8xf32> to vector<2x8x1xf32>
    %208 = vector.broadcast %207 : vector<2x8x1xf32> to vector<2x8x8xf32>
    %209 = arith.subf %205, %208 : vector<2x8x8xf32>
    %210 = math.exp %209 : vector<2x8x8xf32>
    %cst_181 = arith.constant dense<0.000000e+00> : vector<2x8xf32>
    %211 = vector.multi_reduction <add>, %210, %cst_181 [2] : vector<2x8x8xf32> to vector<2x8xf32>
    %212 = vector.shape_cast %211 : vector<2x8xf32> to vector<2x8x1xf32>
    %213 = tpu.reciprocal %212 {approx = true} : vector<2x8x1xf32> -> vector<2x8x1xf32>
    %214 = vector.broadcast %213 : vector<2x8x1xf32> to vector<2x8x8xf32>
    %215 = arith.mulf %210, %214 : vector<2x8x8xf32>
    "tpu.trace_start"() <{level = 10 : i32, message = "bqk,bkd->bqd"}> : () -> ()
    %cst_182 = arith.constant dense<0.000000e+00> : vector<2x8x8xf32>
    %216 = tpu.matmul %215, %201, %cst_182 {dimension_numbers = #tpu.dot_dimension_numbers<[2], [1], [1], [2], [0, 0, 0, 1, 1, 2], [0], [0]>} : vector<2x8x8xf32>, vector<2x8x8xf32>, vector<2x8x8xf32> -> vector<2x8x8xf32>
    "tpu.trace_stop"() : () -> ()
    %217 = vector.shape_cast %216 : vector<2x8x8xf32> to vector<16x8xf32>
    %c0_183 = arith.constant 0 : index
    %c3_184 = arith.constant 3 : index
    %c0_185 = arith.constant 0 : index
    %c0_186 = arith.constant 0 : index
    %218 = vector.load %arg6[%c0_183, %c3_184, %c0_185, %c0_186] : memref<2x4x8x32xf32, #tpu.memory_space<vmem>>, vector<1x1x8x32xf32>
    %219 = vector.shape_cast %218 : vector<1x1x8x32xf32> to vector<8x32xf32>
    %cst_187 = arith.constant dense<0.000000e+00> : vector<16x32xf32>
    %220 = tpu.matmul %217, %219, %cst_187 {dimension_numbers = #tpu.dot_dimension_numbers<[1], [0], [0], [1], [0, 0, 1, 1], [], []>} : vector<16x8xf32>, vector<8x32xf32>, vector<16x32xf32> -> vector<16x32xf32>
    %221 = arith.addf %177, %220 : vector<16x32xf32>
    %222 = arith.addf %13, %221 : vector<16x32xf32>
    %c4 = arith.constant 4 : index
    %c0_188 = arith.constant 0 : index
    %223 = vector.load %arg3[%c4, %c0_188] : memref<18x128xf32, #tpu.memory_space<vmem>>, vector<1x32xf32>
    %224 = vector.broadcast %223 : vector<1x32xf32> to vector<16x32xf32>
    %225 = arith.addf %222, %224 : vector<16x32xf32>
    %c2_189 = arith.constant 2 : index
    %c0_190 = arith.constant 0 : index
    %226 = vector.load %arg3[%c2_189, %c0_190] : memref<18x128xf32, #tpu.memory_space<vmem>>, vector<1x32xf32>
    %c3_191 = arith.constant 3 : index
    %c0_192 = arith.constant 0 : index
    %227 = vector.load %arg3[%c3_191, %c0_192] : memref<18x128xf32, #tpu.memory_space<vmem>>, vector<1x32xf32>
    %cst_193 = arith.constant dense<0.000000e+00> : vector<16xf32>
    %228 = vector.multi_reduction <add>, %225, %cst_193 [1] : vector<16x32xf32> to vector<16xf32>
    %229 = vector.shape_cast %228 : vector<16xf32> to vector<16x1xf32>
    %cst_194 = arith.constant 3.200000e+01 : f32
    %230 = vector.broadcast %cst_194 : f32 to vector<16x1xf32>
    %231 = arith.divf %229, %230 : vector<16x1xf32>
    %232 = vector.broadcast %231 : vector<16x1xf32> to vector<16x32xf32>
    %233 = arith.subf %225, %232 : vector<16x32xf32>
    %234 = arith.mulf %233, %233 : vector<16x32xf32>
    %cst_195 = arith.constant dense<0.000000e+00> : vector<16xf32>
    %235 = vector.multi_reduction <add>, %234, %cst_195 [1] : vector<16x32xf32> to vector<16xf32>
    %236 = vector.shape_cast %235 : vector<16xf32> to vector<16x1xf32>
    %cst_196 = arith.constant 3.200000e+01 : f32
    %237 = vector.broadcast %cst_196 : f32 to vector<16x1xf32>
    %238 = arith.divf %236, %237 : vector<16x1xf32>
    %cst_197 = arith.constant 9.99999974E-6 : f32
    %239 = vector.broadcast %cst_197 : f32 to vector<16x1xf32>
    %240 = arith.addf %238, %239 : vector<16x1xf32>
    %241 = math.rsqrt %240 : vector<16x1xf32>
    %242 = vector.broadcast %241 : vector<16x1xf32> to vector<16x32xf32>
    %243 = arith.mulf %233, %242 : vector<16x32xf32>
    %244 = vector.broadcast %226 : vector<1x32xf32> to vector<16x32xf32>
    %245 = arith.mulf %243, %244 : vector<16x32xf32>
    %246 = vector.broadcast %227 : vector<1x32xf32> to vector<16x32xf32>
    %247 = arith.addf %245, %246 : vector<16x32xf32>
    %c0_198 = arith.constant 0 : index
    %c0_199 = arith.constant 0 : index
    %c0_200 = arith.constant 0 : index
    %248 = vector.load %arg7[%c0_198, %c0_199, %c0_200] : memref<2x32x128xf32, #tpu.memory_space<vmem>>, vector<1x32x128xf32>
    %249 = vector.shape_cast %248 : vector<1x32x128xf32> to vector<32x128xf32>
    %cst_201 = arith.constant dense<0.000000e+00> : vector<16x128xf32>
    %250 = tpu.matmul %247, %249, %cst_201 {dimension_numbers = #tpu.dot_dimension_numbers<[1], [0], [0], [1], [0, 0, 1, 1], [], []>} : vector<16x32xf32>, vector<32x128xf32>, vector<16x128xf32> -> vector<16x128xf32>
    %c6 = arith.constant 6 : index
    %c0_202 = arith.constant 0 : index
    %251 = vector.load %arg3[%c6, %c0_202] : memref<18x128xf32, #tpu.memory_space<vmem>>, vector<1x128xf32>
    %252 = vector.broadcast %251 : vector<1x128xf32> to vector<16x128xf32>
    %253 = arith.addf %250, %252 : vector<16x128xf32>
    %cst_203 = arith.constant 5.000000e-01 : f32
    %254 = vector.broadcast %cst_203 : f32 to vector<16x128xf32>
    %255 = arith.mulf %254, %253 : vector<16x128xf32>
    %cst_204 = arith.constant 4.471500e-02 : f32
    %256 = vector.broadcast %cst_204 : f32 to vector<16x128xf32>
    %257 = arith.mulf %256, %253 : vector<16x128xf32>
    %258 = arith.mulf %257, %253 : vector<16x128xf32>
    %259 = arith.mulf %258, %253 : vector<16x128xf32>
    %260 = arith.addf %253, %259 : vector<16x128xf32>
    %cst_205 = arith.constant 0.797884583 : f32
    %261 = vector.broadcast %cst_205 : f32 to vector<16x128xf32>
    %262 = arith.mulf %261, %260 : vector<16x128xf32>
    %263 = math.tanh %262 : vector<16x128xf32>
    %cst_206 = arith.constant 1.000000e+00 : f32
    %264 = vector.broadcast %cst_206 : f32 to vector<16x128xf32>
    %265 = arith.addf %264, %263 : vector<16x128xf32>
    %266 = arith.mulf %255, %265 : vector<16x128xf32>
    %c0_207 = arith.constant 0 : index
    %c0_208 = arith.constant 0 : index
    %c0_209 = arith.constant 0 : index
    %267 = vector.load %arg8[%c0_207, %c0_208, %c0_209] : memref<2x128x32xf32, #tpu.memory_space<vmem>>, vector<1x128x32xf32>
    %268 = vector.shape_cast %267 : vector<1x128x32xf32> to vector<128x32xf32>
    %cst_210 = arith.constant dense<0.000000e+00> : vector<16x32xf32>
    %269 = tpu.matmul %266, %268, %cst_210 {dimension_numbers = #tpu.dot_dimension_numbers<[1], [0], [0], [1], [0, 0, 1, 1], [], []>} : vector<16x128xf32>, vector<128x32xf32>, vector<16x32xf32> -> vector<16x32xf32>
    %270 = arith.addf %225, %269 : vector<16x32xf32>
    %c5 = arith.constant 5 : index
    %c0_211 = arith.constant 0 : index
    %271 = vector.load %arg3[%c5, %c0_211] : memref<18x128xf32, #tpu.memory_space<vmem>>, vector<1x32xf32>
    %272 = vector.broadcast %271 : vector<1x32xf32> to vector<16x32xf32>
    %273 = arith.addf %270, %272 : vector<16x32xf32>
    %c8 = arith.constant 8 : index
    %c0_212 = arith.constant 0 : index
    %274 = vector.load %arg3[%c8, %c0_212] : memref<18x128xf32, #tpu.memory_space<vmem>>, vector<1x32xf32>
    %c9 = arith.constant 9 : index
    %c0_213 = arith.constant 0 : index
    %275 = vector.load %arg3[%c9, %c0_213] : memref<18x128xf32, #tpu.memory_space<vmem>>, vector<1x32xf32>
    %cst_214 = arith.constant dense<0.000000e+00> : vector<16xf32>
    %276 = vector.multi_reduction <add>, %273, %cst_214 [1] : vector<16x32xf32> to vector<16xf32>
    %277 = vector.shape_cast %276 : vector<16xf32> to vector<16x1xf32>
    %cst_215 = arith.constant 3.200000e+01 : f32
    %278 = vector.broadcast %cst_215 : f32 to vector<16x1xf32>
    %279 = arith.divf %277, %278 : vector<16x1xf32>
    %280 = vector.broadcast %279 : vector<16x1xf32> to vector<16x32xf32>
    %281 = arith.subf %273, %280 : vector<16x32xf32>
    %282 = arith.mulf %281, %281 : vector<16x32xf32>
    %cst_216 = arith.constant dense<0.000000e+00> : vector<16xf32>
    %283 = vector.multi_reduction <add>, %282, %cst_216 [1] : vector<16x32xf32> to vector<16xf32>
    %284 = vector.shape_cast %283 : vector<16xf32> to vector<16x1xf32>
    %cst_217 = arith.constant 3.200000e+01 : f32
    %285 = vector.broadcast %cst_217 : f32 to vector<16x1xf32>
    %286 = arith.divf %284, %285 : vector<16x1xf32>
    %cst_218 = arith.constant 9.99999974E-6 : f32
    %287 = vector.broadcast %cst_218 : f32 to vector<16x1xf32>
    %288 = arith.addf %286, %287 : vector<16x1xf32>
    %289 = math.rsqrt %288 : vector<16x1xf32>
    %290 = vector.broadcast %289 : vector<16x1xf32> to vector<16x32xf32>
    %291 = arith.mulf %281, %290 : vector<16x32xf32>
    %292 = vector.broadcast %274 : vector<1x32xf32> to vector<16x32xf32>
    %293 = arith.mulf %291, %292 : vector<16x32xf32>
    %294 = vector.broadcast %275 : vector<1x32xf32> to vector<16x32xf32>
    %295 = arith.addf %293, %294 : vector<16x32xf32>
    %c1_219 = arith.constant 1 : index
    %c0_220 = arith.constant 0 : index
    %c0_221 = arith.constant 0 : index
    %c0_222 = arith.constant 0 : index
    %c0_223 = arith.constant 0 : index
    %296 = vector.load %arg4[%c1_219, %c0_220, %c0_221, %c0_222, %c0_223] : memref<2x3x4x32x8xf32, #tpu.memory_space<vmem>>, vector<1x1x1x32x8xf32>
    %297 = vector.shape_cast %296 : vector<1x1x1x32x8xf32> to vector<32x8xf32>
    %cst_224 = arith.constant dense<0.000000e+00> : vector<16x8xf32>
    %298 = tpu.matmul %295, %297, %cst_224 {dimension_numbers = #tpu.dot_dimension_numbers<[1], [0], [0], [1], [0, 0, 1, 1], [], []>} : vector<16x32xf32>, vector<32x8xf32>, vector<16x8xf32> -> vector<16x8xf32>
    %c1_225 = arith.constant 1 : index
    %c0_226 = arith.constant 0 : index
    %c0_227 = arith.constant 0 : index
    %c0_228 = arith.constant 0 : index
    %c0_229 = arith.constant 0 : index
    %299 = vector.load %arg5[%c1_225, %c0_226, %c0_227, %c0_228, %c0_229] : memref<2x3x4x1x8xf32, #tpu.memory_space<vmem>>, vector<1x1x1x1x8xf32>
    %300 = vector.shape_cast %299 : vector<1x1x1x1x8xf32> to vector<1x8xf32>
    %301 = vector.broadcast %300 : vector<1x8xf32> to vector<16x8xf32>
    %302 = arith.addf %298, %301 : vector<16x8xf32>
    %c1_230 = arith.constant 1 : index
    %c1_231 = arith.constant 1 : index
    %c0_232 = arith.constant 0 : index
    %c0_233 = arith.constant 0 : index
    %c0_234 = arith.constant 0 : index
    %303 = vector.load %arg4[%c1_230, %c1_231, %c0_232, %c0_233, %c0_234] : memref<2x3x4x32x8xf32, #tpu.memory_space<vmem>>, vector<1x1x1x32x8xf32>
    %304 = vector.shape_cast %303 : vector<1x1x1x32x8xf32> to vector<32x8xf32>
    %cst_235 = arith.constant dense<0.000000e+00> : vector<16x8xf32>
    %305 = tpu.matmul %295, %304, %cst_235 {dimension_numbers = #tpu.dot_dimension_numbers<[1], [0], [0], [1], [0, 0, 1, 1], [], []>} : vector<16x32xf32>, vector<32x8xf32>, vector<16x8xf32> -> vector<16x8xf32>
    %c1_236 = arith.constant 1 : index
    %c1_237 = arith.constant 1 : index
    %c0_238 = arith.constant 0 : index
    %c0_239 = arith.constant 0 : index
    %c0_240 = arith.constant 0 : index
    %306 = vector.load %arg5[%c1_236, %c1_237, %c0_238, %c0_239, %c0_240] : memref<2x3x4x1x8xf32, #tpu.memory_space<vmem>>, vector<1x1x1x1x8xf32>
    %307 = vector.shape_cast %306 : vector<1x1x1x1x8xf32> to vector<1x8xf32>
    %308 = vector.broadcast %307 : vector<1x8xf32> to vector<16x8xf32>
    %309 = arith.addf %305, %308 : vector<16x8xf32>
    %c1_241 = arith.constant 1 : index
    %c2_242 = arith.constant 2 : index
    %c0_243 = arith.constant 0 : index
    %c0_244 = arith.constant 0 : index
    %c0_245 = arith.constant 0 : index
    %310 = vector.load %arg4[%c1_241, %c2_242, %c0_243, %c0_244, %c0_245] : memref<2x3x4x32x8xf32, #tpu.memory_space<vmem>>, vector<1x1x1x32x8xf32>
    %311 = vector.shape_cast %310 : vector<1x1x1x32x8xf32> to vector<32x8xf32>
    %cst_246 = arith.constant dense<0.000000e+00> : vector<16x8xf32>
    %312 = tpu.matmul %295, %311, %cst_246 {dimension_numbers = #tpu.dot_dimension_numbers<[1], [0], [0], [1], [0, 0, 1, 1], [], []>} : vector<16x32xf32>, vector<32x8xf32>, vector<16x8xf32> -> vector<16x8xf32>
    %c1_247 = arith.constant 1 : index
    %c2_248 = arith.constant 2 : index
    %c0_249 = arith.constant 0 : index
    %c0_250 = arith.constant 0 : index
    %c0_251 = arith.constant 0 : index
    %313 = vector.load %arg5[%c1_247, %c2_248, %c0_249, %c0_250, %c0_251] : memref<2x3x4x1x8xf32, #tpu.memory_space<vmem>>, vector<1x1x1x1x8xf32>
    %314 = vector.shape_cast %313 : vector<1x1x1x1x8xf32> to vector<1x8xf32>
    %315 = vector.broadcast %314 : vector<1x8xf32> to vector<16x8xf32>
    %316 = arith.addf %312, %315 : vector<16x8xf32>
    %317 = vector.shape_cast %302 : vector<16x8xf32> to vector<2x8x8xf32>
    %318 = vector.shape_cast %309 : vector<16x8xf32> to vector<2x8x8xf32>
    %319 = vector.shape_cast %316 : vector<16x8xf32> to vector<2x8x8xf32>
    "tpu.trace_start"() <{level = 10 : i32, message = "bqd,bkd->bqk"}> : () -> ()
    %cst_252 = arith.constant dense<0.000000e+00> : vector<2x8x8xf32>
    %320 = tpu.matmul %317, %318, %cst_252 {dimension_numbers = #tpu.dot_dimension_numbers<[2], [2], [1], [1], [0, 0, 0, 1, 1, 1], [0], [0]>} : vector<2x8x8xf32>, vector<2x8x8xf32>, vector<2x8x8xf32> -> vector<2x8x8xf32>
    "tpu.trace_stop"() : () -> ()
    %cst_253 = arith.constant 0.353553385 : f32
    %321 = vector.broadcast %cst_253 : f32 to vector<2x8x8xf32>
    %322 = arith.mulf %320, %321 : vector<2x8x8xf32>
    %323 = arith.addf %322, %24 : vector<2x8x8xf32>
    %cst_254 = arith.constant dense<0xFF800000> : vector<2x8xf32>
    %324 = vector.multi_reduction <maximumf>, %323, %cst_254 [2] : vector<2x8x8xf32> to vector<2x8xf32>
    %325 = vector.shape_cast %324 : vector<2x8xf32> to vector<2x8x1xf32>
    %326 = vector.broadcast %325 : vector<2x8x1xf32> to vector<2x8x8xf32>
    %327 = arith.subf %323, %326 : vector<2x8x8xf32>
    %328 = math.exp %327 : vector<2x8x8xf32>
    %cst_255 = arith.constant dense<0.000000e+00> : vector<2x8xf32>
    %329 = vector.multi_reduction <add>, %328, %cst_255 [2] : vector<2x8x8xf32> to vector<2x8xf32>
    %330 = vector.shape_cast %329 : vector<2x8xf32> to vector<2x8x1xf32>
    %331 = tpu.reciprocal %330 {approx = true} : vector<2x8x1xf32> -> vector<2x8x1xf32>
    %332 = vector.broadcast %331 : vector<2x8x1xf32> to vector<2x8x8xf32>
    %333 = arith.mulf %328, %332 : vector<2x8x8xf32>
    "tpu.trace_start"() <{level = 10 : i32, message = "bqk,bkd->bqd"}> : () -> ()
    %cst_256 = arith.constant dense<0.000000e+00> : vector<2x8x8xf32>
    %334 = tpu.matmul %333, %319, %cst_256 {dimension_numbers = #tpu.dot_dimension_numbers<[2], [1], [1], [2], [0, 0, 0, 1, 1, 2], [0], [0]>} : vector<2x8x8xf32>, vector<2x8x8xf32>, vector<2x8x8xf32> -> vector<2x8x8xf32>
    "tpu.trace_stop"() : () -> ()
    %335 = vector.shape_cast %334 : vector<2x8x8xf32> to vector<16x8xf32>
    %c1_257 = arith.constant 1 : index
    %c0_258 = arith.constant 0 : index
    %c0_259 = arith.constant 0 : index
    %c0_260 = arith.constant 0 : index
    %336 = vector.load %arg6[%c1_257, %c0_258, %c0_259, %c0_260] : memref<2x4x8x32xf32, #tpu.memory_space<vmem>>, vector<1x1x8x32xf32>
    %337 = vector.shape_cast %336 : vector<1x1x8x32xf32> to vector<8x32xf32>
    %cst_261 = arith.constant dense<0.000000e+00> : vector<16x32xf32>
    %338 = tpu.matmul %335, %337, %cst_261 {dimension_numbers = #tpu.dot_dimension_numbers<[1], [0], [0], [1], [0, 0, 1, 1], [], []>} : vector<16x8xf32>, vector<8x32xf32>, vector<16x32xf32> -> vector<16x32xf32>
    %c1_262 = arith.constant 1 : index
    %c0_263 = arith.constant 0 : index
    %c1_264 = arith.constant 1 : index
    %c0_265 = arith.constant 0 : index
    %c0_266 = arith.constant 0 : index
    %339 = vector.load %arg4[%c1_262, %c0_263, %c1_264, %c0_265, %c0_266] : memref<2x3x4x32x8xf32, #tpu.memory_space<vmem>>, vector<1x1x1x32x8xf32>
    %340 = vector.shape_cast %339 : vector<1x1x1x32x8xf32> to vector<32x8xf32>
    %cst_267 = arith.constant dense<0.000000e+00> : vector<16x8xf32>
    %341 = tpu.matmul %295, %340, %cst_267 {dimension_numbers = #tpu.dot_dimension_numbers<[1], [0], [0], [1], [0, 0, 1, 1], [], []>} : vector<16x32xf32>, vector<32x8xf32>, vector<16x8xf32> -> vector<16x8xf32>
    %c1_268 = arith.constant 1 : index
    %c0_269 = arith.constant 0 : index
    %c1_270 = arith.constant 1 : index
    %c0_271 = arith.constant 0 : index
    %c0_272 = arith.constant 0 : index
    %342 = vector.load %arg5[%c1_268, %c0_269, %c1_270, %c0_271, %c0_272] : memref<2x3x4x1x8xf32, #tpu.memory_space<vmem>>, vector<1x1x1x1x8xf32>
    %343 = vector.shape_cast %342 : vector<1x1x1x1x8xf32> to vector<1x8xf32>
    %344 = vector.broadcast %343 : vector<1x8xf32> to vector<16x8xf32>
    %345 = arith.addf %341, %344 : vector<16x8xf32>
    %c1_273 = arith.constant 1 : index
    %c1_274 = arith.constant 1 : index
    %c1_275 = arith.constant 1 : index
    %c0_276 = arith.constant 0 : index
    %c0_277 = arith.constant 0 : index
    %346 = vector.load %arg4[%c1_273, %c1_274, %c1_275, %c0_276, %c0_277] : memref<2x3x4x32x8xf32, #tpu.memory_space<vmem>>, vector<1x1x1x32x8xf32>
    %347 = vector.shape_cast %346 : vector<1x1x1x32x8xf32> to vector<32x8xf32>
    %cst_278 = arith.constant dense<0.000000e+00> : vector<16x8xf32>
    %348 = tpu.matmul %295, %347, %cst_278 {dimension_numbers = #tpu.dot_dimension_numbers<[1], [0], [0], [1], [0, 0, 1, 1], [], []>} : vector<16x32xf32>, vector<32x8xf32>, vector<16x8xf32> -> vector<16x8xf32>
    %c1_279 = arith.constant 1 : index
    %c1_280 = arith.constant 1 : index
    %c1_281 = arith.constant 1 : index
    %c0_282 = arith.constant 0 : index
    %c0_283 = arith.constant 0 : index
    %349 = vector.load %arg5[%c1_279, %c1_280, %c1_281, %c0_282, %c0_283] : memref<2x3x4x1x8xf32, #tpu.memory_space<vmem>>, vector<1x1x1x1x8xf32>
    %350 = vector.shape_cast %349 : vector<1x1x1x1x8xf32> to vector<1x8xf32>
    %351 = vector.broadcast %350 : vector<1x8xf32> to vector<16x8xf32>
    %352 = arith.addf %348, %351 : vector<16x8xf32>
    %c1_284 = arith.constant 1 : index
    %c2_285 = arith.constant 2 : index
    %c1_286 = arith.constant 1 : index
    %c0_287 = arith.constant 0 : index
    %c0_288 = arith.constant 0 : index
    %353 = vector.load %arg4[%c1_284, %c2_285, %c1_286, %c0_287, %c0_288] : memref<2x3x4x32x8xf32, #tpu.memory_space<vmem>>, vector<1x1x1x32x8xf32>
    %354 = vector.shape_cast %353 : vector<1x1x1x32x8xf32> to vector<32x8xf32>
    %cst_289 = arith.constant dense<0.000000e+00> : vector<16x8xf32>
    %355 = tpu.matmul %295, %354, %cst_289 {dimension_numbers = #tpu.dot_dimension_numbers<[1], [0], [0], [1], [0, 0, 1, 1], [], []>} : vector<16x32xf32>, vector<32x8xf32>, vector<16x8xf32> -> vector<16x8xf32>
    %c1_290 = arith.constant 1 : index
    %c2_291 = arith.constant 2 : index
    %c1_292 = arith.constant 1 : index
    %c0_293 = arith.constant 0 : index
    %c0_294 = arith.constant 0 : index
    %356 = vector.load %arg5[%c1_290, %c2_291, %c1_292, %c0_293, %c0_294] : memref<2x3x4x1x8xf32, #tpu.memory_space<vmem>>, vector<1x1x1x1x8xf32>
    %357 = vector.shape_cast %356 : vector<1x1x1x1x8xf32> to vector<1x8xf32>
    %358 = vector.broadcast %357 : vector<1x8xf32> to vector<16x8xf32>
    %359 = arith.addf %355, %358 : vector<16x8xf32>
    %360 = vector.shape_cast %345 : vector<16x8xf32> to vector<2x8x8xf32>
    %361 = vector.shape_cast %352 : vector<16x8xf32> to vector<2x8x8xf32>
    %362 = vector.shape_cast %359 : vector<16x8xf32> to vector<2x8x8xf32>
    "tpu.trace_start"() <{level = 10 : i32, message = "bqd,bkd->bqk"}> : () -> ()
    %cst_295 = arith.constant dense<0.000000e+00> : vector<2x8x8xf32>
    %363 = tpu.matmul %360, %361, %cst_295 {dimension_numbers = #tpu.dot_dimension_numbers<[2], [2], [1], [1], [0, 0, 0, 1, 1, 1], [0], [0]>} : vector<2x8x8xf32>, vector<2x8x8xf32>, vector<2x8x8xf32> -> vector<2x8x8xf32>
    "tpu.trace_stop"() : () -> ()
    %cst_296 = arith.constant 0.353553385 : f32
    %364 = vector.broadcast %cst_296 : f32 to vector<2x8x8xf32>
    %365 = arith.mulf %363, %364 : vector<2x8x8xf32>
    %366 = arith.addf %365, %24 : vector<2x8x8xf32>
    %cst_297 = arith.constant dense<0xFF800000> : vector<2x8xf32>
    %367 = vector.multi_reduction <maximumf>, %366, %cst_297 [2] : vector<2x8x8xf32> to vector<2x8xf32>
    %368 = vector.shape_cast %367 : vector<2x8xf32> to vector<2x8x1xf32>
    %369 = vector.broadcast %368 : vector<2x8x1xf32> to vector<2x8x8xf32>
    %370 = arith.subf %366, %369 : vector<2x8x8xf32>
    %371 = math.exp %370 : vector<2x8x8xf32>
    %cst_298 = arith.constant dense<0.000000e+00> : vector<2x8xf32>
    %372 = vector.multi_reduction <add>, %371, %cst_298 [2] : vector<2x8x8xf32> to vector<2x8xf32>
    %373 = vector.shape_cast %372 : vector<2x8xf32> to vector<2x8x1xf32>
    %374 = tpu.reciprocal %373 {approx = true} : vector<2x8x1xf32> -> vector<2x8x1xf32>
    %375 = vector.broadcast %374 : vector<2x8x1xf32> to vector<2x8x8xf32>
    %376 = arith.mulf %371, %375 : vector<2x8x8xf32>
    "tpu.trace_start"() <{level = 10 : i32, message = "bqk,bkd->bqd"}> : () -> ()
    %cst_299 = arith.constant dense<0.000000e+00> : vector<2x8x8xf32>
    %377 = tpu.matmul %376, %362, %cst_299 {dimension_numbers = #tpu.dot_dimension_numbers<[2], [1], [1], [2], [0, 0, 0, 1, 1, 2], [0], [0]>} : vector<2x8x8xf32>, vector<2x8x8xf32>, vector<2x8x8xf32> -> vector<2x8x8xf32>
    "tpu.trace_stop"() : () -> ()
    %378 = vector.shape_cast %377 : vector<2x8x8xf32> to vector<16x8xf32>
    %c1_300 = arith.constant 1 : index
    %c1_301 = arith.constant 1 : index
    %c0_302 = arith.constant 0 : index
    %c0_303 = arith.constant 0 : index
    %379 = vector.load %arg6[%c1_300, %c1_301, %c0_302, %c0_303] : memref<2x4x8x32xf32, #tpu.memory_space<vmem>>, vector<1x1x8x32xf32>
    %380 = vector.shape_cast %379 : vector<1x1x8x32xf32> to vector<8x32xf32>
    %cst_304 = arith.constant dense<0.000000e+00> : vector<16x32xf32>
    %381 = tpu.matmul %378, %380, %cst_304 {dimension_numbers = #tpu.dot_dimension_numbers<[1], [0], [0], [1], [0, 0, 1, 1], [], []>} : vector<16x8xf32>, vector<8x32xf32>, vector<16x32xf32> -> vector<16x32xf32>
    %382 = arith.addf %338, %381 : vector<16x32xf32>
    %c1_305 = arith.constant 1 : index
    %c0_306 = arith.constant 0 : index
    %c2_307 = arith.constant 2 : index
    %c0_308 = arith.constant 0 : index
    %c0_309 = arith.constant 0 : index
    %383 = vector.load %arg4[%c1_305, %c0_306, %c2_307, %c0_308, %c0_309] : memref<2x3x4x32x8xf32, #tpu.memory_space<vmem>>, vector<1x1x1x32x8xf32>
    %384 = vector.shape_cast %383 : vector<1x1x1x32x8xf32> to vector<32x8xf32>
    %cst_310 = arith.constant dense<0.000000e+00> : vector<16x8xf32>
    %385 = tpu.matmul %295, %384, %cst_310 {dimension_numbers = #tpu.dot_dimension_numbers<[1], [0], [0], [1], [0, 0, 1, 1], [], []>} : vector<16x32xf32>, vector<32x8xf32>, vector<16x8xf32> -> vector<16x8xf32>
    %c1_311 = arith.constant 1 : index
    %c0_312 = arith.constant 0 : index
    %c2_313 = arith.constant 2 : index
    %c0_314 = arith.constant 0 : index
    %c0_315 = arith.constant 0 : index
    %386 = vector.load %arg5[%c1_311, %c0_312, %c2_313, %c0_314, %c0_315] : memref<2x3x4x1x8xf32, #tpu.memory_space<vmem>>, vector<1x1x1x1x8xf32>
    %387 = vector.shape_cast %386 : vector<1x1x1x1x8xf32> to vector<1x8xf32>
    %388 = vector.broadcast %387 : vector<1x8xf32> to vector<16x8xf32>
    %389 = arith.addf %385, %388 : vector<16x8xf32>
    %c1_316 = arith.constant 1 : index
    %c1_317 = arith.constant 1 : index
    %c2_318 = arith.constant 2 : index
    %c0_319 = arith.constant 0 : index
    %c0_320 = arith.constant 0 : index
    %390 = vector.load %arg4[%c1_316, %c1_317, %c2_318, %c0_319, %c0_320] : memref<2x3x4x32x8xf32, #tpu.memory_space<vmem>>, vector<1x1x1x32x8xf32>
    %391 = vector.shape_cast %390 : vector<1x1x1x32x8xf32> to vector<32x8xf32>
    %cst_321 = arith.constant dense<0.000000e+00> : vector<16x8xf32>
    %392 = tpu.matmul %295, %391, %cst_321 {dimension_numbers = #tpu.dot_dimension_numbers<[1], [0], [0], [1], [0, 0, 1, 1], [], []>} : vector<16x32xf32>, vector<32x8xf32>, vector<16x8xf32> -> vector<16x8xf32>
    %c1_322 = arith.constant 1 : index
    %c1_323 = arith.constant 1 : index
    %c2_324 = arith.constant 2 : index
    %c0_325 = arith.constant 0 : index
    %c0_326 = arith.constant 0 : index
    %393 = vector.load %arg5[%c1_322, %c1_323, %c2_324, %c0_325, %c0_326] : memref<2x3x4x1x8xf32, #tpu.memory_space<vmem>>, vector<1x1x1x1x8xf32>
    %394 = vector.shape_cast %393 : vector<1x1x1x1x8xf32> to vector<1x8xf32>
    %395 = vector.broadcast %394 : vector<1x8xf32> to vector<16x8xf32>
    %396 = arith.addf %392, %395 : vector<16x8xf32>
    %c1_327 = arith.constant 1 : index
    %c2_328 = arith.constant 2 : index
    %c2_329 = arith.constant 2 : index
    %c0_330 = arith.constant 0 : index
    %c0_331 = arith.constant 0 : index
    %397 = vector.load %arg4[%c1_327, %c2_328, %c2_329, %c0_330, %c0_331] : memref<2x3x4x32x8xf32, #tpu.memory_space<vmem>>, vector<1x1x1x32x8xf32>
    %398 = vector.shape_cast %397 : vector<1x1x1x32x8xf32> to vector<32x8xf32>
    %cst_332 = arith.constant dense<0.000000e+00> : vector<16x8xf32>
    %399 = tpu.matmul %295, %398, %cst_332 {dimension_numbers = #tpu.dot_dimension_numbers<[1], [0], [0], [1], [0, 0, 1, 1], [], []>} : vector<16x32xf32>, vector<32x8xf32>, vector<16x8xf32> -> vector<16x8xf32>
    %c1_333 = arith.constant 1 : index
    %c2_334 = arith.constant 2 : index
    %c2_335 = arith.constant 2 : index
    %c0_336 = arith.constant 0 : index
    %c0_337 = arith.constant 0 : index
    %400 = vector.load %arg5[%c1_333, %c2_334, %c2_335, %c0_336, %c0_337] : memref<2x3x4x1x8xf32, #tpu.memory_space<vmem>>, vector<1x1x1x1x8xf32>
    %401 = vector.shape_cast %400 : vector<1x1x1x1x8xf32> to vector<1x8xf32>
    %402 = vector.broadcast %401 : vector<1x8xf32> to vector<16x8xf32>
    %403 = arith.addf %399, %402 : vector<16x8xf32>
    %404 = vector.shape_cast %389 : vector<16x8xf32> to vector<2x8x8xf32>
    %405 = vector.shape_cast %396 : vector<16x8xf32> to vector<2x8x8xf32>
    %406 = vector.shape_cast %403 : vector<16x8xf32> to vector<2x8x8xf32>
    "tpu.trace_start"() <{level = 10 : i32, message = "bqd,bkd->bqk"}> : () -> ()
    %cst_338 = arith.constant dense<0.000000e+00> : vector<2x8x8xf32>
    %407 = tpu.matmul %404, %405, %cst_338 {dimension_numbers = #tpu.dot_dimension_numbers<[2], [2], [1], [1], [0, 0, 0, 1, 1, 1], [0], [0]>} : vector<2x8x8xf32>, vector<2x8x8xf32>, vector<2x8x8xf32> -> vector<2x8x8xf32>
    "tpu.trace_stop"() : () -> ()
    %cst_339 = arith.constant 0.353553385 : f32
    %408 = vector.broadcast %cst_339 : f32 to vector<2x8x8xf32>
    %409 = arith.mulf %407, %408 : vector<2x8x8xf32>
    %410 = arith.addf %409, %24 : vector<2x8x8xf32>
    %cst_340 = arith.constant dense<0xFF800000> : vector<2x8xf32>
    %411 = vector.multi_reduction <maximumf>, %410, %cst_340 [2] : vector<2x8x8xf32> to vector<2x8xf32>
    %412 = vector.shape_cast %411 : vector<2x8xf32> to vector<2x8x1xf32>
    %413 = vector.broadcast %412 : vector<2x8x1xf32> to vector<2x8x8xf32>
    %414 = arith.subf %410, %413 : vector<2x8x8xf32>
    %415 = math.exp %414 : vector<2x8x8xf32>
    %cst_341 = arith.constant dense<0.000000e+00> : vector<2x8xf32>
    %416 = vector.multi_reduction <add>, %415, %cst_341 [2] : vector<2x8x8xf32> to vector<2x8xf32>
    %417 = vector.shape_cast %416 : vector<2x8xf32> to vector<2x8x1xf32>
    %418 = tpu.reciprocal %417 {approx = true} : vector<2x8x1xf32> -> vector<2x8x1xf32>
    %419 = vector.broadcast %418 : vector<2x8x1xf32> to vector<2x8x8xf32>
    %420 = arith.mulf %415, %419 : vector<2x8x8xf32>
    "tpu.trace_start"() <{level = 10 : i32, message = "bqk,bkd->bqd"}> : () -> ()
    %cst_342 = arith.constant dense<0.000000e+00> : vector<2x8x8xf32>
    %421 = tpu.matmul %420, %406, %cst_342 {dimension_numbers = #tpu.dot_dimension_numbers<[2], [1], [1], [2], [0, 0, 0, 1, 1, 2], [0], [0]>} : vector<2x8x8xf32>, vector<2x8x8xf32>, vector<2x8x8xf32> -> vector<2x8x8xf32>
    "tpu.trace_stop"() : () -> ()
    %422 = vector.shape_cast %421 : vector<2x8x8xf32> to vector<16x8xf32>
    %c1_343 = arith.constant 1 : index
    %c2_344 = arith.constant 2 : index
    %c0_345 = arith.constant 0 : index
    %c0_346 = arith.constant 0 : index
    %423 = vector.load %arg6[%c1_343, %c2_344, %c0_345, %c0_346] : memref<2x4x8x32xf32, #tpu.memory_space<vmem>>, vector<1x1x8x32xf32>
    %424 = vector.shape_cast %423 : vector<1x1x8x32xf32> to vector<8x32xf32>
    %cst_347 = arith.constant dense<0.000000e+00> : vector<16x32xf32>
    %425 = tpu.matmul %422, %424, %cst_347 {dimension_numbers = #tpu.dot_dimension_numbers<[1], [0], [0], [1], [0, 0, 1, 1], [], []>} : vector<16x8xf32>, vector<8x32xf32>, vector<16x32xf32> -> vector<16x32xf32>
    %426 = arith.addf %382, %425 : vector<16x32xf32>
    %c1_348 = arith.constant 1 : index
    %c0_349 = arith.constant 0 : index
    %c3_350 = arith.constant 3 : index
    %c0_351 = arith.constant 0 : index
    %c0_352 = arith.constant 0 : index
    %427 = vector.load %arg4[%c1_348, %c0_349, %c3_350, %c0_351, %c0_352] : memref<2x3x4x32x8xf32, #tpu.memory_space<vmem>>, vector<1x1x1x32x8xf32>
    %428 = vector.shape_cast %427 : vector<1x1x1x32x8xf32> to vector<32x8xf32>
    %cst_353 = arith.constant dense<0.000000e+00> : vector<16x8xf32>
    %429 = tpu.matmul %295, %428, %cst_353 {dimension_numbers = #tpu.dot_dimension_numbers<[1], [0], [0], [1], [0, 0, 1, 1], [], []>} : vector<16x32xf32>, vector<32x8xf32>, vector<16x8xf32> -> vector<16x8xf32>
    %c1_354 = arith.constant 1 : index
    %c0_355 = arith.constant 0 : index
    %c3_356 = arith.constant 3 : index
    %c0_357 = arith.constant 0 : index
    %c0_358 = arith.constant 0 : index
    %430 = vector.load %arg5[%c1_354, %c0_355, %c3_356, %c0_357, %c0_358] : memref<2x3x4x1x8xf32, #tpu.memory_space<vmem>>, vector<1x1x1x1x8xf32>
    %431 = vector.shape_cast %430 : vector<1x1x1x1x8xf32> to vector<1x8xf32>
    %432 = vector.broadcast %431 : vector<1x8xf32> to vector<16x8xf32>
    %433 = arith.addf %429, %432 : vector<16x8xf32>
    %c1_359 = arith.constant 1 : index
    %c1_360 = arith.constant 1 : index
    %c3_361 = arith.constant 3 : index
    %c0_362 = arith.constant 0 : index
    %c0_363 = arith.constant 0 : index
    %434 = vector.load %arg4[%c1_359, %c1_360, %c3_361, %c0_362, %c0_363] : memref<2x3x4x32x8xf32, #tpu.memory_space<vmem>>, vector<1x1x1x32x8xf32>
    %435 = vector.shape_cast %434 : vector<1x1x1x32x8xf32> to vector<32x8xf32>
    %cst_364 = arith.constant dense<0.000000e+00> : vector<16x8xf32>
    %436 = tpu.matmul %295, %435, %cst_364 {dimension_numbers = #tpu.dot_dimension_numbers<[1], [0], [0], [1], [0, 0, 1, 1], [], []>} : vector<16x32xf32>, vector<32x8xf32>, vector<16x8xf32> -> vector<16x8xf32>
    %c1_365 = arith.constant 1 : index
    %c1_366 = arith.constant 1 : index
    %c3_367 = arith.constant 3 : index
    %c0_368 = arith.constant 0 : index
    %c0_369 = arith.constant 0 : index
    %437 = vector.load %arg5[%c1_365, %c1_366, %c3_367, %c0_368, %c0_369] : memref<2x3x4x1x8xf32, #tpu.memory_space<vmem>>, vector<1x1x1x1x8xf32>
    %438 = vector.shape_cast %437 : vector<1x1x1x1x8xf32> to vector<1x8xf32>
    %439 = vector.broadcast %438 : vector<1x8xf32> to vector<16x8xf32>
    %440 = arith.addf %436, %439 : vector<16x8xf32>
    %c1_370 = arith.constant 1 : index
    %c2_371 = arith.constant 2 : index
    %c3_372 = arith.constant 3 : index
    %c0_373 = arith.constant 0 : index
    %c0_374 = arith.constant 0 : index
    %441 = vector.load %arg4[%c1_370, %c2_371, %c3_372, %c0_373, %c0_374] : memref<2x3x4x32x8xf32, #tpu.memory_space<vmem>>, vector<1x1x1x32x8xf32>
    %442 = vector.shape_cast %441 : vector<1x1x1x32x8xf32> to vector<32x8xf32>
    %cst_375 = arith.constant dense<0.000000e+00> : vector<16x8xf32>
    %443 = tpu.matmul %295, %442, %cst_375 {dimension_numbers = #tpu.dot_dimension_numbers<[1], [0], [0], [1], [0, 0, 1, 1], [], []>} : vector<16x32xf32>, vector<32x8xf32>, vector<16x8xf32> -> vector<16x8xf32>
    %c1_376 = arith.constant 1 : index
    %c2_377 = arith.constant 2 : index
    %c3_378 = arith.constant 3 : index
    %c0_379 = arith.constant 0 : index
    %c0_380 = arith.constant 0 : index
    %444 = vector.load %arg5[%c1_376, %c2_377, %c3_378, %c0_379, %c0_380] : memref<2x3x4x1x8xf32, #tpu.memory_space<vmem>>, vector<1x1x1x1x8xf32>
    %445 = vector.shape_cast %444 : vector<1x1x1x1x8xf32> to vector<1x8xf32>
    %446 = vector.broadcast %445 : vector<1x8xf32> to vector<16x8xf32>
    %447 = arith.addf %443, %446 : vector<16x8xf32>
    %448 = vector.shape_cast %433 : vector<16x8xf32> to vector<2x8x8xf32>
    %449 = vector.shape_cast %440 : vector<16x8xf32> to vector<2x8x8xf32>
    %450 = vector.shape_cast %447 : vector<16x8xf32> to vector<2x8x8xf32>
    "tpu.trace_start"() <{level = 10 : i32, message = "bqd,bkd->bqk"}> : () -> ()
    %cst_381 = arith.constant dense<0.000000e+00> : vector<2x8x8xf32>
    %451 = tpu.matmul %448, %449, %cst_381 {dimension_numbers = #tpu.dot_dimension_numbers<[2], [2], [1], [1], [0, 0, 0, 1, 1, 1], [0], [0]>} : vector<2x8x8xf32>, vector<2x8x8xf32>, vector<2x8x8xf32> -> vector<2x8x8xf32>
    "tpu.trace_stop"() : () -> ()
    %cst_382 = arith.constant 0.353553385 : f32
    %452 = vector.broadcast %cst_382 : f32 to vector<2x8x8xf32>
    %453 = arith.mulf %451, %452 : vector<2x8x8xf32>
    %454 = arith.addf %453, %24 : vector<2x8x8xf32>
    %cst_383 = arith.constant dense<0xFF800000> : vector<2x8xf32>
    %455 = vector.multi_reduction <maximumf>, %454, %cst_383 [2] : vector<2x8x8xf32> to vector<2x8xf32>
    %456 = vector.shape_cast %455 : vector<2x8xf32> to vector<2x8x1xf32>
    %457 = vector.broadcast %456 : vector<2x8x1xf32> to vector<2x8x8xf32>
    %458 = arith.subf %454, %457 : vector<2x8x8xf32>
    %459 = math.exp %458 : vector<2x8x8xf32>
    %cst_384 = arith.constant dense<0.000000e+00> : vector<2x8xf32>
    %460 = vector.multi_reduction <add>, %459, %cst_384 [2] : vector<2x8x8xf32> to vector<2x8xf32>
    %461 = vector.shape_cast %460 : vector<2x8xf32> to vector<2x8x1xf32>
    %462 = tpu.reciprocal %461 {approx = true} : vector<2x8x1xf32> -> vector<2x8x1xf32>
    %463 = vector.broadcast %462 : vector<2x8x1xf32> to vector<2x8x8xf32>
    %464 = arith.mulf %459, %463 : vector<2x8x8xf32>
    "tpu.trace_start"() <{level = 10 : i32, message = "bqk,bkd->bqd"}> : () -> ()
    %cst_385 = arith.constant dense<0.000000e+00> : vector<2x8x8xf32>
    %465 = tpu.matmul %464, %450, %cst_385 {dimension_numbers = #tpu.dot_dimension_numbers<[2], [1], [1], [2], [0, 0, 0, 1, 1, 2], [0], [0]>} : vector<2x8x8xf32>, vector<2x8x8xf32>, vector<2x8x8xf32> -> vector<2x8x8xf32>
    "tpu.trace_stop"() : () -> ()
    %466 = vector.shape_cast %465 : vector<2x8x8xf32> to vector<16x8xf32>
    %c1_386 = arith.constant 1 : index
    %c3_387 = arith.constant 3 : index
    %c0_388 = arith.constant 0 : index
    %c0_389 = arith.constant 0 : index
    %467 = vector.load %arg6[%c1_386, %c3_387, %c0_388, %c0_389] : memref<2x4x8x32xf32, #tpu.memory_space<vmem>>, vector<1x1x8x32xf32>
    %468 = vector.shape_cast %467 : vector<1x1x8x32xf32> to vector<8x32xf32>
    %cst_390 = arith.constant dense<0.000000e+00> : vector<16x32xf32>
    %469 = tpu.matmul %466, %468, %cst_390 {dimension_numbers = #tpu.dot_dimension_numbers<[1], [0], [0], [1], [0, 0, 1, 1], [], []>} : vector<16x8xf32>, vector<8x32xf32>, vector<16x32xf32> -> vector<16x32xf32>
    %470 = arith.addf %426, %469 : vector<16x32xf32>
    %471 = arith.addf %273, %470 : vector<16x32xf32>
    %c12 = arith.constant 12 : index
    %c0_391 = arith.constant 0 : index
    %472 = vector.load %arg3[%c12, %c0_391] : memref<18x128xf32, #tpu.memory_space<vmem>>, vector<1x32xf32>
    %473 = vector.broadcast %472 : vector<1x32xf32> to vector<16x32xf32>
    %474 = arith.addf %471, %473 : vector<16x32xf32>
    %c10 = arith.constant 10 : index
    %c0_392 = arith.constant 0 : index
    %475 = vector.load %arg3[%c10, %c0_392] : memref<18x128xf32, #tpu.memory_space<vmem>>, vector<1x32xf32>
    %c11 = arith.constant 11 : index
    %c0_393 = arith.constant 0 : index
    %476 = vector.load %arg3[%c11, %c0_393] : memref<18x128xf32, #tpu.memory_space<vmem>>, vector<1x32xf32>
    %cst_394 = arith.constant dense<0.000000e+00> : vector<16xf32>
    %477 = vector.multi_reduction <add>, %474, %cst_394 [1] : vector<16x32xf32> to vector<16xf32>
    %478 = vector.shape_cast %477 : vector<16xf32> to vector<16x1xf32>
    %cst_395 = arith.constant 3.200000e+01 : f32
    %479 = vector.broadcast %cst_395 : f32 to vector<16x1xf32>
    %480 = arith.divf %478, %479 : vector<16x1xf32>
    %481 = vector.broadcast %480 : vector<16x1xf32> to vector<16x32xf32>
    %482 = arith.subf %474, %481 : vector<16x32xf32>
    %483 = arith.mulf %482, %482 : vector<16x32xf32>
    %cst_396 = arith.constant dense<0.000000e+00> : vector<16xf32>
    %484 = vector.multi_reduction <add>, %483, %cst_396 [1] : vector<16x32xf32> to vector<16xf32>
    %485 = vector.shape_cast %484 : vector<16xf32> to vector<16x1xf32>
    %cst_397 = arith.constant 3.200000e+01 : f32
    %486 = vector.broadcast %cst_397 : f32 to vector<16x1xf32>
    %487 = arith.divf %485, %486 : vector<16x1xf32>
    %cst_398 = arith.constant 9.99999974E-6 : f32
    %488 = vector.broadcast %cst_398 : f32 to vector<16x1xf32>
    %489 = arith.addf %487, %488 : vector<16x1xf32>
    %490 = math.rsqrt %489 : vector<16x1xf32>
    %491 = vector.broadcast %490 : vector<16x1xf32> to vector<16x32xf32>
    %492 = arith.mulf %482, %491 : vector<16x32xf32>
    %493 = vector.broadcast %475 : vector<1x32xf32> to vector<16x32xf32>
    %494 = arith.mulf %492, %493 : vector<16x32xf32>
    %495 = vector.broadcast %476 : vector<1x32xf32> to vector<16x32xf32>
    %496 = arith.addf %494, %495 : vector<16x32xf32>
    %c1_399 = arith.constant 1 : index
    %c0_400 = arith.constant 0 : index
    %c0_401 = arith.constant 0 : index
    %497 = vector.load %arg7[%c1_399, %c0_400, %c0_401] : memref<2x32x128xf32, #tpu.memory_space<vmem>>, vector<1x32x128xf32>
    %498 = vector.shape_cast %497 : vector<1x32x128xf32> to vector<32x128xf32>
    %cst_402 = arith.constant dense<0.000000e+00> : vector<16x128xf32>
    %499 = tpu.matmul %496, %498, %cst_402 {dimension_numbers = #tpu.dot_dimension_numbers<[1], [0], [0], [1], [0, 0, 1, 1], [], []>} : vector<16x32xf32>, vector<32x128xf32>, vector<16x128xf32> -> vector<16x128xf32>
    %c14 = arith.constant 14 : index
    %c0_403 = arith.constant 0 : index
    %500 = vector.load %arg3[%c14, %c0_403] : memref<18x128xf32, #tpu.memory_space<vmem>>, vector<1x128xf32>
    %501 = vector.broadcast %500 : vector<1x128xf32> to vector<16x128xf32>
    %502 = arith.addf %499, %501 : vector<16x128xf32>
    %cst_404 = arith.constant 5.000000e-01 : f32
    %503 = vector.broadcast %cst_404 : f32 to vector<16x128xf32>
    %504 = arith.mulf %503, %502 : vector<16x128xf32>
    %cst_405 = arith.constant 4.471500e-02 : f32
    %505 = vector.broadcast %cst_405 : f32 to vector<16x128xf32>
    %506 = arith.mulf %505, %502 : vector<16x128xf32>
    %507 = arith.mulf %506, %502 : vector<16x128xf32>
    %508 = arith.mulf %507, %502 : vector<16x128xf32>
    %509 = arith.addf %502, %508 : vector<16x128xf32>
    %cst_406 = arith.constant 0.797884583 : f32
    %510 = vector.broadcast %cst_406 : f32 to vector<16x128xf32>
    %511 = arith.mulf %510, %509 : vector<16x128xf32>
    %512 = math.tanh %511 : vector<16x128xf32>
    %cst_407 = arith.constant 1.000000e+00 : f32
    %513 = vector.broadcast %cst_407 : f32 to vector<16x128xf32>
    %514 = arith.addf %513, %512 : vector<16x128xf32>
    %515 = arith.mulf %504, %514 : vector<16x128xf32>
    %c1_408 = arith.constant 1 : index
    %c0_409 = arith.constant 0 : index
    %c0_410 = arith.constant 0 : index
    %516 = vector.load %arg8[%c1_408, %c0_409, %c0_410] : memref<2x128x32xf32, #tpu.memory_space<vmem>>, vector<1x128x32xf32>
    %517 = vector.shape_cast %516 : vector<1x128x32xf32> to vector<128x32xf32>
    %cst_411 = arith.constant dense<0.000000e+00> : vector<16x32xf32>
    %518 = tpu.matmul %515, %517, %cst_411 {dimension_numbers = #tpu.dot_dimension_numbers<[1], [0], [0], [1], [0, 0, 1, 1], [], []>} : vector<16x128xf32>, vector<128x32xf32>, vector<16x32xf32> -> vector<16x32xf32>
    %519 = arith.addf %474, %518 : vector<16x32xf32>
    %c13 = arith.constant 13 : index
    %c0_412 = arith.constant 0 : index
    %520 = vector.load %arg3[%c13, %c0_412] : memref<18x128xf32, #tpu.memory_space<vmem>>, vector<1x32xf32>
    %521 = vector.broadcast %520 : vector<1x32xf32> to vector<16x32xf32>
    %522 = arith.addf %519, %521 : vector<16x32xf32>
    %c16 = arith.constant 16 : index
    %c0_413 = arith.constant 0 : index
    %523 = vector.load %arg3[%c16, %c0_413] : memref<18x128xf32, #tpu.memory_space<vmem>>, vector<1x32xf32>
    %c17 = arith.constant 17 : index
    %c0_414 = arith.constant 0 : index
    %524 = vector.load %arg3[%c17, %c0_414] : memref<18x128xf32, #tpu.memory_space<vmem>>, vector<1x32xf32>
    %cst_415 = arith.constant dense<0.000000e+00> : vector<16xf32>
    %525 = vector.multi_reduction <add>, %522, %cst_415 [1] : vector<16x32xf32> to vector<16xf32>
    %526 = vector.shape_cast %525 : vector<16xf32> to vector<16x1xf32>
    %cst_416 = arith.constant 3.200000e+01 : f32
    %527 = vector.broadcast %cst_416 : f32 to vector<16x1xf32>
    %528 = arith.divf %526, %527 : vector<16x1xf32>
    %529 = vector.broadcast %528 : vector<16x1xf32> to vector<16x32xf32>
    %530 = arith.subf %522, %529 : vector<16x32xf32>
    %531 = arith.mulf %530, %530 : vector<16x32xf32>
    %cst_417 = arith.constant dense<0.000000e+00> : vector<16xf32>
    %532 = vector.multi_reduction <add>, %531, %cst_417 [1] : vector<16x32xf32> to vector<16xf32>
    %533 = vector.shape_cast %532 : vector<16xf32> to vector<16x1xf32>
    %cst_418 = arith.constant 3.200000e+01 : f32
    %534 = vector.broadcast %cst_418 : f32 to vector<16x1xf32>
    %535 = arith.divf %533, %534 : vector<16x1xf32>
    %cst_419 = arith.constant 9.99999974E-6 : f32
    %536 = vector.broadcast %cst_419 : f32 to vector<16x1xf32>
    %537 = arith.addf %535, %536 : vector<16x1xf32>
    %538 = math.rsqrt %537 : vector<16x1xf32>
    %539 = vector.broadcast %538 : vector<16x1xf32> to vector<16x32xf32>
    %540 = arith.mulf %530, %539 : vector<16x32xf32>
    %541 = vector.broadcast %523 : vector<1x32xf32> to vector<16x32xf32>
    %542 = arith.mulf %540, %541 : vector<16x32xf32>
    %543 = vector.broadcast %524 : vector<1x32xf32> to vector<16x32xf32>
    %544 = arith.addf %542, %543 : vector<16x32xf32>
    %c0_420 = arith.constant 0 : index
    %c0_421 = arith.constant 0 : index
    %545 = vector.load %arg9[%c0_420, %c0_421] : memref<32x128xf32, #tpu.memory_space<vmem>>, vector<32x128xf32>
    %cst_422 = arith.constant dense<0.000000e+00> : vector<16x128xf32>
    %546 = tpu.matmul %544, %545, %cst_422 {dimension_numbers = #tpu.dot_dimension_numbers<[1], [0], [0], [1], [0, 0, 1, 1], [], []>} : vector<16x32xf32>, vector<32x128xf32>, vector<16x128xf32> -> vector<16x128xf32>
    %c0_423 = arith.constant 0 : index
    %c0_424 = arith.constant 0 : index
    %547 = vector.load %arg10[%c0_423, %c0_424] : memref<16x128xf32, #tpu.memory_space<vmem>>, vector<16x128xf32>
    tpu.vector_store %arg10[%c0_423, %c0_424], %546 {strides = array<i32>} : memref<16x128xf32, #tpu.memory_space<vmem>>, vector<16x128xf32>,
    return
  }
}

</mosaic_0001>

<llo_original>
// kernel: gpt2_decoder_forward.1
$region0: #{gpt2_decoder_forward.1}
  #allocation0 [shape = 'u32[]', space=smem, size = 0x4, offset = 0x4, fixed_abs, tag = 'smem constant byte address 0x4 - core index']
  #allocation1 [shape = 'u32[144,128]{1,0:T(1,128)}', space=vmem, size = 0x12000, scoped, tag = 'internal scratch']
  %s0 = inlined_call_operand.vmem [shape: s32[2,8,1], index: 0, kind: input, shape index: {}]
  %s1 = inlined_call_operand.vmem [shape: f32[2,1,8], index: 1, kind: input, shape index: {}]
  %s2 = inlined_call_operand.vmem [shape: f32[80,32], index: 2, kind: input, shape index: {}]
  %s3 = inlined_call_operand.vmem [shape: f32[18,128], index: 3, kind: input, shape index: {}]
  %s4 = inlined_call_operand.vmem [shape: f32[2,3,4,32,8], index: 4, kind: input, shape index: {}]
  %s5 = inlined_call_operand.vmem [shape: f32[2,3,4,1,8], index: 5, kind: input, shape index: {}]
  %s6 = inlined_call_operand.vmem [shape: f32[2,4,8,32], index: 6, kind: input, shape index: {}]
  %s7 = inlined_call_operand.vmem [shape: f32[2,32,128], index: 7, kind: input, shape index: {}]
  %s8 = inlined_call_operand.vmem [shape: f32[2,128,32], index: 8, kind: input, shape index: {}]
  %s9 = inlined_call_operand.vmem [shape: f32[32,128], index: 9, kind: input, shape index: {}]
  %s10 = inlined_call_operand.vmem [shape: f32[16,128], index: 10, kind: output, shape index: {}]
  %s11 = sld [smem:[#allocation0]]
  $region50: #{gpt2_decoder_forward.1} parent=0
    _
  %s13 = ssub.s32 1, %s11
  %s14 = scalar_select 0, %s13, %s11
  // Predicated region
  $region2: #{gpt2_decoder_forward.1} parent=0 // pred_check
    _
  $region3: #{gpt2_decoder_forward.1} parent=0 // pred_check_branch
    %16 = sbr.rel (0) target = $region5
  $region4: #{gpt2_decoder_forward.1} parent=0 // pred_region
    _
  $region5: #{gpt2_decoder_forward.1} parent=0 // pred_fallthru
    _
  // Predicated region
  $region6: #{gpt2_decoder_forward.1} parent=0 // pred_check
    _
  $region7: #{gpt2_decoder_forward.1} parent=0 // pred_check_branch
    %18 = sbr.rel (0) target = $region9
  $region8: #{gpt2_decoder_forward.1} parent=0 // pred_region
    _
  $region9: #{gpt2_decoder_forward.1} parent=0 // pred_fallthru
    _
  // Predicated region
  $region10: #{gpt2_decoder_forward.1} parent=0 // pred_check
    _
  $region11: #{gpt2_decoder_forward.1} parent=0 // pred_check_branch
    %20 = sbr.rel (0) target = $region13
  $region12: #{gpt2_decoder_forward.1} parent=0 // pred_region
    _
  $region13: #{gpt2_decoder_forward.1} parent=0 // pred_fallthru
    _
  // Predicated region
  $region14: #{gpt2_decoder_forward.1} parent=0 // pred_check
    _
  $region15: #{gpt2_decoder_forward.1} parent=0 // pred_check_branch
    %22 = sbr.rel (0) target = $region17
  $region16: #{gpt2_decoder_forward.1} parent=0 // pred_region
    _
  $region17: #{gpt2_decoder_forward.1} parent=0 // pred_fallthru
    _
  // Predicated region
  $region18: #{gpt2_decoder_forward.1} parent=0 // pred_check
    _
  $region19: #{gpt2_decoder_forward.1} parent=0 // pred_check_branch
    %24 = sbr.rel (0) target = $region21
  $region20: #{gpt2_decoder_forward.1} parent=0 // pred_region
    _
  $region21: #{gpt2_decoder_forward.1} parent=0 // pred_fallthru
    _
  // Predicated region
  $region22: #{gpt2_decoder_forward.1} parent=0 // pred_check
    _
  $region23: #{gpt2_decoder_forward.1} parent=0 // pred_check_branch
    %26 = sbr.rel (0) target = $region25
  $region24: #{gpt2_decoder_forward.1} parent=0 // pred_region
    _
  $region25: #{gpt2_decoder_forward.1} parent=0 // pred_fallthru
    _
  // Predicated region
  $region26: #{gpt2_decoder_forward.1} parent=0 // pred_check
    _
  $region27: #{gpt2_decoder_forward.1} parent=0 // pred_check_branch
    %28 = sbr.rel (0) target = $region29
  $region28: #{gpt2_decoder_forward.1} parent=0 // pred_region
    _
  $region29: #{gpt2_decoder_forward.1} parent=0 // pred_fallthru
    _
  // Predicated region
  $region30: #{gpt2_decoder_forward.1} parent=0 // pred_check
    _
  $region31: #{gpt2_decoder_forward.1} parent=0 // pred_check_branch
    %30 = sbr.rel (0) target = $region33
  $region32: #{gpt2_decoder_forward.1} parent=0 // pred_region
    _
  $region33: #{gpt2_decoder_forward.1} parent=0 // pred_fallthru
    _
  // Predicated region
  $region34: #{gpt2_decoder_forward.1} parent=0 // pred_check
    _
  $region35: #{gpt2_decoder_forward.1} parent=0 // pred_check_branch
    %32 = sbr.rel (0) target = $region37
  $region36: #{gpt2_decoder_forward.1} parent=0 // pred_region
    _
  $region37: #{gpt2_decoder_forward.1} parent=0 // pred_fallthru
    _
  // Predicated region
  $region38: #{gpt2_decoder_forward.1} parent=0 // pred_check
    _
  $region39: #{gpt2_decoder_forward.1} parent=0 // pred_check_branch
    %34 = sbr.rel (0) target = $region41
  $region40: #{gpt2_decoder_forward.1} parent=0 // pred_region
    _
  $region41: #{gpt2_decoder_forward.1} parent=0 // pred_fallthru
    _
  %v35 = vlaneseq
  %v36 = vand.u32 %v35, 127
  %v37 = vlaneseq
  %v38 = vshrl.u32 %v37, 7
  %v39 = vld [vmem:[%s0] sm:$0xff]
  %v40 = vld [vmem:[%s0 + $0x8] sm:$0xff]
  %41 = vset.pattern.permute.xlu0 0
  %42 = vperm.xlu0 %41, %v39
  %v43 = vpop.permute.xlu0 %42
  %44 = vset.pattern.permute.xlu0 0
  %45 = vperm.xlu0 %44, %v40
  %v46 = vpop.permute.xlu0 %45
  %vm47 = vcmp.eq.s32.totalorder %v36, %v43
  %vm48 = vcmp.eq.s32.totalorder %v36, %v46
  %v49 = vadd.s32 %v38, 64
  %vm50 = vcmp.eq.s32.totalorder %v36, %v49
  %vm51 = vmor %vm47, %vm50
  %vm52 = vmor %vm48, %vm50
  %v53 = vsel %vm51, 1, 0
  %v54 = vsel %vm52, 1, 0
  %v55 = vcvt.s32.f32 %v53
  %v56 = vcvt.s32.f32 %v54
  %v57 = vld [vmem:[%s2] sm:$0xff]
  %v58 = vld [vmem:[%s2 + $0x8] sm:$0xff]
  %v59 = vld [vmem:[%s2 + $0x10] sm:$0xff]
  %v60 = vld [vmem:[%s2 + $0x18] sm:$0xff]
  %v61 = vld [vmem:[%s2 + $0x20] sm:$0xff]
  %v62 = vld [vmem:[%s2 + $0x28] sm:$0xff]
  %v63 = vld [vmem:[%s2 + $0x30] sm:$0xff]
  %v64 = vld [vmem:[%s2 + $0x38] sm:$0xff]
  %v65 = vld [vmem:[%s2 + $0x40] sm:$0xff]
  %v66 = vld [vmem:[%s2 + $0x48] sm:$0xff]
  %vm67 = vcmask 654336
  %v69 = vsel %vm67, %v55, 0
  %v72 = vsel %vm67, %v56, 0
  %74 = vmatprep.subr.mxu0 0.0
  %75 = vmatpush1.msra.mxu0 0.0
  %76 = vmatprep.subr.mxu0 0.0
  %77 = vmatpush1.msra.mxu0 0.0
  %78 = vmatprep.subr.mxu0 0.0
  %79 = vmatpush1.msra.mxu0 0.0
  %80 = vmatprep.subr.mxu0 0.0
  %81 = vmatpush1.msra.mxu0 0.0
  %82 = vmatprep.subr.mxu0 0.0
  %83 = vmatpush1.msra.mxu0 0.0
  %84 = vmatprep.subr.mxu0 0.0
  %85 = vmatpush1.msra.mxu0 0.0
  %86 = vmatprep.subr.mxu0 0.0
  %87 = vmatpush1.msra.mxu0 %v66
  %88 = vmatprep.subr.mxu0 0.0
  %89 = vmatpush1.msra.mxu0 %v65
  %90 = vmatprep.subr.mxu0 0.0
  %91 = vmatpush1.msra.mxu0 %v64
  %92 = vmatprep.subr.mxu0 0.0
  %93 = vmatpush1.msra.mxu0 %v63
  %94 = vmatprep.subr.mxu0 0.0
  %95 = vmatpush1.msra.mxu0 %v62
  %96 = vmatprep.subr.mxu0 0.0
  %97 = vmatpush1.msra.mxu0 %v61
  %98 = vmatprep.subr.mxu0 0.0
  %99 = vmatpush1.msra.mxu0 %v60
  %100 = vmatprep.subr.mxu0 0.0
  %101 = vmatpush1.msra.mxu0 %v59
  %102 = vmatprep.subr.mxu0 0.0
  %103 = vmatpush1.msra.mxu0 %v58
  %104 = vmatprep.subr.mxu0 0.0
  %105 = vmatpush1.msra.mxu0 %v57
  %106 = vmatprep.subr.mxu0 0.0
  %107 = vmatpush2.msra.mxu0 0.0
  %108 = vmatprep.subr.mxu0 0.0
  %109 = vmatpush2.msra.mxu0 0.0
  %110 = vmatprep.subr.mxu0 0.0
  %111 = vmatpush2.msra.mxu0 0.0
  %112 = vmatprep.subr.mxu0 0.0
  %113 = vmatpush2.msra.mxu0 0.0
  %114 = vmatprep.subr.mxu0 0.0
  %115 = vmatpush2.msra.mxu0 0.0
  %116 = vmatprep.subr.mxu0 0.0
  %117 = vmatpush2.msra.mxu0 0.0
  %118 = vmatprep.subr.mxu0 0.0
  %119 = vmatpush2.msra.mxu0 0.0
  %120 = vmatprep.subr.mxu0 0.0
  %121 = vmatpush2.msra.mxu0 0.0
  %122 = vmatprep.subr.mxu0 0.0
  %123 = vmatpush2.msra.mxu0 0.0
  %124 = vmatprep.subr.mxu0 0.0
  %125 = vmatpush2.msra.mxu0 0.0
  %126 = vmatprep.subr.mxu0 0.0
  %127 = vmatpush2.msra.mxu0 0.0
  %128 = vmatprep.subr.mxu0 0.0
  %129 = vmatpush2.msra.mxu0 0.0
  %130 = vmatprep.subr.mxu0 0.0
  %131 = vmatpush2.msra.mxu0 0.0
  %132 = vmatprep.subr.mxu0 0.0
  %133 = vmatpush2.msra.mxu0 0.0
  %134 = vmatprep.subr.mxu0 0.0
  %135 = vmatpush2.msra.mxu0 0.0
  %136 = vmatprep.subr.mxu0 0.0
  %137 = vmatpush2.msra.mxu0 0.0
  %138 = vmatprep.mubr.f32.mxu0 0.0
  %139 = vmatmul.mubr.f32.gmra.mxu0 %v69
  %v140 = vpop.f32.mrf.mxu0
  %v141 = vadd.f32 0.0, %v140
  %v142 = vpop.f32.mrf.mxu0
  %143 = vmatprep.mubr.f32.mxu0 0.0
  %144 = vmatmul.mubr.f32.gmra.mxu0 %v72
  %v145 = vpop.f32.mrf.mxu0
  %v146 = vadd.f32 0.0, %v145
  %v147 = vpop.f32.mrf.mxu0
  %148 = vdwg.mxu0
  %vm149 = vcmp.le.s32.totalorder %v36, %v38
  %v150 = vld [vmem:[%s1] sm:$0x1]
  %v151 = vld [vmem:[%s1 + $0x1] sm:$0x1]
  %vm152 = vcmp.gt.f32.partialorder %v150, 0.5
  %vm153 = vcmp.gt.f32.partialorder %v151, 0.5
  %v154 = vsel %vm152, 1, 0
  %v155 = vsel %vm153, 1, 0
  %v156 = vlaneseq
  %v157 = vshrl.u32 %v156, 7
  %v158 = vsub.s32 0, %v157
  %v159 = vrot.slane %v154, %v158
  %v160 = vlaneseq
  %v161 = vshrl.u32 %v160, 7
  %v162 = vsub.s32 0, %v161
  %v163 = vrot.slane %v155, %v162
  %vm164 = vcmp.eq.s32.totalorder %v159, 1
  %vm165 = vcmp.eq.s32.totalorder %v163, 1
  %vm166 = vmand %vm149, %vm164
  %vm167 = vmand %vm149, %vm165
  %v168 = vsel %vm166, 0.0, -10000.0
  %v169 = vsel %vm167, 0.0, -10000.0
  %v170 = vld [vmem:[%s3] sm:$0x1]
  %v171 = vld [vmem:[%s3 + $0x1] sm:$0x1]
  %vm172 = vcmask 261120
  %v173 = vsel %vm172, %v141, 0.0
  %174 = vadd.xlane.f32.xlu0 %v173
  %v175 = vpop.xlane.xlu0 %174
  %v176 = vsel %vm172, %v146, 0.0
  %177 = vadd.xlane.f32.xlu0 %v176
  %v178 = vpop.xlane.xlu0 %177
  %v179 = vrcp.pop 32.0
  %v180 = vmul.f32 %v175, %v179
  %v181 = vmul.f32 %v178, %v179
  %v182 = vsub.f32 %v141, %v180
  %v183 = vsub.f32 %v146, %v181
  %v184 = vmul.f32 %v182, %v182
  %v185 = vmul.f32 %v183, %v183
  %v186 = vsel %vm172, %v184, 0.0
  %187 = vadd.xlane.f32.xlu0 %v186
  %v188 = vpop.xlane.xlu0 %187
  %v189 = vsel %vm172, %v185, 0.0
  %190 = vadd.xlane.f32.xlu0 %v189
  %v191 = vpop.xlane.xlu0 %190
  %v192 = vmul.f32 %v188, %v179
  %v193 = vmul.f32 %v191, %v179
  %v194 = vadd.f32 %v192, 1e-05
  %v195 = vadd.f32 %v193, 1e-05
  %v196 = vrsqrt.pop %v194
  %v197 = vrsqrt.pop %v195
  %v198 = vmul.f32 %v182, %v196
  %v199 = vmul.f32 %v183, %v197
  %v200 = vlaneseq
  %v201 = vshrl.u32 %v200, 7
  %v202 = vsub.s32 0, %v201
  %v203 = vrot.slane %v170, %v202
  %v204 = vmul.f32 %v198, %v203
  %v205 = vmul.f32 %v199, %v203
  %v206 = vlaneseq
  %v207 = vshrl.u32 %v206, 7
  %v208 = vsub.s32 0, %v207
  %v209 = vrot.slane %v171, %v208
  %v210 = vadd.f32 %v204, %v209
  %v211 = vadd.f32 %v205, %v209
  %v212 = vld [vmem:[%s4] sm:$0xff]
  %v213 = vld [vmem:[%s4 + $0x8] sm:$0xff]
  %v214 = vld [vmem:[%s4 + $0x10] sm:$0xff]
  %v215 = vld [vmem:[%s4 + $0x18] sm:$0xff]
  %v216 = vld [vmem:[%s5] sm:$0x1]
  %v218 = vlaneseq
  %v219 = vshrl.u32 %v218, 7
  %v220 = vsub.s32 0, %v219
  %v221 = vrot.slane %v216, %v220
  %v224 = vsel %vm172, %v210, 0
  %v227 = vsel %vm172, %v211, 0
  %229 = vmatprep.subr.mxu0 0.0
  %230 = vmatpush1.msra.mxu0 0.0
  %231 = vmatprep.subr.mxu0 0.0
  %232 = vmatpush1.msra.mxu0 0.0
  %233 = vmatprep.subr.mxu0 0.0
  %234 = vmatpush1.msra.mxu0 0.0
  %235 = vmatprep.subr.mxu0 0.0
  %236 = vmatpush1.msra.mxu0 0.0
  %237 = vmatprep.subr.mxu0 0.0
  %238 = vmatpush1.msra.mxu0 0.0
  %239 = vmatprep.subr.mxu0 0.0
  %240 = vmatpush1.msra.mxu0 0.0
  %241 = vmatprep.subr.mxu0 0.0
  %242 = vmatpush1.msra.mxu0 0.0
  %243 = vmatprep.subr.mxu0 0.0
  %244 = vmatpush1.msra.mxu0 0.0
  %245 = vmatprep.subr.mxu0 0.0
  %246 = vmatpush1.msra.mxu0 0.0
  %247 = vmatprep.subr.mxu0 0.0
  %248 = vmatpush1.msra.mxu0 0.0
  %249 = vmatprep.subr.mxu0 0.0
  %250 = vmatpush1.msra.mxu0 0.0
  %251 = vmatprep.subr.mxu0 0.0
  %252 = vmatpush1.msra.mxu0 0.0
  %253 = vmatprep.subr.mxu0 0.0
  %254 = vmatpush1.msra.mxu0 %v215
  %255 = vmatprep.subr.mxu0 0.0
  %256 = vmatpush1.msra.mxu0 %v214
  %257 = vmatprep.subr.mxu0 0.0
  %258 = vmatpush1.msra.mxu0 %v213
  %259 = vmatprep.subr.mxu0 0.0
  %260 = vmatpush1.msra.mxu0 %v212
  %261 = vmatprep.subr.mxu0 0.0
  %262 = vmatpush2.msra.mxu0 0.0
  %263 = vmatprep.subr.mxu0 0.0
  %264 = vmatpush2.msra.mxu0 0.0
  %265 = vmatprep.subr.mxu0 0.0
  %266 = vmatpush2.msra.mxu0 0.0
  %267 = vmatprep.subr.mxu0 0.0
  %268 = vmatpush2.msra.mxu0 0.0
  %269 = vmatprep.subr.mxu0 0.0
  %270 = vmatpush2.msra.mxu0 0.0
  %271 = vmatprep.subr.mxu0 0.0
  %272 = vmatpush2.msra.mxu0 0.0
  %273 = vmatprep.subr.mxu0 0.0
  %274 = vmatpush2.msra.mxu0 0.0
  %275 = vmatprep.subr.mxu0 0.0
  %276 = vmatpush2.msra.mxu0 0.0
  %277 = vmatprep.subr.mxu0 0.0
  %278 = vmatpush2.msra.mxu0 0.0
  %279 = vmatprep.subr.mxu0 0.0
  %280 = vmatpush2.msra.mxu0 0.0
  %281 = vmatprep.subr.mxu0 0.0
  %282 = vmatpush2.msra.mxu0 0.0
  %283 = vmatprep.subr.mxu0 0.0
  %284 = vmatpush2.msra.mxu0 0.0
  %285 = vmatprep.subr.mxu0 0.0
  %286 = vmatpush2.msra.mxu0 0.0
  %287 = vmatprep.subr.mxu0 0.0
  %288 = vmatpush2.msra.mxu0 0.0
  %289 = vmatprep.subr.mxu0 0.0
  %290 = vmatpush2.msra.mxu0 0.0
  %291 = vmatprep.subr.mxu0 0.0
  %292 = vmatpush2.msra.mxu0 0.0
  %293 = vmatprep.mubr.f32.mxu0 0.0
  %294 = vmatmul.mubr.f32.gmra.mxu0 %v224
  %v295 = vpop.f32.mrf.mxu0
  %v296 = vadd.f32 %v221, %v295
  %v297 = vpop.f32.mrf.mxu0
  %298 = vmatprep.mubr.f32.mxu0 0.0
  %299 = vmatmul.mubr.f32.gmra.mxu0 %v227
  %v300 = vpop.f32.mrf.mxu0
  %v301 = vadd.f32 %v221, %v300
  %v302 = vpop.f32.mrf.mxu0
  %303 = vdwg.mxu0
  %s304 = scalar_lea.vmem %s4, 128
  %v305 = vld [vmem:[%s304] sm:$0xff]
  %v306 = vld [vmem:[%s304 + $0x8] sm:$0xff]
  %v307 = vld [vmem:[%s304 + $0x10] sm:$0xff]
  %v308 = vld [vmem:[%s304 + $0x18] sm:$0xff]
  %s309 = scalar_lea.vmem %s5, 4
  %v310 = vld [vmem:[%s309] sm:$0x1]
  %v312 = vlaneseq
  %v313 = vshrl.u32 %v312, 7
  %v314 = vsub.s32 0, %v313
  %v315 = vrot.slane %v310, %v314
  %317 = vmatprep.subr.mxu0 0.0
  %318 = vmatpush1.msra.mxu0 0.0
  %319 = vmatprep.subr.mxu0 0.0
  %320 = vmatpush1.msra.mxu0 0.0
  %321 = vmatprep.subr.mxu0 0.0
  %322 = vmatpush1.msra.mxu0 0.0
  %323 = vmatprep.subr.mxu0 0.0
  %324 = vmatpush1.msra.mxu0 0.0
  %325 = vmatprep.subr.mxu0 0.0
  %326 = vmatpush1.msra.mxu0 0.0
  %327 = vmatprep.subr.mxu0 0.0
  %328 = vmatpush1.msra.mxu0 0.0
  %329 = vmatprep.subr.mxu0 0.0
  %330 = vmatpush1.msra.mxu0 0.0
  %331 = vmatprep.subr.mxu0 0.0
  %332 = vmatpush1.msra.mxu0 0.0
  %333 = vmatprep.subr.mxu0 0.0
  %334 = vmatpush1.msra.mxu0 0.0
  %335 = vmatprep.subr.mxu0 0.0
  %336 = vmatpush1.msra.mxu0 0.0
  %337 = vmatprep.subr.mxu0 0.0
  %338 = vmatpush1.msra.mxu0 0.0
  %339 = vmatprep.subr.mxu0 0.0
  %340 = vmatpush1.msra.mxu0 0.0
  %341 = vmatprep.subr.mxu0 0.0
  %342 = vmatpush1.msra.mxu0 %v308
  %343 = vmatprep.subr.mxu0 0.0
  %344 = vmatpush1.msra.mxu0 %v307
  %345 = vmatprep.subr.mxu0 0.0
  %346 = vmatpush1.msra.mxu0 %v306
  %347 = vmatprep.subr.mxu0 0.0
  %348 = vmatpush1.msra.mxu0 %v305
  %349 = vmatprep.subr.mxu0 0.0
  %350 = vmatpush2.msra.mxu0 0.0
  %351 = vmatprep.subr.mxu0 0.0
  %352 = vmatpush2.msra.mxu0 0.0
  %353 = vmatprep.subr.mxu0 0.0
  %354 = vmatpush2.msra.mxu0 0.0
  %355 = vmatprep.subr.mxu0 0.0
  %356 = vmatpush2.msra.mxu0 0.0
  %357 = vmatprep.subr.mxu0 0.0
  %358 = vmatpush2.msra.mxu0 0.0
  %359 = vmatprep.subr.mxu0 0.0
  %360 = vmatpush2.msra.mxu0 0.0
  %361 = vmatprep.subr.mxu0 0.0
  %362 = vmatpush2.msra.mxu0 0.0
  %363 = vmatprep.subr.mxu0 0.0
  %364 = vmatpush2.msra.mxu0 0.0
  %365 = vmatprep.subr.mxu0 0.0
  %366 = vmatpush2.msra.mxu0 0.0
  %367 = vmatprep.subr.mxu0 0.0
  %368 = vmatpush2.msra.mxu0 0.0
  %369 = vmatprep.subr.mxu0 0.0
  %370 = vmatpush2.msra.mxu0 0.0
  %371 = vmatprep.subr.mxu0 0.0
  %372 = vmatpush2.msra.mxu0 0.0
  %373 = vmatprep.subr.mxu0 0.0
  %374 = vmatpush2.msra.mxu0 0.0
  %375 = vmatprep.subr.mxu0 0.0
  %376 = vmatpush2.msra.mxu0 0.0
  %377 = vmatprep.subr.mxu0 0.0
  %378 = vmatpush2.msra.mxu0 0.0
  %379 = vmatprep.subr.mxu0 0.0
  %380 = vmatpush2.msra.mxu0 0.0
  %381 = vmatprep.mubr.f32.mxu0 0.0
  %382 = vmatmul.mubr.f32.gmra.mxu0 %v224
  %v383 = vpop.f32.mrf.mxu0
  %v384 = vadd.f32 %v315, %v383
  %v385 = vpop.f32.mrf.mxu0
  %386 = vmatprep.mubr.f32.mxu0 0.0
  %387 = vmatmul.mubr.f32.gmra.mxu0 %v227
  %v388 = vpop.f32.mrf.mxu0
  %v389 = vadd.f32 %v315, %v388
  %v390 = vpop.f32.mrf.mxu0
  %391 = vdwg.mxu0
  %s392 = scalar_lea.vmem %s4, 256
  %v393 = vld [vmem:[%s392] sm:$0xff]
  %v394 = vld [vmem:[%s392 + $0x8] sm:$0xff]
  %v395 = vld [vmem:[%s392 + $0x10] sm:$0xff]
  %v396 = vld [vmem:[%s392 + $0x18] sm:$0xff]
  %s397 = scalar_lea.vmem %s5, 8
  %v398 = vld [vmem:[%s397] sm:$0x1]
  %v400 = vlaneseq
  %v401 = vshrl.u32 %v400, 7
  %v402 = vsub.s32 0, %v401
  %v403 = vrot.slane %v398, %v402
  %405 = vmatprep.subr.mxu0 0.0
  %406 = vmatpush1.msra.mxu0 0.0
  %407 = vmatprep.subr.mxu0 0.0
  %408 = vmatpush1.msra.mxu0 0.0
  %409 = vmatprep.subr.mxu0 0.0
  %410 = vmatpush1.msra.mxu0 0.0
  %411 = vmatprep.subr.mxu0 0.0
  %412 = vmatpush1.msra.mxu0 0.0
  %413 = vmatprep.subr.mxu0 0.0
  %414 = vmatpush1.msra.mxu0 0.0
  %415 = vmatprep.subr.mxu0 0.0
  %416 = vmatpush1.msra.mxu0 0.0
  %417 = vmatprep.subr.mxu0 0.0
  %418 = vmatpush1.msra.mxu0 0.0
  %419 = vmatprep.subr.mxu0 0.0
  %420 = vmatpush1.msra.mxu0 0.0
  %421 = vmatprep.subr.mxu0 0.0
  %422 = vmatpush1.msra.mxu0 0.0
  %423 = vmatprep.subr.mxu0 0.0
  %424 = vmatpush1.msra.mxu0 0.0
  %425 = vmatprep.subr.mxu0 0.0
  %426 = vmatpush1.msra.mxu0 0.0
  %427 = vmatprep.subr.mxu0 0.0
  %428 = vmatpush1.msra.mxu0 0.0
  %429 = vmatprep.subr.mxu0 0.0
  %430 = vmatpush1.msra.mxu0 %v396
  %431 = vmatprep.subr.mxu0 0.0
  %432 = vmatpush1.msra.mxu0 %v395
  %433 = vmatprep.subr.mxu0 0.0
  %434 = vmatpush1.msra.mxu0 %v394
  %435 = vmatprep.subr.mxu0 0.0
  %436 = vmatpush1.msra.mxu0 %v393
  %437 = vmatprep.subr.mxu0 0.0
  %438 = vmatpush2.msra.mxu0 0.0
  %439 = vmatprep.subr.mxu0 0.0
  %440 = vmatpush2.msra.mxu0 0.0
  %441 = vmatprep.subr.mxu0 0.0
  %442 = vmatpush2.msra.mxu0 0.0
  %443 = vmatprep.subr.mxu0 0.0
  %444 = vmatpush2.msra.mxu0 0.0
  %445 = vmatprep.subr.mxu0 0.0
  %446 = vmatpush2.msra.mxu0 0.0
  %447 = vmatprep.subr.mxu0 0.0
  %448 = vmatpush2.msra.mxu0 0.0
  %449 = vmatprep.subr.mxu0 0.0
  %450 = vmatpush2.msra.mxu0 0.0
  %451 = vmatprep.subr.mxu0 0.0
  %452 = vmatpush2.msra.mxu0 0.0
  %453 = vmatprep.subr.mxu0 0.0
  %454 = vmatpush2.msra.mxu0 0.0
  %455 = vmatprep.subr.mxu0 0.0
  %456 = vmatpush2.msra.mxu0 0.0
  %457 = vmatprep.subr.mxu0 0.0
  %458 = vmatpush2.msra.mxu0 0.0
  %459 = vmatprep.subr.mxu0 0.0
  %460 = vmatpush2.msra.mxu0 0.0
  %461 = vmatprep.subr.mxu0 0.0
  %462 = vmatpush2.msra.mxu0 0.0
  %463 = vmatprep.subr.mxu0 0.0
  %464 = vmatpush2.msra.mxu0 0.0
  %465 = vmatprep.subr.mxu0 0.0
  %466 = vmatpush2.msra.mxu0 0.0
  %467 = vmatprep.subr.mxu0 0.0
  %468 = vmatpush2.msra.mxu0 0.0
  %469 = vmatprep.mubr.f32.mxu0 0.0
  %470 = vmatmul.mubr.f32.gmra.mxu0 %v224
  %v471 = vpop.f32.mrf.mxu0
  %v472 = vadd.f32 %v403, %v471
  %v473 = vpop.f32.mrf.mxu0
  %474 = vmatprep.mubr.f32.mxu0 0.0
  %475 = vmatmul.mubr.f32.gmra.mxu0 %v227
  %v476 = vpop.f32.mrf.mxu0
  %v477 = vadd.f32 %v403, %v476
  %v478 = vpop.f32.mrf.mxu0
  %479 = vdwg.mxu0
  %vm480 = vcmask 64512
  %v482 = vsel %vm480, %v296, 0
  %v485 = vsel %vm480, %v384, 0
  %487 = vmatprep.subr.mxu0 0.0
  %488 = vmatpush1.xpose.msra.mxu0 0.0
  %489 = vmatprep.subr.mxu0 0.0
  %490 = vmatpush1.xpose.msra.mxu0 0.0
  %491 = vmatprep.subr.mxu0 0.0
  %492 = vmatpush1.xpose.msra.mxu0 0.0
  %493 = vmatprep.subr.mxu0 0.0
  %494 = vmatpush1.xpose.msra.mxu0 0.0
  %495 = vmatprep.subr.mxu0 0.0
  %496 = vmatpush1.xpose.msra.mxu0 0.0
  %497 = vmatprep.subr.mxu0 0.0
  %498 = vmatpush1.xpose.msra.mxu0 0.0
  %499 = vmatprep.subr.mxu0 0.0
  %500 = vmatpush1.xpose.msra.mxu0 0.0
  %501 = vmatprep.subr.mxu0 0.0
  %502 = vmatpush1.xpose.msra.mxu0 0.0
  %503 = vmatprep.subr.mxu0 0.0
  %504 = vmatpush1.xpose.msra.mxu0 0.0
  %505 = vmatprep.subr.mxu0 0.0
  %506 = vmatpush1.xpose.msra.mxu0 0.0
  %507 = vmatprep.subr.mxu0 0.0
  %508 = vmatpush1.xpose.msra.mxu0 0.0
  %509 = vmatprep.subr.mxu0 0.0
  %510 = vmatpush1.xpose.msra.mxu0 0.0
  %511 = vmatprep.subr.mxu0 0.0
  %512 = vmatpush1.xpose.msra.mxu0 0.0
  %513 = vmatprep.subr.mxu0 0.0
  %514 = vmatpush1.xpose.msra.mxu0 0.0
  %515 = vmatprep.subr.mxu0 0.0
  %516 = vmatpush1.xpose.msra.mxu0 0.0
  %517 = vmatprep.subr.mxu0 0.0
  %518 = vmatpush1.xpose.msra.mxu0 %v485
  %519 = vmatprep.subr.mxu0 0.0
  %520 = vmatpush2.xpose.msra.mxu0 0.0
  %521 = vmatprep.subr.mxu0 0.0
  %522 = vmatpush2.xpose.msra.mxu0 0.0
  %523 = vmatprep.subr.mxu0 0.0
  %524 = vmatpush2.xpose.msra.mxu0 0.0
  %525 = vmatprep.subr.mxu0 0.0
  %526 = vmatpush2.xpose.msra.mxu0 0.0
  %527 = vmatprep.subr.mxu0 0.0
  %528 = vmatpush2.xpose.msra.mxu0 0.0
  %529 = vmatprep.subr.mxu0 0.0
  %530 = vmatpush2.xpose.msra.mxu0 0.0
  %531 = vmatprep.subr.mxu0 0.0
  %532 = vmatpush2.xpose.msra.mxu0 0.0
  %533 = vmatprep.subr.mxu0 0.0
  %534 = vmatpush2.xpose.msra.mxu0 0.0
  %535 = vmatprep.subr.mxu0 0.0
  %536 = vmatpush2.xpose.msra.mxu0 0.0
  %537 = vmatprep.subr.mxu0 0.0
  %538 = vmatpush2.xpose.msra.mxu0 0.0
  %539 = vmatprep.subr.mxu0 0.0
  %540 = vmatpush2.xpose.msra.mxu0 0.0
  %541 = vmatprep.subr.mxu0 0.0
  %542 = vmatpush2.xpose.msra.mxu0 0.0
  %543 = vmatprep.subr.mxu0 0.0
  %544 = vmatpush2.xpose.msra.mxu0 0.0
  %545 = vmatprep.subr.mxu0 0.0
  %546 = vmatpush2.xpose.msra.mxu0 0.0
  %547 = vmatprep.subr.mxu0 0.0
  %548 = vmatpush2.xpose.msra.mxu0 0.0
  %549 = vmatprep.subr.mxu0 0.0
  %550 = vmatpush2.xpose.msra.mxu0 0.0
  %551 = vmatprep.mubr.f32.mxu0 0.0
  %552 = vmatmul.mubr.f32.gmra.mxu0 %v482
  %v553 = vpop.f32.mrf.mxu0
  %v554 = vadd.f32 0.0, %v553
  %v555 = vpop.f32.mrf.mxu0
  %556 = vdwg.mxu0
  %v558 = vsel %vm480, %v301, 0
  %v561 = vsel %vm480, %v389, 0
  %563 = vmatprep.subr.mxu0 0.0
  %564 = vmatpush1.xpose.msra.mxu0 0.0
  %565 = vmatprep.subr.mxu0 0.0
  %566 = vmatpush1.xpose.msra.mxu0 0.0
  %567 = vmatprep.subr.mxu0 0.0
  %568 = vmatpush1.xpose.msra.mxu0 0.0
  %569 = vmatprep.subr.mxu0 0.0
  %570 = vmatpush1.xpose.msra.mxu0 0.0
  %571 = vmatprep.subr.mxu0 0.0
  %572 = vmatpush1.xpose.msra.mxu0 0.0
  %573 = vmatprep.subr.mxu0 0.0
  %574 = vmatpush1.xpose.msra.mxu0 0.0
  %575 = vmatprep.subr.mxu0 0.0
  %576 = vmatpush1.xpose.msra.mxu0 0.0
  %577 = vmatprep.subr.mxu0 0.0
  %578 = vmatpush1.xpose.msra.mxu0 0.0
  %579 = vmatprep.subr.mxu0 0.0
  %580 = vmatpush1.xpose.msra.mxu0 0.0
  %581 = vmatprep.subr.mxu0 0.0
  %582 = vmatpush1.xpose.msra.mxu0 0.0
  %583 = vmatprep.subr.mxu0 0.0
  %584 = vmatpush1.xpose.msra.mxu0 0.0
  %585 = vmatprep.subr.mxu0 0.0
  %586 = vmatpush1.xpose.msra.mxu0 0.0
  %587 = vmatprep.subr.mxu0 0.0
  %588 = vmatpush1.xpose.msra.mxu0 0.0
  %589 = vmatprep.subr.mxu0 0.0
  %590 = vmatpush1.xpose.msra.mxu0 0.0
  %591 = vmatprep.subr.mxu0 0.0
  %592 = vmatpush1.xpose.msra.mxu0 0.0
  %593 = vmatprep.subr.mxu0 0.0
  %594 = vmatpush1.xpose.msra.mxu0 %v561
  %595 = vmatprep.subr.mxu0 0.0
  %596 = vmatpush2.xpose.msra.mxu0 0.0
  %597 = vmatprep.subr.mxu0 0.0
  %598 = vmatpush2.xpose.msra.mxu0 0.0
  %599 = vmatprep.subr.mxu0 0.0
  %600 = vmatpush2.xpose.msra.mxu0 0.0
  %601 = vmatprep.subr.mxu0 0.0
  %602 = vmatpush2.xpose.msra.mxu0 0.0
  %603 = vmatprep.subr.mxu0 0.0
  %604 = vmatpush2.xpose.msra.mxu0 0.0
  %605 = vmatprep.subr.mxu0 0.0
  %606 = vmatpush2.xpose.msra.mxu0 0.0
  %607 = vmatprep.subr.mxu0 0.0
  %608 = vmatpush2.xpose.msra.mxu0 0.0
  %609 = vmatprep.subr.mxu0 0.0
  %610 = vmatpush2.xpose.msra.mxu0 0.0
  %611 = vmatprep.subr.mxu0 0.0
  %612 = vmatpush2.xpose.msra.mxu0 0.0
  %613 = vmatprep.subr.mxu0 0.0
  %614 = vmatpush2.xpose.msra.mxu0 0.0
  %615 = vmatprep.subr.mxu0 0.0
  %616 = vmatpush2.xpose.msra.mxu0 0.0
  %617 = vmatprep.subr.mxu0 0.0
  %618 = vmatpush2.xpose.msra.mxu0 0.0
  %619 = vmatprep.subr.mxu0 0.0
  %620 = vmatpush2.xpose.msra.mxu0 0.0
  %621 = vmatprep.subr.mxu0 0.0
  %622 = vmatpush2.xpose.msra.mxu0 0.0
  %623 = vmatprep.subr.mxu0 0.0
  %624 = vmatpush2.xpose.msra.mxu0 0.0
  %625 = vmatprep.subr.mxu0 0.0
  %626 = vmatpush2.xpose.msra.mxu0 0.0
  %627 = vmatprep.mubr.f32.mxu0 0.0
  %628 = vmatmul.mubr.f32.gmra.mxu0 %v558
  %v629 = vpop.f32.mrf.mxu0
  %v630 = vadd.f32 0.0, %v629
  %v631 = vpop.f32.mrf.mxu0
  %632 = vdwg.mxu0
  %v633 = vmul.f32 %v554, 0.35355338
  %v634 = vmul.f32 %v630, 0.35355338
  %v635 = vadd.f32 %v633, %v168
  %v636 = vadd.f32 %v634, %v169
  %v637 = vsel %vm480, %v635, -inf
  %638 = vmax.xlane.f32.xlu0 %v637
  %v639 = vpop.xlane.xlu0 %638
  %v640 = vsel %vm480, %v636, -inf
  %641 = vmax.xlane.f32.xlu0 %v640
  %v642 = vpop.xlane.xlu0 %641
  %v643 = vsub.f32 %v635, %v639
  %v644 = vsub.f32 %v636, %v642
  %v645 = vmul.f32 %v643, 1.442695
  %v646 = vpow.pop %v645
  %v647 = vmul.f32 %v644, 1.442695
  %v648 = vpow.pop %v647
  %v649 = vsel %vm480, %v646, 0.0
  %650 = vadd.xlane.f32.xlu0 %v649
  %v651 = vpop.xlane.xlu0 %650
  %v652 = vsel %vm480, %v648, 0.0
  %653 = vadd.xlane.f32.xlu0 %v652
  %v654 = vpop.xlane.xlu0 %653
  %v655 = vrcp.pop %v651
  %v656 = vrcp.pop %v654
  %v657 = vmul.f32 %v646, %v655
  %v658 = vmul.f32 %v648, %v656
  %v660 = vsel %vm480, %v657, 0
  %662 = vmatprep.subr.mxu0 0.0
  %663 = vmatpush1.msra.mxu0 0.0
  %664 = vmatprep.subr.mxu0 0.0
  %665 = vmatpush1.msra.mxu0 0.0
  %666 = vmatprep.subr.mxu0 0.0
  %667 = vmatpush1.msra.mxu0 0.0
  %668 = vmatprep.subr.mxu0 0.0
  %669 = vmatpush1.msra.mxu0 0.0
  %670 = vmatprep.subr.mxu0 0.0
  %671 = vmatpush1.msra.mxu0 0.0
  %672 = vmatprep.subr.mxu0 0.0
  %673 = vmatpush1.msra.mxu0 0.0
  %674 = vmatprep.subr.mxu0 0.0
  %675 = vmatpush1.msra.mxu0 0.0
  %676 = vmatprep.subr.mxu0 0.0
  %677 = vmatpush1.msra.mxu0 0.0
  %678 = vmatprep.subr.mxu0 0.0
  %679 = vmatpush1.msra.mxu0 0.0
  %680 = vmatprep.subr.mxu0 0.0
  %681 = vmatpush1.msra.mxu0 0.0
  %682 = vmatprep.subr.mxu0 0.0
  %683 = vmatpush1.msra.mxu0 0.0
  %684 = vmatprep.subr.mxu0 0.0
  %685 = vmatpush1.msra.mxu0 0.0
  %686 = vmatprep.subr.mxu0 0.0
  %687 = vmatpush1.msra.mxu0 0.0
  %688 = vmatprep.subr.mxu0 0.0
  %689 = vmatpush1.msra.mxu0 0.0
  %690 = vmatprep.subr.mxu0 0.0
  %691 = vmatpush1.msra.mxu0 0.0
  %692 = vmatprep.subr.mxu0 0.0
  %693 = vmatpush1.msra.mxu0 %v472
  %694 = vmatprep.subr.mxu0 0.0
  %695 = vmatpush2.msra.mxu0 0.0
  %696 = vmatprep.subr.mxu0 0.0
  %697 = vmatpush2.msra.mxu0 0.0
  %698 = vmatprep.subr.mxu0 0.0
  %699 = vmatpush2.msra.mxu0 0.0
  %700 = vmatprep.subr.mxu0 0.0
  %701 = vmatpush2.msra.mxu0 0.0
  %702 = vmatprep.subr.mxu0 0.0
  %703 = vmatpush2.msra.mxu0 0.0
  %704 = vmatprep.subr.mxu0 0.0
  %705 = vmatpush2.msra.mxu0 0.0
  %706 = vmatprep.subr.mxu0 0.0
  %707 = vmatpush2.msra.mxu0 0.0
  %708 = vmatprep.subr.mxu0 0.0
  %709 = vmatpush2.msra.mxu0 0.0
  %710 = vmatprep.subr.mxu0 0.0
  %711 = vmatpush2.msra.mxu0 0.0
  %712 = vmatprep.subr.mxu0 0.0
  %713 = vmatpush2.msra.mxu0 0.0
  %714 = vmatprep.subr.mxu0 0.0
  %715 = vmatpush2.msra.mxu0 0.0
  %716 = vmatprep.subr.mxu0 0.0
  %717 = vmatpush2.msra.mxu0 0.0
  %718 = vmatprep.subr.mxu0 0.0
  %719 = vmatpush2.msra.mxu0 0.0
  %720 = vmatprep.subr.mxu0 0.0
  %721 = vmatpush2.msra.mxu0 0.0
  %722 = vmatprep.subr.mxu0 0.0
  %723 = vmatpush2.msra.mxu0 0.0
  %724 = vmatprep.subr.mxu0 0.0
  %725 = vmatpush2.msra.mxu0 0.0
  %726 = vmatprep.mubr.f32.mxu0 0.0
  %727 = vmatmul.mubr.f32.gmra.mxu0 %v660
  %v728 = vpop.f32.mrf.mxu0
  %v729 = vadd.f32 0.0, %v728
  %v730 = vpop.f32.mrf.mxu0
  %731 = vdwg.mxu0
  %v733 = vsel %vm480, %v658, 0
  %735 = vmatprep.subr.mxu0 0.0
  %736 = vmatpush1.msra.mxu0 0.0
  %737 = vmatprep.subr.mxu0 0.0
  %738 = vmatpush1.msra.mxu0 0.0
  %739 = vmatprep.subr.mxu0 0.0
  %740 = vmatpush1.msra.mxu0 0.0
  %741 = vmatprep.subr.mxu0 0.0
  %742 = vmatpush1.msra.mxu0 0.0
  %743 = vmatprep.subr.mxu0 0.0
  %744 = vmatpush1.msra.mxu0 0.0
  %745 = vmatprep.subr.mxu0 0.0
  %746 = vmatpush1.msra.mxu0 0.0
  %747 = vmatprep.subr.mxu0 0.0
  %748 = vmatpush1.msra.mxu0 0.0
  %749 = vmatprep.subr.mxu0 0.0
  %750 = vmatpush1.msra.mxu0 0.0
  %751 = vmatprep.subr.mxu0 0.0
  %752 = vmatpush1.msra.mxu0 0.0
  %753 = vmatprep.subr.mxu0 0.0
  %754 = vmatpush1.msra.mxu0 0.0
  %755 = vmatprep.subr.mxu0 0.0
  %756 = vmatpush1.msra.mxu0 0.0
  %757 = vmatprep.subr.mxu0 0.0
  %758 = vmatpush1.msra.mxu0 0.0
  %759 = vmatprep.subr.mxu0 0.0
  %760 = vmatpush1.msra.mxu0 0.0
  %761 = vmatprep.subr.mxu0 0.0
  %762 = vmatpush1.msra.mxu0 0.0
  %763 = vmatprep.subr.mxu0 0.0
  %764 = vmatpush1.msra.mxu0 0.0
  %765 = vmatprep.subr.mxu0 0.0
  %766 = vmatpush1.msra.mxu0 %v477
  %767 = vmatprep.subr.mxu0 0.0
  %768 = vmatpush2.msra.mxu0 0.0
  %769 = vmatprep.subr.mxu0 0.0
  %770 = vmatpush2.msra.mxu0 0.0
  %771 = vmatprep.subr.mxu0 0.0
  %772 = vmatpush2.msra.mxu0 0.0
  %773 = vmatprep.subr.mxu0 0.0
  %774 = vmatpush2.msra.mxu0 0.0
  %775 = vmatprep.subr.mxu0 0.0
  %776 = vmatpush2.msra.mxu0 0.0
  %777 = vmatprep.subr.mxu0 0.0
  %778 = vmatpush2.msra.mxu0 0.0
  %779 = vmatprep.subr.mxu0 0.0
  %780 = vmatpush2.msra.mxu0 0.0
  %781 = vmatprep.subr.mxu0 0.0
  %782 = vmatpush2.msra.mxu0 0.0
  %783 = vmatprep.subr.mxu0 0.0
  %784 = vmatpush2.msra.mxu0 0.0
  %785 = vmatprep.subr.mxu0 0.0
  %786 = vmatpush2.msra.mxu0 0.0
  %787 = vmatprep.subr.mxu0 0.0
  %788 = vmatpush2.msra.mxu0 0.0
  %789 = vmatprep.subr.mxu0 0.0
  %790 = vmatpush2.msra.mxu0 0.0
  %791 = vmatprep.subr.mxu0 0.0
  %792 = vmatpush2.msra.mxu0 0.0
  %793 = vmatprep.subr.mxu0 0.0
  %794 = vmatpush2.msra.mxu0 0.0
  %795 = vmatprep.subr.mxu0 0.0
  %796 = vmatpush2.msra.mxu0 0.0
  %797 = vmatprep.subr.mxu0 0.0
  %798 = vmatpush2.msra.mxu0 0.0
  %799 = vmatprep.mubr.f32.mxu0 0.0
  %800 = vmatmul.mubr.f32.gmra.mxu0 %v733
  %v801 = vpop.f32.mrf.mxu0
  %v802 = vadd.f32 0.0, %v801
  %v803 = vpop.f32.mrf.mxu0
  %804 = vdwg.mxu0
  %v805 = vld [vmem:[%s6] sm:$0xff]
  %s806 = scalar_lea.vmem %s4, 32
  %v807 = vld [vmem:[%s806] sm:$0xff]
  %v808 = vld [vmem:[%s806 + $0x8] sm:$0xff]
  %v809 = vld [vmem:[%s806 + $0x10] sm:$0xff]
  %v810 = vld [vmem:[%s806 + $0x18] sm:$0xff]
  %s811 = scalar_lea.vmem %s5, 1
  %v812 = vld [vmem:[%s811] sm:$0x1]
  %v814 = vlaneseq
  %v815 = vshrl.u32 %v814, 7
  %v816 = vsub.s32 0, %v815
  %v817 = vrot.slane %v812, %v816
  %819 = vmatprep.subr.mxu0 0.0
  %820 = vmatpush1.msra.mxu0 0.0
  %821 = vmatprep.subr.mxu0 0.0
  %822 = vmatpush1.msra.mxu0 0.0
  %823 = vmatprep.subr.mxu0 0.0
  %824 = vmatpush1.msra.mxu0 0.0
  %825 = vmatprep.subr.mxu0 0.0
  %826 = vmatpush1.msra.mxu0 0.0
  %827 = vmatprep.subr.mxu0 0.0
  %828 = vmatpush1.msra.mxu0 0.0
  %829 = vmatprep.subr.mxu0 0.0
  %830 = vmatpush1.msra.mxu0 0.0
  %831 = vmatprep.subr.mxu0 0.0
  %832 = vmatpush1.msra.mxu0 0.0
  %833 = vmatprep.subr.mxu0 0.0
  %834 = vmatpush1.msra.mxu0 0.0
  %835 = vmatprep.subr.mxu0 0.0
  %836 = vmatpush1.msra.mxu0 0.0
  %837 = vmatprep.subr.mxu0 0.0
  %838 = vmatpush1.msra.mxu0 0.0
  %839 = vmatprep.subr.mxu0 0.0
  %840 = vmatpush1.msra.mxu0 0.0
  %841 = vmatprep.subr.mxu0 0.0
  %842 = vmatpush1.msra.mxu0 0.0
  %843 = vmatprep.subr.mxu0 0.0
  %844 = vmatpush1.msra.mxu0 %v810
  %845 = vmatprep.subr.mxu0 0.0
  %846 = vmatpush1.msra.mxu0 %v809
  %847 = vmatprep.subr.mxu0 0.0
  %848 = vmatpush1.msra.mxu0 %v808
  %849 = vmatprep.subr.mxu0 0.0
  %850 = vmatpush1.msra.mxu0 %v807
  %851 = vmatprep.subr.mxu0 0.0
  %852 = vmatpush2.msra.mxu0 0.0
  %853 = vmatprep.subr.mxu0 0.0
  %854 = vmatpush2.msra.mxu0 0.0
  %855 = vmatprep.subr.mxu0 0.0
  %856 = vmatpush2.msra.mxu0 0.0
  %857 = vmatprep.subr.mxu0 0.0
  %858 = vmatpush2.msra.mxu0 0.0
  %859 = vmatprep.subr.mxu0 0.0
  %860 = vmatpush2.msra.mxu0 0.0
  %861 = vmatprep.subr.mxu0 0.0
  %862 = vmatpush2.msra.mxu0 0.0
  %863 = vmatprep.subr.mxu0 0.0
  %864 = vmatpush2.msra.mxu0 0.0
  %865 = vmatprep.subr.mxu0 0.0
  %866 = vmatpush2.msra.mxu0 0.0
  %867 = vmatprep.subr.mxu0 0.0
  %868 = vmatpush2.msra.mxu0 0.0
  %869 = vmatprep.subr.mxu0 0.0
  %870 = vmatpush2.msra.mxu0 0.0
  %871 = vmatprep.subr.mxu0 0.0
  %872 = vmatpush2.msra.mxu0 0.0
  %873 = vmatprep.subr.mxu0 0.0
  %874 = vmatpush2.msra.mxu0 0.0
  %875 = vmatprep.subr.mxu0 0.0
  %876 = vmatpush2.msra.mxu0 0.0
  %877 = vmatprep.subr.mxu0 0.0
  %878 = vmatpush2.msra.mxu0 0.0
  %879 = vmatprep.subr.mxu0 0.0
  %880 = vmatpush2.msra.mxu0 0.0
  %881 = vmatprep.subr.mxu0 0.0
  %882 = vmatpush2.msra.mxu0 0.0
  %883 = vmatprep.mubr.f32.mxu0 0.0
  %884 = vmatmul.mubr.f32.gmra.mxu0 %v224
  %v885 = vpop.f32.mrf.mxu0
  %v886 = vadd.f32 %v817, %v885
  %v887 = vpop.f32.mrf.mxu0
  %888 = vmatprep.mubr.f32.mxu0 0.0
  %889 = vmatmul.mubr.f32.gmra.mxu0 %v227
  %v890 = vpop.f32.mrf.mxu0
  %v891 = vadd.f32 %v817, %v890
  %v892 = vpop.f32.mrf.mxu0
  %893 = vdwg.mxu0
  %s894 = scalar_lea.vmem %s4, 160
  %v895 = vld [vmem:[%s894] sm:$0xff]
  %v896 = vld [vmem:[%s894 + $0x8] sm:$0xff]
  %v897 = vld [vmem:[%s894 + $0x10] sm:$0xff]
  %v898 = vld [vmem:[%s894 + $0x18] sm:$0xff]
  %s899 = scalar_lea.vmem %s5, 5
  %v900 = vld [vmem:[%s899] sm:$0x1]
  %v902 = vlaneseq
  %v903 = vshrl.u32 %v902, 7
  %v904 = vsub.s32 0, %v903
  %v905 = vrot.slane %v900, %v904
  %907 = vmatprep.subr.mxu0 0.0
  %908 = vmatpush1.msra.mxu0 0.0
  %909 = vmatprep.subr.mxu0 0.0
  %910 = vmatpush1.msra.mxu0 0.0
  %911 = vmatprep.subr.mxu0 0.0
  %912 = vmatpush1.msra.mxu0 0.0
  %913 = vmatprep.subr.mxu0 0.0
  %914 = vmatpush1.msra.mxu0 0.0
  %915 = vmatprep.subr.mxu0 0.0
  %916 = vmatpush1.msra.mxu0 0.0
  %917 = vmatprep.subr.mxu0 0.0
  %918 = vmatpush1.msra.mxu0 0.0
  %919 = vmatprep.subr.mxu0 0.0
  %920 = vmatpush1.msra.mxu0 0.0
  %921 = vmatprep.subr.mxu0 0.0
  %922 = vmatpush1.msra.mxu0 0.0
  %923 = vmatprep.subr.mxu0 0.0
  %924 = vmatpush1.msra.mxu0 0.0
  %925 = vmatprep.subr.mxu0 0.0
  %926 = vmatpush1.msra.mxu0 0.0
  %927 = vmatprep.subr.mxu0 0.0
  %928 = vmatpush1.msra.mxu0 0.0
  %929 = vmatprep.subr.mxu0 0.0
  %930 = vmatpush1.msra.mxu0 0.0
  %931 = vmatprep.subr.mxu0 0.0
  %932 = vmatpush1.msra.mxu0 %v898
  %933 = vmatprep.subr.mxu0 0.0
  %934 = vmatpush1.msra.mxu0 %v897
  %935 = vmatprep.subr.mxu0 0.0
  %936 = vmatpush1.msra.mxu0 %v896
  %937 = vmatprep.subr.mxu0 0.0
  %938 = vmatpush1.msra.mxu0 %v895
  %939 = vmatprep.subr.mxu0 0.0
  %940 = vmatpush2.msra.mxu0 0.0
  %941 = vmatprep.subr.mxu0 0.0
  %942 = vmatpush2.msra.mxu0 0.0
  %943 = vmatprep.subr.mxu0 0.0
  %944 = vmatpush2.msra.mxu0 0.0
  %945 = vmatprep.subr.mxu0 0.0
  %946 = vmatpush2.msra.mxu0 0.0
  %947 = vmatprep.subr.mxu0 0.0
  %948 = vmatpush2.msra.mxu0 0.0
  %949 = vmatprep.subr.mxu0 0.0
  %950 = vmatpush2.msra.mxu0 0.0
  %951 = vmatprep.subr.mxu0 0.0
  %952 = vmatpush2.msra.mxu0 0.0
  %953 = vmatprep.subr.mxu0 0.0
  %954 = vmatpush2.msra.mxu0 0.0
  %955 = vmatprep.subr.mxu0 0.0
  %956 = vmatpush2.msra.mxu0 0.0
  %957 = vmatprep.subr.mxu0 0.0
  %958 = vmatpush2.msra.mxu0 0.0
  %959 = vmatprep.subr.mxu0 0.0
  %960 = vmatpush2.msra.mxu0 0.0
  %961 = vmatprep.subr.mxu0 0.0
  %962 = vmatpush2.msra.mxu0 0.0
  %963 = vmatprep.subr.mxu0 0.0
  %964 = vmatpush2.msra.mxu0 0.0
  %965 = vmatprep.subr.mxu0 0.0
  %966 = vmatpush2.msra.mxu0 0.0
  %967 = vmatprep.subr.mxu0 0.0
  %968 = vmatpush2.msra.mxu0 0.0
  %969 = vmatprep.subr.mxu0 0.0
  %970 = vmatpush2.msra.mxu0 0.0
  %971 = vmatprep.mubr.f32.mxu0 0.0
  %972 = vmatmul.mubr.f32.gmra.mxu0 %v224
  %v973 = vpop.f32.mrf.mxu0
  %v974 = vadd.f32 %v905, %v973
  %v975 = vpop.f32.mrf.mxu0
  %976 = vmatprep.mubr.f32.mxu0 0.0
  %977 = vmatmul.mubr.f32.gmra.mxu0 %v227
  %v978 = vpop.f32.mrf.mxu0
  %v979 = vadd.f32 %v905, %v978
  %v980 = vpop.f32.mrf.mxu0
  %981 = vdwg.mxu0
  %s982 = scalar_lea.vmem %s4, 288
  %v983 = vld [vmem:[%s982] sm:$0xff]
  %v984 = vld [vmem:[%s982 + $0x8] sm:$0xff]
  %v985 = vld [vmem:[%s982 + $0x10] sm:$0xff]
  %v986 = vld [vmem:[%s982 + $0x18] sm:$0xff]
  %s987 = scalar_lea.vmem %s5, 9
  %v988 = vld [vmem:[%s987] sm:$0x1]
  %v990 = vlaneseq
  %v991 = vshrl.u32 %v990, 7
  %v992 = vsub.s32 0, %v991
  %v993 = vrot.slane %v988, %v992
  %995 = vmatprep.subr.mxu0 0.0
  %996 = vmatpush1.msra.mxu0 0.0
  %997 = vmatprep.subr.mxu0 0.0
  %998 = vmatpush1.msra.mxu0 0.0
  %999 = vmatprep.subr.mxu0 0.0
  %1000 = vmatpush1.msra.mxu0 0.0
  %1001 = vmatprep.subr.mxu0 0.0
  %1002 = vmatpush1.msra.mxu0 0.0
  %1003 = vmatprep.subr.mxu0 0.0
  %1004 = vmatpush1.msra.mxu0 0.0
  %1005 = vmatprep.subr.mxu0 0.0
  %1006 = vmatpush1.msra.mxu0 0.0
  %1007 = vmatprep.subr.mxu0 0.0
  %1008 = vmatpush1.msra.mxu0 0.0
  %1009 = vmatprep.subr.mxu0 0.0
  %1010 = vmatpush1.msra.mxu0 0.0
  %1011 = vmatprep.subr.mxu0 0.0
  %1012 = vmatpush1.msra.mxu0 0.0
  %1013 = vmatprep.subr.mxu0 0.0
  %1014 = vmatpush1.msra.mxu0 0.0
  %1015 = vmatprep.subr.mxu0 0.0
  %1016 = vmatpush1.msra.mxu0 0.0
  %1017 = vmatprep.subr.mxu0 0.0
  %1018 = vmatpush1.msra.mxu0 0.0
  %1019 = vmatprep.subr.mxu0 0.0
  %1020 = vmatpush1.msra.mxu0 %v986
  %1021 = vmatprep.subr.mxu0 0.0
  %1022 = vmatpush1.msra.mxu0 %v985
  %1023 = vmatprep.subr.mxu0 0.0
  %1024 = vmatpush1.msra.mxu0 %v984
  %1025 = vmatprep.subr.mxu0 0.0
  %1026 = vmatpush1.msra.mxu0 %v983
  %1027 = vmatprep.subr.mxu0 0.0
  %1028 = vmatpush2.msra.mxu0 0.0
  %1029 = vmatprep.subr.mxu0 0.0
  %1030 = vmatpush2.msra.mxu0 0.0
  %1031 = vmatprep.subr.mxu0 0.0
  %1032 = vmatpush2.msra.mxu0 0.0
  %1033 = vmatprep.subr.mxu0 0.0
  %1034 = vmatpush2.msra.mxu0 0.0
  %1035 = vmatprep.subr.mxu0 0.0
  %1036 = vmatpush2.msra.mxu0 0.0
  %1037 = vmatprep.subr.mxu0 0.0
  %1038 = vmatpush2.msra.mxu0 0.0
  %1039 = vmatprep.subr.mxu0 0.0
  %1040 = vmatpush2.msra.mxu0 0.0
  %1041 = vmatprep.subr.mxu0 0.0
  %1042 = vmatpush2.msra.mxu0 0.0
  %1043 = vmatprep.subr.mxu0 0.0
  %1044 = vmatpush2.msra.mxu0 0.0
  %1045 = vmatprep.subr.mxu0 0.0
  %1046 = vmatpush2.msra.mxu0 0.0
  %1047 = vmatprep.subr.mxu0 0.0
  %1048 = vmatpush2.msra.mxu0 0.0
  %1049 = vmatprep.subr.mxu0 0.0
  %1050 = vmatpush2.msra.mxu0 0.0
  %1051 = vmatprep.subr.mxu0 0.0
  %1052 = vmatpush2.msra.mxu0 0.0
  %1053 = vmatprep.subr.mxu0 0.0
  %1054 = vmatpush2.msra.mxu0 0.0
  %1055 = vmatprep.subr.mxu0 0.0
  %1056 = vmatpush2.msra.mxu0 0.0
  %1057 = vmatprep.subr.mxu0 0.0
  %1058 = vmatpush2.msra.mxu0 0.0
  %1059 = vmatprep.mubr.f32.mxu0 0.0
  %1060 = vmatmul.mubr.f32.gmra.mxu0 %v224
  %v1061 = vpop.f32.mrf.mxu0
  %v1062 = vadd.f32 %v993, %v1061
  %v1063 = vpop.f32.mrf.mxu0
  %1064 = vmatprep.mubr.f32.mxu0 0.0
  %1065 = vmatmul.mubr.f32.gmra.mxu0 %v227
  %v1066 = vpop.f32.mrf.mxu0
  %v1067 = vadd.f32 %v993, %v1066
  %v1068 = vpop.f32.mrf.mxu0
  %1069 = vdwg.mxu0
  %v1071 = vsel %vm480, %v886, 0
  %v1074 = vsel %vm480, %v974, 0
  %1076 = vmatprep.subr.mxu0 0.0
  %1077 = vmatpush1.xpose.msra.mxu0 0.0
  %1078 = vmatprep.subr.mxu0 0.0
  %1079 = vmatpush1.xpose.msra.mxu0 0.0
  %1080 = vmatprep.subr.mxu0 0.0
  %1081 = vmatpush1.xpose.msra.mxu0 0.0
  %1082 = vmatprep.subr.mxu0 0.0
  %1083 = vmatpush1.xpose.msra.mxu0 0.0
  %1084 = vmatprep.subr.mxu0 0.0
  %1085 = vmatpush1.xpose.msra.mxu0 0.0
  %1086 = vmatprep.subr.mxu0 0.0
  %1087 = vmatpush1.xpose.msra.mxu0 0.0
  %1088 = vmatprep.subr.mxu0 0.0
  %1089 = vmatpush1.xpose.msra.mxu0 0.0
  %1090 = vmatprep.subr.mxu0 0.0
  %1091 = vmatpush1.xpose.msra.mxu0 0.0
  %1092 = vmatprep.subr.mxu0 0.0
  %1093 = vmatpush1.xpose.msra.mxu0 0.0
  %1094 = vmatprep.subr.mxu0 0.0
  %1095 = vmatpush1.xpose.msra.mxu0 0.0
  %1096 = vmatprep.subr.mxu0 0.0
  %1097 = vmatpush1.xpose.msra.mxu0 0.0
  %1098 = vmatprep.subr.mxu0 0.0
  %1099 = vmatpush1.xpose.msra.mxu0 0.0
  %1100 = vmatprep.subr.mxu0 0.0
  %1101 = vmatpush1.xpose.msra.mxu0 0.0
  %1102 = vmatprep.subr.mxu0 0.0
  %1103 = vmatpush1.xpose.msra.mxu0 0.0
  %1104 = vmatprep.subr.mxu0 0.0
  %1105 = vmatpush1.xpose.msra.mxu0 0.0
  %1106 = vmatprep.subr.mxu0 0.0
  %1107 = vmatpush1.xpose.msra.mxu0 %v1074
  %1108 = vmatprep.subr.mxu0 0.0
  %1109 = vmatpush2.xpose.msra.mxu0 0.0
  %1110 = vmatprep.subr.mxu0 0.0
  %1111 = vmatpush2.xpose.msra.mxu0 0.0
  %1112 = vmatprep.subr.mxu0 0.0
  %1113 = vmatpush2.xpose.msra.mxu0 0.0
  %1114 = vmatprep.subr.mxu0 0.0
  %1115 = vmatpush2.xpose.msra.mxu0 0.0
  %1116 = vmatprep.subr.mxu0 0.0
  %1117 = vmatpush2.xpose.msra.mxu0 0.0
  %1118 = vmatprep.subr.mxu0 0.0
  %1119 = vmatpush2.xpose.msra.mxu0 0.0
  %1120 = vmatprep.subr.mxu0 0.0
  %1121 = vmatpush2.xpose.msra.mxu0 0.0
  %1122 = vmatprep.subr.mxu0 0.0
  %1123 = vmatpush2.xpose.msra.mxu0 0.0
  %1124 = vmatprep.subr.mxu0 0.0
  %1125 = vmatpush2.xpose.msra.mxu0 0.0
  %1126 = vmatprep.subr.mxu0 0.0
  %1127 = vmatpush2.xpose.msra.mxu0 0.0
  %1128 = vmatprep.subr.mxu0 0.0
  %1129 = vmatpush2.xpose.msra.mxu0 0.0
  %1130 = vmatprep.subr.mxu0 0.0
  %1131 = vmatpush2.xpose.msra.mxu0 0.0
  %1132 = vmatprep.subr.mxu0 0.0
  %1133 = vmatpush2.xpose.msra.mxu0 0.0
  %1134 = vmatprep.subr.mxu0 0.0
  %1135 = vmatpush2.xpose.msra.mxu0 0.0
  %1136 = vmatprep.subr.mxu0 0.0
  %1137 = vmatpush2.xpose.msra.mxu0 0.0
  %1138 = vmatprep.subr.mxu0 0.0
  %1139 = vmatpush2.xpose.msra.mxu0 0.0
  %1140 = vmatprep.mubr.f32.mxu0 0.0
  %1141 = vmatmul.mubr.f32.gmra.mxu0 %v1071
  %v1142 = vpop.f32.mrf.mxu0
  %v1143 = vadd.f32 0.0, %v1142
  %v1144 = vpop.f32.mrf.mxu0
  %1145 = vdwg.mxu0
  %v1147 = vsel %vm480, %v891, 0
  %v1150 = vsel %vm480, %v979, 0
  %1152 = vmatprep.subr.mxu0 0.0
  %1153 = vmatpush1.xpose.msra.mxu0 0.0
  %1154 = vmatprep.subr.mxu0 0.0
  %1155 = vmatpush1.xpose.msra.mxu0 0.0
  %1156 = vmatprep.subr.mxu0 0.0
  %1157 = vmatpush1.xpose.msra.mxu0 0.0
  %1158 = vmatprep.subr.mxu0 0.0
  %1159 = vmatpush1.xpose.msra.mxu0 0.0
  %1160 = vmatprep.subr.mxu0 0.0
  %1161 = vmatpush1.xpose.msra.mxu0 0.0
  %1162 = vmatprep.subr.mxu0 0.0
  %1163 = vmatpush1.xpose.msra.mxu0 0.0
  %1164 = vmatprep.subr.mxu0 0.0
  %1165 = vmatpush1.xpose.msra.mxu0 0.0
  %1166 = vmatprep.subr.mxu0 0.0
  %1167 = vmatpush1.xpose.msra.mxu0 0.0
  %1168 = vmatprep.subr.mxu0 0.0
  %1169 = vmatpush1.xpose.msra.mxu0 0.0
  %1170 = vmatprep.subr.mxu0 0.0
  %1171 = vmatpush1.xpose.msra.mxu0 0.0
  %1172 = vmatprep.subr.mxu0 0.0
  %1173 = vmatpush1.xpose.msra.mxu0 0.0
  %1174 = vmatprep.subr.mxu0 0.0
  %1175 = vmatpush1.xpose.msra.mxu0 0.0
  %1176 = vmatprep.subr.mxu0 0.0
  %1177 = vmatpush1.xpose.msra.mxu0 0.0
  %1178 = vmatprep.subr.mxu0 0.0
  %1179 = vmatpush1.xpose.msra.mxu0 0.0
  %1180 = vmatprep.subr.mxu0 0.0
  %1181 = vmatpush1.xpose.msra.mxu0 0.0
  %1182 = vmatprep.subr.mxu0 0.0
  %1183 = vmatpush1.xpose.msra.mxu0 %v1150
  %1184 = vmatprep.subr.mxu0 0.0
  %1185 = vmatpush2.xpose.msra.mxu0 0.0
  %1186 = vmatprep.subr.mxu0 0.0
  %1187 = vmatpush2.xpose.msra.mxu0 0.0
  %1188 = vmatprep.subr.mxu0 0.0
  %1189 = vmatpush2.xpose.msra.mxu0 0.0
  %1190 = vmatprep.subr.mxu0 0.0
  %1191 = vmatpush2.xpose.msra.mxu0 0.0
  %1192 = vmatprep.subr.mxu0 0.0
  %1193 = vmatpush2.xpose.msra.mxu0 0.0
  %1194 = vmatprep.subr.mxu0 0.0
  %1195 = vmatpush2.xpose.msra.mxu0 0.0
  %1196 = vmatprep.subr.mxu0 0.0
  %1197 = vmatpush2.xpose.msra.mxu0 0.0
  %1198 = vmatprep.subr.mxu0 0.0
  %1199 = vmatpush2.xpose.msra.mxu0 0.0
  %1200 = vmatprep.subr.mxu0 0.0
  %1201 = vmatpush2.xpose.msra.mxu0 0.0
  %1202 = vmatprep.subr.mxu0 0.0
  %1203 = vmatpush2.xpose.msra.mxu0 0.0
  %1204 = vmatprep.subr.mxu0 0.0
  %1205 = vmatpush2.xpose.msra.mxu0 0.0
  %1206 = vmatprep.subr.mxu0 0.0
  %1207 = vmatpush2.xpose.msra.mxu0 0.0
  %1208 = vmatprep.subr.mxu0 0.0
  %1209 = vmatpush2.xpose.msra.mxu0 0.0
  %1210 = vmatprep.subr.mxu0 0.0
  %1211 = vmatpush2.xpose.msra.mxu0 0.0
  %1212 = vmatprep.subr.mxu0 0.0
  %1213 = vmatpush2.xpose.msra.mxu0 0.0
  %1214 = vmatprep.subr.mxu0 0.0
  %1215 = vmatpush2.xpose.msra.mxu0 0.0
  %1216 = vmatprep.mubr.f32.mxu0 0.0
  %1217 = vmatmul.mubr.f32.gmra.mxu0 %v1147
  %v1218 = vpop.f32.mrf.mxu0
  %v1219 = vadd.f32 0.0, %v1218
  %v1220 = vpop.f32.mrf.mxu0
  %1221 = vdwg.mxu0
  %v1222 = vmul.f32 %v1143, 0.35355338
  %v1223 = vmul.f32 %v1219, 0.35355338
  %v1224 = vadd.f32 %v1222, %v168
  %v1225 = vadd.f32 %v1223, %v169
  %v1226 = vsel %vm480, %v1224, -inf
  %1227 = vmax.xlane.f32.xlu0 %v1226
  %v1228 = vpop.xlane.xlu0 %1227
  %v1229 = vsel %vm480, %v1225, -inf
  %1230 = vmax.xlane.f32.xlu0 %v1229
  %v1231 = vpop.xlane.xlu0 %1230
  %v1232 = vsub.f32 %v1224, %v1228
  %v1233 = vsub.f32 %v1225, %v1231
  %v1234 = vmul.f32 %v1232, 1.442695
  %v1235 = vpow.pop %v1234
  %v1236 = vmul.f32 %v1233, 1.442695
  %v1237 = vpow.pop %v1236
  %v1238 = vsel %vm480, %v1235, 0.0
  %1239 = vadd.xlane.f32.xlu0 %v1238
  %v1240 = vpop.xlane.xlu0 %1239
  %v1241 = vsel %vm480, %v1237, 0.0
  %1242 = vadd.xlane.f32.xlu0 %v1241
  %v1243 = vpop.xlane.xlu0 %1242
  %v1244 = vrcp.pop %v1240
  %v1245 = vrcp.pop %v1243
  %v1246 = vmul.f32 %v1235, %v1244
  %v1247 = vmul.f32 %v1237, %v1245
  %v1249 = vsel %vm480, %v1246, 0
  %1251 = vmatprep.subr.mxu0 0.0
  %1252 = vmatpush1.msra.mxu0 0.0
  %1253 = vmatprep.subr.mxu0 0.0
  %1254 = vmatpush1.msra.mxu0 0.0
  %1255 = vmatprep.subr.mxu0 0.0
  %1256 = vmatpush1.msra.mxu0 0.0
  %1257 = vmatprep.subr.mxu0 0.0
  %1258 = vmatpush1.msra.mxu0 0.0
  %1259 = vmatprep.subr.mxu0 0.0
  %1260 = vmatpush1.msra.mxu0 0.0
  %1261 = vmatprep.subr.mxu0 0.0
  %1262 = vmatpush1.msra.mxu0 0.0
  %1263 = vmatprep.subr.mxu0 0.0
  %1264 = vmatpush1.msra.mxu0 0.0
  %1265 = vmatprep.subr.mxu0 0.0
  %1266 = vmatpush1.msra.mxu0 0.0
  %1267 = vmatprep.subr.mxu0 0.0
  %1268 = vmatpush1.msra.mxu0 0.0
  %1269 = vmatprep.subr.mxu0 0.0
  %1270 = vmatpush1.msra.mxu0 0.0
  %1271 = vmatprep.subr.mxu0 0.0
  %1272 = vmatpush1.msra.mxu0 0.0
  %1273 = vmatprep.subr.mxu0 0.0
  %1274 = vmatpush1.msra.mxu0 0.0
  %1275 = vmatprep.subr.mxu0 0.0
  %1276 = vmatpush1.msra.mxu0 0.0
  %1277 = vmatprep.subr.mxu0 0.0
  %1278 = vmatpush1.msra.mxu0 0.0
  %1279 = vmatprep.subr.mxu0 0.0
  %1280 = vmatpush1.msra.mxu0 0.0
  %1281 = vmatprep.subr.mxu0 0.0
  %1282 = vmatpush1.msra.mxu0 %v1062
  %1283 = vmatprep.subr.mxu0 0.0
  %1284 = vmatpush2.msra.mxu0 0.0
  %1285 = vmatprep.subr.mxu0 0.0
  %1286 = vmatpush2.msra.mxu0 0.0
  %1287 = vmatprep.subr.mxu0 0.0
  %1288 = vmatpush2.msra.mxu0 0.0
  %1289 = vmatprep.subr.mxu0 0.0
  %1290 = vmatpush2.msra.mxu0 0.0
  %1291 = vmatprep.subr.mxu0 0.0
  %1292 = vmatpush2.msra.mxu0 0.0
  %1293 = vmatprep.subr.mxu0 0.0
  %1294 = vmatpush2.msra.mxu0 0.0
  %1295 = vmatprep.subr.mxu0 0.0
  %1296 = vmatpush2.msra.mxu0 0.0
  %1297 = vmatprep.subr.mxu0 0.0
  %1298 = vmatpush2.msra.mxu0 0.0
  %1299 = vmatprep.subr.mxu0 0.0
  %1300 = vmatpush2.msra.mxu0 0.0
  %1301 = vmatprep.subr.mxu0 0.0
  %1302 = vmatpush2.msra.mxu0 0.0
  %1303 = vmatprep.subr.mxu0 0.0
  %1304 = vmatpush2.msra.mxu0 0.0
  %1305 = vmatprep.subr.mxu0 0.0
  %1306 = vmatpush2.msra.mxu0 0.0
  %1307 = vmatprep.subr.mxu0 0.0
  %1308 = vmatpush2.msra.mxu0 0.0
  %1309 = vmatprep.subr.mxu0 0.0
  %1310 = vmatpush2.msra.mxu0 0.0
  %1311 = vmatprep.subr.mxu0 0.0
  %1312 = vmatpush2.msra.mxu0 0.0
  %1313 = vmatprep.subr.mxu0 0.0
  %1314 = vmatpush2.msra.mxu0 0.0
  %1315 = vmatprep.mubr.f32.mxu0 0.0
  %1316 = vmatmul.mubr.f32.gmra.mxu0 %v1249
  %v1317 = vpop.f32.mrf.mxu0
  %v1318 = vadd.f32 0.0, %v1317
  %v1319 = vpop.f32.mrf.mxu0
  %1320 = vdwg.mxu0
  %v1322 = vsel %vm480, %v1247, 0
  %1324 = vmatprep.subr.mxu0 0.0
  %1325 = vmatpush1.msra.mxu0 0.0
  %1326 = vmatprep.subr.mxu0 0.0
  %1327 = vmatpush1.msra.mxu0 0.0
  %1328 = vmatprep.subr.mxu0 0.0
  %1329 = vmatpush1.msra.mxu0 0.0
  %1330 = vmatprep.subr.mxu0 0.0
  %1331 = vmatpush1.msra.mxu0 0.0
  %1332 = vmatprep.subr.mxu0 0.0
  %1333 = vmatpush1.msra.mxu0 0.0
  %1334 = vmatprep.subr.mxu0 0.0
  %1335 = vmatpush1.msra.mxu0 0.0
  %1336 = vmatprep.subr.mxu0 0.0
  %1337 = vmatpush1.msra.mxu0 0.0
  %1338 = vmatprep.subr.mxu0 0.0
  %1339 = vmatpush1.msra.mxu0 0.0
  %1340 = vmatprep.subr.mxu0 0.0
  %1341 = vmatpush1.msra.mxu0 0.0
  %1342 = vmatprep.subr.mxu0 0.0
  %1343 = vmatpush1.msra.mxu0 0.0
  %1344 = vmatprep.subr.mxu0 0.0
  %1345 = vmatpush1.msra.mxu0 0.0
  %1346 = vmatprep.subr.mxu0 0.0
  %1347 = vmatpush1.msra.mxu0 0.0
  %1348 = vmatprep.subr.mxu0 0.0
  %1349 = vmatpush1.msra.mxu0 0.0
  %1350 = vmatprep.subr.mxu0 0.0
  %1351 = vmatpush1.msra.mxu0 0.0
  %1352 = vmatprep.subr.mxu0 0.0
  %1353 = vmatpush1.msra.mxu0 0.0
  %1354 = vmatprep.subr.mxu0 0.0
  %1355 = vmatpush1.msra.mxu0 %v1067
  %1356 = vmatprep.subr.mxu0 0.0
  %1357 = vmatpush2.msra.mxu0 0.0
  %1358 = vmatprep.subr.mxu0 0.0
  %1359 = vmatpush2.msra.mxu0 0.0
  %1360 = vmatprep.subr.mxu0 0.0
  %1361 = vmatpush2.msra.mxu0 0.0
  %1362 = vmatprep.subr.mxu0 0.0
  %1363 = vmatpush2.msra.mxu0 0.0
  %1364 = vmatprep.subr.mxu0 0.0
  %1365 = vmatpush2.msra.mxu0 0.0
  %1366 = vmatprep.subr.mxu0 0.0
  %1367 = vmatpush2.msra.mxu0 0.0
  %1368 = vmatprep.subr.mxu0 0.0
  %1369 = vmatpush2.msra.mxu0 0.0
  %1370 = vmatprep.subr.mxu0 0.0
  %1371 = vmatpush2.msra.mxu0 0.0
  %1372 = vmatprep.subr.mxu0 0.0
  %1373 = vmatpush2.msra.mxu0 0.0
  %1374 = vmatprep.subr.mxu0 0.0
  %1375 = vmatpush2.msra.mxu0 0.0
  %1376 = vmatprep.subr.mxu0 0.0
  %1377 = vmatpush2.msra.mxu0 0.0
  %1378 = vmatprep.subr.mxu0 0.0
  %1379 = vmatpush2.msra.mxu0 0.0
  %1380 = vmatprep.subr.mxu0 0.0
  %1381 = vmatpush2.msra.mxu0 0.0
  %1382 = vmatprep.subr.mxu0 0.0
  %1383 = vmatpush2.msra.mxu0 0.0
  %1384 = vmatprep.subr.mxu0 0.0
  %1385 = vmatpush2.msra.mxu0 0.0
  %1386 = vmatprep.subr.mxu0 0.0
  %1387 = vmatpush2.msra.mxu0 0.0
  %1388 = vmatprep.mubr.f32.mxu0 0.0
  %1389 = vmatmul.mubr.f32.gmra.mxu0 %v1322
  %v1390 = vpop.f32.mrf.mxu0
  %v1391 = vadd.f32 0.0, %v1390
  %v1392 = vpop.f32.mrf.mxu0
  %1393 = vdwg.mxu0
  %s1394 = scalar_lea.vmem %s6, 8
  %v1395 = vld [vmem:[%s1394] sm:$0xff]
  %v1397 = vsel %vm480, %v1318, 0
  %v1400 = vsel %vm480, %v1391, 0
  %1402 = vmatprep.subr.mxu0 0.0
  %1403 = vmatpush1.msra.mxu0 0.0
  %1404 = vmatprep.subr.mxu0 0.0
  %1405 = vmatpush1.msra.mxu0 0.0
  %1406 = vmatprep.subr.mxu0 0.0
  %1407 = vmatpush1.msra.mxu0 0.0
  %1408 = vmatprep.subr.mxu0 0.0
  %1409 = vmatpush1.msra.mxu0 0.0
  %1410 = vmatprep.subr.mxu0 0.0
  %1411 = vmatpush1.msra.mxu0 0.0
  %1412 = vmatprep.subr.mxu0 0.0
  %1413 = vmatpush1.msra.mxu0 0.0
  %1414 = vmatprep.subr.mxu0 0.0
  %1415 = vmatpush1.msra.mxu0 0.0
  %1416 = vmatprep.subr.mxu0 0.0
  %1417 = vmatpush1.msra.mxu0 0.0
  %1418 = vmatprep.subr.mxu0 0.0
  %1419 = vmatpush1.msra.mxu0 0.0
  %1420 = vmatprep.subr.mxu0 0.0
  %1421 = vmatpush1.msra.mxu0 0.0
  %1422 = vmatprep.subr.mxu0 0.0
  %1423 = vmatpush1.msra.mxu0 0.0
  %1424 = vmatprep.subr.mxu0 0.0
  %1425 = vmatpush1.msra.mxu0 0.0
  %1426 = vmatprep.subr.mxu0 0.0
  %1427 = vmatpush1.msra.mxu0 0.0
  %1428 = vmatprep.subr.mxu0 0.0
  %1429 = vmatpush1.msra.mxu0 0.0
  %1430 = vmatprep.subr.mxu0 0.0
  %1431 = vmatpush1.msra.mxu0 0.0
  %1432 = vmatprep.subr.mxu0 0.0
  %1433 = vmatpush1.msra.mxu0 %v1395
  %1434 = vmatprep.subr.mxu0 0.0
  %1435 = vmatpush2.msra.mxu0 0.0
  %1436 = vmatprep.subr.mxu0 0.0
  %1437 = vmatpush2.msra.mxu0 0.0
  %1438 = vmatprep.subr.mxu0 0.0
  %1439 = vmatpush2.msra.mxu0 0.0
  %1440 = vmatprep.subr.mxu0 0.0
  %1441 = vmatpush2.msra.mxu0 0.0
  %1442 = vmatprep.subr.mxu0 0.0
  %1443 = vmatpush2.msra.mxu0 0.0
  %1444 = vmatprep.subr.mxu0 0.0
  %1445 = vmatpush2.msra.mxu0 0.0
  %1446 = vmatprep.subr.mxu0 0.0
  %1447 = vmatpush2.msra.mxu0 0.0
  %1448 = vmatprep.subr.mxu0 0.0
  %1449 = vmatpush2.msra.mxu0 0.0
  %1450 = vmatprep.subr.mxu0 0.0
  %1451 = vmatpush2.msra.mxu0 0.0
  %1452 = vmatprep.subr.mxu0 0.0
  %1453 = vmatpush2.msra.mxu0 0.0
  %1454 = vmatprep.subr.mxu0 0.0
  %1455 = vmatpush2.msra.mxu0 0.0
  %1456 = vmatprep.subr.mxu0 0.0
  %1457 = vmatpush2.msra.mxu0 0.0
  %1458 = vmatprep.subr.mxu0 0.0
  %1459 = vmatpush2.msra.mxu0 0.0
  %1460 = vmatprep.subr.mxu0 0.0
  %1461 = vmatpush2.msra.mxu0 0.0
  %1462 = vmatprep.subr.mxu0 0.0
  %1463 = vmatpush2.msra.mxu0 0.0
  %1464 = vmatprep.subr.mxu0 0.0
  %1465 = vmatpush2.msra.mxu0 0.0
  %1466 = vmatprep.mubr.f32.mxu0 0.0
  %1467 = vmatmul.mubr.f32.gmra.mxu0 %v1397
  %v1468 = vpop.f32.mrf.mxu0
  %v1469 = vadd.f32 0.0, %v1468
  %v1470 = vpop.f32.mrf.mxu0
  %1471 = vmatprep.mubr.f32.mxu0 0.0
  %1472 = vmatmul.mubr.f32.gmra.mxu0 %v1400
  %v1473 = vpop.f32.mrf.mxu0
  %v1474 = vadd.f32 0.0, %v1473
  %v1475 = vpop.f32.mrf.mxu0
  %1476 = vdwg.mxu0
  %v1478 = vsel %vm480, %v729, 0
  %v1481 = vsel %vm480, %v802, 0
  %1483 = vmatprep.subr.mxu0 0.0
  %1484 = vmatpush1.msra.mxu0 0.0
  %1485 = vmatprep.subr.mxu0 0.0
  %1486 = vmatpush1.msra.mxu0 0.0
  %1487 = vmatprep.subr.mxu0 0.0
  %1488 = vmatpush1.msra.mxu0 0.0
  %1489 = vmatprep.subr.mxu0 0.0
  %1490 = vmatpush1.msra.mxu0 0.0
  %1491 = vmatprep.subr.mxu0 0.0
  %1492 = vmatpush1.msra.mxu0 0.0
  %1493 = vmatprep.subr.mxu0 0.0
  %1494 = vmatpush1.msra.mxu0 0.0
  %1495 = vmatprep.subr.mxu0 0.0
  %1496 = vmatpush1.msra.mxu0 0.0
  %1497 = vmatprep.subr.mxu0 0.0
  %1498 = vmatpush1.msra.mxu0 0.0
  %1499 = vmatprep.subr.mxu0 0.0
  %1500 = vmatpush1.msra.mxu0 0.0
  %1501 = vmatprep.subr.mxu0 0.0
  %1502 = vmatpush1.msra.mxu0 0.0
  %1503 = vmatprep.subr.mxu0 0.0
  %1504 = vmatpush1.msra.mxu0 0.0
  %1505 = vmatprep.subr.mxu0 0.0
  %1506 = vmatpush1.msra.mxu0 0.0
  %1507 = vmatprep.subr.mxu0 0.0
  %1508 = vmatpush1.msra.mxu0 0.0
  %1509 = vmatprep.subr.mxu0 0.0
  %1510 = vmatpush1.msra.mxu0 0.0
  %1511 = vmatprep.subr.mxu0 0.0
  %1512 = vmatpush1.msra.mxu0 0.0
  %1513 = vmatprep.subr.mxu0 0.0
  %1514 = vmatpush1.msra.mxu0 %v805
  %1515 = vmatprep.subr.mxu0 0.0
  %1516 = vmatpush2.msra.mxu0 0.0
  %1517 = vmatprep.subr.mxu0 0.0
  %1518 = vmatpush2.msra.mxu0 0.0
  %1519 = vmatprep.subr.mxu0 0.0
  %1520 = vmatpush2.msra.mxu0 0.0
  %1521 = vmatprep.subr.mxu0 0.0
  %1522 = vmatpush2.msra.mxu0 0.0
  %1523 = vmatprep.subr.mxu0 0.0
  %1524 = vmatpush2.msra.mxu0 0.0
  %1525 = vmatprep.subr.mxu0 0.0
  %1526 = vmatpush2.msra.mxu0 0.0
  %1527 = vmatprep.subr.mxu0 0.0
  %1528 = vmatpush2.msra.mxu0 0.0
  %1529 = vmatprep.subr.mxu0 0.0
  %1530 = vmatpush2.msra.mxu0 0.0
  %1531 = vmatprep.subr.mxu0 0.0
  %1532 = vmatpush2.msra.mxu0 0.0
  %1533 = vmatprep.subr.mxu0 0.0
  %1534 = vmatpush2.msra.mxu0 0.0
  %1535 = vmatprep.subr.mxu0 0.0
  %1536 = vmatpush2.msra.mxu0 0.0
  %1537 = vmatprep.subr.mxu0 0.0
  %1538 = vmatpush2.msra.mxu0 0.0
  %1539 = vmatprep.subr.mxu0 0.0
  %1540 = vmatpush2.msra.mxu0 0.0
  %1541 = vmatprep.subr.mxu0 0.0
  %1542 = vmatpush2.msra.mxu0 0.0
  %1543 = vmatprep.subr.mxu0 0.0
  %1544 = vmatpush2.msra.mxu0 0.0
  %1545 = vmatprep.subr.mxu0 0.0
  %1546 = vmatpush2.msra.mxu0 0.0
  %1547 = vmatprep.mubr.f32.mxu0 0.0
  %1548 = vmatmul.mubr.f32.gmra.mxu0 %v1478
  %v1549 = vpop.f32.mrf.mxu0
  %v1550 = vadd.f32 %v1469, %v1549
  %v1551 = vpop.f32.mrf.mxu0
  %1552 = vmatprep.mubr.f32.mxu0 0.0
  %1553 = vmatmul.mubr.f32.gmra.mxu0 %v1481
  %v1554 = vpop.f32.mrf.mxu0
  %v1555 = vadd.f32 %v1474, %v1554
  %v1556 = vpop.f32.mrf.mxu0
  %1557 = vdwg.mxu0
  %s1558 = scalar_lea.vmem %s4, 64
  %v1559 = vld [vmem:[%s1558] sm:$0xff]
  %v1560 = vld [vmem:[%s1558 + $0x8] sm:$0xff]
  %v1561 = vld [vmem:[%s1558 + $0x10] sm:$0xff]
  %v1562 = vld [vmem:[%s1558 + $0x18] sm:$0xff]
  %s1563 = scalar_lea.vmem %s5, 2
  %v1564 = vld [vmem:[%s1563] sm:$0x1]
  %v1566 = vlaneseq
  %v1567 = vshrl.u32 %v1566, 7
  %v1568 = vsub.s32 0, %v1567
  %v1569 = vrot.slane %v1564, %v1568
  %1571 = vmatprep.subr.mxu0 0.0
  %1572 = vmatpush1.msra.mxu0 0.0
  %1573 = vmatprep.subr.mxu0 0.0
  %1574 = vmatpush1.msra.mxu0 0.0
  %1575 = vmatprep.subr.mxu0 0.0
  %1576 = vmatpush1.msra.mxu0 0.0
  %1577 = vmatprep.subr.mxu0 0.0
  %1578 = vmatpush1.msra.mxu0 0.0
  %1579 = vmatprep.subr.mxu0 0.0
  %1580 = vmatpush1.msra.mxu0 0.0
  %1581 = vmatprep.subr.mxu0 0.0
  %1582 = vmatpush1.msra.mxu0 0.0
  %1583 = vmatprep.subr.mxu0 0.0
  %1584 = vmatpush1.msra.mxu0 0.0
  %1585 = vmatprep.subr.mxu0 0.0
  %1586 = vmatpush1.msra.mxu0 0.0
  %1587 = vmatprep.subr.mxu0 0.0
  %1588 = vmatpush1.msra.mxu0 0.0
  %1589 = vmatprep.subr.mxu0 0.0
  %1590 = vmatpush1.msra.mxu0 0.0
  %1591 = vmatprep.subr.mxu0 0.0
  %1592 = vmatpush1.msra.mxu0 0.0
  %1593 = vmatprep.subr.mxu0 0.0
  %1594 = vmatpush1.msra.mxu0 0.0
  %1595 = vmatprep.subr.mxu0 0.0
  %1596 = vmatpush1.msra.mxu0 %v1562
  %1597 = vmatprep.subr.mxu0 0.0
  %1598 = vmatpush1.msra.mxu0 %v1561
  %1599 = vmatprep.subr.mxu0 0.0
  %1600 = vmatpush1.msra.mxu0 %v1560
  %1601 = vmatprep.subr.mxu0 0.0
  %1602 = vmatpush1.msra.mxu0 %v1559
  %1603 = vmatprep.subr.mxu0 0.0
  %1604 = vmatpush2.msra.mxu0 0.0
  %1605 = vmatprep.subr.mxu0 0.0
  %1606 = vmatpush2.msra.mxu0 0.0
  %1607 = vmatprep.subr.mxu0 0.0
  %1608 = vmatpush2.msra.mxu0 0.0
  %1609 = vmatprep.subr.mxu0 0.0
  %1610 = vmatpush2.msra.mxu0 0.0
  %1611 = vmatprep.subr.mxu0 0.0
  %1612 = vmatpush2.msra.mxu0 0.0
  %1613 = vmatprep.subr.mxu0 0.0
  %1614 = vmatpush2.msra.mxu0 0.0
  %1615 = vmatprep.subr.mxu0 0.0
  %1616 = vmatpush2.msra.mxu0 0.0
  %1617 = vmatprep.subr.mxu0 0.0
  %1618 = vmatpush2.msra.mxu0 0.0
  %1619 = vmatprep.subr.mxu0 0.0
  %1620 = vmatpush2.msra.mxu0 0.0
  %1621 = vmatprep.subr.mxu0 0.0
  %1622 = vmatpush2.msra.mxu0 0.0
  %1623 = vmatprep.subr.mxu0 0.0
  %1624 = vmatpush2.msra.mxu0 0.0
  %1625 = vmatprep.subr.mxu0 0.0
  %1626 = vmatpush2.msra.mxu0 0.0
  %1627 = vmatprep.subr.mxu0 0.0
  %1628 = vmatpush2.msra.mxu0 0.0
  %1629 = vmatprep.subr.mxu0 0.0
  %1630 = vmatpush2.msra.mxu0 0.0
  %1631 = vmatprep.subr.mxu0 0.0
  %1632 = vmatpush2.msra.mxu0 0.0
  %1633 = vmatprep.subr.mxu0 0.0
  %1634 = vmatpush2.msra.mxu0 0.0
  %1635 = vmatprep.mubr.f32.mxu0 0.0
  %1636 = vmatmul.mubr.f32.gmra.mxu0 %v224
  %v1637 = vpop.f32.mrf.mxu0
  %v1638 = vadd.f32 %v1569, %v1637
  %v1639 = vpop.f32.mrf.mxu0
  %1640 = vmatprep.mubr.f32.mxu0 0.0
  %1641 = vmatmul.mubr.f32.gmra.mxu0 %v227
  %v1642 = vpop.f32.mrf.mxu0
  %v1643 = vadd.f32 %v1569, %v1642
  %v1644 = vpop.f32.mrf.mxu0
  %1645 = vdwg.mxu0
  %s1646 = scalar_lea.vmem %s4, 192
  %v1647 = vld [vmem:[%s1646] sm:$0xff]
  %v1648 = vld [vmem:[%s1646 + $0x8] sm:$0xff]
  %v1649 = vld [vmem:[%s1646 + $0x10] sm:$0xff]
  %v1650 = vld [vmem:[%s1646 + $0x18] sm:$0xff]
  %s1651 = scalar_lea.vmem %s5, 6
  %v1652 = vld [vmem:[%s1651] sm:$0x1]
  %v1654 = vlaneseq
  %v1655 = vshrl.u32 %v1654, 7
  %v1656 = vsub.s32 0, %v1655
  %v1657 = vrot.slane %v1652, %v1656
  %1659 = vmatprep.subr.mxu0 0.0
  %1660 = vmatpush1.msra.mxu0 0.0
  %1661 = vmatprep.subr.mxu0 0.0
  %1662 = vmatpush1.msra.mxu0 0.0
  %1663 = vmatprep.subr.mxu0 0.0
  %1664 = vmatpush1.msra.mxu0 0.0
  %1665 = vmatprep.subr.mxu0 0.0
  %1666 = vmatpush1.msra.mxu0 0.0
  %1667 = vmatprep.subr.mxu0 0.0
  %1668 = vmatpush1.msra.mxu0 0.0
  %1669 = vmatprep.subr.mxu0 0.0
  %1670 = vmatpush1.msra.mxu0 0.0
  %1671 = vmatprep.subr.mxu0 0.0
  %1672 = vmatpush1.msra.mxu0 0.0
  %1673 = vmatprep.subr.mxu0 0.0
  %1674 = vmatpush1.msra.mxu0 0.0
  %1675 = vmatprep.subr.mxu0 0.0
  %1676 = vmatpush1.msra.mxu0 0.0
  %1677 = vmatprep.subr.mxu0 0.0
  %1678 = vmatpush1.msra.mxu0 0.0
  %1679 = vmatprep.subr.mxu0 0.0
  %1680 = vmatpush1.msra.mxu0 0.0
  %1681 = vmatprep.subr.mxu0 0.0
  %1682 = vmatpush1.msra.mxu0 0.0
  %1683 = vmatprep.subr.mxu0 0.0
  %1684 = vmatpush1.msra.mxu0 %v1650
  %1685 = vmatprep.subr.mxu0 0.0
  %1686 = vmatpush1.msra.mxu0 %v1649
  %1687 = vmatprep.subr.mxu0 0.0
  %1688 = vmatpush1.msra.mxu0 %v1648
  %1689 = vmatprep.subr.mxu0 0.0
  %1690 = vmatpush1.msra.mxu0 %v1647
  %1691 = vmatprep.subr.mxu0 0.0
  %1692 = vmatpush2.msra.mxu0 0.0
  %1693 = vmatprep.subr.mxu0 0.0
  %1694 = vmatpush2.msra.mxu0 0.0
  %1695 = vmatprep.subr.mxu0 0.0
  %1696 = vmatpush2.msra.mxu0 0.0
  %1697 = vmatprep.subr.mxu0 0.0
  %1698 = vmatpush2.msra.mxu0 0.0
  %1699 = vmatprep.subr.mxu0 0.0
  %1700 = vmatpush2.msra.mxu0 0.0
  %1701 = vmatprep.subr.mxu0 0.0
  %1702 = vmatpush2.msra.mxu0 0.0
  %1703 = vmatprep.subr.mxu0 0.0
  %1704 = vmatpush2.msra.mxu0 0.0
  %1705 = vmatprep.subr.mxu0 0.0
  %1706 = vmatpush2.msra.mxu0 0.0
  %1707 = vmatprep.subr.mxu0 0.0
  %1708 = vmatpush2.msra.mxu0 0.0
  %1709 = vmatprep.subr.mxu0 0.0
  %1710 = vmatpush2.msra.mxu0 0.0
  %1711 = vmatprep.subr.mxu0 0.0
  %1712 = vmatpush2.msra.mxu0 0.0
  %1713 = vmatprep.subr.mxu0 0.0
  %1714 = vmatpush2.msra.mxu0 0.0
  %1715 = vmatprep.subr.mxu0 0.0
  %1716 = vmatpush2.msra.mxu0 0.0
  %1717 = vmatprep.subr.mxu0 0.0
  %1718 = vmatpush2.msra.mxu0 0.0
  %1719 = vmatprep.subr.mxu0 0.0
  %1720 = vmatpush2.msra.mxu0 0.0
  %1721 = vmatprep.subr.mxu0 0.0
  %1722 = vmatpush2.msra.mxu0 0.0
  %1723 = vmatprep.mubr.f32.mxu0 0.0
  %1724 = vmatmul.mubr.f32.gmra.mxu0 %v224
  %v1725 = vpop.f32.mrf.mxu0
  %v1726 = vadd.f32 %v1657, %v1725
  %v1727 = vpop.f32.mrf.mxu0
  %1728 = vmatprep.mubr.f32.mxu0 0.0
  %1729 = vmatmul.mubr.f32.gmra.mxu0 %v227
  %v1730 = vpop.f32.mrf.mxu0
  %v1731 = vadd.f32 %v1657, %v1730
  %v1732 = vpop.f32.mrf.mxu0
  %1733 = vdwg.mxu0
  %s1734 = scalar_lea.vmem %s4, 320
  %v1735 = vld [vmem:[%s1734] sm:$0xff]
  %v1736 = vld [vmem:[%s1734 + $0x8] sm:$0xff]
  %v1737 = vld [vmem:[%s1734 + $0x10] sm:$0xff]
  %v1738 = vld [vmem:[%s1734 + $0x18] sm:$0xff]
  %s1739 = scalar_lea.vmem %s5, 10
  %v1740 = vld [vmem:[%s1739] sm:$0x1]
  %v1742 = vlaneseq
  %v1743 = vshrl.u32 %v1742, 7
  %v1744 = vsub.s32 0, %v1743
  %v1745 = vrot.slane %v1740, %v1744
  %1747 = vmatprep.subr.mxu0 0.0
  %1748 = vmatpush1.msra.mxu0 0.0
  %1749 = vmatprep.subr.mxu0 0.0
  %1750 = vmatpush1.msra.mxu0 0.0
  %1751 = vmatprep.subr.mxu0 0.0
  %1752 = vmatpush1.msra.mxu0 0.0
  %1753 = vmatprep.subr.mxu0 0.0
  %1754 = vmatpush1.msra.mxu0 0.0
  %1755 = vmatprep.subr.mxu0 0.0
  %1756 = vmatpush1.msra.mxu0 0.0
  %1757 = vmatprep.subr.mxu0 0.0
  %1758 = vmatpush1.msra.mxu0 0.0
  %1759 = vmatprep.subr.mxu0 0.0
  %1760 = vmatpush1.msra.mxu0 0.0
  %1761 = vmatprep.subr.mxu0 0.0
  %1762 = vmatpush1.msra.mxu0 0.0
  %1763 = vmatprep.subr.mxu0 0.0
  %1764 = vmatpush1.msra.mxu0 0.0
  %1765 = vmatprep.subr.mxu0 0.0
  %1766 = vmatpush1.msra.mxu0 0.0
  %1767 = vmatprep.subr.mxu0 0.0
  %1768 = vmatpush1.msra.mxu0 0.0
  %1769 = vmatprep.subr.mxu0 0.0
  %1770 = vmatpush1.msra.mxu0 0.0
  %1771 = vmatprep.subr.mxu0 0.0
  %1772 = vmatpush1.msra.mxu0 %v1738
  %1773 = vmatprep.subr.mxu0 0.0
  %1774 = vmatpush1.msra.mxu0 %v1737
  %1775 = vmatprep.subr.mxu0 0.0
  %1776 = vmatpush1.msra.mxu0 %v1736
  %1777 = vmatprep.subr.mxu0 0.0
  %1778 = vmatpush1.msra.mxu0 %v1735
  %1779 = vmatprep.subr.mxu0 0.0
  %1780 = vmatpush2.msra.mxu0 0.0
  %1781 = vmatprep.subr.mxu0 0.0
  %1782 = vmatpush2.msra.mxu0 0.0
  %1783 = vmatprep.subr.mxu0 0.0
  %1784 = vmatpush2.msra.mxu0 0.0
  %1785 = vmatprep.subr.mxu0 0.0
  %1786 = vmatpush2.msra.mxu0 0.0
  %1787 = vmatprep.subr.mxu0 0.0
  %1788 = vmatpush2.msra.mxu0 0.0
  %1789 = vmatprep.subr.mxu0 0.0
  %1790 = vmatpush2.msra.mxu0 0.0
  %1791 = vmatprep.subr.mxu0 0.0
  %1792 = vmatpush2.msra.mxu0 0.0
  %1793 = vmatprep.subr.mxu0 0.0
  %1794 = vmatpush2.msra.mxu0 0.0
  %1795 = vmatprep.subr.mxu0 0.0
  %1796 = vmatpush2.msra.mxu0 0.0
  %1797 = vmatprep.subr.mxu0 0.0
  %1798 = vmatpush2.msra.mxu0 0.0
  %1799 = vmatprep.subr.mxu0 0.0
  %1800 = vmatpush2.msra.mxu0 0.0
  %1801 = vmatprep.subr.mxu0 0.0
  %1802 = vmatpush2.msra.mxu0 0.0
  %1803 = vmatprep.subr.mxu0 0.0
  %1804 = vmatpush2.msra.mxu0 0.0
  %1805 = vmatprep.subr.mxu0 0.0
  %1806 = vmatpush2.msra.mxu0 0.0
  %1807 = vmatprep.subr.mxu0 0.0
  %1808 = vmatpush2.msra.mxu0 0.0
  %1809 = vmatprep.subr.mxu0 0.0
  %1810 = vmatpush2.msra.mxu0 0.0
  %1811 = vmatprep.mubr.f32.mxu0 0.0
  %1812 = vmatmul.mubr.f32.gmra.mxu0 %v224
  %v1813 = vpop.f32.mrf.mxu0
  %v1814 = vadd.f32 %v1745, %v1813
  %v1815 = vpop.f32.mrf.mxu0
  %1816 = vmatprep.mubr.f32.mxu0 0.0
  %1817 = vmatmul.mubr.f32.gmra.mxu0 %v227
  %v1818 = vpop.f32.mrf.mxu0
  %v1819 = vadd.f32 %v1745, %v1818
  %v1820 = vpop.f32.mrf.mxu0
  %1821 = vdwg.mxu0
  %v1823 = vsel %vm480, %v1638, 0
  %v1826 = vsel %vm480, %v1726, 0
  %1828 = vmatprep.subr.mxu0 0.0
  %1829 = vmatpush1.xpose.msra.mxu0 0.0
  %1830 = vmatprep.subr.mxu0 0.0
  %1831 = vmatpush1.xpose.msra.mxu0 0.0
  %1832 = vmatprep.subr.mxu0 0.0
  %1833 = vmatpush1.xpose.msra.mxu0 0.0
  %1834 = vmatprep.subr.mxu0 0.0
  %1835 = vmatpush1.xpose.msra.mxu0 0.0
  %1836 = vmatprep.subr.mxu0 0.0
  %1837 = vmatpush1.xpose.msra.mxu0 0.0
  %1838 = vmatprep.subr.mxu0 0.0
  %1839 = vmatpush1.xpose.msra.mxu0 0.0
  %1840 = vmatprep.subr.mxu0 0.0
  %1841 = vmatpush1.xpose.msra.mxu0 0.0
  %1842 = vmatprep.subr.mxu0 0.0
  %1843 = vmatpush1.xpose.msra.mxu0 0.0
  %1844 = vmatprep.subr.mxu0 0.0
  %1845 = vmatpush1.xpose.msra.mxu0 0.0
  %1846 = vmatprep.subr.mxu0 0.0
  %1847 = vmatpush1.xpose.msra.mxu0 0.0
  %1848 = vmatprep.subr.mxu0 0.0
  %1849 = vmatpush1.xpose.msra.mxu0 0.0
  %1850 = vmatprep.subr.mxu0 0.0
  %1851 = vmatpush1.xpose.msra.mxu0 0.0
  %1852 = vmatprep.subr.mxu0 0.0
  %1853 = vmatpush1.xpose.msra.mxu0 0.0
  %1854 = vmatprep.subr.mxu0 0.0
  %1855 = vmatpush1.xpose.msra.mxu0 0.0
  %1856 = vmatprep.subr.mxu0 0.0
  %1857 = vmatpush1.xpose.msra.mxu0 0.0
  %1858 = vmatprep.subr.mxu0 0.0
  %1859 = vmatpush1.xpose.msra.mxu0 %v1826
  %1860 = vmatprep.subr.mxu0 0.0
  %1861 = vmatpush2.xpose.msra.mxu0 0.0
  %1862 = vmatprep.subr.mxu0 0.0
  %1863 = vmatpush2.xpose.msra.mxu0 0.0
  %1864 = vmatprep.subr.mxu0 0.0
  %1865 = vmatpush2.xpose.msra.mxu0 0.0
  %1866 = vmatprep.subr.mxu0 0.0
  %1867 = vmatpush2.xpose.msra.mxu0 0.0
  %1868 = vmatprep.subr.mxu0 0.0
  %1869 = vmatpush2.xpose.msra.mxu0 0.0
  %1870 = vmatprep.subr.mxu0 0.0
  %1871 = vmatpush2.xpose.msra.mxu0 0.0
  %1872 = vmatprep.subr.mxu0 0.0
  %1873 = vmatpush2.xpose.msra.mxu0 0.0
  %1874 = vmatprep.subr.mxu0 0.0
  %1875 = vmatpush2.xpose.msra.mxu0 0.0
  %1876 = vmatprep.subr.mxu0 0.0
  %1877 = vmatpush2.xpose.msra.mxu0 0.0
  %1878 = vmatprep.subr.mxu0 0.0
  %1879 = vmatpush2.xpose.msra.mxu0 0.0
  %1880 = vmatprep.subr.mxu0 0.0
  %1881 = vmatpush2.xpose.msra.mxu0 0.0
  %1882 = vmatprep.subr.mxu0 0.0
  %1883 = vmatpush2.xpose.msra.mxu0 0.0
  %1884 = vmatprep.subr.mxu0 0.0
  %1885 = vmatpush2.xpose.msra.mxu0 0.0
  %1886 = vmatprep.subr.mxu0 0.0
  %1887 = vmatpush2.xpose.msra.mxu0 0.0
  %1888 = vmatprep.subr.mxu0 0.0
  %1889 = vmatpush2.xpose.msra.mxu0 0.0
  %1890 = vmatprep.subr.mxu0 0.0
  %1891 = vmatpush2.xpose.msra.mxu0 0.0
  %1892 = vmatprep.mubr.f32.mxu0 0.0
  %1893 = vmatmul.mubr.f32.gmra.mxu0 %v1823
  %v1894 = vpop.f32.mrf.mxu0
  %v1895 = vadd.f32 0.0, %v1894
  %v1896 = vpop.f32.mrf.mxu0
  %1897 = vdwg.mxu0
  %v1899 = vsel %vm480, %v1643, 0
  %v1902 = vsel %vm480, %v1731, 0
  %1904 = vmatprep.subr.mxu0 0.0
  %1905 = vmatpush1.xpose.msra.mxu0 0.0
  %1906 = vmatprep.subr.mxu0 0.0
  %1907 = vmatpush1.xpose.msra.mxu0 0.0
  %1908 = vmatprep.subr.mxu0 0.0
  %1909 = vmatpush1.xpose.msra.mxu0 0.0
  %1910 = vmatprep.subr.mxu0 0.0
  %1911 = vmatpush1.xpose.msra.mxu0 0.0
  %1912 = vmatprep.subr.mxu0 0.0
  %1913 = vmatpush1.xpose.msra.mxu0 0.0
  %1914 = vmatprep.subr.mxu0 0.0
  %1915 = vmatpush1.xpose.msra.mxu0 0.0
  %1916 = vmatprep.subr.mxu0 0.0
  %1917 = vmatpush1.xpose.msra.mxu0 0.0
  %1918 = vmatprep.subr.mxu0 0.0
  %1919 = vmatpush1.xpose.msra.mxu0 0.0
  %1920 = vmatprep.subr.mxu0 0.0
  %1921 = vmatpush1.xpose.msra.mxu0 0.0
  %1922 = vmatprep.subr.mxu0 0.0
  %1923 = vmatpush1.xpose.msra.mxu0 0.0
  %1924 = vmatprep.subr.mxu0 0.0
  %1925 = vmatpush1.xpose.msra.mxu0 0.0
  %1926 = vmatprep.subr.mxu0 0.0
  %1927 = vmatpush1.xpose.msra.mxu0 0.0
  %1928 = vmatprep.subr.mxu0 0.0
  %1929 = vmatpush1.xpose.msra.mxu0 0.0
  %1930 = vmatprep.subr.mxu0 0.0
  %1931 = vmatpush1.xpose.msra.mxu0 0.0
  %1932 = vmatprep.subr.mxu0 0.0
  %1933 = vmatpush1.xpose.msra.mxu0 0.0
  %1934 = vmatprep.subr.mxu0 0.0
  %1935 = vmatpush1.xpose.msra.mxu0 %v1902
  %1936 = vmatprep.subr.mxu0 0.0
  %1937 = vmatpush2.xpose.msra.mxu0 0.0
  %1938 = vmatprep.subr.mxu0 0.0
  %1939 = vmatpush2.xpose.msra.mxu0 0.0
  %1940 = vmatprep.subr.mxu0 0.0
  %1941 = vmatpush2.xpose.msra.mxu0 0.0
  %1942 = vmatprep.subr.mxu0 0.0
  %1943 = vmatpush2.xpose.msra.mxu0 0.0
  %1944 = vmatprep.subr.mxu0 0.0
  %1945 = vmatpush2.xpose.msra.mxu0 0.0
  %1946 = vmatprep.subr.mxu0 0.0
  %1947 = vmatpush2.xpose.msra.mxu0 0.0
  %1948 = vmatprep.subr.mxu0 0.0
  %1949 = vmatpush2.xpose.msra.mxu0 0.0
  %1950 = vmatprep.subr.mxu0 0.0
  %1951 = vmatpush2.xpose.msra.mxu0 0.0
  %1952 = vmatprep.subr.mxu0 0.0
  %1953 = vmatpush2.xpose.msra.mxu0 0.0
  %1954 = vmatprep.subr.mxu0 0.0
  %1955 = vmatpush2.xpose.msra.mxu0 0.0
  %1956 = vmatprep.subr.mxu0 0.0
  %1957 = vmatpush2.xpose.msra.mxu0 0.0
  %1958 = vmatprep.subr.mxu0 0.0
  %1959 = vmatpush2.xpose.msra.mxu0 0.0
  %1960 = vmatprep.subr.mxu0 0.0
  %1961 = vmatpush2.xpose.msra.mxu0 0.0
  %1962 = vmatprep.subr.mxu0 0.0
  %1963 = vmatpush2.xpose.msra.mxu0 0.0
  %1964 = vmatprep.subr.mxu0 0.0
  %1965 = vmatpush2.xpose.msra.mxu0 0.0
  %1966 = vmatprep.subr.mxu0 0.0
  %1967 = vmatpush2.xpose.msra.mxu0 0.0
  %1968 = vmatprep.mubr.f32.mxu0 0.0
  %1969 = vmatmul.mubr.f32.gmra.mxu0 %v1899
  %v1970 = vpop.f32.mrf.mxu0
  %v1971 = vadd.f32 0.0, %v1970
  %v1972 = vpop.f32.mrf.mxu0
  %1973 = vdwg.mxu0
  %v1974 = vmul.f32 %v1895, 0.35355338
  %v1975 = vmul.f32 %v1971, 0.35355338
  %v1976 = vadd.f32 %v1974, %v168
  %v1977 = vadd.f32 %v1975, %v169
  %v1978 = vsel %vm480, %v1976, -inf
  %1979 = vmax.xlane.f32.xlu0 %v1978
  %v1980 = vpop.xlane.xlu0 %1979
  %v1981 = vsel %vm480, %v1977, -inf
  %1982 = vmax.xlane.f32.xlu0 %v1981
  %v1983 = vpop.xlane.xlu0 %1982
  %v1984 = vsub.f32 %v1976, %v1980
  %v1985 = vsub.f32 %v1977, %v1983
  %v1986 = vmul.f32 %v1984, 1.442695
  %v1987 = vpow.pop %v1986
  %v1988 = vmul.f32 %v1985, 1.442695
  %v1989 = vpow.pop %v1988
  %v1990 = vsel %vm480, %v1987, 0.0
  %1991 = vadd.xlane.f32.xlu0 %v1990
  %v1992 = vpop.xlane.xlu0 %1991
  %v1993 = vsel %vm480, %v1989, 0.0
  %1994 = vadd.xlane.f32.xlu0 %v1993
  %v1995 = vpop.xlane.xlu0 %1994
  %v1996 = vrcp.pop %v1992
  %v1997 = vrcp.pop %v1995
  %v1998 = vmul.f32 %v1987, %v1996
  %v1999 = vmul.f32 %v1989, %v1997
  %v2001 = vsel %vm480, %v1998, 0
  %2003 = vmatprep.subr.mxu0 0.0
  %2004 = vmatpush1.msra.mxu0 0.0
  %2005 = vmatprep.subr.mxu0 0.0
  %2006 = vmatpush1.msra.mxu0 0.0
  %2007 = vmatprep.subr.mxu0 0.0
  %2008 = vmatpush1.msra.mxu0 0.0
  %2009 = vmatprep.subr.mxu0 0.0
  %2010 = vmatpush1.msra.mxu0 0.0
  %2011 = vmatprep.subr.mxu0 0.0
  %2012 = vmatpush1.msra.mxu0 0.0
  %2013 = vmatprep.subr.mxu0 0.0
  %2014 = vmatpush1.msra.mxu0 0.0
  %2015 = vmatprep.subr.mxu0 0.0
  %2016 = vmatpush1.msra.mxu0 0.0
  %2017 = vmatprep.subr.mxu0 0.0
  %2018 = vmatpush1.msra.mxu0 0.0
  %2019 = vmatprep.subr.mxu0 0.0
  %2020 = vmatpush1.msra.mxu0 0.0
  %2021 = vmatprep.subr.mxu0 0.0
  %2022 = vmatpush1.msra.mxu0 0.0
  %2023 = vmatprep.subr.mxu0 0.0
  %2024 = vmatpush1.msra.mxu0 0.0
  %2025 = vmatprep.subr.mxu0 0.0
  %2026 = vmatpush1.msra.mxu0 0.0
  %2027 = vmatprep.subr.mxu0 0.0
  %2028 = vmatpush1.msra.mxu0 0.0
  %2029 = vmatprep.subr.mxu0 0.0
  %2030 = vmatpush1.msra.mxu0 0.0
  %2031 = vmatprep.subr.mxu0 0.0
  %2032 = vmatpush1.msra.mxu0 0.0
  %2033 = vmatprep.subr.mxu0 0.0
  %2034 = vmatpush1.msra.mxu0 %v1814
  %2035 = vmatprep.subr.mxu0 0.0
  %2036 = vmatpush2.msra.mxu0 0.0
  %2037 = vmatprep.subr.mxu0 0.0
  %2038 = vmatpush2.msra.mxu0 0.0
  %2039 = vmatprep.subr.mxu0 0.0
  %2040 = vmatpush2.msra.mxu0 0.0
  %2041 = vmatprep.subr.mxu0 0.0
  %2042 = vmatpush2.msra.mxu0 0.0
  %2043 = vmatprep.subr.mxu0 0.0
  %2044 = vmatpush2.msra.mxu0 0.0
  %2045 = vmatprep.subr.mxu0 0.0
  %2046 = vmatpush2.msra.mxu0 0.0
  %2047 = vmatprep.subr.mxu0 0.0
  %2048 = vmatpush2.msra.mxu0 0.0
  %2049 = vmatprep.subr.mxu0 0.0
  %2050 = vmatpush2.msra.mxu0 0.0
  %2051 = vmatprep.subr.mxu0 0.0
  %2052 = vmatpush2.msra.mxu0 0.0
  %2053 = vmatprep.subr.mxu0 0.0
  %2054 = vmatpush2.msra.mxu0 0.0
  %2055 = vmatprep.subr.mxu0 0.0
  %2056 = vmatpush2.msra.mxu0 0.0
  %2057 = vmatprep.subr.mxu0 0.0
  %2058 = vmatpush2.msra.mxu0 0.0
  %2059 = vmatprep.subr.mxu0 0.0
  %2060 = vmatpush2.msra.mxu0 0.0
  %2061 = vmatprep.subr.mxu0 0.0
  %2062 = vmatpush2.msra.mxu0 0.0
  %2063 = vmatprep.subr.mxu0 0.0
  %2064 = vmatpush2.msra.mxu0 0.0
  %2065 = vmatprep.subr.mxu0 0.0
  %2066 = vmatpush2.msra.mxu0 0.0
  %2067 = vmatprep.mubr.f32.mxu0 0.0
  %2068 = vmatmul.mubr.f32.gmra.mxu0 %v2001
  %v2069 = vpop.f32.mrf.mxu0
  %v2070 = vadd.f32 0.0, %v2069
  %v2071 = vpop.f32.mrf.mxu0
  %2072 = vdwg.mxu0
  %v2074 = vsel %vm480, %v1999, 0
  %2076 = vmatprep.subr.mxu0 0.0
  %2077 = vmatpush1.msra.mxu0 0.0
  %2078 = vmatprep.subr.mxu0 0.0
  %2079 = vmatpush1.msra.mxu0 0.0
  %2080 = vmatprep.subr.mxu0 0.0
  %2081 = vmatpush1.msra.mxu0 0.0
  %2082 = vmatprep.subr.mxu0 0.0
  %2083 = vmatpush1.msra.mxu0 0.0
  %2084 = vmatprep.subr.mxu0 0.0
  %2085 = vmatpush1.msra.mxu0 0.0
  %2086 = vmatprep.subr.mxu0 0.0
  %2087 = vmatpush1.msra.mxu0 0.0
  %2088 = vmatprep.subr.mxu0 0.0
  %2089 = vmatpush1.msra.mxu0 0.0
  %2090 = vmatprep.subr.mxu0 0.0
  %2091 = vmatpush1.msra.mxu0 0.0
  %2092 = vmatprep.subr.mxu0 0.0
  %2093 = vmatpush1.msra.mxu0 0.0
  %2094 = vmatprep.subr.mxu0 0.0
  %2095 = vmatpush1.msra.mxu0 0.0
  %2096 = vmatprep.subr.mxu0 0.0
  %2097 = vmatpush1.msra.mxu0 0.0
  %2098 = vmatprep.subr.mxu0 0.0
  %2099 = vmatpush1.msra.mxu0 0.0
  %2100 = vmatprep.subr.mxu0 0.0
  %2101 = vmatpush1.msra.mxu0 0.0
  %2102 = vmatprep.subr.mxu0 0.0
  %2103 = vmatpush1.msra.mxu0 0.0
  %2104 = vmatprep.subr.mxu0 0.0
  %2105 = vmatpush1.msra.mxu0 0.0
  %2106 = vmatprep.subr.mxu0 0.0
  %2107 = vmatpush1.msra.mxu0 %v1819
  %2108 = vmatprep.subr.mxu0 0.0
  %2109 = vmatpush2.msra.mxu0 0.0
  %2110 = vmatprep.subr.mxu0 0.0
  %2111 = vmatpush2.msra.mxu0 0.0
  %2112 = vmatprep.subr.mxu0 0.0
  %2113 = vmatpush2.msra.mxu0 0.0
  %2114 = vmatprep.subr.mxu0 0.0
  %2115 = vmatpush2.msra.mxu0 0.0
  %2116 = vmatprep.subr.mxu0 0.0
  %2117 = vmatpush2.msra.mxu0 0.0
  %2118 = vmatprep.subr.mxu0 0.0
  %2119 = vmatpush2.msra.mxu0 0.0
  %2120 = vmatprep.subr.mxu0 0.0
  %2121 = vmatpush2.msra.mxu0 0.0
  %2122 = vmatprep.subr.mxu0 0.0
  %2123 = vmatpush2.msra.mxu0 0.0
  %2124 = vmatprep.subr.mxu0 0.0
  %2125 = vmatpush2.msra.mxu0 0.0
  %2126 = vmatprep.subr.mxu0 0.0
  %2127 = vmatpush2.msra.mxu0 0.0
  %2128 = vmatprep.subr.mxu0 0.0
  %2129 = vmatpush2.msra.mxu0 0.0
  %2130 = vmatprep.subr.mxu0 0.0
  %2131 = vmatpush2.msra.mxu0 0.0
  %2132 = vmatprep.subr.mxu0 0.0
  %2133 = vmatpush2.msra.mxu0 0.0
  %2134 = vmatprep.subr.mxu0 0.0
  %2135 = vmatpush2.msra.mxu0 0.0
  %2136 = vmatprep.subr.mxu0 0.0
  %2137 = vmatpush2.msra.mxu0 0.0
  %2138 = vmatprep.subr.mxu0 0.0
  %2139 = vmatpush2.msra.mxu0 0.0
  %2140 = vmatprep.mubr.f32.mxu0 0.0
  %2141 = vmatmul.mubr.f32.gmra.mxu0 %v2074
  %v2142 = vpop.f32.mrf.mxu0
  %v2143 = vadd.f32 0.0, %v2142
  %v2144 = vpop.f32.mrf.mxu0
  %2145 = vdwg.mxu0
  %s2146 = scalar_lea.vmem %s6, 16
  %v2147 = vld [vmem:[%s2146] sm:$0xff]
  %v2149 = vsel %vm480, %v2070, 0
  %v2152 = vsel %vm480, %v2143, 0
  %2154 = vmatprep.subr.mxu0 0.0
  %2155 = vmatpush1.msra.mxu0 0.0
  %2156 = vmatprep.subr.mxu0 0.0
  %2157 = vmatpush1.msra.mxu0 0.0
  %2158 = vmatprep.subr.mxu0 0.0
  %2159 = vmatpush1.msra.mxu0 0.0
  %2160 = vmatprep.subr.mxu0 0.0
  %2161 = vmatpush1.msra.mxu0 0.0
  %2162 = vmatprep.subr.mxu0 0.0
  %2163 = vmatpush1.msra.mxu0 0.0
  %2164 = vmatprep.subr.mxu0 0.0
  %2165 = vmatpush1.msra.mxu0 0.0
  %2166 = vmatprep.subr.mxu0 0.0
  %2167 = vmatpush1.msra.mxu0 0.0
  %2168 = vmatprep.subr.mxu0 0.0
  %2169 = vmatpush1.msra.mxu0 0.0
  %2170 = vmatprep.subr.mxu0 0.0
  %2171 = vmatpush1.msra.mxu0 0.0
  %2172 = vmatprep.subr.mxu0 0.0
  %2173 = vmatpush1.msra.mxu0 0.0
  %2174 = vmatprep.subr.mxu0 0.0
  %2175 = vmatpush1.msra.mxu0 0.0
  %2176 = vmatprep.subr.mxu0 0.0
  %2177 = vmatpush1.msra.mxu0 0.0
  %2178 = vmatprep.subr.mxu0 0.0
  %2179 = vmatpush1.msra.mxu0 0.0
  %2180 = vmatprep.subr.mxu0 0.0
  %2181 = vmatpush1.msra.mxu0 0.0
  %2182 = vmatprep.subr.mxu0 0.0
  %2183 = vmatpush1.msra.mxu0 0.0
  %2184 = vmatprep.subr.mxu0 0.0
  %2185 = vmatpush1.msra.mxu0 %v2147
  %2186 = vmatprep.subr.mxu0 0.0
  %2187 = vmatpush2.msra.mxu0 0.0
  %2188 = vmatprep.subr.mxu0 0.0
  %2189 = vmatpush2.msra.mxu0 0.0
  %2190 = vmatprep.subr.mxu0 0.0
  %2191 = vmatpush2.msra.mxu0 0.0
  %2192 = vmatprep.subr.mxu0 0.0
  %2193 = vmatpush2.msra.mxu0 0.0
  %2194 = vmatprep.subr.mxu0 0.0
  %2195 = vmatpush2.msra.mxu0 0.0
  %2196 = vmatprep.subr.mxu0 0.0
  %2197 = vmatpush2.msra.mxu0 0.0
  %2198 = vmatprep.subr.mxu0 0.0
  %2199 = vmatpush2.msra.mxu0 0.0
  %2200 = vmatprep.subr.mxu0 0.0
  %2201 = vmatpush2.msra.mxu0 0.0
  %2202 = vmatprep.subr.mxu0 0.0
  %2203 = vmatpush2.msra.mxu0 0.0
  %2204 = vmatprep.subr.mxu0 0.0
  %2205 = vmatpush2.msra.mxu0 0.0
  %2206 = vmatprep.subr.mxu0 0.0
  %2207 = vmatpush2.msra.mxu0 0.0
  %2208 = vmatprep.subr.mxu0 0.0
  %2209 = vmatpush2.msra.mxu0 0.0
  %2210 = vmatprep.subr.mxu0 0.0
  %2211 = vmatpush2.msra.mxu0 0.0
  %2212 = vmatprep.subr.mxu0 0.0
  %2213 = vmatpush2.msra.mxu0 0.0
  %2214 = vmatprep.subr.mxu0 0.0
  %2215 = vmatpush2.msra.mxu0 0.0
  %2216 = vmatprep.subr.mxu0 0.0
  %2217 = vmatpush2.msra.mxu0 0.0
  %2218 = vmatprep.mubr.f32.mxu0 0.0
  %2219 = vmatmul.mubr.f32.gmra.mxu0 %v2149
  %v2220 = vpop.f32.mrf.mxu0
  %v2221 = vadd.f32 0.0, %v2220
  %v2222 = vpop.f32.mrf.mxu0
  %2223 = vmatprep.mubr.f32.mxu0 0.0
  %2224 = vmatmul.mubr.f32.gmra.mxu0 %v2152
  %v2225 = vpop.f32.mrf.mxu0
  %v2226 = vadd.f32 0.0, %v2225
  %v2227 = vpop.f32.mrf.mxu0
  %2228 = vdwg.mxu0
  %v2229 = vadd.f32 %v1550, %v2221
  %v2230 = vadd.f32 %v1555, %v2226
  %s2231 = scalar_lea.vmem %s4, 96
  %v2232 = vld [vmem:[%s2231] sm:$0xff]
  %v2233 = vld [vmem:[%s2231 + $0x8] sm:$0xff]
  %v2234 = vld [vmem:[%s2231 + $0x10] sm:$0xff]
  %v2235 = vld [vmem:[%s2231 + $0x18] sm:$0xff]
  %s2236 = scalar_lea.vmem %s5, 3
  %v2237 = vld [vmem:[%s2236] sm:$0x1]
  %v2239 = vlaneseq
  %v2240 = vshrl.u32 %v2239, 7
  %v2241 = vsub.s32 0, %v2240
  %v2242 = vrot.slane %v2237, %v2241
  %2244 = vmatprep.subr.mxu0 0.0
  %2245 = vmatpush1.msra.mxu0 0.0
  %2246 = vmatprep.subr.mxu0 0.0
  %2247 = vmatpush1.msra.mxu0 0.0
  %2248 = vmatprep.subr.mxu0 0.0
  %2249 = vmatpush1.msra.mxu0 0.0
  %2250 = vmatprep.subr.mxu0 0.0
  %2251 = vmatpush1.msra.mxu0 0.0
  %2252 = vmatprep.subr.mxu0 0.0
  %2253 = vmatpush1.msra.mxu0 0.0
  %2254 = vmatprep.subr.mxu0 0.0
  %2255 = vmatpush1.msra.mxu0 0.0
  %2256 = vmatprep.subr.mxu0 0.0
  %2257 = vmatpush1.msra.mxu0 0.0
  %2258 = vmatprep.subr.mxu0 0.0
  %2259 = vmatpush1.msra.mxu0 0.0
  %2260 = vmatprep.subr.mxu0 0.0
  %2261 = vmatpush1.msra.mxu0 0.0
  %2262 = vmatprep.subr.mxu0 0.0
  %2263 = vmatpush1.msra.mxu0 0.0
  %2264 = vmatprep.subr.mxu0 0.0
  %2265 = vmatpush1.msra.mxu0 0.0
  %2266 = vmatprep.subr.mxu0 0.0
  %2267 = vmatpush1.msra.mxu0 0.0
  %2268 = vmatprep.subr.mxu0 0.0
  %2269 = vmatpush1.msra.mxu0 %v2235
  %2270 = vmatprep.subr.mxu0 0.0
  %2271 = vmatpush1.msra.mxu0 %v2234
  %2272 = vmatprep.subr.mxu0 0.0
  %2273 = vmatpush1.msra.mxu0 %v2233
  %2274 = vmatprep.subr.mxu0 0.0
  %2275 = vmatpush1.msra.mxu0 %v2232
  %2276 = vmatprep.subr.mxu0 0.0
  %2277 = vmatpush2.msra.mxu0 0.0
  %2278 = vmatprep.subr.mxu0 0.0
  %2279 = vmatpush2.msra.mxu0 0.0
  %2280 = vmatprep.subr.mxu0 0.0
  %2281 = vmatpush2.msra.mxu0 0.0
  %2282 = vmatprep.subr.mxu0 0.0
  %2283 = vmatpush2.msra.mxu0 0.0
  %2284 = vmatprep.subr.mxu0 0.0
  %2285 = vmatpush2.msra.mxu0 0.0
  %2286 = vmatprep.subr.mxu0 0.0
  %2287 = vmatpush2.msra.mxu0 0.0
  %2288 = vmatprep.subr.mxu0 0.0
  %2289 = vmatpush2.msra.mxu0 0.0
  %2290 = vmatprep.subr.mxu0 0.0
  %2291 = vmatpush2.msra.mxu0 0.0
  %2292 = vmatprep.subr.mxu0 0.0
  %2293 = vmatpush2.msra.mxu0 0.0
  %2294 = vmatprep.subr.mxu0 0.0
  %2295 = vmatpush2.msra.mxu0 0.0
  %2296 = vmatprep.subr.mxu0 0.0
  %2297 = vmatpush2.msra.mxu0 0.0
  %2298 = vmatprep.subr.mxu0 0.0
  %2299 = vmatpush2.msra.mxu0 0.0
  %2300 = vmatprep.subr.mxu0 0.0
  %2301 = vmatpush2.msra.mxu0 0.0
  %2302 = vmatprep.subr.mxu0 0.0
  %2303 = vmatpush2.msra.mxu0 0.0
  %2304 = vmatprep.subr.mxu0 0.0
  %2305 = vmatpush2.msra.mxu0 0.0
  %2306 = vmatprep.subr.mxu0 0.0
  %2307 = vmatpush2.msra.mxu0 0.0
  %2308 = vmatprep.mubr.f32.mxu0 0.0
  %2309 = vmatmul.mubr.f32.gmra.mxu0 %v224
  %v2310 = vpop.f32.mrf.mxu0
  %v2311 = vadd.f32 %v2242, %v2310
  %v2312 = vpop.f32.mrf.mxu0
  %2313 = vmatprep.mubr.f32.mxu0 0.0
  %2314 = vmatmul.mubr.f32.gmra.mxu0 %v227
  %v2315 = vpop.f32.mrf.mxu0
  %v2316 = vadd.f32 %v2242, %v2315
  %v2317 = vpop.f32.mrf.mxu0
  %2318 = vdwg.mxu0
  %s2319 = scalar_lea.vmem %s4, 224
  %v2320 = vld [vmem:[%s2319] sm:$0xff]
  %v2321 = vld [vmem:[%s2319 + $0x8] sm:$0xff]
  %v2322 = vld [vmem:[%s2319 + $0x10] sm:$0xff]
  %v2323 = vld [vmem:[%s2319 + $0x18] sm:$0xff]
  %s2324 = scalar_lea.vmem %s5, 7
  %v2325 = vld [vmem:[%s2324] sm:$0x1]
  %v2327 = vlaneseq
  %v2328 = vshrl.u32 %v2327, 7
  %v2329 = vsub.s32 0, %v2328
  %v2330 = vrot.slane %v2325, %v2329
  %2332 = vmatprep.subr.mxu0 0.0
  %2333 = vmatpush1.msra.mxu0 0.0
  %2334 = vmatprep.subr.mxu0 0.0
  %2335 = vmatpush1.msra.mxu0 0.0
  %2336 = vmatprep.subr.mxu0 0.0
  %2337 = vmatpush1.msra.mxu0 0.0
  %2338 = vmatprep.subr.mxu0 0.0
  %2339 = vmatpush1.msra.mxu0 0.0
  %2340 = vmatprep.subr.mxu0 0.0
  %2341 = vmatpush1.msra.mxu0 0.0
  %2342 = vmatprep.subr.mxu0 0.0
  %2343 = vmatpush1.msra.mxu0 0.0
  %2344 = vmatprep.subr.mxu0 0.0
  %2345 = vmatpush1.msra.mxu0 0.0
  %2346 = vmatprep.subr.mxu0 0.0
  %2347 = vmatpush1.msra.mxu0 0.0
  %2348 = vmatprep.subr.mxu0 0.0
  %2349 = vmatpush1.msra.mxu0 0.0
  %2350 = vmatprep.subr.mxu0 0.0
  %2351 = vmatpush1.msra.mxu0 0.0
  %2352 = vmatprep.subr.mxu0 0.0
  %2353 = vmatpush1.msra.mxu0 0.0
  %2354 = vmatprep.subr.mxu0 0.0
  %2355 = vmatpush1.msra.mxu0 0.0
  %2356 = vmatprep.subr.mxu0 0.0
  %2357 = vmatpush1.msra.mxu0 %v2323
  %2358 = vmatprep.subr.mxu0 0.0
  %2359 = vmatpush1.msra.mxu0 %v2322
  %2360 = vmatprep.subr.mxu0 0.0
  %2361 = vmatpush1.msra.mxu0 %v2321
  %2362 = vmatprep.subr.mxu0 0.0
  %2363 = vmatpush1.msra.mxu0 %v2320
  %2364 = vmatprep.subr.mxu0 0.0
  %2365 = vmatpush2.msra.mxu0 0.0
  %2366 = vmatprep.subr.mxu0 0.0
  %2367 = vmatpush2.msra.mxu0 0.0
  %2368 = vmatprep.subr.mxu0 0.0
  %2369 = vmatpush2.msra.mxu0 0.0
  %2370 = vmatprep.subr.mxu0 0.0
  %2371 = vmatpush2.msra.mxu0 0.0
  %2372 = vmatprep.subr.mxu0 0.0
  %2373 = vmatpush2.msra.mxu0 0.0
  %2374 = vmatprep.subr.mxu0 0.0
  %2375 = vmatpush2.msra.mxu0 0.0
  %2376 = vmatprep.subr.mxu0 0.0
  %2377 = vmatpush2.msra.mxu0 0.0
  %2378 = vmatprep.subr.mxu0 0.0
  %2379 = vmatpush2.msra.mxu0 0.0
  %2380 = vmatprep.subr.mxu0 0.0
  %2381 = vmatpush2.msra.mxu0 0.0
  %2382 = vmatprep.subr.mxu0 0.0
  %2383 = vmatpush2.msra.mxu0 0.0
  %2384 = vmatprep.subr.mxu0 0.0
  %2385 = vmatpush2.msra.mxu0 0.0
  %2386 = vmatprep.subr.mxu0 0.0
  %2387 = vmatpush2.msra.mxu0 0.0
  %2388 = vmatprep.subr.mxu0 0.0
  %2389 = vmatpush2.msra.mxu0 0.0
  %2390 = vmatprep.subr.mxu0 0.0
  %2391 = vmatpush2.msra.mxu0 0.0
  %2392 = vmatprep.subr.mxu0 0.0
  %2393 = vmatpush2.msra.mxu0 0.0
  %2394 = vmatprep.subr.mxu0 0.0
  %2395 = vmatpush2.msra.mxu0 0.0
  %2396 = vmatprep.mubr.f32.mxu0 0.0
  %2397 = vmatmul.mubr.f32.gmra.mxu0 %v224
  %v2398 = vpop.f32.mrf.mxu0
  %v2399 = vadd.f32 %v2330, %v2398
  %v2400 = vpop.f32.mrf.mxu0
  %2401 = vmatprep.mubr.f32.mxu0 0.0
  %2402 = vmatmul.mubr.f32.gmra.mxu0 %v227
  %v2403 = vpop.f32.mrf.mxu0
  %v2404 = vadd.f32 %v2330, %v2403
  %v2405 = vpop.f32.mrf.mxu0
  %2406 = vdwg.mxu0
  %s2407 = scalar_lea.vmem %s4, 352
  %v2408 = vld [vmem:[%s2407] sm:$0xff]
  %v2409 = vld [vmem:[%s2407 + $0x8] sm:$0xff]
  %v2410 = vld [vmem:[%s2407 + $0x10] sm:$0xff]
  %v2411 = vld [vmem:[%s2407 + $0x18] sm:$0xff]
  %s2412 = scalar_lea.vmem %s5, 11
  %v2413 = vld [vmem:[%s2412] sm:$0x1]
  %v2415 = vlaneseq
  %v2416 = vshrl.u32 %v2415, 7
  %v2417 = vsub.s32 0, %v2416
  %v2418 = vrot.slane %v2413, %v2417
  %2420 = vmatprep.subr.mxu0 0.0
  %2421 = vmatpush1.msra.mxu0 0.0
  %2422 = vmatprep.subr.mxu0 0.0
  %2423 = vmatpush1.msra.mxu0 0.0
  %2424 = vmatprep.subr.mxu0 0.0
  %2425 = vmatpush1.msra.mxu0 0.0
  %2426 = vmatprep.subr.mxu0 0.0
  %2427 = vmatpush1.msra.mxu0 0.0
  %2428 = vmatprep.subr.mxu0 0.0
  %2429 = vmatpush1.msra.mxu0 0.0
  %2430 = vmatprep.subr.mxu0 0.0
  %2431 = vmatpush1.msra.mxu0 0.0
  %2432 = vmatprep.subr.mxu0 0.0
  %2433 = vmatpush1.msra.mxu0 0.0
  %2434 = vmatprep.subr.mxu0 0.0
  %2435 = vmatpush1.msra.mxu0 0.0
  %2436 = vmatprep.subr.mxu0 0.0
  %2437 = vmatpush1.msra.mxu0 0.0
  %2438 = vmatprep.subr.mxu0 0.0
  %2439 = vmatpush1.msra.mxu0 0.0
  %2440 = vmatprep.subr.mxu0 0.0
  %2441 = vmatpush1.msra.mxu0 0.0
  %2442 = vmatprep.subr.mxu0 0.0
  %2443 = vmatpush1.msra.mxu0 0.0
  %2444 = vmatprep.subr.mxu0 0.0
  %2445 = vmatpush1.msra.mxu0 %v2411
  %2446 = vmatprep.subr.mxu0 0.0
  %2447 = vmatpush1.msra.mxu0 %v2410
  %2448 = vmatprep.subr.mxu0 0.0
  %2449 = vmatpush1.msra.mxu0 %v2409
  %2450 = vmatprep.subr.mxu0 0.0
  %2451 = vmatpush1.msra.mxu0 %v2408
  %2452 = vmatprep.subr.mxu0 0.0
  %2453 = vmatpush2.msra.mxu0 0.0
  %2454 = vmatprep.subr.mxu0 0.0
  %2455 = vmatpush2.msra.mxu0 0.0
  %2456 = vmatprep.subr.mxu0 0.0
  %2457 = vmatpush2.msra.mxu0 0.0
  %2458 = vmatprep.subr.mxu0 0.0
  %2459 = vmatpush2.msra.mxu0 0.0
  %2460 = vmatprep.subr.mxu0 0.0
  %2461 = vmatpush2.msra.mxu0 0.0
  %2462 = vmatprep.subr.mxu0 0.0
  %2463 = vmatpush2.msra.mxu0 0.0
  %2464 = vmatprep.subr.mxu0 0.0
  %2465 = vmatpush2.msra.mxu0 0.0
  %2466 = vmatprep.subr.mxu0 0.0
  %2467 = vmatpush2.msra.mxu0 0.0
  %2468 = vmatprep.subr.mxu0 0.0
  %2469 = vmatpush2.msra.mxu0 0.0
  %2470 = vmatprep.subr.mxu0 0.0
  %2471 = vmatpush2.msra.mxu0 0.0
  %2472 = vmatprep.subr.mxu0 0.0
  %2473 = vmatpush2.msra.mxu0 0.0
  %2474 = vmatprep.subr.mxu0 0.0
  %2475 = vmatpush2.msra.mxu0 0.0
  %2476 = vmatprep.subr.mxu0 0.0
  %2477 = vmatpush2.msra.mxu0 0.0
  %2478 = vmatprep.subr.mxu0 0.0
  %2479 = vmatpush2.msra.mxu0 0.0
  %2480 = vmatprep.subr.mxu0 0.0
  %2481 = vmatpush2.msra.mxu0 0.0
  %2482 = vmatprep.subr.mxu0 0.0
  %2483 = vmatpush2.msra.mxu0 0.0
  %2484 = vmatprep.mubr.f32.mxu0 0.0
  %2485 = vmatmul.mubr.f32.gmra.mxu0 %v224
  %v2486 = vpop.f32.mrf.mxu0
  %v2487 = vadd.f32 %v2418, %v2486
  %v2488 = vpop.f32.mrf.mxu0
  %2489 = vmatprep.mubr.f32.mxu0 0.0
  %2490 = vmatmul.mubr.f32.gmra.mxu0 %v227
  %v2491 = vpop.f32.mrf.mxu0
  %v2492 = vadd.f32 %v2418, %v2491
  %v2493 = vpop.f32.mrf.mxu0
  %2494 = vdwg.mxu0
  %v2496 = vsel %vm480, %v2311, 0
  %v2499 = vsel %vm480, %v2399, 0
  %2501 = vmatprep.subr.mxu0 0.0
  %2502 = vmatpush1.xpose.msra.mxu0 0.0
  %2503 = vmatprep.subr.mxu0 0.0
  %2504 = vmatpush1.xpose.msra.mxu0 0.0
  %2505 = vmatprep.subr.mxu0 0.0
  %2506 = vmatpush1.xpose.msra.mxu0 0.0
  %2507 = vmatprep.subr.mxu0 0.0
  %2508 = vmatpush1.xpose.msra.mxu0 0.0
  %2509 = vmatprep.subr.mxu0 0.0
  %2510 = vmatpush1.xpose.msra.mxu0 0.0
  %2511 = vmatprep.subr.mxu0 0.0
  %2512 = vmatpush1.xpose.msra.mxu0 0.0
  %2513 = vmatprep.subr.mxu0 0.0
  %2514 = vmatpush1.xpose.msra.mxu0 0.0
  %2515 = vmatprep.subr.mxu0 0.0
  %2516 = vmatpush1.xpose.msra.mxu0 0.0
  %2517 = vmatprep.subr.mxu0 0.0
  %2518 = vmatpush1.xpose.msra.mxu0 0.0
  %2519 = vmatprep.subr.mxu0 0.0
  %2520 = vmatpush1.xpose.msra.mxu0 0.0
  %2521 = vmatprep.subr.mxu0 0.0
  %2522 = vmatpush1.xpose.msra.mxu0 0.0
  %2523 = vmatprep.subr.mxu0 0.0
  %2524 = vmatpush1.xpose.msra.mxu0 0.0
  %2525 = vmatprep.subr.mxu0 0.0
  %2526 = vmatpush1.xpose.msra.mxu0 0.0
  %2527 = vmatprep.subr.mxu0 0.0
  %2528 = vmatpush1.xpose.msra.mxu0 0.0
  %2529 = vmatprep.subr.mxu0 0.0
  %2530 = vmatpush1.xpose.msra.mxu0 0.0
  %2531 = vmatprep.subr.mxu0 0.0
  %2532 = vmatpush1.xpose.msra.mxu0 %v2499
  %2533 = vmatprep.subr.mxu0 0.0
  %2534 = vmatpush2.xpose.msra.mxu0 0.0
  %2535 = vmatprep.subr.mxu0 0.0
  %2536 = vmatpush2.xpose.msra.mxu0 0.0
  %2537 = vmatprep.subr.mxu0 0.0
  %2538 = vmatpush2.xpose.msra.mxu0 0.0
  %2539 = vmatprep.subr.mxu0 0.0
  %2540 = vmatpush2.xpose.msra.mxu0 0.0
  %2541 = vmatprep.subr.mxu0 0.0
  %2542 = vmatpush2.xpose.msra.mxu0 0.0
  %2543 = vmatprep.subr.mxu0 0.0
  %2544 = vmatpush2.xpose.msra.mxu0 0.0
  %2545 = vmatprep.subr.mxu0 0.0
  %2546 = vmatpush2.xpose.msra.mxu0 0.0
  %2547 = vmatprep.subr.mxu0 0.0
  %2548 = vmatpush2.xpose.msra.mxu0 0.0
  %2549 = vmatprep.subr.mxu0 0.0
  %2550 = vmatpush2.xpose.msra.mxu0 0.0
  %2551 = vmatprep.subr.mxu0 0.0
  %2552 = vmatpush2.xpose.msra.mxu0 0.0
  %2553 = vmatprep.subr.mxu0 0.0
  %2554 = vmatpush2.xpose.msra.mxu0 0.0
  %2555 = vmatprep.subr.mxu0 0.0
  %2556 = vmatpush2.xpose.msra.mxu0 0.0
  %2557 = vmatprep.subr.mxu0 0.0
  %2558 = vmatpush2.xpose.msra.mxu0 0.0
  %2559 = vmatprep.subr.mxu0 0.0
  %2560 = vmatpush2.xpose.msra.mxu0 0.0
  %2561 = vmatprep.subr.mxu0 0.0
  %2562 = vmatpush2.xpose.msra.mxu0 0.0
  %2563 = vmatprep.subr.mxu0 0.0
  %2564 = vmatpush2.xpose.msra.mxu0 0.0
  %2565 = vmatprep.mubr.f32.mxu0 0.0
  %2566 = vmatmul.mubr.f32.gmra.mxu0 %v2496
  %v2567 = vpop.f32.mrf.mxu0
  %v2568 = vadd.f32 0.0, %v2567
  %v2569 = vpop.f32.mrf.mxu0
  %2570 = vdwg.mxu0
  %v2572 = vsel %vm480, %v2316, 0
  %v2575 = vsel %vm480, %v2404, 0
  %2577 = vmatprep.subr.mxu0 0.0
  %2578 = vmatpush1.xpose.msra.mxu0 0.0
  %2579 = vmatprep.subr.mxu0 0.0
  %2580 = vmatpush1.xpose.msra.mxu0 0.0
  %2581 = vmatprep.subr.mxu0 0.0
  %2582 = vmatpush1.xpose.msra.mxu0 0.0
  %2583 = vmatprep.subr.mxu0 0.0
  %2584 = vmatpush1.xpose.msra.mxu0 0.0
  %2585 = vmatprep.subr.mxu0 0.0
  %2586 = vmatpush1.xpose.msra.mxu0 0.0
  %2587 = vmatprep.subr.mxu0 0.0
  %2588 = vmatpush1.xpose.msra.mxu0 0.0
  %2589 = vmatprep.subr.mxu0 0.0
  %2590 = vmatpush1.xpose.msra.mxu0 0.0
  %2591 = vmatprep.subr.mxu0 0.0
  %2592 = vmatpush1.xpose.msra.mxu0 0.0
  %2593 = vmatprep.subr.mxu0 0.0
  %2594 = vmatpush1.xpose.msra.mxu0 0.0
  %2595 = vmatprep.subr.mxu0 0.0
  %2596 = vmatpush1.xpose.msra.mxu0 0.0
  %2597 = vmatprep.subr.mxu0 0.0
  %2598 = vmatpush1.xpose.msra.mxu0 0.0
  %2599 = vmatprep.subr.mxu0 0.0
  %2600 = vmatpush1.xpose.msra.mxu0 0.0
  %2601 = vmatprep.subr.mxu0 0.0
  %2602 = vmatpush1.xpose.msra.mxu0 0.0
  %2603 = vmatprep.subr.mxu0 0.0
  %2604 = vmatpush1.xpose.msra.mxu0 0.0
  %2605 = vmatprep.subr.mxu0 0.0
  %2606 = vmatpush1.xpose.msra.mxu0 0.0
  %2607 = vmatprep.subr.mxu0 0.0
  %2608 = vmatpush1.xpose.msra.mxu0 %v2575
  %2609 = vmatprep.subr.mxu0 0.0
  %2610 = vmatpush2.xpose.msra.mxu0 0.0
  %2611 = vmatprep.subr.mxu0 0.0
  %2612 = vmatpush2.xpose.msra.mxu0 0.0
  %2613 = vmatprep.subr.mxu0 0.0
  %2614 = vmatpush2.xpose.msra.mxu0 0.0
  %2615 = vmatprep.subr.mxu0 0.0
  %2616 = vmatpush2.xpose.msra.mxu0 0.0
  %2617 = vmatprep.subr.mxu0 0.0
  %2618 = vmatpush2.xpose.msra.mxu0 0.0
  %2619 = vmatprep.subr.mxu0 0.0
  %2620 = vmatpush2.xpose.msra.mxu0 0.0
  %2621 = vmatprep.subr.mxu0 0.0
  %2622 = vmatpush2.xpose.msra.mxu0 0.0
  %2623 = vmatprep.subr.mxu0 0.0
  %2624 = vmatpush2.xpose.msra.mxu0 0.0
  %2625 = vmatprep.subr.mxu0 0.0
  %2626 = vmatpush2.xpose.msra.mxu0 0.0
  %2627 = vmatprep.subr.mxu0 0.0
  %2628 = vmatpush2.xpose.msra.mxu0 0.0
  %2629 = vmatprep.subr.mxu0 0.0
  %2630 = vmatpush2.xpose.msra.mxu0 0.0
  %2631 = vmatprep.subr.mxu0 0.0
  %2632 = vmatpush2.xpose.msra.mxu0 0.0
  %2633 = vmatprep.subr.mxu0 0.0
  %2634 = vmatpush2.xpose.msra.mxu0 0.0
  %2635 = vmatprep.subr.mxu0 0.0
  %2636 = vmatpush2.xpose.msra.mxu0 0.0
  %2637 = vmatprep.subr.mxu0 0.0
  %2638 = vmatpush2.xpose.msra.mxu0 0.0
  %2639 = vmatprep.subr.mxu0 0.0
  %2640 = vmatpush2.xpose.msra.mxu0 0.0
  %2641 = vmatprep.mubr.f32.mxu0 0.0
  %2642 = vmatmul.mubr.f32.gmra.mxu0 %v2572
  %v2643 = vpop.f32.mrf.mxu0
  %v2644 = vadd.f32 0.0, %v2643
  %v2645 = vpop.f32.mrf.mxu0
  %2646 = vdwg.mxu0
  %v2647 = vmul.f32 %v2568, 0.35355338
  %v2648 = vmul.f32 %v2644, 0.35355338
  %v2649 = vadd.f32 %v2647, %v168
  %v2650 = vadd.f32 %v2648, %v169
  %v2651 = vsel %vm480, %v2649, -inf
  %2652 = vmax.xlane.f32.xlu0 %v2651
  %v2653 = vpop.xlane.xlu0 %2652
  %v2654 = vsel %vm480, %v2650, -inf
  %2655 = vmax.xlane.f32.xlu0 %v2654
  %v2656 = vpop.xlane.xlu0 %2655
  %v2657 = vsub.f32 %v2649, %v2653
  %v2658 = vsub.f32 %v2650, %v2656
  %v2659 = vmul.f32 %v2657, 1.442695
  %v2660 = vpow.pop %v2659
  %v2661 = vmul.f32 %v2658, 1.442695
  %v2662 = vpow.pop %v2661
  %v2663 = vsel %vm480, %v2660, 0.0
  %2664 = vadd.xlane.f32.xlu0 %v2663
  %v2665 = vpop.xlane.xlu0 %2664
  %v2666 = vsel %vm480, %v2662, 0.0
  %2667 = vadd.xlane.f32.xlu0 %v2666
  %v2668 = vpop.xlane.xlu0 %2667
  %v2669 = vrcp.pop %v2665
  %v2670 = vrcp.pop %v2668
  %v2671 = vmul.f32 %v2660, %v2669
  %v2672 = vmul.f32 %v2662, %v2670
  %v2674 = vsel %vm480, %v2671, 0
  %2676 = vmatprep.subr.mxu0 0.0
  %2677 = vmatpush1.msra.mxu0 0.0
  %2678 = vmatprep.subr.mxu0 0.0
  %2679 = vmatpush1.msra.mxu0 0.0
  %2680 = vmatprep.subr.mxu0 0.0
  %2681 = vmatpush1.msra.mxu0 0.0
  %2682 = vmatprep.subr.mxu0 0.0
  %2683 = vmatpush1.msra.mxu0 0.0
  %2684 = vmatprep.subr.mxu0 0.0
  %2685 = vmatpush1.msra.mxu0 0.0
  %2686 = vmatprep.subr.mxu0 0.0
  %2687 = vmatpush1.msra.mxu0 0.0
  %2688 = vmatprep.subr.mxu0 0.0
  %2689 = vmatpush1.msra.mxu0 0.0
  %2690 = vmatprep.subr.mxu0 0.0
  %2691 = vmatpush1.msra.mxu0 0.0
  %2692 = vmatprep.subr.mxu0 0.0
  %2693 = vmatpush1.msra.mxu0 0.0
  %2694 = vmatprep.subr.mxu0 0.0
  %2695 = vmatpush1.msra.mxu0 0.0
  %2696 = vmatprep.subr.mxu0 0.0
  %2697 = vmatpush1.msra.mxu0 0.0
  %2698 = vmatprep.subr.mxu0 0.0
  %2699 = vmatpush1.msra.mxu0 0.0
  %2700 = vmatprep.subr.mxu0 0.0
  %2701 = vmatpush1.msra.mxu0 0.0
  %2702 = vmatprep.subr.mxu0 0.0
  %2703 = vmatpush1.msra.mxu0 0.0
  %2704 = vmatprep.subr.mxu0 0.0
  %2705 = vmatpush1.msra.mxu0 0.0
  %2706 = vmatprep.subr.mxu0 0.0
  %2707 = vmatpush1.msra.mxu0 %v2487
  %2708 = vmatprep.subr.mxu0 0.0
  %2709 = vmatpush2.msra.mxu0 0.0
  %2710 = vmatprep.subr.mxu0 0.0
  %2711 = vmatpush2.msra.mxu0 0.0
  %2712 = vmatprep.subr.mxu0 0.0
  %2713 = vmatpush2.msra.mxu0 0.0
  %2714 = vmatprep.subr.mxu0 0.0
  %2715 = vmatpush2.msra.mxu0 0.0
  %2716 = vmatprep.subr.mxu0 0.0
  %2717 = vmatpush2.msra.mxu0 0.0
  %2718 = vmatprep.subr.mxu0 0.0
  %2719 = vmatpush2.msra.mxu0 0.0
  %2720 = vmatprep.subr.mxu0 0.0
  %2721 = vmatpush2.msra.mxu0 0.0
  %2722 = vmatprep.subr.mxu0 0.0
  %2723 = vmatpush2.msra.mxu0 0.0
  %2724 = vmatprep.subr.mxu0 0.0
  %2725 = vmatpush2.msra.mxu0 0.0
  %2726 = vmatprep.subr.mxu0 0.0
  %2727 = vmatpush2.msra.mxu0 0.0
  %2728 = vmatprep.subr.mxu0 0.0
  %2729 = vmatpush2.msra.mxu0 0.0
  %2730 = vmatprep.subr.mxu0 0.0
  %2731 = vmatpush2.msra.mxu0 0.0
  %2732 = vmatprep.subr.mxu0 0.0
  %2733 = vmatpush2.msra.mxu0 0.0
  %2734 = vmatprep.subr.mxu0 0.0
  %2735 = vmatpush2.msra.mxu0 0.0
  %2736 = vmatprep.subr.mxu0 0.0
  %2737 = vmatpush2.msra.mxu0 0.0
  %2738 = vmatprep.subr.mxu0 0.0
  %2739 = vmatpush2.msra.mxu0 0.0
  %2740 = vmatprep.mubr.f32.mxu0 0.0
  %2741 = vmatmul.mubr.f32.gmra.mxu0 %v2674
  %v2742 = vpop.f32.mrf.mxu0
  %v2743 = vadd.f32 0.0, %v2742
  %v2744 = vpop.f32.mrf.mxu0
  %2745 = vdwg.mxu0
  %v2747 = vsel %vm480, %v2672, 0
  %2749 = vmatprep.subr.mxu0 0.0
  %2750 = vmatpush1.msra.mxu0 0.0
  %2751 = vmatprep.subr.mxu0 0.0
  %2752 = vmatpush1.msra.mxu0 0.0
  %2753 = vmatprep.subr.mxu0 0.0
  %2754 = vmatpush1.msra.mxu0 0.0
  %2755 = vmatprep.subr.mxu0 0.0
  %2756 = vmatpush1.msra.mxu0 0.0
  %2757 = vmatprep.subr.mxu0 0.0
  %2758 = vmatpush1.msra.mxu0 0.0
  %2759 = vmatprep.subr.mxu0 0.0
  %2760 = vmatpush1.msra.mxu0 0.0
  %2761 = vmatprep.subr.mxu0 0.0
  %2762 = vmatpush1.msra.mxu0 0.0
  %2763 = vmatprep.subr.mxu0 0.0
  %2764 = vmatpush1.msra.mxu0 0.0
  %2765 = vmatprep.subr.mxu0 0.0
  %2766 = vmatpush1.msra.mxu0 0.0
  %2767 = vmatprep.subr.mxu0 0.0
  %2768 = vmatpush1.msra.mxu0 0.0
  %2769 = vmatprep.subr.mxu0 0.0
  %2770 = vmatpush1.msra.mxu0 0.0
  %2771 = vmatprep.subr.mxu0 0.0
  %2772 = vmatpush1.msra.mxu0 0.0
  %2773 = vmatprep.subr.mxu0 0.0
  %2774 = vmatpush1.msra.mxu0 0.0
  %2775 = vmatprep.subr.mxu0 0.0
  %2776 = vmatpush1.msra.mxu0 0.0
  %2777 = vmatprep.subr.mxu0 0.0
  %2778 = vmatpush1.msra.mxu0 0.0
  %2779 = vmatprep.subr.mxu0 0.0
  %2780 = vmatpush1.msra.mxu0 %v2492
  %2781 = vmatprep.subr.mxu0 0.0
  %2782 = vmatpush2.msra.mxu0 0.0
  %2783 = vmatprep.subr.mxu0 0.0
  %2784 = vmatpush2.msra.mxu0 0.0
  %2785 = vmatprep.subr.mxu0 0.0
  %2786 = vmatpush2.msra.mxu0 0.0
  %2787 = vmatprep.subr.mxu0 0.0
  %2788 = vmatpush2.msra.mxu0 0.0
  %2789 = vmatprep.subr.mxu0 0.0
  %2790 = vmatpush2.msra.mxu0 0.0
  %2791 = vmatprep.subr.mxu0 0.0
  %2792 = vmatpush2.msra.mxu0 0.0
  %2793 = vmatprep.subr.mxu0 0.0
  %2794 = vmatpush2.msra.mxu0 0.0
  %2795 = vmatprep.subr.mxu0 0.0
  %2796 = vmatpush2.msra.mxu0 0.0
  %2797 = vmatprep.subr.mxu0 0.0
  %2798 = vmatpush2.msra.mxu0 0.0
  %2799 = vmatprep.subr.mxu0 0.0
  %2800 = vmatpush2.msra.mxu0 0.0
  %2801 = vmatprep.subr.mxu0 0.0
  %2802 = vmatpush2.msra.mxu0 0.0
  %2803 = vmatprep.subr.mxu0 0.0
  %2804 = vmatpush2.msra.mxu0 0.0
  %2805 = vmatprep.subr.mxu0 0.0
  %2806 = vmatpush2.msra.mxu0 0.0
  %2807 = vmatprep.subr.mxu0 0.0
  %2808 = vmatpush2.msra.mxu0 0.0
  %2809 = vmatprep.subr.mxu0 0.0
  %2810 = vmatpush2.msra.mxu0 0.0
  %2811 = vmatprep.subr.mxu0 0.0
  %2812 = vmatpush2.msra.mxu0 0.0
  %2813 = vmatprep.mubr.f32.mxu0 0.0
  %2814 = vmatmul.mubr.f32.gmra.mxu0 %v2747
  %v2815 = vpop.f32.mrf.mxu0
  %v2816 = vadd.f32 0.0, %v2815
  %v2817 = vpop.f32.mrf.mxu0
  %2818 = vdwg.mxu0
  %s2819 = scalar_lea.vmem %s6, 24
  %v2820 = vld [vmem:[%s2819] sm:$0xff]
  %v2822 = vsel %vm480, %v2743, 0
  %v2825 = vsel %vm480, %v2816, 0
  %2827 = vmatprep.subr.mxu0 0.0
  %2828 = vmatpush1.msra.mxu0 0.0
  %2829 = vmatprep.subr.mxu0 0.0
  %2830 = vmatpush1.msra.mxu0 0.0
  %2831 = vmatprep.subr.mxu0 0.0
  %2832 = vmatpush1.msra.mxu0 0.0
  %2833 = vmatprep.subr.mxu0 0.0
  %2834 = vmatpush1.msra.mxu0 0.0
  %2835 = vmatprep.subr.mxu0 0.0
  %2836 = vmatpush1.msra.mxu0 0.0
  %2837 = vmatprep.subr.mxu0 0.0
  %2838 = vmatpush1.msra.mxu0 0.0
  %2839 = vmatprep.subr.mxu0 0.0
  %2840 = vmatpush1.msra.mxu0 0.0
  %2841 = vmatprep.subr.mxu0 0.0
  %2842 = vmatpush1.msra.mxu0 0.0
  %2843 = vmatprep.subr.mxu0 0.0
  %2844 = vmatpush1.msra.mxu0 0.0
  %2845 = vmatprep.subr.mxu0 0.0
  %2846 = vmatpush1.msra.mxu0 0.0
  %2847 = vmatprep.subr.mxu0 0.0
  %2848 = vmatpush1.msra.mxu0 0.0
  %2849 = vmatprep.subr.mxu0 0.0
  %2850 = vmatpush1.msra.mxu0 0.0
  %2851 = vmatprep.subr.mxu0 0.0
  %2852 = vmatpush1.msra.mxu0 0.0
  %2853 = vmatprep.subr.mxu0 0.0
  %2854 = vmatpush1.msra.mxu0 0.0
  %2855 = vmatprep.subr.mxu0 0.0
  %2856 = vmatpush1.msra.mxu0 0.0
  %2857 = vmatprep.subr.mxu0 0.0
  %2858 = vmatpush1.msra.mxu0 %v2820
  %2859 = vmatprep.subr.mxu0 0.0
  %2860 = vmatpush2.msra.mxu0 0.0
  %2861 = vmatprep.subr.mxu0 0.0
  %2862 = vmatpush2.msra.mxu0 0.0
  %2863 = vmatprep.subr.mxu0 0.0
  %2864 = vmatpush2.msra.mxu0 0.0
  %2865 = vmatprep.subr.mxu0 0.0
  %2866 = vmatpush2.msra.mxu0 0.0
  %2867 = vmatprep.subr.mxu0 0.0
  %2868 = vmatpush2.msra.mxu0 0.0
  %2869 = vmatprep.subr.mxu0 0.0
  %2870 = vmatpush2.msra.mxu0 0.0
  %2871 = vmatprep.subr.mxu0 0.0
  %2872 = vmatpush2.msra.mxu0 0.0
  %2873 = vmatprep.subr.mxu0 0.0
  %2874 = vmatpush2.msra.mxu0 0.0
  %2875 = vmatprep.subr.mxu0 0.0
  %2876 = vmatpush2.msra.mxu0 0.0
  %2877 = vmatprep.subr.mxu0 0.0
  %2878 = vmatpush2.msra.mxu0 0.0
  %2879 = vmatprep.subr.mxu0 0.0
  %2880 = vmatpush2.msra.mxu0 0.0
  %2881 = vmatprep.subr.mxu0 0.0
  %2882 = vmatpush2.msra.mxu0 0.0
  %2883 = vmatprep.subr.mxu0 0.0
  %2884 = vmatpush2.msra.mxu0 0.0
  %2885 = vmatprep.subr.mxu0 0.0
  %2886 = vmatpush2.msra.mxu0 0.0
  %2887 = vmatprep.subr.mxu0 0.0
  %2888 = vmatpush2.msra.mxu0 0.0
  %2889 = vmatprep.subr.mxu0 0.0
  %2890 = vmatpush2.msra.mxu0 0.0
  %2891 = vmatprep.mubr.f32.mxu0 0.0
  %2892 = vmatmul.mubr.f32.gmra.mxu0 %v2822
  %v2893 = vpop.f32.mrf.mxu0
  %v2894 = vadd.f32 0.0, %v2893
  %v2895 = vpop.f32.mrf.mxu0
  %2896 = vmatprep.mubr.f32.mxu0 0.0
  %2897 = vmatmul.mubr.f32.gmra.mxu0 %v2825
  %v2898 = vpop.f32.mrf.mxu0
  %v2899 = vadd.f32 0.0, %v2898
  %v2900 = vpop.f32.mrf.mxu0
  %2901 = vdwg.mxu0
  %v2902 = vadd.f32 %v2229, %v2894
  %v2903 = vadd.f32 %v2230, %v2899
  %v2904 = vadd.f32 %v141, %v2902
  %v2905 = vadd.f32 %v146, %v2903
  %v2906 = vld [vmem:[%s3 + $0x4] sm:$0x1]
  %v2907 = vlaneseq
  %v2908 = vshrl.u32 %v2907, 7
  %v2909 = vsub.s32 0, %v2908
  %v2910 = vrot.slane %v2906, %v2909
  %v2911 = vadd.f32 %v2904, %v2910
  %v2912 = vadd.f32 %v2905, %v2910
  %v2913 = vld [vmem:[%s3 + $0x2] sm:$0x1]
  %v2914 = vld [vmem:[%s3 + $0x3] sm:$0x1]
  %v2915 = vsel %vm172, %v2911, 0.0
  %2916 = vadd.xlane.f32.xlu0 %v2915
  %v2917 = vpop.xlane.xlu0 %2916
  %v2918 = vsel %vm172, %v2912, 0.0
  %2919 = vadd.xlane.f32.xlu0 %v2918
  %v2920 = vpop.xlane.xlu0 %2919
  %v2921 = vmul.f32 %v2917, %v179
  %v2922 = vmul.f32 %v2920, %v179
  %v2923 = vsub.f32 %v2911, %v2921
  %v2924 = vsub.f32 %v2912, %v2922
  %v2925 = vmul.f32 %v2923, %v2923
  %v2926 = vmul.f32 %v2924, %v2924
  %v2927 = vsel %vm172, %v2925, 0.0
  %2928 = vadd.xlane.f32.xlu0 %v2927
  %v2929 = vpop.xlane.xlu0 %2928
  %v2930 = vsel %vm172, %v2926, 0.0
  %2931 = vadd.xlane.f32.xlu0 %v2930
  %v2932 = vpop.xlane.xlu0 %2931
  %v2933 = vmul.f32 %v2929, %v179
  %v2934 = vmul.f32 %v2932, %v179
  %v2935 = vadd.f32 %v2933, 1e-05
  %v2936 = vadd.f32 %v2934, 1e-05
  %v2937 = vrsqrt.pop %v2935
  %v2938 = vrsqrt.pop %v2936
  %v2939 = vmul.f32 %v2923, %v2937
  %v2940 = vmul.f32 %v2924, %v2938
  %v2941 = vlaneseq
  %v2942 = vshrl.u32 %v2941, 7
  %v2943 = vsub.s32 0, %v2942
  %v2944 = vrot.slane %v2913, %v2943
  %v2945 = vmul.f32 %v2939, %v2944
  %v2946 = vmul.f32 %v2940, %v2944
  %v2947 = vlaneseq
  %v2948 = vshrl.u32 %v2947, 7
  %v2949 = vsub.s32 0, %v2948
  %v2950 = vrot.slane %v2914, %v2949
  %v2951 = vadd.f32 %v2945, %v2950
  %v2952 = vadd.f32 %v2946, %v2950
  %v2953 = vld [vmem:[%s7] sm:$0xff]
  %v2954 = vld [vmem:[%s7 + $0x8] sm:$0xff]
  %v2955 = vld [vmem:[%s7 + $0x10] sm:$0xff]
  %v2956 = vld [vmem:[%s7 + $0x18] sm:$0xff]
  %v2957 = vld [vmem:[%s3 + $0x6] sm:$0x1]
  %v2958 = vlaneseq
  %v2959 = vshrl.u32 %v2958, 7
  %v2960 = vsub.s32 0, %v2959
  %v2961 = vrot.slane %v2957, %v2960
  %v2963 = vsel %vm172, %v2951, 0
  %v2966 = vsel %vm172, %v2952, 0
  %2968 = vmatprep.subr.mxu0 0.0
  %2969 = vmatpush1.msra.mxu0 0.0
  %2970 = vmatprep.subr.mxu0 0.0
  %2971 = vmatpush1.msra.mxu0 0.0
  %2972 = vmatprep.subr.mxu0 0.0
  %2973 = vmatpush1.msra.mxu0 0.0
  %2974 = vmatprep.subr.mxu0 0.0
  %2975 = vmatpush1.msra.mxu0 0.0
  %2976 = vmatprep.subr.mxu0 0.0
  %2977 = vmatpush1.msra.mxu0 0.0
  %2978 = vmatprep.subr.mxu0 0.0
  %2979 = vmatpush1.msra.mxu0 0.0
  %2980 = vmatprep.subr.mxu0 0.0
  %2981 = vmatpush1.msra.mxu0 0.0
  %2982 = vmatprep.subr.mxu0 0.0
  %2983 = vmatpush1.msra.mxu0 0.0
  %2984 = vmatprep.subr.mxu0 0.0
  %2985 = vmatpush1.msra.mxu0 0.0
  %2986 = vmatprep.subr.mxu0 0.0
  %2987 = vmatpush1.msra.mxu0 0.0
  %2988 = vmatprep.subr.mxu0 0.0
  %2989 = vmatpush1.msra.mxu0 0.0
  %2990 = vmatprep.subr.mxu0 0.0
  %2991 = vmatpush1.msra.mxu0 0.0
  %2992 = vmatprep.subr.mxu0 0.0
  %2993 = vmatpush1.msra.mxu0 %v2956
  %2994 = vmatprep.subr.mxu0 0.0
  %2995 = vmatpush1.msra.mxu0 %v2955
  %2996 = vmatprep.subr.mxu0 0.0
  %2997 = vmatpush1.msra.mxu0 %v2954
  %2998 = vmatprep.subr.mxu0 0.0
  %2999 = vmatpush1.msra.mxu0 %v2953
  %3000 = vmatprep.subr.mxu0 0.0
  %3001 = vmatpush2.msra.mxu0 0.0
  %3002 = vmatprep.subr.mxu0 0.0
  %3003 = vmatpush2.msra.mxu0 0.0
  %3004 = vmatprep.subr.mxu0 0.0
  %3005 = vmatpush2.msra.mxu0 0.0
  %3006 = vmatprep.subr.mxu0 0.0
  %3007 = vmatpush2.msra.mxu0 0.0
  %3008 = vmatprep.subr.mxu0 0.0
  %3009 = vmatpush2.msra.mxu0 0.0
  %3010 = vmatprep.subr.mxu0 0.0
  %3011 = vmatpush2.msra.mxu0 0.0
  %3012 = vmatprep.subr.mxu0 0.0
  %3013 = vmatpush2.msra.mxu0 0.0
  %3014 = vmatprep.subr.mxu0 0.0
  %3015 = vmatpush2.msra.mxu0 0.0
  %3016 = vmatprep.subr.mxu0 0.0
  %3017 = vmatpush2.msra.mxu0 0.0
  %3018 = vmatprep.subr.mxu0 0.0
  %3019 = vmatpush2.msra.mxu0 0.0
  %3020 = vmatprep.subr.mxu0 0.0
  %3021 = vmatpush2.msra.mxu0 0.0
  %3022 = vmatprep.subr.mxu0 0.0
  %3023 = vmatpush2.msra.mxu0 0.0
  %3024 = vmatprep.subr.mxu0 0.0
  %3025 = vmatpush2.msra.mxu0 0.0
  %3026 = vmatprep.subr.mxu0 0.0
  %3027 = vmatpush2.msra.mxu0 0.0
  %3028 = vmatprep.subr.mxu0 0.0
  %3029 = vmatpush2.msra.mxu0 0.0
  %3030 = vmatprep.subr.mxu0 0.0
  %3031 = vmatpush2.msra.mxu0 0.0
  %3032 = vmatprep.mubr.f32.mxu0 0.0
  %3033 = vmatmul.mubr.f32.gmra.mxu0 %v2963
  %v3034 = vpop.f32.mrf.mxu0
  %v3035 = vadd.f32 %v2961, %v3034
  %v3036 = vpop.f32.mrf.mxu0
  %3037 = vmatprep.mubr.f32.mxu0 0.0
  %3038 = vmatmul.mubr.f32.gmra.mxu0 %v2966
  %v3039 = vpop.f32.mrf.mxu0
  %v3040 = vadd.f32 %v2961, %v3039
  %v3041 = vpop.f32.mrf.mxu0
  %3042 = vdwg.mxu0
  %v3043 = vmul.f32 %v3035, 0.5
  %v3044 = vmul.f32 %v3040, 0.5
  %v3045 = vmul.f32 %v3035, 0.044715
  %v3046 = vmul.f32 %v3040, 0.044715
  %v3047 = vmul.f32 %v3045, %v3035
  %v3048 = vmul.f32 %v3046, %v3040
  %v3049 = vmul.f32 %v3047, %v3035
  %v3050 = vmul.f32 %v3048, %v3040
  %v3051 = vadd.f32 %v3035, %v3049
  %v3052 = vadd.f32 %v3040, %v3050
  %v3053 = vmul.f32 %v3051, 0.7978846
  %v3054 = vmul.f32 %v3052, 0.7978846
  %v3055 = vtanh.pop %v3053
  %v3056 = vtanh.pop %v3054
  %v3057 = vadd.f32 %v3055, 1.0
  %v3058 = vadd.f32 %v3056, 1.0
  %v3059 = vmul.f32 %v3043, %v3057
  %v3060 = vmul.f32 %v3044, %v3058
  %v3061 = vld [vmem:[%s8] sm:$0xff]
  %v3062 = vld [vmem:[%s8 + $0x8] sm:$0xff]
  %v3063 = vld [vmem:[%s8 + $0x10] sm:$0xff]
  %v3064 = vld [vmem:[%s8 + $0x18] sm:$0xff]
  %v3065 = vld [vmem:[%s8 + $0x20] sm:$0xff]
  %v3066 = vld [vmem:[%s8 + $0x28] sm:$0xff]
  %v3067 = vld [vmem:[%s8 + $0x30] sm:$0xff]
  %v3068 = vld [vmem:[%s8 + $0x38] sm:$0xff]
  %v3069 = vld [vmem:[%s8 + $0x40] sm:$0xff]
  %v3070 = vld [vmem:[%s8 + $0x48] sm:$0xff]
  %v3071 = vld [vmem:[%s8 + $0x50] sm:$0xff]
  %v3072 = vld [vmem:[%s8 + $0x58] sm:$0xff]
  %v3073 = vld [vmem:[%s8 + $0x60] sm:$0xff]
  %v3074 = vld [vmem:[%s8 + $0x68] sm:$0xff]
  %v3075 = vld [vmem:[%s8 + $0x70] sm:$0xff]
  %v3076 = vld [vmem:[%s8 + $0x78] sm:$0xff]
  %3077 = vmatprep.subr.mxu0 0.0
  %3078 = vmatpush1.msra.mxu0 %v3076
  %3079 = vmatprep.subr.mxu0 0.0
  %3080 = vmatpush1.msra.mxu0 %v3075
  %3081 = vmatprep.subr.mxu0 0.0
  %3082 = vmatpush1.msra.mxu0 %v3074
  %3083 = vmatprep.subr.mxu0 0.0
  %3084 = vmatpush1.msra.mxu0 %v3073
  %3085 = vmatprep.subr.mxu0 0.0
  %3086 = vmatpush1.msra.mxu0 %v3072
  %3087 = vmatprep.subr.mxu0 0.0
  %3088 = vmatpush1.msra.mxu0 %v3071
  %3089 = vmatprep.subr.mxu0 0.0
  %3090 = vmatpush1.msra.mxu0 %v3070
  %3091 = vmatprep.subr.mxu0 0.0
  %3092 = vmatpush1.msra.mxu0 %v3069
  %3093 = vmatprep.subr.mxu0 0.0
  %3094 = vmatpush1.msra.mxu0 %v3068
  %3095 = vmatprep.subr.mxu0 0.0
  %3096 = vmatpush1.msra.mxu0 %v3067
  %3097 = vmatprep.subr.mxu0 0.0
  %3098 = vmatpush1.msra.mxu0 %v3066
  %3099 = vmatprep.subr.mxu0 0.0
  %3100 = vmatpush1.msra.mxu0 %v3065
  %3101 = vmatprep.subr.mxu0 0.0
  %3102 = vmatpush1.msra.mxu0 %v3064
  %3103 = vmatprep.subr.mxu0 0.0
  %3104 = vmatpush1.msra.mxu0 %v3063
  %3105 = vmatprep.subr.mxu0 0.0
  %3106 = vmatpush1.msra.mxu0 %v3062
  %3107 = vmatprep.subr.mxu0 0.0
  %3108 = vmatpush1.msra.mxu0 %v3061
  %3109 = vmatprep.subr.mxu0 0.0
  %3110 = vmatpush2.msra.mxu0 0.0
  %3111 = vmatprep.subr.mxu0 0.0
  %3112 = vmatpush2.msra.mxu0 0.0
  %3113 = vmatprep.subr.mxu0 0.0
  %3114 = vmatpush2.msra.mxu0 0.0
  %3115 = vmatprep.subr.mxu0 0.0
  %3116 = vmatpush2.msra.mxu0 0.0
  %3117 = vmatprep.subr.mxu0 0.0
  %3118 = vmatpush2.msra.mxu0 0.0
  %3119 = vmatprep.subr.mxu0 0.0
  %3120 = vmatpush2.msra.mxu0 0.0
  %3121 = vmatprep.subr.mxu0 0.0
  %3122 = vmatpush2.msra.mxu0 0.0
  %3123 = vmatprep.subr.mxu0 0.0
  %3124 = vmatpush2.msra.mxu0 0.0
  %3125 = vmatprep.subr.mxu0 0.0
  %3126 = vmatpush2.msra.mxu0 0.0
  %3127 = vmatprep.subr.mxu0 0.0
  %3128 = vmatpush2.msra.mxu0 0.0
  %3129 = vmatprep.subr.mxu0 0.0
  %3130 = vmatpush2.msra.mxu0 0.0
  %3131 = vmatprep.subr.mxu0 0.0
  %3132 = vmatpush2.msra.mxu0 0.0
  %3133 = vmatprep.subr.mxu0 0.0
  %3134 = vmatpush2.msra.mxu0 0.0
  %3135 = vmatprep.subr.mxu0 0.0
  %3136 = vmatpush2.msra.mxu0 0.0
  %3137 = vmatprep.subr.mxu0 0.0
  %3138 = vmatpush2.msra.mxu0 0.0
  %3139 = vmatprep.subr.mxu0 0.0
  %3140 = vmatpush2.msra.mxu0 0.0
  %3141 = vmatprep.mubr.f32.mxu0 0.0
  %3142 = vmatmul.mubr.f32.gmra.mxu0 %v3059
  %v3143 = vpop.f32.mrf.mxu0
  %v3144 = vadd.f32 0.0, %v3143
  %v3145 = vpop.f32.mrf.mxu0
  %3146 = vmatprep.mubr.f32.mxu0 0.0
  %3147 = vmatmul.mubr.f32.gmra.mxu0 %v3060
  %v3148 = vpop.f32.mrf.mxu0
  %v3149 = vadd.f32 0.0, %v3148
  %v3150 = vpop.f32.mrf.mxu0
  %3151 = vdwg.mxu0
  %v3152 = vadd.f32 %v2911, %v3144
  %v3153 = vadd.f32 %v2912, %v3149
  %v3154 = vld [vmem:[%s3 + $0x5] sm:$0x1]
  %v3155 = vlaneseq
  %v3156 = vshrl.u32 %v3155, 7
  %v3157 = vsub.s32 0, %v3156
  %v3158 = vrot.slane %v3154, %v3157
  %v3159 = vadd.f32 %v3152, %v3158
  %v3160 = vadd.f32 %v3153, %v3158
  %v3161 = vld [vmem:[%s3 + $0x8] sm:$0x1]
  %v3162 = vld [vmem:[%s3 + $0x9] sm:$0x1]
  %v3163 = vsel %vm172, %v3159, 0.0
  %3164 = vadd.xlane.f32.xlu0 %v3163
  %v3165 = vpop.xlane.xlu0 %3164
  %v3166 = vsel %vm172, %v3160, 0.0
  %3167 = vadd.xlane.f32.xlu0 %v3166
  %v3168 = vpop.xlane.xlu0 %3167
  %v3169 = vmul.f32 %v3165, %v179
  %v3170 = vmul.f32 %v3168, %v179
  %v3171 = vsub.f32 %v3159, %v3169
  %v3172 = vsub.f32 %v3160, %v3170
  %v3173 = vmul.f32 %v3171, %v3171
  %v3174 = vmul.f32 %v3172, %v3172
  %v3175 = vsel %vm172, %v3173, 0.0
  %3176 = vadd.xlane.f32.xlu0 %v3175
  %v3177 = vpop.xlane.xlu0 %3176
  %v3178 = vsel %vm172, %v3174, 0.0
  %3179 = vadd.xlane.f32.xlu0 %v3178
  %v3180 = vpop.xlane.xlu0 %3179
  %v3181 = vmul.f32 %v3177, %v179
  %v3182 = vmul.f32 %v3180, %v179
  %v3183 = vadd.f32 %v3181, 1e-05
  %v3184 = vadd.f32 %v3182, 1e-05
  %v3185 = vrsqrt.pop %v3183
  %v3186 = vrsqrt.pop %v3184
  %v3187 = vmul.f32 %v3171, %v3185
  %v3188 = vmul.f32 %v3172, %v3186
  %v3189 = vlaneseq
  %v3190 = vshrl.u32 %v3189, 7
  %v3191 = vsub.s32 0, %v3190
  %v3192 = vrot.slane %v3161, %v3191
  %v3193 = vmul.f32 %v3187, %v3192
  %v3194 = vmul.f32 %v3188, %v3192
  %v3195 = vlaneseq
  %v3196 = vshrl.u32 %v3195, 7
  %v3197 = vsub.s32 0, %v3196
  %v3198 = vrot.slane %v3162, %v3197
  %v3199 = vadd.f32 %v3193, %v3198
  %v3200 = vadd.f32 %v3194, %v3198
  %s3201 = scalar_lea.vmem %s4, 384
  %v3202 = vld [vmem:[%s3201] sm:$0xff]
  %v3203 = vld [vmem:[%s3201 + $0x8] sm:$0xff]
  %v3204 = vld [vmem:[%s3201 + $0x10] sm:$0xff]
  %v3205 = vld [vmem:[%s3201 + $0x18] sm:$0xff]
  %s3206 = scalar_lea.vmem %s5, 12
  %v3207 = vld [vmem:[%s3206] sm:$0x1]
  %v3209 = vlaneseq
  %v3210 = vshrl.u32 %v3209, 7
  %v3211 = vsub.s32 0, %v3210
  %v3212 = vrot.slane %v3207, %v3211
  %v3215 = vsel %vm172, %v3199, 0
  %v3218 = vsel %vm172, %v3200, 0
  %3220 = vmatprep.subr.mxu0 0.0
  %3221 = vmatpush1.msra.mxu0 0.0
  %3222 = vmatprep.subr.mxu0 0.0
  %3223 = vmatpush1.msra.mxu0 0.0
  %3224 = vmatprep.subr.mxu0 0.0
  %3225 = vmatpush1.msra.mxu0 0.0
  %3226 = vmatprep.subr.mxu0 0.0
  %3227 = vmatpush1.msra.mxu0 0.0
  %3228 = vmatprep.subr.mxu0 0.0
  %3229 = vmatpush1.msra.mxu0 0.0
  %3230 = vmatprep.subr.mxu0 0.0
  %3231 = vmatpush1.msra.mxu0 0.0
  %3232 = vmatprep.subr.mxu0 0.0
  %3233 = vmatpush1.msra.mxu0 0.0
  %3234 = vmatprep.subr.mxu0 0.0
  %3235 = vmatpush1.msra.mxu0 0.0
  %3236 = vmatprep.subr.mxu0 0.0
  %3237 = vmatpush1.msra.mxu0 0.0
  %3238 = vmatprep.subr.mxu0 0.0
  %3239 = vmatpush1.msra.mxu0 0.0
  %3240 = vmatprep.subr.mxu0 0.0
  %3241 = vmatpush1.msra.mxu0 0.0
  %3242 = vmatprep.subr.mxu0 0.0
  %3243 = vmatpush1.msra.mxu0 0.0
  %3244 = vmatprep.subr.mxu0 0.0
  %3245 = vmatpush1.msra.mxu0 %v3205
  %3246 = vmatprep.subr.mxu0 0.0
  %3247 = vmatpush1.msra.mxu0 %v3204
  %3248 = vmatprep.subr.mxu0 0.0
  %3249 = vmatpush1.msra.mxu0 %v3203
  %3250 = vmatprep.subr.mxu0 0.0
  %3251 = vmatpush1.msra.mxu0 %v3202
  %3252 = vmatprep.subr.mxu0 0.0
  %3253 = vmatpush2.msra.mxu0 0.0
  %3254 = vmatprep.subr.mxu0 0.0
  %3255 = vmatpush2.msra.mxu0 0.0
  %3256 = vmatprep.subr.mxu0 0.0
  %3257 = vmatpush2.msra.mxu0 0.0
  %3258 = vmatprep.subr.mxu0 0.0
  %3259 = vmatpush2.msra.mxu0 0.0
  %3260 = vmatprep.subr.mxu0 0.0
  %3261 = vmatpush2.msra.mxu0 0.0
  %3262 = vmatprep.subr.mxu0 0.0
  %3263 = vmatpush2.msra.mxu0 0.0
  %3264 = vmatprep.subr.mxu0 0.0
  %3265 = vmatpush2.msra.mxu0 0.0
  %3266 = vmatprep.subr.mxu0 0.0
  %3267 = vmatpush2.msra.mxu0 0.0
  %3268 = vmatprep.subr.mxu0 0.0
  %3269 = vmatpush2.msra.mxu0 0.0
  %3270 = vmatprep.subr.mxu0 0.0
  %3271 = vmatpush2.msra.mxu0 0.0
  %3272 = vmatprep.subr.mxu0 0.0
  %3273 = vmatpush2.msra.mxu0 0.0
  %3274 = vmatprep.subr.mxu0 0.0
  %3275 = vmatpush2.msra.mxu0 0.0
  %3276 = vmatprep.subr.mxu0 0.0
  %3277 = vmatpush2.msra.mxu0 0.0
  %3278 = vmatprep.subr.mxu0 0.0
  %3279 = vmatpush2.msra.mxu0 0.0
  %3280 = vmatprep.subr.mxu0 0.0
  %3281 = vmatpush2.msra.mxu0 0.0
  %3282 = vmatprep.subr.mxu0 0.0
  %3283 = vmatpush2.msra.mxu0 0.0
  %3284 = vmatprep.mubr.f32.mxu0 0.0
  %3285 = vmatmul.mubr.f32.gmra.mxu0 %v3215
  %v3286 = vpop.f32.mrf.mxu0
  %v3287 = vadd.f32 %v3212, %v3286
  %v3288 = vpop.f32.mrf.mxu0
  %3289 = vmatprep.mubr.f32.mxu0 0.0
  %3290 = vmatmul.mubr.f32.gmra.mxu0 %v3218
  %v3291 = vpop.f32.mrf.mxu0
  %v3292 = vadd.f32 %v3212, %v3291
  %v3293 = vpop.f32.mrf.mxu0
  %3294 = vdwg.mxu0
  %s3295 = scalar_lea.vmem %s4, 512
  %v3296 = vld [vmem:[%s3295] sm:$0xff]
  %v3297 = vld [vmem:[%s3295 + $0x8] sm:$0xff]
  %v3298 = vld [vmem:[%s3295 + $0x10] sm:$0xff]
  %v3299 = vld [vmem:[%s3295 + $0x18] sm:$0xff]
  %s3300 = scalar_lea.vmem %s5, 16
  %v3301 = vld [vmem:[%s3300] sm:$0x1]
  %v3303 = vlaneseq
  %v3304 = vshrl.u32 %v3303, 7
  %v3305 = vsub.s32 0, %v3304
  %v3306 = vrot.slane %v3301, %v3305
  %3308 = vmatprep.subr.mxu0 0.0
  %3309 = vmatpush1.msra.mxu0 0.0
  %3310 = vmatprep.subr.mxu0 0.0
  %3311 = vmatpush1.msra.mxu0 0.0
  %3312 = vmatprep.subr.mxu0 0.0
  %3313 = vmatpush1.msra.mxu0 0.0
  %3314 = vmatprep.subr.mxu0 0.0
  %3315 = vmatpush1.msra.mxu0 0.0
  %3316 = vmatprep.subr.mxu0 0.0
  %3317 = vmatpush1.msra.mxu0 0.0
  %3318 = vmatprep.subr.mxu0 0.0
  %3319 = vmatpush1.msra.mxu0 0.0
  %3320 = vmatprep.subr.mxu0 0.0
  %3321 = vmatpush1.msra.mxu0 0.0
  %3322 = vmatprep.subr.mxu0 0.0
  %3323 = vmatpush1.msra.mxu0 0.0
  %3324 = vmatprep.subr.mxu0 0.0
  %3325 = vmatpush1.msra.mxu0 0.0
  %3326 = vmatprep.subr.mxu0 0.0
  %3327 = vmatpush1.msra.mxu0 0.0
  %3328 = vmatprep.subr.mxu0 0.0
  %3329 = vmatpush1.msra.mxu0 0.0
  %3330 = vmatprep.subr.mxu0 0.0
  %3331 = vmatpush1.msra.mxu0 0.0
  %3332 = vmatprep.subr.mxu0 0.0
  %3333 = vmatpush1.msra.mxu0 %v3299
  %3334 = vmatprep.subr.mxu0 0.0
  %3335 = vmatpush1.msra.mxu0 %v3298
  %3336 = vmatprep.subr.mxu0 0.0
  %3337 = vmatpush1.msra.mxu0 %v3297
  %3338 = vmatprep.subr.mxu0 0.0
  %3339 = vmatpush1.msra.mxu0 %v3296
  %3340 = vmatprep.subr.mxu0 0.0
  %3341 = vmatpush2.msra.mxu0 0.0
  %3342 = vmatprep.subr.mxu0 0.0
  %3343 = vmatpush2.msra.mxu0 0.0
  %3344 = vmatprep.subr.mxu0 0.0
  %3345 = vmatpush2.msra.mxu0 0.0
  %3346 = vmatprep.subr.mxu0 0.0
  %3347 = vmatpush2.msra.mxu0 0.0
  %3348 = vmatprep.subr.mxu0 0.0
  %3349 = vmatpush2.msra.mxu0 0.0
  %3350 = vmatprep.subr.mxu0 0.0
  %3351 = vmatpush2.msra.mxu0 0.0
  %3352 = vmatprep.subr.mxu0 0.0
  %3353 = vmatpush2.msra.mxu0 0.0
  %3354 = vmatprep.subr.mxu0 0.0
  %3355 = vmatpush2.msra.mxu0 0.0
  %3356 = vmatprep.subr.mxu0 0.0
  %3357 = vmatpush2.msra.mxu0 0.0
  %3358 = vmatprep.subr.mxu0 0.0
  %3359 = vmatpush2.msra.mxu0 0.0
  %3360 = vmatprep.subr.mxu0 0.0
  %3361 = vmatpush2.msra.mxu0 0.0
  %3362 = vmatprep.subr.mxu0 0.0
  %3363 = vmatpush2.msra.mxu0 0.0
  %3364 = vmatprep.subr.mxu0 0.0
  %3365 = vmatpush2.msra.mxu0 0.0
  %3366 = vmatprep.subr.mxu0 0.0
  %3367 = vmatpush2.msra.mxu0 0.0
  %3368 = vmatprep.subr.mxu0 0.0
  %3369 = vmatpush2.msra.mxu0 0.0
  %3370 = vmatprep.subr.mxu0 0.0
  %3371 = vmatpush2.msra.mxu0 0.0
  %3372 = vmatprep.mubr.f32.mxu0 0.0
  %3373 = vmatmul.mubr.f32.gmra.mxu0 %v3215
  %v3374 = vpop.f32.mrf.mxu0
  %v3375 = vadd.f32 %v3306, %v3374
  %v3376 = vpop.f32.mrf.mxu0
  %3377 = vmatprep.mubr.f32.mxu0 0.0
  %3378 = vmatmul.mubr.f32.gmra.mxu0 %v3218
  %v3379 = vpop.f32.mrf.mxu0
  %v3380 = vadd.f32 %v3306, %v3379
  %v3381 = vpop.f32.mrf.mxu0
  %3382 = vdwg.mxu0
  %s3383 = scalar_lea.vmem %s4, 640
  %v3384 = vld [vmem:[%s3383] sm:$0xff]
  %v3385 = vld [vmem:[%s3383 + $0x8] sm:$0xff]
  %v3386 = vld [vmem:[%s3383 + $0x10] sm:$0xff]
  %v3387 = vld [vmem:[%s3383 + $0x18] sm:$0xff]
  %s3388 = scalar_lea.vmem %s5, 20
  %v3389 = vld [vmem:[%s3388] sm:$0x1]
  %v3391 = vlaneseq
  %v3392 = vshrl.u32 %v3391, 7
  %v3393 = vsub.s32 0, %v3392
  %v3394 = vrot.slane %v3389, %v3393
  %3396 = vmatprep.subr.mxu0 0.0
  %3397 = vmatpush1.msra.mxu0 0.0
  %3398 = vmatprep.subr.mxu0 0.0
  %3399 = vmatpush1.msra.mxu0 0.0
  %3400 = vmatprep.subr.mxu0 0.0
  %3401 = vmatpush1.msra.mxu0 0.0
  %3402 = vmatprep.subr.mxu0 0.0
  %3403 = vmatpush1.msra.mxu0 0.0
  %3404 = vmatprep.subr.mxu0 0.0
  %3405 = vmatpush1.msra.mxu0 0.0
  %3406 = vmatprep.subr.mxu0 0.0
  %3407 = vmatpush1.msra.mxu0 0.0
  %3408 = vmatprep.subr.mxu0 0.0
  %3409 = vmatpush1.msra.mxu0 0.0
  %3410 = vmatprep.subr.mxu0 0.0
  %3411 = vmatpush1.msra.mxu0 0.0
  %3412 = vmatprep.subr.mxu0 0.0
  %3413 = vmatpush1.msra.mxu0 0.0
  %3414 = vmatprep.subr.mxu0 0.0
  %3415 = vmatpush1.msra.mxu0 0.0
  %3416 = vmatprep.subr.mxu0 0.0
  %3417 = vmatpush1.msra.mxu0 0.0
  %3418 = vmatprep.subr.mxu0 0.0
  %3419 = vmatpush1.msra.mxu0 0.0
  %3420 = vmatprep.subr.mxu0 0.0
  %3421 = vmatpush1.msra.mxu0 %v3387
  %3422 = vmatprep.subr.mxu0 0.0
  %3423 = vmatpush1.msra.mxu0 %v3386
  %3424 = vmatprep.subr.mxu0 0.0
  %3425 = vmatpush1.msra.mxu0 %v3385
  %3426 = vmatprep.subr.mxu0 0.0
  %3427 = vmatpush1.msra.mxu0 %v3384
  %3428 = vmatprep.subr.mxu0 0.0
  %3429 = vmatpush2.msra.mxu0 0.0
  %3430 = vmatprep.subr.mxu0 0.0
  %3431 = vmatpush2.msra.mxu0 0.0
  %3432 = vmatprep.subr.mxu0 0.0
  %3433 = vmatpush2.msra.mxu0 0.0
  %3434 = vmatprep.subr.mxu0 0.0
  %3435 = vmatpush2.msra.mxu0 0.0
  %3436 = vmatprep.subr.mxu0 0.0
  %3437 = vmatpush2.msra.mxu0 0.0
  %3438 = vmatprep.subr.mxu0 0.0
  %3439 = vmatpush2.msra.mxu0 0.0
  %3440 = vmatprep.subr.mxu0 0.0
  %3441 = vmatpush2.msra.mxu0 0.0
  %3442 = vmatprep.subr.mxu0 0.0
  %3443 = vmatpush2.msra.mxu0 0.0
  %3444 = vmatprep.subr.mxu0 0.0
  %3445 = vmatpush2.msra.mxu0 0.0
  %3446 = vmatprep.subr.mxu0 0.0
  %3447 = vmatpush2.msra.mxu0 0.0
  %3448 = vmatprep.subr.mxu0 0.0
  %3449 = vmatpush2.msra.mxu0 0.0
  %3450 = vmatprep.subr.mxu0 0.0
  %3451 = vmatpush2.msra.mxu0 0.0
  %3452 = vmatprep.subr.mxu0 0.0
  %3453 = vmatpush2.msra.mxu0 0.0
  %3454 = vmatprep.subr.mxu0 0.0
  %3455 = vmatpush2.msra.mxu0 0.0
  %3456 = vmatprep.subr.mxu0 0.0
  %3457 = vmatpush2.msra.mxu0 0.0
  %3458 = vmatprep.subr.mxu0 0.0
  %3459 = vmatpush2.msra.mxu0 0.0
  %3460 = vmatprep.mubr.f32.mxu0 0.0
  %3461 = vmatmul.mubr.f32.gmra.mxu0 %v3215
  %v3462 = vpop.f32.mrf.mxu0
  %v3463 = vadd.f32 %v3394, %v3462
  %v3464 = vpop.f32.mrf.mxu0
  %3465 = vmatprep.mubr.f32.mxu0 0.0
  %3466 = vmatmul.mubr.f32.gmra.mxu0 %v3218
  %v3467 = vpop.f32.mrf.mxu0
  %v3468 = vadd.f32 %v3394, %v3467
  %v3469 = vpop.f32.mrf.mxu0
  %3470 = vdwg.mxu0
  %v3472 = vsel %vm480, %v3287, 0
  %v3475 = vsel %vm480, %v3375, 0
  %3477 = vmatprep.subr.mxu0 0.0
  %3478 = vmatpush1.xpose.msra.mxu0 0.0
  %3479 = vmatprep.subr.mxu0 0.0
  %3480 = vmatpush1.xpose.msra.mxu0 0.0
  %3481 = vmatprep.subr.mxu0 0.0
  %3482 = vmatpush1.xpose.msra.mxu0 0.0
  %3483 = vmatprep.subr.mxu0 0.0
  %3484 = vmatpush1.xpose.msra.mxu0 0.0
  %3485 = vmatprep.subr.mxu0 0.0
  %3486 = vmatpush1.xpose.msra.mxu0 0.0
  %3487 = vmatprep.subr.mxu0 0.0
  %3488 = vmatpush1.xpose.msra.mxu0 0.0
  %3489 = vmatprep.subr.mxu0 0.0
  %3490 = vmatpush1.xpose.msra.mxu0 0.0
  %3491 = vmatprep.subr.mxu0 0.0
  %3492 = vmatpush1.xpose.msra.mxu0 0.0
  %3493 = vmatprep.subr.mxu0 0.0
  %3494 = vmatpush1.xpose.msra.mxu0 0.0
  %3495 = vmatprep.subr.mxu0 0.0
  %3496 = vmatpush1.xpose.msra.mxu0 0.0
  %3497 = vmatprep.subr.mxu0 0.0
  %3498 = vmatpush1.xpose.msra.mxu0 0.0
  %3499 = vmatprep.subr.mxu0 0.0
  %3500 = vmatpush1.xpose.msra.mxu0 0.0
  %3501 = vmatprep.subr.mxu0 0.0
  %3502 = vmatpush1.xpose.msra.mxu0 0.0
  %3503 = vmatprep.subr.mxu0 0.0
  %3504 = vmatpush1.xpose.msra.mxu0 0.0
  %3505 = vmatprep.subr.mxu0 0.0
  %3506 = vmatpush1.xpose.msra.mxu0 0.0
  %3507 = vmatprep.subr.mxu0 0.0
  %3508 = vmatpush1.xpose.msra.mxu0 %v3475
  %3509 = vmatprep.subr.mxu0 0.0
  %3510 = vmatpush2.xpose.msra.mxu0 0.0
  %3511 = vmatprep.subr.mxu0 0.0
  %3512 = vmatpush2.xpose.msra.mxu0 0.0
  %3513 = vmatprep.subr.mxu0 0.0
  %3514 = vmatpush2.xpose.msra.mxu0 0.0
  %3515 = vmatprep.subr.mxu0 0.0
  %3516 = vmatpush2.xpose.msra.mxu0 0.0
  %3517 = vmatprep.subr.mxu0 0.0
  %3518 = vmatpush2.xpose.msra.mxu0 0.0
  %3519 = vmatprep.subr.mxu0 0.0
  %3520 = vmatpush2.xpose.msra.mxu0 0.0
  %3521 = vmatprep.subr.mxu0 0.0
  %3522 = vmatpush2.xpose.msra.mxu0 0.0
  %3523 = vmatprep.subr.mxu0 0.0
  %3524 = vmatpush2.xpose.msra.mxu0 0.0
  %3525 = vmatprep.subr.mxu0 0.0
  %3526 = vmatpush2.xpose.msra.mxu0 0.0
  %3527 = vmatprep.subr.mxu0 0.0
  %3528 = vmatpush2.xpose.msra.mxu0 0.0
  %3529 = vmatprep.subr.mxu0 0.0
  %3530 = vmatpush2.xpose.msra.mxu0 0.0
  %3531 = vmatprep.subr.mxu0 0.0
  %3532 = vmatpush2.xpose.msra.mxu0 0.0
  %3533 = vmatprep.subr.mxu0 0.0
  %3534 = vmatpush2.xpose.msra.mxu0 0.0
  %3535 = vmatprep.subr.mxu0 0.0
  %3536 = vmatpush2.xpose.msra.mxu0 0.0
  %3537 = vmatprep.subr.mxu0 0.0
  %3538 = vmatpush2.xpose.msra.mxu0 0.0
  %3539 = vmatprep.subr.mxu0 0.0
  %3540 = vmatpush2.xpose.msra.mxu0 0.0
  %3541 = vmatprep.mubr.f32.mxu0 0.0
  %3542 = vmatmul.mubr.f32.gmra.mxu0 %v3472
  %v3543 = vpop.f32.mrf.mxu0
  %v3544 = vadd.f32 0.0, %v3543
  %v3545 = vpop.f32.mrf.mxu0
  %3546 = vdwg.mxu0
  %v3548 = vsel %vm480, %v3292, 0
  %v3551 = vsel %vm480, %v3380, 0
  %3553 = vmatprep.subr.mxu0 0.0
  %3554 = vmatpush1.xpose.msra.mxu0 0.0
  %3555 = vmatprep.subr.mxu0 0.0
  %3556 = vmatpush1.xpose.msra.mxu0 0.0
  %3557 = vmatprep.subr.mxu0 0.0
  %3558 = vmatpush1.xpose.msra.mxu0 0.0
  %3559 = vmatprep.subr.mxu0 0.0
  %3560 = vmatpush1.xpose.msra.mxu0 0.0
  %3561 = vmatprep.subr.mxu0 0.0
  %3562 = vmatpush1.xpose.msra.mxu0 0.0
  %3563 = vmatprep.subr.mxu0 0.0
  %3564 = vmatpush1.xpose.msra.mxu0 0.0
  %3565 = vmatprep.subr.mxu0 0.0
  %3566 = vmatpush1.xpose.msra.mxu0 0.0
  %3567 = vmatprep.subr.mxu0 0.0
  %3568 = vmatpush1.xpose.msra.mxu0 0.0
  %3569 = vmatprep.subr.mxu0 0.0
  %3570 = vmatpush1.xpose.msra.mxu0 0.0
  %3571 = vmatprep.subr.mxu0 0.0
  %3572 = vmatpush1.xpose.msra.mxu0 0.0
  %3573 = vmatprep.subr.mxu0 0.0
  %3574 = vmatpush1.xpose.msra.mxu0 0.0
  %3575 = vmatprep.subr.mxu0 0.0
  %3576 = vmatpush1.xpose.msra.mxu0 0.0
  %3577 = vmatprep.subr.mxu0 0.0
  %3578 = vmatpush1.xpose.msra.mxu0 0.0
  %3579 = vmatprep.subr.mxu0 0.0
  %3580 = vmatpush1.xpose.msra.mxu0 0.0
  %3581 = vmatprep.subr.mxu0 0.0
  %3582 = vmatpush1.xpose.msra.mxu0 0.0
  %3583 = vmatprep.subr.mxu0 0.0
  %3584 = vmatpush1.xpose.msra.mxu0 %v3551
  %3585 = vmatprep.subr.mxu0 0.0
  %3586 = vmatpush2.xpose.msra.mxu0 0.0
  %3587 = vmatprep.subr.mxu0 0.0
  %3588 = vmatpush2.xpose.msra.mxu0 0.0
  %3589 = vmatprep.subr.mxu0 0.0
  %3590 = vmatpush2.xpose.msra.mxu0 0.0
  %3591 = vmatprep.subr.mxu0 0.0
  %3592 = vmatpush2.xpose.msra.mxu0 0.0
  %3593 = vmatprep.subr.mxu0 0.0
  %3594 = vmatpush2.xpose.msra.mxu0 0.0
  %3595 = vmatprep.subr.mxu0 0.0
  %3596 = vmatpush2.xpose.msra.mxu0 0.0
  %3597 = vmatprep.subr.mxu0 0.0
  %3598 = vmatpush2.xpose.msra.mxu0 0.0
  %3599 = vmatprep.subr.mxu0 0.0
  %3600 = vmatpush2.xpose.msra.mxu0 0.0
  %3601 = vmatprep.subr.mxu0 0.0
  %3602 = vmatpush2.xpose.msra.mxu0 0.0
  %3603 = vmatprep.subr.mxu0 0.0
  %3604 = vmatpush2.xpose.msra.mxu0 0.0
  %3605 = vmatprep.subr.mxu0 0.0
  %3606 = vmatpush2.xpose.msra.mxu0 0.0
  %3607 = vmatprep.subr.mxu0 0.0
  %3608 = vmatpush2.xpose.msra.mxu0 0.0
  %3609 = vmatprep.subr.mxu0 0.0
  %3610 = vmatpush2.xpose.msra.mxu0 0.0
  %3611 = vmatprep.subr.mxu0 0.0
  %3612 = vmatpush2.xpose.msra.mxu0 0.0
  %3613 = vmatprep.subr.mxu0 0.0
  %3614 = vmatpush2.xpose.msra.mxu0 0.0
  %3615 = vmatprep.subr.mxu0 0.0
  %3616 = vmatpush2.xpose.msra.mxu0 0.0
  %3617 = vmatprep.mubr.f32.mxu0 0.0
  %3618 = vmatmul.mubr.f32.gmra.mxu0 %v3548
  %v3619 = vpop.f32.mrf.mxu0
  %v3620 = vadd.f32 0.0, %v3619
  %v3621 = vpop.f32.mrf.mxu0
  %3622 = vdwg.mxu0
  %v3623 = vmul.f32 %v3544, 0.35355338
  %v3624 = vmul.f32 %v3620, 0.35355338
  %v3625 = vadd.f32 %v3623, %v168
  %v3626 = vadd.f32 %v3624, %v169
  %v3627 = vsel %vm480, %v3625, -inf
  %3628 = vmax.xlane.f32.xlu0 %v3627
  %v3629 = vpop.xlane.xlu0 %3628
  %v3630 = vsel %vm480, %v3626, -inf
  %3631 = vmax.xlane.f32.xlu0 %v3630
  %v3632 = vpop.xlane.xlu0 %3631
  %v3633 = vsub.f32 %v3625, %v3629
  %v3634 = vsub.f32 %v3626, %v3632
  %v3635 = vmul.f32 %v3633, 1.442695
  %v3636 = vpow.pop %v3635
  %v3637 = vmul.f32 %v3634, 1.442695
  %v3638 = vpow.pop %v3637
  %v3639 = vsel %vm480, %v3636, 0.0
  %3640 = vadd.xlane.f32.xlu0 %v3639
  %v3641 = vpop.xlane.xlu0 %3640
  %v3642 = vsel %vm480, %v3638, 0.0
  %3643 = vadd.xlane.f32.xlu0 %v3642
  %v3644 = vpop.xlane.xlu0 %3643
  %v3645 = vrcp.pop %v3641
  %v3646 = vrcp.pop %v3644
  %v3647 = vmul.f32 %v3636, %v3645
  %v3648 = vmul.f32 %v3638, %v3646
  %v3650 = vsel %vm480, %v3647, 0
  %3652 = vmatprep.subr.mxu0 0.0
  %3653 = vmatpush1.msra.mxu0 0.0
  %3654 = vmatprep.subr.mxu0 0.0
  %3655 = vmatpush1.msra.mxu0 0.0
  %3656 = vmatprep.subr.mxu0 0.0
  %3657 = vmatpush1.msra.mxu0 0.0
  %3658 = vmatprep.subr.mxu0 0.0
  %3659 = vmatpush1.msra.mxu0 0.0
  %3660 = vmatprep.subr.mxu0 0.0
  %3661 = vmatpush1.msra.mxu0 0.0
  %3662 = vmatprep.subr.mxu0 0.0
  %3663 = vmatpush1.msra.mxu0 0.0
  %3664 = vmatprep.subr.mxu0 0.0
  %3665 = vmatpush1.msra.mxu0 0.0
  %3666 = vmatprep.subr.mxu0 0.0
  %3667 = vmatpush1.msra.mxu0 0.0
  %3668 = vmatprep.subr.mxu0 0.0
  %3669 = vmatpush1.msra.mxu0 0.0
  %3670 = vmatprep.subr.mxu0 0.0
  %3671 = vmatpush1.msra.mxu0 0.0
  %3672 = vmatprep.subr.mxu0 0.0
  %3673 = vmatpush1.msra.mxu0 0.0
  %3674 = vmatprep.subr.mxu0 0.0
  %3675 = vmatpush1.msra.mxu0 0.0
  %3676 = vmatprep.subr.mxu0 0.0
  %3677 = vmatpush1.msra.mxu0 0.0
  %3678 = vmatprep.subr.mxu0 0.0
  %3679 = vmatpush1.msra.mxu0 0.0
  %3680 = vmatprep.subr.mxu0 0.0
  %3681 = vmatpush1.msra.mxu0 0.0
  %3682 = vmatprep.subr.mxu0 0.0
  %3683 = vmatpush1.msra.mxu0 %v3463
  %3684 = vmatprep.subr.mxu0 0.0
  %3685 = vmatpush2.msra.mxu0 0.0
  %3686 = vmatprep.subr.mxu0 0.0
  %3687 = vmatpush2.msra.mxu0 0.0
  %3688 = vmatprep.subr.mxu0 0.0
  %3689 = vmatpush2.msra.mxu0 0.0
  %3690 = vmatprep.subr.mxu0 0.0
  %3691 = vmatpush2.msra.mxu0 0.0
  %3692 = vmatprep.subr.mxu0 0.0
  %3693 = vmatpush2.msra.mxu0 0.0
  %3694 = vmatprep.subr.mxu0 0.0
  %3695 = vmatpush2.msra.mxu0 0.0
  %3696 = vmatprep.subr.mxu0 0.0
  %3697 = vmatpush2.msra.mxu0 0.0
  %3698 = vmatprep.subr.mxu0 0.0
  %3699 = vmatpush2.msra.mxu0 0.0
  %3700 = vmatprep.subr.mxu0 0.0
  %3701 = vmatpush2.msra.mxu0 0.0
  %3702 = vmatprep.subr.mxu0 0.0
  %3703 = vmatpush2.msra.mxu0 0.0
  %3704 = vmatprep.subr.mxu0 0.0
  %3705 = vmatpush2.msra.mxu0 0.0
  %3706 = vmatprep.subr.mxu0 0.0
  %3707 = vmatpush2.msra.mxu0 0.0
  %3708 = vmatprep.subr.mxu0 0.0
  %3709 = vmatpush2.msra.mxu0 0.0
  %3710 = vmatprep.subr.mxu0 0.0
  %3711 = vmatpush2.msra.mxu0 0.0
  %3712 = vmatprep.subr.mxu0 0.0
  %3713 = vmatpush2.msra.mxu0 0.0
  %3714 = vmatprep.subr.mxu0 0.0
  %3715 = vmatpush2.msra.mxu0 0.0
  %3716 = vmatprep.mubr.f32.mxu0 0.0
  %3717 = vmatmul.mubr.f32.gmra.mxu0 %v3650
  %v3718 = vpop.f32.mrf.mxu0
  %v3719 = vadd.f32 0.0, %v3718
  %v3720 = vpop.f32.mrf.mxu0
  %3721 = vdwg.mxu0
  %v3723 = vsel %vm480, %v3648, 0
  %3725 = vmatprep.subr.mxu0 0.0
  %3726 = vmatpush1.msra.mxu0 0.0
  %3727 = vmatprep.subr.mxu0 0.0
  %3728 = vmatpush1.msra.mxu0 0.0
  %3729 = vmatprep.subr.mxu0 0.0
  %3730 = vmatpush1.msra.mxu0 0.0
  %3731 = vmatprep.subr.mxu0 0.0
  %3732 = vmatpush1.msra.mxu0 0.0
  %3733 = vmatprep.subr.mxu0 0.0
  %3734 = vmatpush1.msra.mxu0 0.0
  %3735 = vmatprep.subr.mxu0 0.0
  %3736 = vmatpush1.msra.mxu0 0.0
  %3737 = vmatprep.subr.mxu0 0.0
  %3738 = vmatpush1.msra.mxu0 0.0
  %3739 = vmatprep.subr.mxu0 0.0
  %3740 = vmatpush1.msra.mxu0 0.0
  %3741 = vmatprep.subr.mxu0 0.0
  %3742 = vmatpush1.msra.mxu0 0.0
  %3743 = vmatprep.subr.mxu0 0.0
  %3744 = vmatpush1.msra.mxu0 0.0
  %3745 = vmatprep.subr.mxu0 0.0
  %3746 = vmatpush1.msra.mxu0 0.0
  %3747 = vmatprep.subr.mxu0 0.0
  %3748 = vmatpush1.msra.mxu0 0.0
  %3749 = vmatprep.subr.mxu0 0.0
  %3750 = vmatpush1.msra.mxu0 0.0
  %3751 = vmatprep.subr.mxu0 0.0
  %3752 = vmatpush1.msra.mxu0 0.0
  %3753 = vmatprep.subr.mxu0 0.0
  %3754 = vmatpush1.msra.mxu0 0.0
  %3755 = vmatprep.subr.mxu0 0.0
  %3756 = vmatpush1.msra.mxu0 %v3468
  %3757 = vmatprep.subr.mxu0 0.0
  %3758 = vmatpush2.msra.mxu0 0.0
  %3759 = vmatprep.subr.mxu0 0.0
  %3760 = vmatpush2.msra.mxu0 0.0
  %3761 = vmatprep.subr.mxu0 0.0
  %3762 = vmatpush2.msra.mxu0 0.0
  %3763 = vmatprep.subr.mxu0 0.0
  %3764 = vmatpush2.msra.mxu0 0.0
  %3765 = vmatprep.subr.mxu0 0.0
  %3766 = vmatpush2.msra.mxu0 0.0
  %3767 = vmatprep.subr.mxu0 0.0
  %3768 = vmatpush2.msra.mxu0 0.0
  %3769 = vmatprep.subr.mxu0 0.0
  %3770 = vmatpush2.msra.mxu0 0.0
  %3771 = vmatprep.subr.mxu0 0.0
  %3772 = vmatpush2.msra.mxu0 0.0
  %3773 = vmatprep.subr.mxu0 0.0
  %3774 = vmatpush2.msra.mxu0 0.0
  %3775 = vmatprep.subr.mxu0 0.0
  %3776 = vmatpush2.msra.mxu0 0.0
  %3777 = vmatprep.subr.mxu0 0.0
  %3778 = vmatpush2.msra.mxu0 0.0
  %3779 = vmatprep.subr.mxu0 0.0
  %3780 = vmatpush2.msra.mxu0 0.0
  %3781 = vmatprep.subr.mxu0 0.0
  %3782 = vmatpush2.msra.mxu0 0.0
  %3783 = vmatprep.subr.mxu0 0.0
  %3784 = vmatpush2.msra.mxu0 0.0
  %3785 = vmatprep.subr.mxu0 0.0
  %3786 = vmatpush2.msra.mxu0 0.0
  %3787 = vmatprep.subr.mxu0 0.0
  %3788 = vmatpush2.msra.mxu0 0.0
  %3789 = vmatprep.mubr.f32.mxu0 0.0
  %3790 = vmatmul.mubr.f32.gmra.mxu0 %v3723
  %v3791 = vpop.f32.mrf.mxu0
  %v3792 = vadd.f32 0.0, %v3791
  %v3793 = vpop.f32.mrf.mxu0
  %3794 = vdwg.mxu0
  %s3795 = scalar_lea.vmem %s6, 32
  %v3796 = vld [vmem:[%s3795] sm:$0xff]
  %s3797 = scalar_lea.vmem %s4, 416
  %v3798 = vld [vmem:[%s3797] sm:$0xff]
  %v3799 = vld [vmem:[%s3797 + $0x8] sm:$0xff]
  %v3800 = vld [vmem:[%s3797 + $0x10] sm:$0xff]
  %v3801 = vld [vmem:[%s3797 + $0x18] sm:$0xff]
  %s3802 = scalar_lea.vmem %s5, 13
  %v3803 = vld [vmem:[%s3802] sm:$0x1]
  %v3805 = vlaneseq
  %v3806 = vshrl.u32 %v3805, 7
  %v3807 = vsub.s32 0, %v3806
  %v3808 = vrot.slane %v3803, %v3807
  %3810 = vmatprep.subr.mxu0 0.0
  %3811 = vmatpush1.msra.mxu0 0.0
  %3812 = vmatprep.subr.mxu0 0.0
  %3813 = vmatpush1.msra.mxu0 0.0
  %3814 = vmatprep.subr.mxu0 0.0
  %3815 = vmatpush1.msra.mxu0 0.0
  %3816 = vmatprep.subr.mxu0 0.0
  %3817 = vmatpush1.msra.mxu0 0.0
  %3818 = vmatprep.subr.mxu0 0.0
  %3819 = vmatpush1.msra.mxu0 0.0
  %3820 = vmatprep.subr.mxu0 0.0
  %3821 = vmatpush1.msra.mxu0 0.0
  %3822 = vmatprep.subr.mxu0 0.0
  %3823 = vmatpush1.msra.mxu0 0.0
  %3824 = vmatprep.subr.mxu0 0.0
  %3825 = vmatpush1.msra.mxu0 0.0
  %3826 = vmatprep.subr.mxu0 0.0
  %3827 = vmatpush1.msra.mxu0 0.0
  %3828 = vmatprep.subr.mxu0 0.0
  %3829 = vmatpush1.msra.mxu0 0.0
  %3830 = vmatprep.subr.mxu0 0.0
  %3831 = vmatpush1.msra.mxu0 0.0
  %3832 = vmatprep.subr.mxu0 0.0
  %3833 = vmatpush1.msra.mxu0 0.0
  %3834 = vmatprep.subr.mxu0 0.0
  %3835 = vmatpush1.msra.mxu0 %v3801
  %3836 = vmatprep.subr.mxu0 0.0
  %3837 = vmatpush1.msra.mxu0 %v3800
  %3838 = vmatprep.subr.mxu0 0.0
  %3839 = vmatpush1.msra.mxu0 %v3799
  %3840 = vmatprep.subr.mxu0 0.0
  %3841 = vmatpush1.msra.mxu0 %v3798
  %3842 = vmatprep.subr.mxu0 0.0
  %3843 = vmatpush2.msra.mxu0 0.0
  %3844 = vmatprep.subr.mxu0 0.0
  %3845 = vmatpush2.msra.mxu0 0.0
  %3846 = vmatprep.subr.mxu0 0.0
  %3847 = vmatpush2.msra.mxu0 0.0
  %3848 = vmatprep.subr.mxu0 0.0
  %3849 = vmatpush2.msra.mxu0 0.0
  %3850 = vmatprep.subr.mxu0 0.0
  %3851 = vmatpush2.msra.mxu0 0.0
  %3852 = vmatprep.subr.mxu0 0.0
  %3853 = vmatpush2.msra.mxu0 0.0
  %3854 = vmatprep.subr.mxu0 0.0
  %3855 = vmatpush2.msra.mxu0 0.0
  %3856 = vmatprep.subr.mxu0 0.0
  %3857 = vmatpush2.msra.mxu0 0.0
  %3858 = vmatprep.subr.mxu0 0.0
  %3859 = vmatpush2.msra.mxu0 0.0
  %3860 = vmatprep.subr.mxu0 0.0
  %3861 = vmatpush2.msra.mxu0 0.0
  %3862 = vmatprep.subr.mxu0 0.0
  %3863 = vmatpush2.msra.mxu0 0.0
  %3864 = vmatprep.subr.mxu0 0.0
  %3865 = vmatpush2.msra.mxu0 0.0
  %3866 = vmatprep.subr.mxu0 0.0
  %3867 = vmatpush2.msra.mxu0 0.0
  %3868 = vmatprep.subr.mxu0 0.0
  %3869 = vmatpush2.msra.mxu0 0.0
  %3870 = vmatprep.subr.mxu0 0.0
  %3871 = vmatpush2.msra.mxu0 0.0
  %3872 = vmatprep.subr.mxu0 0.0
  %3873 = vmatpush2.msra.mxu0 0.0
  %3874 = vmatprep.mubr.f32.mxu0 0.0
  %3875 = vmatmul.mubr.f32.gmra.mxu0 %v3215
  %v3876 = vpop.f32.mrf.mxu0
  %v3877 = vadd.f32 %v3808, %v3876
  %v3878 = vpop.f32.mrf.mxu0
  %3879 = vmatprep.mubr.f32.mxu0 0.0
  %3880 = vmatmul.mubr.f32.gmra.mxu0 %v3218
  %v3881 = vpop.f32.mrf.mxu0
  %v3882 = vadd.f32 %v3808, %v3881
  %v3883 = vpop.f32.mrf.mxu0
  %3884 = vdwg.mxu0
  %s3885 = scalar_lea.vmem %s4, 544
  %v3886 = vld [vmem:[%s3885] sm:$0xff]
  %v3887 = vld [vmem:[%s3885 + $0x8] sm:$0xff]
  %v3888 = vld [vmem:[%s3885 + $0x10] sm:$0xff]
  %v3889 = vld [vmem:[%s3885 + $0x18] sm:$0xff]
  %s3890 = scalar_lea.vmem %s5, 17
  %v3891 = vld [vmem:[%s3890] sm:$0x1]
  %v3893 = vlaneseq
  %v3894 = vshrl.u32 %v3893, 7
  %v3895 = vsub.s32 0, %v3894
  %v3896 = vrot.slane %v3891, %v3895
  %3898 = vmatprep.subr.mxu0 0.0
  %3899 = vmatpush1.msra.mxu0 0.0
  %3900 = vmatprep.subr.mxu0 0.0
  %3901 = vmatpush1.msra.mxu0 0.0
  %3902 = vmatprep.subr.mxu0 0.0
  %3903 = vmatpush1.msra.mxu0 0.0
  %3904 = vmatprep.subr.mxu0 0.0
  %3905 = vmatpush1.msra.mxu0 0.0
  %3906 = vmatprep.subr.mxu0 0.0
  %3907 = vmatpush1.msra.mxu0 0.0
  %3908 = vmatprep.subr.mxu0 0.0
  %3909 = vmatpush1.msra.mxu0 0.0
  %3910 = vmatprep.subr.mxu0 0.0
  %3911 = vmatpush1.msra.mxu0 0.0
  %3912 = vmatprep.subr.mxu0 0.0
  %3913 = vmatpush1.msra.mxu0 0.0
  %3914 = vmatprep.subr.mxu0 0.0
  %3915 = vmatpush1.msra.mxu0 0.0
  %3916 = vmatprep.subr.mxu0 0.0
  %3917 = vmatpush1.msra.mxu0 0.0
  %3918 = vmatprep.subr.mxu0 0.0
  %3919 = vmatpush1.msra.mxu0 0.0
  %3920 = vmatprep.subr.mxu0 0.0
  %3921 = vmatpush1.msra.mxu0 0.0
  %3922 = vmatprep.subr.mxu0 0.0
  %3923 = vmatpush1.msra.mxu0 %v3889
  %3924 = vmatprep.subr.mxu0 0.0
  %3925 = vmatpush1.msra.mxu0 %v3888
  %3926 = vmatprep.subr.mxu0 0.0
  %3927 = vmatpush1.msra.mxu0 %v3887
  %3928 = vmatprep.subr.mxu0 0.0
  %3929 = vmatpush1.msra.mxu0 %v3886
  %3930 = vmatprep.subr.mxu0 0.0
  %3931 = vmatpush2.msra.mxu0 0.0
  %3932 = vmatprep.subr.mxu0 0.0
  %3933 = vmatpush2.msra.mxu0 0.0
  %3934 = vmatprep.subr.mxu0 0.0
  %3935 = vmatpush2.msra.mxu0 0.0
  %3936 = vmatprep.subr.mxu0 0.0
  %3937 = vmatpush2.msra.mxu0 0.0
  %3938 = vmatprep.subr.mxu0 0.0
  %3939 = vmatpush2.msra.mxu0 0.0
  %3940 = vmatprep.subr.mxu0 0.0
  %3941 = vmatpush2.msra.mxu0 0.0
  %3942 = vmatprep.subr.mxu0 0.0
  %3943 = vmatpush2.msra.mxu0 0.0
  %3944 = vmatprep.subr.mxu0 0.0
  %3945 = vmatpush2.msra.mxu0 0.0
  %3946 = vmatprep.subr.mxu0 0.0
  %3947 = vmatpush2.msra.mxu0 0.0
  %3948 = vmatprep.subr.mxu0 0.0
  %3949 = vmatpush2.msra.mxu0 0.0
  %3950 = vmatprep.subr.mxu0 0.0
  %3951 = vmatpush2.msra.mxu0 0.0
  %3952 = vmatprep.subr.mxu0 0.0
  %3953 = vmatpush2.msra.mxu0 0.0
  %3954 = vmatprep.subr.mxu0 0.0
  %3955 = vmatpush2.msra.mxu0 0.0
  %3956 = vmatprep.subr.mxu0 0.0
  %3957 = vmatpush2.msra.mxu0 0.0
  %3958 = vmatprep.subr.mxu0 0.0
  %3959 = vmatpush2.msra.mxu0 0.0
  %3960 = vmatprep.subr.mxu0 0.0
  %3961 = vmatpush2.msra.mxu0 0.0
  %3962 = vmatprep.mubr.f32.mxu0 0.0
  %3963 = vmatmul.mubr.f32.gmra.mxu0 %v3215
  %v3964 = vpop.f32.mrf.mxu0
  %v3965 = vadd.f32 %v3896, %v3964
  %v3966 = vpop.f32.mrf.mxu0
  %3967 = vmatprep.mubr.f32.mxu0 0.0
  %3968 = vmatmul.mubr.f32.gmra.mxu0 %v3218
  %v3969 = vpop.f32.mrf.mxu0
  %v3970 = vadd.f32 %v3896, %v3969
  %v3971 = vpop.f32.mrf.mxu0
  %3972 = vdwg.mxu0
  %s3973 = scalar_lea.vmem %s4, 672
  %v3974 = vld [vmem:[%s3973] sm:$0xff]
  %v3975 = vld [vmem:[%s3973 + $0x8] sm:$0xff]
  %v3976 = vld [vmem:[%s3973 + $0x10] sm:$0xff]
  %v3977 = vld [vmem:[%s3973 + $0x18] sm:$0xff]
  %s3978 = scalar_lea.vmem %s5, 21
  %v3979 = vld [vmem:[%s3978] sm:$0x1]
  %v3981 = vlaneseq
  %v3982 = vshrl.u32 %v3981, 7
  %v3983 = vsub.s32 0, %v3982
  %v3984 = vrot.slane %v3979, %v3983
  %3986 = vmatprep.subr.mxu0 0.0
  %3987 = vmatpush1.msra.mxu0 0.0
  %3988 = vmatprep.subr.mxu0 0.0
  %3989 = vmatpush1.msra.mxu0 0.0
  %3990 = vmatprep.subr.mxu0 0.0
  %3991 = vmatpush1.msra.mxu0 0.0
  %3992 = vmatprep.subr.mxu0 0.0
  %3993 = vmatpush1.msra.mxu0 0.0
  %3994 = vmatprep.subr.mxu0 0.0
  %3995 = vmatpush1.msra.mxu0 0.0
  %3996 = vmatprep.subr.mxu0 0.0
  %3997 = vmatpush1.msra.mxu0 0.0
  %3998 = vmatprep.subr.mxu0 0.0
  %3999 = vmatpush1.msra.mxu0 0.0
  %4000 = vmatprep.subr.mxu0 0.0
  %4001 = vmatpush1.msra.mxu0 0.0
  %4002 = vmatprep.subr.mxu0 0.0
  %4003 = vmatpush1.msra.mxu0 0.0
  %4004 = vmatprep.subr.mxu0 0.0
  %4005 = vmatpush1.msra.mxu0 0.0
  %4006 = vmatprep.subr.mxu0 0.0
  %4007 = vmatpush1.msra.mxu0 0.0
  %4008 = vmatprep.subr.mxu0 0.0
  %4009 = vmatpush1.msra.mxu0 0.0
  %4010 = vmatprep.subr.mxu0 0.0
  %4011 = vmatpush1.msra.mxu0 %v3977
  %4012 = vmatprep.subr.mxu0 0.0
  %4013 = vmatpush1.msra.mxu0 %v3976
  %4014 = vmatprep.subr.mxu0 0.0
  %4015 = vmatpush1.msra.mxu0 %v3975
  %4016 = vmatprep.subr.mxu0 0.0
  %4017 = vmatpush1.msra.mxu0 %v3974
  %4018 = vmatprep.subr.mxu0 0.0
  %4019 = vmatpush2.msra.mxu0 0.0
  %4020 = vmatprep.subr.mxu0 0.0
  %4021 = vmatpush2.msra.mxu0 0.0
  %4022 = vmatprep.subr.mxu0 0.0
  %4023 = vmatpush2.msra.mxu0 0.0
  %4024 = vmatprep.subr.mxu0 0.0
  %4025 = vmatpush2.msra.mxu0 0.0
  %4026 = vmatprep.subr.mxu0 0.0
  %4027 = vmatpush2.msra.mxu0 0.0
  %4028 = vmatprep.subr.mxu0 0.0
  %4029 = vmatpush2.msra.mxu0 0.0
  %4030 = vmatprep.subr.mxu0 0.0
  %4031 = vmatpush2.msra.mxu0 0.0
  %4032 = vmatprep.subr.mxu0 0.0
  %4033 = vmatpush2.msra.mxu0 0.0
  %4034 = vmatprep.subr.mxu0 0.0
  %4035 = vmatpush2.msra.mxu0 0.0
  %4036 = vmatprep.subr.mxu0 0.0
  %4037 = vmatpush2.msra.mxu0 0.0
  %4038 = vmatprep.subr.mxu0 0.0
  %4039 = vmatpush2.msra.mxu0 0.0
  %4040 = vmatprep.subr.mxu0 0.0
  %4041 = vmatpush2.msra.mxu0 0.0
  %4042 = vmatprep.subr.mxu0 0.0
  %4043 = vmatpush2.msra.mxu0 0.0
  %4044 = vmatprep.subr.mxu0 0.0
  %4045 = vmatpush2.msra.mxu0 0.0
  %4046 = vmatprep.subr.mxu0 0.0
  %4047 = vmatpush2.msra.mxu0 0.0
  %4048 = vmatprep.subr.mxu0 0.0
  %4049 = vmatpush2.msra.mxu0 0.0
  %4050 = vmatprep.mubr.f32.mxu0 0.0
  %4051 = vmatmul.mubr.f32.gmra.mxu0 %v3215
  %v4052 = vpop.f32.mrf.mxu0
  %v4053 = vadd.f32 %v3984, %v4052
  %v4054 = vpop.f32.mrf.mxu0
  %4055 = vmatprep.mubr.f32.mxu0 0.0
  %4056 = vmatmul.mubr.f32.gmra.mxu0 %v3218
  %v4057 = vpop.f32.mrf.mxu0
  %v4058 = vadd.f32 %v3984, %v4057
  %v4059 = vpop.f32.mrf.mxu0
  %4060 = vdwg.mxu0
  %v4062 = vsel %vm480, %v3877, 0
  %v4065 = vsel %vm480, %v3965, 0
  %4067 = vmatprep.subr.mxu0 0.0
  %4068 = vmatpush1.xpose.msra.mxu0 0.0
  %4069 = vmatprep.subr.mxu0 0.0
  %4070 = vmatpush1.xpose.msra.mxu0 0.0
  %4071 = vmatprep.subr.mxu0 0.0
  %4072 = vmatpush1.xpose.msra.mxu0 0.0
  %4073 = vmatprep.subr.mxu0 0.0
  %4074 = vmatpush1.xpose.msra.mxu0 0.0
  %4075 = vmatprep.subr.mxu0 0.0
  %4076 = vmatpush1.xpose.msra.mxu0 0.0
  %4077 = vmatprep.subr.mxu0 0.0
  %4078 = vmatpush1.xpose.msra.mxu0 0.0
  %4079 = vmatprep.subr.mxu0 0.0
  %4080 = vmatpush1.xpose.msra.mxu0 0.0
  %4081 = vmatprep.subr.mxu0 0.0
  %4082 = vmatpush1.xpose.msra.mxu0 0.0
  %4083 = vmatprep.subr.mxu0 0.0
  %4084 = vmatpush1.xpose.msra.mxu0 0.0
  %4085 = vmatprep.subr.mxu0 0.0
  %4086 = vmatpush1.xpose.msra.mxu0 0.0
  %4087 = vmatprep.subr.mxu0 0.0
  %4088 = vmatpush1.xpose.msra.mxu0 0.0
  %4089 = vmatprep.subr.mxu0 0.0
  %4090 = vmatpush1.xpose.msra.mxu0 0.0
  %4091 = vmatprep.subr.mxu0 0.0
  %4092 = vmatpush1.xpose.msra.mxu0 0.0
  %4093 = vmatprep.subr.mxu0 0.0
  %4094 = vmatpush1.xpose.msra.mxu0 0.0
  %4095 = vmatprep.subr.mxu0 0.0
  %4096 = vmatpush1.xpose.msra.mxu0 0.0
  %4097 = vmatprep.subr.mxu0 0.0
  %4098 = vmatpush1.xpose.msra.mxu0 %v4065
  %4099 = vmatprep.subr.mxu0 0.0
  %4100 = vmatpush2.xpose.msra.mxu0 0.0
  %4101 = vmatprep.subr.mxu0 0.0
  %4102 = vmatpush2.xpose.msra.mxu0 0.0
  %4103 = vmatprep.subr.mxu0 0.0
  %4104 = vmatpush2.xpose.msra.mxu0 0.0
  %4105 = vmatprep.subr.mxu0 0.0
  %4106 = vmatpush2.xpose.msra.mxu0 0.0
  %4107 = vmatprep.subr.mxu0 0.0
  %4108 = vmatpush2.xpose.msra.mxu0 0.0
  %4109 = vmatprep.subr.mxu0 0.0
  %4110 = vmatpush2.xpose.msra.mxu0 0.0
  %4111 = vmatprep.subr.mxu0 0.0
  %4112 = vmatpush2.xpose.msra.mxu0 0.0
  %4113 = vmatprep.subr.mxu0 0.0
  %4114 = vmatpush2.xpose.msra.mxu0 0.0
  %4115 = vmatprep.subr.mxu0 0.0
  %4116 = vmatpush2.xpose.msra.mxu0 0.0
  %4117 = vmatprep.subr.mxu0 0.0
  %4118 = vmatpush2.xpose.msra.mxu0 0.0
  %4119 = vmatprep.subr.mxu0 0.0
  %4120 = vmatpush2.xpose.msra.mxu0 0.0
  %4121 = vmatprep.subr.mxu0 0.0
  %4122 = vmatpush2.xpose.msra.mxu0 0.0
  %4123 = vmatprep.subr.mxu0 0.0
  %4124 = vmatpush2.xpose.msra.mxu0 0.0
  %4125 = vmatprep.subr.mxu0 0.0
  %4126 = vmatpush2.xpose.msra.mxu0 0.0
  %4127 = vmatprep.subr.mxu0 0.0
  %4128 = vmatpush2.xpose.msra.mxu0 0.0
  %4129 = vmatprep.subr.mxu0 0.0
  %4130 = vmatpush2.xpose.msra.mxu0 0.0
  %4131 = vmatprep.mubr.f32.mxu0 0.0
  %4132 = vmatmul.mubr.f32.gmra.mxu0 %v4062
  %v4133 = vpop.f32.mrf.mxu0
  %v4134 = vadd.f32 0.0, %v4133
  %v4135 = vpop.f32.mrf.mxu0
  %4136 = vdwg.mxu0
  %v4138 = vsel %vm480, %v3882, 0
  %v4141 = vsel %vm480, %v3970, 0
  %4143 = vmatprep.subr.mxu0 0.0
  %4144 = vmatpush1.xpose.msra.mxu0 0.0
  %4145 = vmatprep.subr.mxu0 0.0
  %4146 = vmatpush1.xpose.msra.mxu0 0.0
  %4147 = vmatprep.subr.mxu0 0.0
  %4148 = vmatpush1.xpose.msra.mxu0 0.0
  %4149 = vmatprep.subr.mxu0 0.0
  %4150 = vmatpush1.xpose.msra.mxu0 0.0
  %4151 = vmatprep.subr.mxu0 0.0
  %4152 = vmatpush1.xpose.msra.mxu0 0.0
  %4153 = vmatprep.subr.mxu0 0.0
  %4154 = vmatpush1.xpose.msra.mxu0 0.0
  %4155 = vmatprep.subr.mxu0 0.0
  %4156 = vmatpush1.xpose.msra.mxu0 0.0
  %4157 = vmatprep.subr.mxu0 0.0
  %4158 = vmatpush1.xpose.msra.mxu0 0.0
  %4159 = vmatprep.subr.mxu0 0.0
  %4160 = vmatpush1.xpose.msra.mxu0 0.0
  %4161 = vmatprep.subr.mxu0 0.0
  %4162 = vmatpush1.xpose.msra.mxu0 0.0
  %4163 = vmatprep.subr.mxu0 0.0
  %4164 = vmatpush1.xpose.msra.mxu0 0.0
  %4165 = vmatprep.subr.mxu0 0.0
  %4166 = vmatpush1.xpose.msra.mxu0 0.0
  %4167 = vmatprep.subr.mxu0 0.0
  %4168 = vmatpush1.xpose.msra.mxu0 0.0
  %4169 = vmatprep.subr.mxu0 0.0
  %4170 = vmatpush1.xpose.msra.mxu0 0.0
  %4171 = vmatprep.subr.mxu0 0.0
  %4172 = vmatpush1.xpose.msra.mxu0 0.0
  %4173 = vmatprep.subr.mxu0 0.0
  %4174 = vmatpush1.xpose.msra.mxu0 %v4141
  %4175 = vmatprep.subr.mxu0 0.0
  %4176 = vmatpush2.xpose.msra.mxu0 0.0
  %4177 = vmatprep.subr.mxu0 0.0
  %4178 = vmatpush2.xpose.msra.mxu0 0.0
  %4179 = vmatprep.subr.mxu0 0.0
  %4180 = vmatpush2.xpose.msra.mxu0 0.0
  %4181 = vmatprep.subr.mxu0 0.0
  %4182 = vmatpush2.xpose.msra.mxu0 0.0
  %4183 = vmatprep.subr.mxu0 0.0
  %4184 = vmatpush2.xpose.msra.mxu0 0.0
  %4185 = vmatprep.subr.mxu0 0.0
  %4186 = vmatpush2.xpose.msra.mxu0 0.0
  %4187 = vmatprep.subr.mxu0 0.0
  %4188 = vmatpush2.xpose.msra.mxu0 0.0
  %4189 = vmatprep.subr.mxu0 0.0
  %4190 = vmatpush2.xpose.msra.mxu0 0.0
  %4191 = vmatprep.subr.mxu0 0.0
  %4192 = vmatpush2.xpose.msra.mxu0 0.0
  %4193 = vmatprep.subr.mxu0 0.0
  %4194 = vmatpush2.xpose.msra.mxu0 0.0
  %4195 = vmatprep.subr.mxu0 0.0
  %4196 = vmatpush2.xpose.msra.mxu0 0.0
  %4197 = vmatprep.subr.mxu0 0.0
  %4198 = vmatpush2.xpose.msra.mxu0 0.0
  %4199 = vmatprep.subr.mxu0 0.0
  %4200 = vmatpush2.xpose.msra.mxu0 0.0
  %4201 = vmatprep.subr.mxu0 0.0
  %4202 = vmatpush2.xpose.msra.mxu0 0.0
  %4203 = vmatprep.subr.mxu0 0.0
  %4204 = vmatpush2.xpose.msra.mxu0 0.0
  %4205 = vmatprep.subr.mxu0 0.0
  %4206 = vmatpush2.xpose.msra.mxu0 0.0
  %4207 = vmatprep.mubr.f32.mxu0 0.0
  %4208 = vmatmul.mubr.f32.gmra.mxu0 %v4138
  %v4209 = vpop.f32.mrf.mxu0
  %v4210 = vadd.f32 0.0, %v4209
  %v4211 = vpop.f32.mrf.mxu0
  %4212 = vdwg.mxu0
  %v4213 = vmul.f32 %v4134, 0.35355338
  %v4214 = vmul.f32 %v4210, 0.35355338
  %v4215 = vadd.f32 %v4213, %v168
  %v4216 = vadd.f32 %v4214, %v169
  %v4217 = vsel %vm480, %v4215, -inf
  %4218 = vmax.xlane.f32.xlu0 %v4217
  %v4219 = vpop.xlane.xlu0 %4218
  %v4220 = vsel %vm480, %v4216, -inf
  %4221 = vmax.xlane.f32.xlu0 %v4220
  %v4222 = vpop.xlane.xlu0 %4221
  %v4223 = vsub.f32 %v4215, %v4219
  %v4224 = vsub.f32 %v4216, %v4222
  %v4225 = vmul.f32 %v4223, 1.442695
  %v4226 = vpow.pop %v4225
  %v4227 = vmul.f32 %v4224, 1.442695
  %v4228 = vpow.pop %v4227
  %v4229 = vsel %vm480, %v4226, 0.0
  %4230 = vadd.xlane.f32.xlu0 %v4229
  %v4231 = vpop.xlane.xlu0 %4230
  %v4232 = vsel %vm480, %v4228, 0.0
  %4233 = vadd.xlane.f32.xlu0 %v4232
  %v4234 = vpop.xlane.xlu0 %4233
  %v4235 = vrcp.pop %v4231
  %v4236 = vrcp.pop %v4234
  %v4237 = vmul.f32 %v4226, %v4235
  %v4238 = vmul.f32 %v4228, %v4236
  %v4240 = vsel %vm480, %v4237, 0
  %4242 = vmatprep.subr.mxu0 0.0
  %4243 = vmatpush1.msra.mxu0 0.0
  %4244 = vmatprep.subr.mxu0 0.0
  %4245 = vmatpush1.msra.mxu0 0.0
  %4246 = vmatprep.subr.mxu0 0.0
  %4247 = vmatpush1.msra.mxu0 0.0
  %4248 = vmatprep.subr.mxu0 0.0
  %4249 = vmatpush1.msra.mxu0 0.0
  %4250 = vmatprep.subr.mxu0 0.0
  %4251 = vmatpush1.msra.mxu0 0.0
  %4252 = vmatprep.subr.mxu0 0.0
  %4253 = vmatpush1.msra.mxu0 0.0
  %4254 = vmatprep.subr.mxu0 0.0
  %4255 = vmatpush1.msra.mxu0 0.0
  %4256 = vmatprep.subr.mxu0 0.0
  %4257 = vmatpush1.msra.mxu0 0.0
  %4258 = vmatprep.subr.mxu0 0.0
  %4259 = vmatpush1.msra.mxu0 0.0
  %4260 = vmatprep.subr.mxu0 0.0
  %4261 = vmatpush1.msra.mxu0 0.0
  %4262 = vmatprep.subr.mxu0 0.0
  %4263 = vmatpush1.msra.mxu0 0.0
  %4264 = vmatprep.subr.mxu0 0.0
  %4265 = vmatpush1.msra.mxu0 0.0
  %4266 = vmatprep.subr.mxu0 0.0
  %4267 = vmatpush1.msra.mxu0 0.0
  %4268 = vmatprep.subr.mxu0 0.0
  %4269 = vmatpush1.msra.mxu0 0.0
  %4270 = vmatprep.subr.mxu0 0.0
  %4271 = vmatpush1.msra.mxu0 0.0
  %4272 = vmatprep.subr.mxu0 0.0
  %4273 = vmatpush1.msra.mxu0 %v4053
  %4274 = vmatprep.subr.mxu0 0.0
  %4275 = vmatpush2.msra.mxu0 0.0
  %4276 = vmatprep.subr.mxu0 0.0
  %4277 = vmatpush2.msra.mxu0 0.0
  %4278 = vmatprep.subr.mxu0 0.0
  %4279 = vmatpush2.msra.mxu0 0.0
  %4280 = vmatprep.subr.mxu0 0.0
  %4281 = vmatpush2.msra.mxu0 0.0
  %4282 = vmatprep.subr.mxu0 0.0
  %4283 = vmatpush2.msra.mxu0 0.0
  %4284 = vmatprep.subr.mxu0 0.0
  %4285 = vmatpush2.msra.mxu0 0.0
  %4286 = vmatprep.subr.mxu0 0.0
  %4287 = vmatpush2.msra.mxu0 0.0
  %4288 = vmatprep.subr.mxu0 0.0
  %4289 = vmatpush2.msra.mxu0 0.0
  %4290 = vmatprep.subr.mxu0 0.0
  %4291 = vmatpush2.msra.mxu0 0.0
  %4292 = vmatprep.subr.mxu0 0.0
  %4293 = vmatpush2.msra.mxu0 0.0
  %4294 = vmatprep.subr.mxu0 0.0
  %4295 = vmatpush2.msra.mxu0 0.0
  %4296 = vmatprep.subr.mxu0 0.0
  %4297 = vmatpush2.msra.mxu0 0.0
  %4298 = vmatprep.subr.mxu0 0.0
  %4299 = vmatpush2.msra.mxu0 0.0
  %4300 = vmatprep.subr.mxu0 0.0
  %4301 = vmatpush2.msra.mxu0 0.0
  %4302 = vmatprep.subr.mxu0 0.0
  %4303 = vmatpush2.msra.mxu0 0.0
  %4304 = vmatprep.subr.mxu0 0.0
  %4305 = vmatpush2.msra.mxu0 0.0
  %4306 = vmatprep.mubr.f32.mxu0 0.0
  %4307 = vmatmul.mubr.f32.gmra.mxu0 %v4240
  %v4308 = vpop.f32.mrf.mxu0
  %v4309 = vadd.f32 0.0, %v4308
  %v4310 = vpop.f32.mrf.mxu0
  %4311 = vdwg.mxu0
  %v4313 = vsel %vm480, %v4238, 0
  %4315 = vmatprep.subr.mxu0 0.0
  %4316 = vmatpush1.msra.mxu0 0.0
  %4317 = vmatprep.subr.mxu0 0.0
  %4318 = vmatpush1.msra.mxu0 0.0
  %4319 = vmatprep.subr.mxu0 0.0
  %4320 = vmatpush1.msra.mxu0 0.0
  %4321 = vmatprep.subr.mxu0 0.0
  %4322 = vmatpush1.msra.mxu0 0.0
  %4323 = vmatprep.subr.mxu0 0.0
  %4324 = vmatpush1.msra.mxu0 0.0
  %4325 = vmatprep.subr.mxu0 0.0
  %4326 = vmatpush1.msra.mxu0 0.0
  %4327 = vmatprep.subr.mxu0 0.0
  %4328 = vmatpush1.msra.mxu0 0.0
  %4329 = vmatprep.subr.mxu0 0.0
  %4330 = vmatpush1.msra.mxu0 0.0
  %4331 = vmatprep.subr.mxu0 0.0
  %4332 = vmatpush1.msra.mxu0 0.0
  %4333 = vmatprep.subr.mxu0 0.0
  %4334 = vmatpush1.msra.mxu0 0.0
  %4335 = vmatprep.subr.mxu0 0.0
  %4336 = vmatpush1.msra.mxu0 0.0
  %4337 = vmatprep.subr.mxu0 0.0
  %4338 = vmatpush1.msra.mxu0 0.0
  %4339 = vmatprep.subr.mxu0 0.0
  %4340 = vmatpush1.msra.mxu0 0.0
  %4341 = vmatprep.subr.mxu0 0.0
  %4342 = vmatpush1.msra.mxu0 0.0
  %4343 = vmatprep.subr.mxu0 0.0
  %4344 = vmatpush1.msra.mxu0 0.0
  %4345 = vmatprep.subr.mxu0 0.0
  %4346 = vmatpush1.msra.mxu0 %v4058
  %4347 = vmatprep.subr.mxu0 0.0
  %4348 = vmatpush2.msra.mxu0 0.0
  %4349 = vmatprep.subr.mxu0 0.0
  %4350 = vmatpush2.msra.mxu0 0.0
  %4351 = vmatprep.subr.mxu0 0.0
  %4352 = vmatpush2.msra.mxu0 0.0
  %4353 = vmatprep.subr.mxu0 0.0
  %4354 = vmatpush2.msra.mxu0 0.0
  %4355 = vmatprep.subr.mxu0 0.0
  %4356 = vmatpush2.msra.mxu0 0.0
  %4357 = vmatprep.subr.mxu0 0.0
  %4358 = vmatpush2.msra.mxu0 0.0
  %4359 = vmatprep.subr.mxu0 0.0
  %4360 = vmatpush2.msra.mxu0 0.0
  %4361 = vmatprep.subr.mxu0 0.0
  %4362 = vmatpush2.msra.mxu0 0.0
  %4363 = vmatprep.subr.mxu0 0.0
  %4364 = vmatpush2.msra.mxu0 0.0
  %4365 = vmatprep.subr.mxu0 0.0
  %4366 = vmatpush2.msra.mxu0 0.0
  %4367 = vmatprep.subr.mxu0 0.0
  %4368 = vmatpush2.msra.mxu0 0.0
  %4369 = vmatprep.subr.mxu0 0.0
  %4370 = vmatpush2.msra.mxu0 0.0
  %4371 = vmatprep.subr.mxu0 0.0
  %4372 = vmatpush2.msra.mxu0 0.0
  %4373 = vmatprep.subr.mxu0 0.0
  %4374 = vmatpush2.msra.mxu0 0.0
  %4375 = vmatprep.subr.mxu0 0.0
  %4376 = vmatpush2.msra.mxu0 0.0
  %4377 = vmatprep.subr.mxu0 0.0
  %4378 = vmatpush2.msra.mxu0 0.0
  %4379 = vmatprep.mubr.f32.mxu0 0.0
  %4380 = vmatmul.mubr.f32.gmra.mxu0 %v4313
  %v4381 = vpop.f32.mrf.mxu0
  %v4382 = vadd.f32 0.0, %v4381
  %v4383 = vpop.f32.mrf.mxu0
  %4384 = vdwg.mxu0
  %s4385 = scalar_lea.vmem %s6, 40
  %v4386 = vld [vmem:[%s4385] sm:$0xff]
  %v4388 = vsel %vm480, %v4309, 0
  %v4391 = vsel %vm480, %v4382, 0
  %4393 = vmatprep.subr.mxu0 0.0
  %4394 = vmatpush1.msra.mxu0 0.0
  %4395 = vmatprep.subr.mxu0 0.0
  %4396 = vmatpush1.msra.mxu0 0.0
  %4397 = vmatprep.subr.mxu0 0.0
  %4398 = vmatpush1.msra.mxu0 0.0
  %4399 = vmatprep.subr.mxu0 0.0
  %4400 = vmatpush1.msra.mxu0 0.0
  %4401 = vmatprep.subr.mxu0 0.0
  %4402 = vmatpush1.msra.mxu0 0.0
  %4403 = vmatprep.subr.mxu0 0.0
  %4404 = vmatpush1.msra.mxu0 0.0
  %4405 = vmatprep.subr.mxu0 0.0
  %4406 = vmatpush1.msra.mxu0 0.0
  %4407 = vmatprep.subr.mxu0 0.0
  %4408 = vmatpush1.msra.mxu0 0.0
  %4409 = vmatprep.subr.mxu0 0.0
  %4410 = vmatpush1.msra.mxu0 0.0
  %4411 = vmatprep.subr.mxu0 0.0
  %4412 = vmatpush1.msra.mxu0 0.0
  %4413 = vmatprep.subr.mxu0 0.0
  %4414 = vmatpush1.msra.mxu0 0.0
  %4415 = vmatprep.subr.mxu0 0.0
  %4416 = vmatpush1.msra.mxu0 0.0
  %4417 = vmatprep.subr.mxu0 0.0
  %4418 = vmatpush1.msra.mxu0 0.0
  %4419 = vmatprep.subr.mxu0 0.0
  %4420 = vmatpush1.msra.mxu0 0.0
  %4421 = vmatprep.subr.mxu0 0.0
  %4422 = vmatpush1.msra.mxu0 0.0
  %4423 = vmatprep.subr.mxu0 0.0
  %4424 = vmatpush1.msra.mxu0 %v4386
  %4425 = vmatprep.subr.mxu0 0.0
  %4426 = vmatpush2.msra.mxu0 0.0
  %4427 = vmatprep.subr.mxu0 0.0
  %4428 = vmatpush2.msra.mxu0 0.0
  %4429 = vmatprep.subr.mxu0 0.0
  %4430 = vmatpush2.msra.mxu0 0.0
  %4431 = vmatprep.subr.mxu0 0.0
  %4432 = vmatpush2.msra.mxu0 0.0
  %4433 = vmatprep.subr.mxu0 0.0
  %4434 = vmatpush2.msra.mxu0 0.0
  %4435 = vmatprep.subr.mxu0 0.0
  %4436 = vmatpush2.msra.mxu0 0.0
  %4437 = vmatprep.subr.mxu0 0.0
  %4438 = vmatpush2.msra.mxu0 0.0
  %4439 = vmatprep.subr.mxu0 0.0
  %4440 = vmatpush2.msra.mxu0 0.0
  %4441 = vmatprep.subr.mxu0 0.0
  %4442 = vmatpush2.msra.mxu0 0.0
  %4443 = vmatprep.subr.mxu0 0.0
  %4444 = vmatpush2.msra.mxu0 0.0
  %4445 = vmatprep.subr.mxu0 0.0
  %4446 = vmatpush2.msra.mxu0 0.0
  %4447 = vmatprep.subr.mxu0 0.0
  %4448 = vmatpush2.msra.mxu0 0.0
  %4449 = vmatprep.subr.mxu0 0.0
  %4450 = vmatpush2.msra.mxu0 0.0
  %4451 = vmatprep.subr.mxu0 0.0
  %4452 = vmatpush2.msra.mxu0 0.0
  %4453 = vmatprep.subr.mxu0 0.0
  %4454 = vmatpush2.msra.mxu0 0.0
  %4455 = vmatprep.subr.mxu0 0.0
  %4456 = vmatpush2.msra.mxu0 0.0
  %4457 = vmatprep.mubr.f32.mxu0 0.0
  %4458 = vmatmul.mubr.f32.gmra.mxu0 %v4388
  %v4459 = vpop.f32.mrf.mxu0
  %v4460 = vadd.f32 0.0, %v4459
  %v4461 = vpop.f32.mrf.mxu0
  %4462 = vmatprep.mubr.f32.mxu0 0.0
  %4463 = vmatmul.mubr.f32.gmra.mxu0 %v4391
  %v4464 = vpop.f32.mrf.mxu0
  %v4465 = vadd.f32 0.0, %v4464
  %v4466 = vpop.f32.mrf.mxu0
  %4467 = vdwg.mxu0
  %v4469 = vsel %vm480, %v3719, 0
  %v4472 = vsel %vm480, %v3792, 0
  %4474 = vmatprep.subr.mxu0 0.0
  %4475 = vmatpush1.msra.mxu0 0.0
  %4476 = vmatprep.subr.mxu0 0.0
  %4477 = vmatpush1.msra.mxu0 0.0
  %4478 = vmatprep.subr.mxu0 0.0
  %4479 = vmatpush1.msra.mxu0 0.0
  %4480 = vmatprep.subr.mxu0 0.0
  %4481 = vmatpush1.msra.mxu0 0.0
  %4482 = vmatprep.subr.mxu0 0.0
  %4483 = vmatpush1.msra.mxu0 0.0
  %4484 = vmatprep.subr.mxu0 0.0
  %4485 = vmatpush1.msra.mxu0 0.0
  %4486 = vmatprep.subr.mxu0 0.0
  %4487 = vmatpush1.msra.mxu0 0.0
  %4488 = vmatprep.subr.mxu0 0.0
  %4489 = vmatpush1.msra.mxu0 0.0
  %4490 = vmatprep.subr.mxu0 0.0
  %4491 = vmatpush1.msra.mxu0 0.0
  %4492 = vmatprep.subr.mxu0 0.0
  %4493 = vmatpush1.msra.mxu0 0.0
  %4494 = vmatprep.subr.mxu0 0.0
  %4495 = vmatpush1.msra.mxu0 0.0
  %4496 = vmatprep.subr.mxu0 0.0
  %4497 = vmatpush1.msra.mxu0 0.0
  %4498 = vmatprep.subr.mxu0 0.0
  %4499 = vmatpush1.msra.mxu0 0.0
  %4500 = vmatprep.subr.mxu0 0.0
  %4501 = vmatpush1.msra.mxu0 0.0
  %4502 = vmatprep.subr.mxu0 0.0
  %4503 = vmatpush1.msra.mxu0 0.0
  %4504 = vmatprep.subr.mxu0 0.0
  %4505 = vmatpush1.msra.mxu0 %v3796
  %4506 = vmatprep.subr.mxu0 0.0
  %4507 = vmatpush2.msra.mxu0 0.0
  %4508 = vmatprep.subr.mxu0 0.0
  %4509 = vmatpush2.msra.mxu0 0.0
  %4510 = vmatprep.subr.mxu0 0.0
  %4511 = vmatpush2.msra.mxu0 0.0
  %4512 = vmatprep.subr.mxu0 0.0
  %4513 = vmatpush2.msra.mxu0 0.0
  %4514 = vmatprep.subr.mxu0 0.0
  %4515 = vmatpush2.msra.mxu0 0.0
  %4516 = vmatprep.subr.mxu0 0.0
  %4517 = vmatpush2.msra.mxu0 0.0
  %4518 = vmatprep.subr.mxu0 0.0
  %4519 = vmatpush2.msra.mxu0 0.0
  %4520 = vmatprep.subr.mxu0 0.0
  %4521 = vmatpush2.msra.mxu0 0.0
  %4522 = vmatprep.subr.mxu0 0.0
  %4523 = vmatpush2.msra.mxu0 0.0
  %4524 = vmatprep.subr.mxu0 0.0
  %4525 = vmatpush2.msra.mxu0 0.0
  %4526 = vmatprep.subr.mxu0 0.0
  %4527 = vmatpush2.msra.mxu0 0.0
  %4528 = vmatprep.subr.mxu0 0.0
  %4529 = vmatpush2.msra.mxu0 0.0
  %4530 = vmatprep.subr.mxu0 0.0
  %4531 = vmatpush2.msra.mxu0 0.0
  %4532 = vmatprep.subr.mxu0 0.0
  %4533 = vmatpush2.msra.mxu0 0.0
  %4534 = vmatprep.subr.mxu0 0.0
  %4535 = vmatpush2.msra.mxu0 0.0
  %4536 = vmatprep.subr.mxu0 0.0
  %4537 = vmatpush2.msra.mxu0 0.0
  %4538 = vmatprep.mubr.f32.mxu0 0.0
  %4539 = vmatmul.mubr.f32.gmra.mxu0 %v4469
  %v4540 = vpop.f32.mrf.mxu0
  %v4541 = vadd.f32 %v4460, %v4540
  %v4542 = vpop.f32.mrf.mxu0
  %4543 = vmatprep.mubr.f32.mxu0 0.0
  %4544 = vmatmul.mubr.f32.gmra.mxu0 %v4472
  %v4545 = vpop.f32.mrf.mxu0
  %v4546 = vadd.f32 %v4465, %v4545
  %v4547 = vpop.f32.mrf.mxu0
  %4548 = vdwg.mxu0
  %s4549 = scalar_lea.vmem %s4, 448
  %v4550 = vld [vmem:[%s4549] sm:$0xff]
  %v4551 = vld [vmem:[%s4549 + $0x8] sm:$0xff]
  %v4552 = vld [vmem:[%s4549 + $0x10] sm:$0xff]
  %v4553 = vld [vmem:[%s4549 + $0x18] sm:$0xff]
  %s4554 = scalar_lea.vmem %s5, 14
  %v4555 = vld [vmem:[%s4554] sm:$0x1]
  %v4557 = vlaneseq
  %v4558 = vshrl.u32 %v4557, 7
  %v4559 = vsub.s32 0, %v4558
  %v4560 = vrot.slane %v4555, %v4559
  %4562 = vmatprep.subr.mxu0 0.0
  %4563 = vmatpush1.msra.mxu0 0.0
  %4564 = vmatprep.subr.mxu0 0.0
  %4565 = vmatpush1.msra.mxu0 0.0
  %4566 = vmatprep.subr.mxu0 0.0
  %4567 = vmatpush1.msra.mxu0 0.0
  %4568 = vmatprep.subr.mxu0 0.0
  %4569 = vmatpush1.msra.mxu0 0.0
  %4570 = vmatprep.subr.mxu0 0.0
  %4571 = vmatpush1.msra.mxu0 0.0
  %4572 = vmatprep.subr.mxu0 0.0
  %4573 = vmatpush1.msra.mxu0 0.0
  %4574 = vmatprep.subr.mxu0 0.0
  %4575 = vmatpush1.msra.mxu0 0.0
  %4576 = vmatprep.subr.mxu0 0.0
  %4577 = vmatpush1.msra.mxu0 0.0
  %4578 = vmatprep.subr.mxu0 0.0
  %4579 = vmatpush1.msra.mxu0 0.0
  %4580 = vmatprep.subr.mxu0 0.0
  %4581 = vmatpush1.msra.mxu0 0.0
  %4582 = vmatprep.subr.mxu0 0.0
  %4583 = vmatpush1.msra.mxu0 0.0
  %4584 = vmatprep.subr.mxu0 0.0
  %4585 = vmatpush1.msra.mxu0 0.0
  %4586 = vmatprep.subr.mxu0 0.0
  %4587 = vmatpush1.msra.mxu0 %v4553
  %4588 = vmatprep.subr.mxu0 0.0
  %4589 = vmatpush1.msra.mxu0 %v4552
  %4590 = vmatprep.subr.mxu0 0.0
  %4591 = vmatpush1.msra.mxu0 %v4551
  %4592 = vmatprep.subr.mxu0 0.0
  %4593 = vmatpush1.msra.mxu0 %v4550
  %4594 = vmatprep.subr.mxu0 0.0
  %4595 = vmatpush2.msra.mxu0 0.0
  %4596 = vmatprep.subr.mxu0 0.0
  %4597 = vmatpush2.msra.mxu0 0.0
  %4598 = vmatprep.subr.mxu0 0.0
  %4599 = vmatpush2.msra.mxu0 0.0
  %4600 = vmatprep.subr.mxu0 0.0
  %4601 = vmatpush2.msra.mxu0 0.0
  %4602 = vmatprep.subr.mxu0 0.0
  %4603 = vmatpush2.msra.mxu0 0.0
  %4604 = vmatprep.subr.mxu0 0.0
  %4605 = vmatpush2.msra.mxu0 0.0
  %4606 = vmatprep.subr.mxu0 0.0
  %4607 = vmatpush2.msra.mxu0 0.0
  %4608 = vmatprep.subr.mxu0 0.0
  %4609 = vmatpush2.msra.mxu0 0.0
  %4610 = vmatprep.subr.mxu0 0.0
  %4611 = vmatpush2.msra.mxu0 0.0
  %4612 = vmatprep.subr.mxu0 0.0
  %4613 = vmatpush2.msra.mxu0 0.0
  %4614 = vmatprep.subr.mxu0 0.0
  %4615 = vmatpush2.msra.mxu0 0.0
  %4616 = vmatprep.subr.mxu0 0.0
  %4617 = vmatpush2.msra.mxu0 0.0
  %4618 = vmatprep.subr.mxu0 0.0
  %4619 = vmatpush2.msra.mxu0 0.0
  %4620 = vmatprep.subr.mxu0 0.0
  %4621 = vmatpush2.msra.mxu0 0.0
  %4622 = vmatprep.subr.mxu0 0.0
  %4623 = vmatpush2.msra.mxu0 0.0
  %4624 = vmatprep.subr.mxu0 0.0
  %4625 = vmatpush2.msra.mxu0 0.0
  %4626 = vmatprep.mubr.f32.mxu0 0.0
  %4627 = vmatmul.mubr.f32.gmra.mxu0 %v3215
  %v4628 = vpop.f32.mrf.mxu0
  %v4629 = vadd.f32 %v4560, %v4628
  %v4630 = vpop.f32.mrf.mxu0
  %4631 = vmatprep.mubr.f32.mxu0 0.0
  %4632 = vmatmul.mubr.f32.gmra.mxu0 %v3218
  %v4633 = vpop.f32.mrf.mxu0
  %v4634 = vadd.f32 %v4560, %v4633
  %v4635 = vpop.f32.mrf.mxu0
  %4636 = vdwg.mxu0
  %s4637 = scalar_lea.vmem %s4, 576
  %v4638 = vld [vmem:[%s4637] sm:$0xff]
  %v4639 = vld [vmem:[%s4637 + $0x8] sm:$0xff]
  %v4640 = vld [vmem:[%s4637 + $0x10] sm:$0xff]
  %v4641 = vld [vmem:[%s4637 + $0x18] sm:$0xff]
  %s4642 = scalar_lea.vmem %s5, 18
  %v4643 = vld [vmem:[%s4642] sm:$0x1]
  %v4645 = vlaneseq
  %v4646 = vshrl.u32 %v4645, 7
  %v4647 = vsub.s32 0, %v4646
  %v4648 = vrot.slane %v4643, %v4647
  %4650 = vmatprep.subr.mxu0 0.0
  %4651 = vmatpush1.msra.mxu0 0.0
  %4652 = vmatprep.subr.mxu0 0.0
  %4653 = vmatpush1.msra.mxu0 0.0
  %4654 = vmatprep.subr.mxu0 0.0
  %4655 = vmatpush1.msra.mxu0 0.0
  %4656 = vmatprep.subr.mxu0 0.0
  %4657 = vmatpush1.msra.mxu0 0.0
  %4658 = vmatprep.subr.mxu0 0.0
  %4659 = vmatpush1.msra.mxu0 0.0
  %4660 = vmatprep.subr.mxu0 0.0
  %4661 = vmatpush1.msra.mxu0 0.0
  %4662 = vmatprep.subr.mxu0 0.0
  %4663 = vmatpush1.msra.mxu0 0.0
  %4664 = vmatprep.subr.mxu0 0.0
  %4665 = vmatpush1.msra.mxu0 0.0
  %4666 = vmatprep.subr.mxu0 0.0
  %4667 = vmatpush1.msra.mxu0 0.0
  %4668 = vmatprep.subr.mxu0 0.0
  %4669 = vmatpush1.msra.mxu0 0.0
  %4670 = vmatprep.subr.mxu0 0.0
  %4671 = vmatpush1.msra.mxu0 0.0
  %4672 = vmatprep.subr.mxu0 0.0
  %4673 = vmatpush1.msra.mxu0 0.0
  %4674 = vmatprep.subr.mxu0 0.0
  %4675 = vmatpush1.msra.mxu0 %v4641
  %4676 = vmatprep.subr.mxu0 0.0
  %4677 = vmatpush1.msra.mxu0 %v4640
  %4678 = vmatprep.subr.mxu0 0.0
  %4679 = vmatpush1.msra.mxu0 %v4639
  %4680 = vmatprep.subr.mxu0 0.0
  %4681 = vmatpush1.msra.mxu0 %v4638
  %4682 = vmatprep.subr.mxu0 0.0
  %4683 = vmatpush2.msra.mxu0 0.0
  %4684 = vmatprep.subr.mxu0 0.0
  %4685 = vmatpush2.msra.mxu0 0.0
  %4686 = vmatprep.subr.mxu0 0.0
  %4687 = vmatpush2.msra.mxu0 0.0
  %4688 = vmatprep.subr.mxu0 0.0
  %4689 = vmatpush2.msra.mxu0 0.0
  %4690 = vmatprep.subr.mxu0 0.0
  %4691 = vmatpush2.msra.mxu0 0.0
  %4692 = vmatprep.subr.mxu0 0.0
  %4693 = vmatpush2.msra.mxu0 0.0
  %4694 = vmatprep.subr.mxu0 0.0
  %4695 = vmatpush2.msra.mxu0 0.0
  %4696 = vmatprep.subr.mxu0 0.0
  %4697 = vmatpush2.msra.mxu0 0.0
  %4698 = vmatprep.subr.mxu0 0.0
  %4699 = vmatpush2.msra.mxu0 0.0
  %4700 = vmatprep.subr.mxu0 0.0
  %4701 = vmatpush2.msra.mxu0 0.0
  %4702 = vmatprep.subr.mxu0 0.0
  %4703 = vmatpush2.msra.mxu0 0.0
  %4704 = vmatprep.subr.mxu0 0.0
  %4705 = vmatpush2.msra.mxu0 0.0
  %4706 = vmatprep.subr.mxu0 0.0
  %4707 = vmatpush2.msra.mxu0 0.0
  %4708 = vmatprep.subr.mxu0 0.0
  %4709 = vmatpush2.msra.mxu0 0.0
  %4710 = vmatprep.subr.mxu0 0.0
  %4711 = vmatpush2.msra.mxu0 0.0
  %4712 = vmatprep.subr.mxu0 0.0
  %4713 = vmatpush2.msra.mxu0 0.0
  %4714 = vmatprep.mubr.f32.mxu0 0.0
  %4715 = vmatmul.mubr.f32.gmra.mxu0 %v3215
  %v4716 = vpop.f32.mrf.mxu0
  %v4717 = vadd.f32 %v4648, %v4716
  %v4718 = vpop.f32.mrf.mxu0
  %4719 = vmatprep.mubr.f32.mxu0 0.0
  %4720 = vmatmul.mubr.f32.gmra.mxu0 %v3218
  %v4721 = vpop.f32.mrf.mxu0
  %v4722 = vadd.f32 %v4648, %v4721
  %v4723 = vpop.f32.mrf.mxu0
  %4724 = vdwg.mxu0
  %s4725 = scalar_lea.vmem %s4, 704
  %v4726 = vld [vmem:[%s4725] sm:$0xff]
  %v4727 = vld [vmem:[%s4725 + $0x8] sm:$0xff]
  %v4728 = vld [vmem:[%s4725 + $0x10] sm:$0xff]
  %v4729 = vld [vmem:[%s4725 + $0x18] sm:$0xff]
  %s4730 = scalar_lea.vmem %s5, 22
  %v4731 = vld [vmem:[%s4730] sm:$0x1]
  %v4733 = vlaneseq
  %v4734 = vshrl.u32 %v4733, 7
  %v4735 = vsub.s32 0, %v4734
  %v4736 = vrot.slane %v4731, %v4735
  %4738 = vmatprep.subr.mxu0 0.0
  %4739 = vmatpush1.msra.mxu0 0.0
  %4740 = vmatprep.subr.mxu0 0.0
  %4741 = vmatpush1.msra.mxu0 0.0
  %4742 = vmatprep.subr.mxu0 0.0
  %4743 = vmatpush1.msra.mxu0 0.0
  %4744 = vmatprep.subr.mxu0 0.0
  %4745 = vmatpush1.msra.mxu0 0.0
  %4746 = vmatprep.subr.mxu0 0.0
  %4747 = vmatpush1.msra.mxu0 0.0
  %4748 = vmatprep.subr.mxu0 0.0
  %4749 = vmatpush1.msra.mxu0 0.0
  %4750 = vmatprep.subr.mxu0 0.0
  %4751 = vmatpush1.msra.mxu0 0.0
  %4752 = vmatprep.subr.mxu0 0.0
  %4753 = vmatpush1.msra.mxu0 0.0
  %4754 = vmatprep.subr.mxu0 0.0
  %4755 = vmatpush1.msra.mxu0 0.0
  %4756 = vmatprep.subr.mxu0 0.0
  %4757 = vmatpush1.msra.mxu0 0.0
  %4758 = vmatprep.subr.mxu0 0.0
  %4759 = vmatpush1.msra.mxu0 0.0
  %4760 = vmatprep.subr.mxu0 0.0
  %4761 = vmatpush1.msra.mxu0 0.0
  %4762 = vmatprep.subr.mxu0 0.0
  %4763 = vmatpush1.msra.mxu0 %v4729
  %4764 = vmatprep.subr.mxu0 0.0
  %4765 = vmatpush1.msra.mxu0 %v4728
  %4766 = vmatprep.subr.mxu0 0.0
  %4767 = vmatpush1.msra.mxu0 %v4727
  %4768 = vmatprep.subr.mxu0 0.0
  %4769 = vmatpush1.msra.mxu0 %v4726
  %4770 = vmatprep.subr.mxu0 0.0
  %4771 = vmatpush2.msra.mxu0 0.0
  %4772 = vmatprep.subr.mxu0 0.0
  %4773 = vmatpush2.msra.mxu0 0.0
  %4774 = vmatprep.subr.mxu0 0.0
  %4775 = vmatpush2.msra.mxu0 0.0
  %4776 = vmatprep.subr.mxu0 0.0
  %4777 = vmatpush2.msra.mxu0 0.0
  %4778 = vmatprep.subr.mxu0 0.0
  %4779 = vmatpush2.msra.mxu0 0.0
  %4780 = vmatprep.subr.mxu0 0.0
  %4781 = vmatpush2.msra.mxu0 0.0
  %4782 = vmatprep.subr.mxu0 0.0
  %4783 = vmatpush2.msra.mxu0 0.0
  %4784 = vmatprep.subr.mxu0 0.0
  %4785 = vmatpush2.msra.mxu0 0.0
  %4786 = vmatprep.subr.mxu0 0.0
  %4787 = vmatpush2.msra.mxu0 0.0
  %4788 = vmatprep.subr.mxu0 0.0
  %4789 = vmatpush2.msra.mxu0 0.0
  %4790 = vmatprep.subr.mxu0 0.0
  %4791 = vmatpush2.msra.mxu0 0.0
  %4792 = vmatprep.subr.mxu0 0.0
  %4793 = vmatpush2.msra.mxu0 0.0
  %4794 = vmatprep.subr.mxu0 0.0
  %4795 = vmatpush2.msra.mxu0 0.0
  %4796 = vmatprep.subr.mxu0 0.0
  %4797 = vmatpush2.msra.mxu0 0.0
  %4798 = vmatprep.subr.mxu0 0.0
  %4799 = vmatpush2.msra.mxu0 0.0
  %4800 = vmatprep.subr.mxu0 0.0
  %4801 = vmatpush2.msra.mxu0 0.0
  %4802 = vmatprep.mubr.f32.mxu0 0.0
  %4803 = vmatmul.mubr.f32.gmra.mxu0 %v3215
  %v4804 = vpop.f32.mrf.mxu0
  %v4805 = vadd.f32 %v4736, %v4804
  %v4806 = vpop.f32.mrf.mxu0
  %4807 = vmatprep.mubr.f32.mxu0 0.0
  %4808 = vmatmul.mubr.f32.gmra.mxu0 %v3218
  %v4809 = vpop.f32.mrf.mxu0
  %v4810 = vadd.f32 %v4736, %v4809
  %v4811 = vpop.f32.mrf.mxu0
  %4812 = vdwg.mxu0
  %v4814 = vsel %vm480, %v4629, 0
  %v4817 = vsel %vm480, %v4717, 0
  %4819 = vmatprep.subr.mxu0 0.0
  %4820 = vmatpush1.xpose.msra.mxu0 0.0
  %4821 = vmatprep.subr.mxu0 0.0
  %4822 = vmatpush1.xpose.msra.mxu0 0.0
  %4823 = vmatprep.subr.mxu0 0.0
  %4824 = vmatpush1.xpose.msra.mxu0 0.0
  %4825 = vmatprep.subr.mxu0 0.0
  %4826 = vmatpush1.xpose.msra.mxu0 0.0
  %4827 = vmatprep.subr.mxu0 0.0
  %4828 = vmatpush1.xpose.msra.mxu0 0.0
  %4829 = vmatprep.subr.mxu0 0.0
  %4830 = vmatpush1.xpose.msra.mxu0 0.0
  %4831 = vmatprep.subr.mxu0 0.0
  %4832 = vmatpush1.xpose.msra.mxu0 0.0
  %4833 = vmatprep.subr.mxu0 0.0
  %4834 = vmatpush1.xpose.msra.mxu0 0.0
  %4835 = vmatprep.subr.mxu0 0.0
  %4836 = vmatpush1.xpose.msra.mxu0 0.0
  %4837 = vmatprep.subr.mxu0 0.0
  %4838 = vmatpush1.xpose.msra.mxu0 0.0
  %4839 = vmatprep.subr.mxu0 0.0
  %4840 = vmatpush1.xpose.msra.mxu0 0.0
  %4841 = vmatprep.subr.mxu0 0.0
  %4842 = vmatpush1.xpose.msra.mxu0 0.0
  %4843 = vmatprep.subr.mxu0 0.0
  %4844 = vmatpush1.xpose.msra.mxu0 0.0
  %4845 = vmatprep.subr.mxu0 0.0
  %4846 = vmatpush1.xpose.msra.mxu0 0.0
  %4847 = vmatprep.subr.mxu0 0.0
  %4848 = vmatpush1.xpose.msra.mxu0 0.0
  %4849 = vmatprep.subr.mxu0 0.0
  %4850 = vmatpush1.xpose.msra.mxu0 %v4817
  %4851 = vmatprep.subr.mxu0 0.0
  %4852 = vmatpush2.xpose.msra.mxu0 0.0
  %4853 = vmatprep.subr.mxu0 0.0
  %4854 = vmatpush2.xpose.msra.mxu0 0.0
  %4855 = vmatprep.subr.mxu0 0.0
  %4856 = vmatpush2.xpose.msra.mxu0 0.0
  %4857 = vmatprep.subr.mxu0 0.0
  %4858 = vmatpush2.xpose.msra.mxu0 0.0
  %4859 = vmatprep.subr.mxu0 0.0
  %4860 = vmatpush2.xpose.msra.mxu0 0.0
  %4861 = vmatprep.subr.mxu0 0.0
  %4862 = vmatpush2.xpose.msra.mxu0 0.0
  %4863 = vmatprep.subr.mxu0 0.0
  %4864 = vmatpush2.xpose.msra.mxu0 0.0
  %4865 = vmatprep.subr.mxu0 0.0
  %4866 = vmatpush2.xpose.msra.mxu0 0.0
  %4867 = vmatprep.subr.mxu0 0.0
  %4868 = vmatpush2.xpose.msra.mxu0 0.0
  %4869 = vmatprep.subr.mxu0 0.0
  %4870 = vmatpush2.xpose.msra.mxu0 0.0
  %4871 = vmatprep.subr.mxu0 0.0
  %4872 = vmatpush2.xpose.msra.mxu0 0.0
  %4873 = vmatprep.subr.mxu0 0.0
  %4874 = vmatpush2.xpose.msra.mxu0 0.0
  %4875 = vmatprep.subr.mxu0 0.0
  %4876 = vmatpush2.xpose.msra.mxu0 0.0
  %4877 = vmatprep.subr.mxu0 0.0
  %4878 = vmatpush2.xpose.msra.mxu0 0.0
  %4879 = vmatprep.subr.mxu0 0.0
  %4880 = vmatpush2.xpose.msra.mxu0 0.0
  %4881 = vmatprep.subr.mxu0 0.0
  %4882 = vmatpush2.xpose.msra.mxu0 0.0
  %4883 = vmatprep.mubr.f32.mxu0 0.0
  %4884 = vmatmul.mubr.f32.gmra.mxu0 %v4814
  %v4885 = vpop.f32.mrf.mxu0
  %v4886 = vadd.f32 0.0, %v4885
  %v4887 = vpop.f32.mrf.mxu0
  %4888 = vdwg.mxu0
  %v4890 = vsel %vm480, %v4634, 0
  %v4893 = vsel %vm480, %v4722, 0
  %4895 = vmatprep.subr.mxu0 0.0
  %4896 = vmatpush1.xpose.msra.mxu0 0.0
  %4897 = vmatprep.subr.mxu0 0.0
  %4898 = vmatpush1.xpose.msra.mxu0 0.0
  %4899 = vmatprep.subr.mxu0 0.0
  %4900 = vmatpush1.xpose.msra.mxu0 0.0
  %4901 = vmatprep.subr.mxu0 0.0
  %4902 = vmatpush1.xpose.msra.mxu0 0.0
  %4903 = vmatprep.subr.mxu0 0.0
  %4904 = vmatpush1.xpose.msra.mxu0 0.0
  %4905 = vmatprep.subr.mxu0 0.0
  %4906 = vmatpush1.xpose.msra.mxu0 0.0
  %4907 = vmatprep.subr.mxu0 0.0
  %4908 = vmatpush1.xpose.msra.mxu0 0.0
  %4909 = vmatprep.subr.mxu0 0.0
  %4910 = vmatpush1.xpose.msra.mxu0 0.0
  %4911 = vmatprep.subr.mxu0 0.0
  %4912 = vmatpush1.xpose.msra.mxu0 0.0
  %4913 = vmatprep.subr.mxu0 0.0
  %4914 = vmatpush1.xpose.msra.mxu0 0.0
  %4915 = vmatprep.subr.mxu0 0.0
  %4916 = vmatpush1.xpose.msra.mxu0 0.0
  %4917 = vmatprep.subr.mxu0 0.0
  %4918 = vmatpush1.xpose.msra.mxu0 0.0
  %4919 = vmatprep.subr.mxu0 0.0
  %4920 = vmatpush1.xpose.msra.mxu0 0.0
  %4921 = vmatprep.subr.mxu0 0.0
  %4922 = vmatpush1.xpose.msra.mxu0 0.0
  %4923 = vmatprep.subr.mxu0 0.0
  %4924 = vmatpush1.xpose.msra.mxu0 0.0
  %4925 = vmatprep.subr.mxu0 0.0
  %4926 = vmatpush1.xpose.msra.mxu0 %v4893
  %4927 = vmatprep.subr.mxu0 0.0
  %4928 = vmatpush2.xpose.msra.mxu0 0.0
  %4929 = vmatprep.subr.mxu0 0.0
  %4930 = vmatpush2.xpose.msra.mxu0 0.0
  %4931 = vmatprep.subr.mxu0 0.0
  %4932 = vmatpush2.xpose.msra.mxu0 0.0
  %4933 = vmatprep.subr.mxu0 0.0
  %4934 = vmatpush2.xpose.msra.mxu0 0.0
  %4935 = vmatprep.subr.mxu0 0.0
  %4936 = vmatpush2.xpose.msra.mxu0 0.0
  %4937 = vmatprep.subr.mxu0 0.0
  %4938 = vmatpush2.xpose.msra.mxu0 0.0
  %4939 = vmatprep.subr.mxu0 0.0
  %4940 = vmatpush2.xpose.msra.mxu0 0.0
  %4941 = vmatprep.subr.mxu0 0.0
  %4942 = vmatpush2.xpose.msra.mxu0 0.0
  %4943 = vmatprep.subr.mxu0 0.0
  %4944 = vmatpush2.xpose.msra.mxu0 0.0
  %4945 = vmatprep.subr.mxu0 0.0
  %4946 = vmatpush2.xpose.msra.mxu0 0.0
  %4947 = vmatprep.subr.mxu0 0.0
  %4948 = vmatpush2.xpose.msra.mxu0 0.0
  %4949 = vmatprep.subr.mxu0 0.0
  %4950 = vmatpush2.xpose.msra.mxu0 0.0
  %4951 = vmatprep.subr.mxu0 0.0
  %4952 = vmatpush2.xpose.msra.mxu0 0.0
  %4953 = vmatprep.subr.mxu0 0.0
  %4954 = vmatpush2.xpose.msra.mxu0 0.0
  %4955 = vmatprep.subr.mxu0 0.0
  %4956 = vmatpush2.xpose.msra.mxu0 0.0
  %4957 = vmatprep.subr.mxu0 0.0
  %4958 = vmatpush2.xpose.msra.mxu0 0.0
  %4959 = vmatprep.mubr.f32.mxu0 0.0
  %4960 = vmatmul.mubr.f32.gmra.mxu0 %v4890
  %v4961 = vpop.f32.mrf.mxu0
  %v4962 = vadd.f32 0.0, %v4961
  %v4963 = vpop.f32.mrf.mxu0
  %4964 = vdwg.mxu0
  %v4965 = vmul.f32 %v4886, 0.35355338
  %v4966 = vmul.f32 %v4962, 0.35355338
  %v4967 = vadd.f32 %v4965, %v168
  %v4968 = vadd.f32 %v4966, %v169
  %v4969 = vsel %vm480, %v4967, -inf
  %4970 = vmax.xlane.f32.xlu0 %v4969
  %v4971 = vpop.xlane.xlu0 %4970
  %v4972 = vsel %vm480, %v4968, -inf
  %4973 = vmax.xlane.f32.xlu0 %v4972
  %v4974 = vpop.xlane.xlu0 %4973
  %v4975 = vsub.f32 %v4967, %v4971
  %v4976 = vsub.f32 %v4968, %v4974
  %v4977 = vmul.f32 %v4975, 1.442695
  %v4978 = vpow.pop %v4977
  %v4979 = vmul.f32 %v4976, 1.442695
  %v4980 = vpow.pop %v4979
  %v4981 = vsel %vm480, %v4978, 0.0
  %4982 = vadd.xlane.f32.xlu0 %v4981
  %v4983 = vpop.xlane.xlu0 %4982
  %v4984 = vsel %vm480, %v4980, 0.0
  %4985 = vadd.xlane.f32.xlu0 %v4984
  %v4986 = vpop.xlane.xlu0 %4985
  %v4987 = vrcp.pop %v4983
  %v4988 = vrcp.pop %v4986
  %v4989 = vmul.f32 %v4978, %v4987
  %v4990 = vmul.f32 %v4980, %v4988
  %v4992 = vsel %vm480, %v4989, 0
  %4994 = vmatprep.subr.mxu0 0.0
  %4995 = vmatpush1.msra.mxu0 0.0
  %4996 = vmatprep.subr.mxu0 0.0
  %4997 = vmatpush1.msra.mxu0 0.0
  %4998 = vmatprep.subr.mxu0 0.0
  %4999 = vmatpush1.msra.mxu0 0.0
  %5000 = vmatprep.subr.mxu0 0.0
  %5001 = vmatpush1.msra.mxu0 0.0
  %5002 = vmatprep.subr.mxu0 0.0
  %5003 = vmatpush1.msra.mxu0 0.0
  %5004 = vmatprep.subr.mxu0 0.0
  %5005 = vmatpush1.msra.mxu0 0.0
  %5006 = vmatprep.subr.mxu0 0.0
  %5007 = vmatpush1.msra.mxu0 0.0
  %5008 = vmatprep.subr.mxu0 0.0
  %5009 = vmatpush1.msra.mxu0 0.0
  %5010 = vmatprep.subr.mxu0 0.0
  %5011 = vmatpush1.msra.mxu0 0.0
  %5012 = vmatprep.subr.mxu0 0.0
  %5013 = vmatpush1.msra.mxu0 0.0
  %5014 = vmatprep.subr.mxu0 0.0
  %5015 = vmatpush1.msra.mxu0 0.0
  %5016 = vmatprep.subr.mxu0 0.0
  %5017 = vmatpush1.msra.mxu0 0.0
  %5018 = vmatprep.subr.mxu0 0.0
  %5019 = vmatpush1.msra.mxu0 0.0
  %5020 = vmatprep.subr.mxu0 0.0
  %5021 = vmatpush1.msra.mxu0 0.0
  %5022 = vmatprep.subr.mxu0 0.0
  %5023 = vmatpush1.msra.mxu0 0.0
  %5024 = vmatprep.subr.mxu0 0.0
  %5025 = vmatpush1.msra.mxu0 %v4805
  %5026 = vmatprep.subr.mxu0 0.0
  %5027 = vmatpush2.msra.mxu0 0.0
  %5028 = vmatprep.subr.mxu0 0.0
  %5029 = vmatpush2.msra.mxu0 0.0
  %5030 = vmatprep.subr.mxu0 0.0
  %5031 = vmatpush2.msra.mxu0 0.0
  %5032 = vmatprep.subr.mxu0 0.0
  %5033 = vmatpush2.msra.mxu0 0.0
  %5034 = vmatprep.subr.mxu0 0.0
  %5035 = vmatpush2.msra.mxu0 0.0
  %5036 = vmatprep.subr.mxu0 0.0
  %5037 = vmatpush2.msra.mxu0 0.0
  %5038 = vmatprep.subr.mxu0 0.0
  %5039 = vmatpush2.msra.mxu0 0.0
  %5040 = vmatprep.subr.mxu0 0.0
  %5041 = vmatpush2.msra.mxu0 0.0
  %5042 = vmatprep.subr.mxu0 0.0
  %5043 = vmatpush2.msra.mxu0 0.0
  %5044 = vmatprep.subr.mxu0 0.0
  %5045 = vmatpush2.msra.mxu0 0.0
  %5046 = vmatprep.subr.mxu0 0.0
  %5047 = vmatpush2.msra.mxu0 0.0
  %5048 = vmatprep.subr.mxu0 0.0
  %5049 = vmatpush2.msra.mxu0 0.0
  %5050 = vmatprep.subr.mxu0 0.0
  %5051 = vmatpush2.msra.mxu0 0.0
  %5052 = vmatprep.subr.mxu0 0.0
  %5053 = vmatpush2.msra.mxu0 0.0
  %5054 = vmatprep.subr.mxu0 0.0
  %5055 = vmatpush2.msra.mxu0 0.0
  %5056 = vmatprep.subr.mxu0 0.0
  %5057 = vmatpush2.msra.mxu0 0.0
  %5058 = vmatprep.mubr.f32.mxu0 0.0
  %5059 = vmatmul.mubr.f32.gmra.mxu0 %v4992
  %v5060 = vpop.f32.mrf.mxu0
  %v5061 = vadd.f32 0.0, %v5060
  %v5062 = vpop.f32.mrf.mxu0
  %5063 = vdwg.mxu0
  %v5065 = vsel %vm480, %v4990, 0
  %5067 = vmatprep.subr.mxu0 0.0
  %5068 = vmatpush1.msra.mxu0 0.0
  %5069 = vmatprep.subr.mxu0 0.0
  %5070 = vmatpush1.msra.mxu0 0.0
  %5071 = vmatprep.subr.mxu0 0.0
  %5072 = vmatpush1.msra.mxu0 0.0
  %5073 = vmatprep.subr.mxu0 0.0
  %5074 = vmatpush1.msra.mxu0 0.0
  %5075 = vmatprep.subr.mxu0 0.0
  %5076 = vmatpush1.msra.mxu0 0.0
  %5077 = vmatprep.subr.mxu0 0.0
  %5078 = vmatpush1.msra.mxu0 0.0
  %5079 = vmatprep.subr.mxu0 0.0
  %5080 = vmatpush1.msra.mxu0 0.0
  %5081 = vmatprep.subr.mxu0 0.0
  %5082 = vmatpush1.msra.mxu0 0.0
  %5083 = vmatprep.subr.mxu0 0.0
  %5084 = vmatpush1.msra.mxu0 0.0
  %5085 = vmatprep.subr.mxu0 0.0
  %5086 = vmatpush1.msra.mxu0 0.0
  %5087 = vmatprep.subr.mxu0 0.0
  %5088 = vmatpush1.msra.mxu0 0.0
  %5089 = vmatprep.subr.mxu0 0.0
  %5090 = vmatpush1.msra.mxu0 0.0
  %5091 = vmatprep.subr.mxu0 0.0
  %5092 = vmatpush1.msra.mxu0 0.0
  %5093 = vmatprep.subr.mxu0 0.0
  %5094 = vmatpush1.msra.mxu0 0.0
  %5095 = vmatprep.subr.mxu0 0.0
  %5096 = vmatpush1.msra.mxu0 0.0
  %5097 = vmatprep.subr.mxu0 0.0
  %5098 = vmatpush1.msra.mxu0 %v4810
  %5099 = vmatprep.subr.mxu0 0.0
  %5100 = vmatpush2.msra.mxu0 0.0
  %5101 = vmatprep.subr.mxu0 0.0
  %5102 = vmatpush2.msra.mxu0 0.0
  %5103 = vmatprep.subr.mxu0 0.0
  %5104 = vmatpush2.msra.mxu0 0.0
  %5105 = vmatprep.subr.mxu0 0.0
  %5106 = vmatpush2.msra.mxu0 0.0
  %5107 = vmatprep.subr.mxu0 0.0
  %5108 = vmatpush2.msra.mxu0 0.0
  %5109 = vmatprep.subr.mxu0 0.0
  %5110 = vmatpush2.msra.mxu0 0.0
  %5111 = vmatprep.subr.mxu0 0.0
  %5112 = vmatpush2.msra.mxu0 0.0
  %5113 = vmatprep.subr.mxu0 0.0
  %5114 = vmatpush2.msra.mxu0 0.0
  %5115 = vmatprep.subr.mxu0 0.0
  %5116 = vmatpush2.msra.mxu0 0.0
  %5117 = vmatprep.subr.mxu0 0.0
  %5118 = vmatpush2.msra.mxu0 0.0
  %5119 = vmatprep.subr.mxu0 0.0
  %5120 = vmatpush2.msra.mxu0 0.0
  %5121 = vmatprep.subr.mxu0 0.0
  %5122 = vmatpush2.msra.mxu0 0.0
  %5123 = vmatprep.subr.mxu0 0.0
  %5124 = vmatpush2.msra.mxu0 0.0
  %5125 = vmatprep.subr.mxu0 0.0
  %5126 = vmatpush2.msra.mxu0 0.0
  %5127 = vmatprep.subr.mxu0 0.0
  %5128 = vmatpush2.msra.mxu0 0.0
  %5129 = vmatprep.subr.mxu0 0.0
  %5130 = vmatpush2.msra.mxu0 0.0
  %5131 = vmatprep.mubr.f32.mxu0 0.0
  %5132 = vmatmul.mubr.f32.gmra.mxu0 %v5065
  %v5133 = vpop.f32.mrf.mxu0
  %v5134 = vadd.f32 0.0, %v5133
  %v5135 = vpop.f32.mrf.mxu0
  %5136 = vdwg.mxu0
  %s5137 = scalar_lea.vmem %s6, 48
  %v5138 = vld [vmem:[%s5137] sm:$0xff]
  %v5140 = vsel %vm480, %v5061, 0
  %v5143 = vsel %vm480, %v5134, 0
  %5145 = vmatprep.subr.mxu0 0.0
  %5146 = vmatpush1.msra.mxu0 0.0
  %5147 = vmatprep.subr.mxu0 0.0
  %5148 = vmatpush1.msra.mxu0 0.0
  %5149 = vmatprep.subr.mxu0 0.0
  %5150 = vmatpush1.msra.mxu0 0.0
  %5151 = vmatprep.subr.mxu0 0.0
  %5152 = vmatpush1.msra.mxu0 0.0
  %5153 = vmatprep.subr.mxu0 0.0
  %5154 = vmatpush1.msra.mxu0 0.0
  %5155 = vmatprep.subr.mxu0 0.0
  %5156 = vmatpush1.msra.mxu0 0.0
  %5157 = vmatprep.subr.mxu0 0.0
  %5158 = vmatpush1.msra.mxu0 0.0
  %5159 = vmatprep.subr.mxu0 0.0
  %5160 = vmatpush1.msra.mxu0 0.0
  %5161 = vmatprep.subr.mxu0 0.0
  %5162 = vmatpush1.msra.mxu0 0.0
  %5163 = vmatprep.subr.mxu0 0.0
  %5164 = vmatpush1.msra.mxu0 0.0
  %5165 = vmatprep.subr.mxu0 0.0
  %5166 = vmatpush1.msra.mxu0 0.0
  %5167 = vmatprep.subr.mxu0 0.0
  %5168 = vmatpush1.msra.mxu0 0.0
  %5169 = vmatprep.subr.mxu0 0.0
  %5170 = vmatpush1.msra.mxu0 0.0
  %5171 = vmatprep.subr.mxu0 0.0
  %5172 = vmatpush1.msra.mxu0 0.0
  %5173 = vmatprep.subr.mxu0 0.0
  %5174 = vmatpush1.msra.mxu0 0.0
  %5175 = vmatprep.subr.mxu0 0.0
  %5176 = vmatpush1.msra.mxu0 %v5138
  %5177 = vmatprep.subr.mxu0 0.0
  %5178 = vmatpush2.msra.mxu0 0.0
  %5179 = vmatprep.subr.mxu0 0.0
  %5180 = vmatpush2.msra.mxu0 0.0
  %5181 = vmatprep.subr.mxu0 0.0
  %5182 = vmatpush2.msra.mxu0 0.0
  %5183 = vmatprep.subr.mxu0 0.0
  %5184 = vmatpush2.msra.mxu0 0.0
  %5185 = vmatprep.subr.mxu0 0.0
  %5186 = vmatpush2.msra.mxu0 0.0
  %5187 = vmatprep.subr.mxu0 0.0
  %5188 = vmatpush2.msra.mxu0 0.0
  %5189 = vmatprep.subr.mxu0 0.0
  %5190 = vmatpush2.msra.mxu0 0.0
  %5191 = vmatprep.subr.mxu0 0.0
  %5192 = vmatpush2.msra.mxu0 0.0
  %5193 = vmatprep.subr.mxu0 0.0
  %5194 = vmatpush2.msra.mxu0 0.0
  %5195 = vmatprep.subr.mxu0 0.0
  %5196 = vmatpush2.msra.mxu0 0.0
  %5197 = vmatprep.subr.mxu0 0.0
  %5198 = vmatpush2.msra.mxu0 0.0
  %5199 = vmatprep.subr.mxu0 0.0
  %5200 = vmatpush2.msra.mxu0 0.0
  %5201 = vmatprep.subr.mxu0 0.0
  %5202 = vmatpush2.msra.mxu0 0.0
  %5203 = vmatprep.subr.mxu0 0.0
  %5204 = vmatpush2.msra.mxu0 0.0
  %5205 = vmatprep.subr.mxu0 0.0
  %5206 = vmatpush2.msra.mxu0 0.0
  %5207 = vmatprep.subr.mxu0 0.0
  %5208 = vmatpush2.msra.mxu0 0.0
  %5209 = vmatprep.mubr.f32.mxu0 0.0
  %5210 = vmatmul.mubr.f32.gmra.mxu0 %v5140
  %v5211 = vpop.f32.mrf.mxu0
  %v5212 = vadd.f32 0.0, %v5211
  %v5213 = vpop.f32.mrf.mxu0
  %5214 = vmatprep.mubr.f32.mxu0 0.0
  %5215 = vmatmul.mubr.f32.gmra.mxu0 %v5143
  %v5216 = vpop.f32.mrf.mxu0
  %v5217 = vadd.f32 0.0, %v5216
  %v5218 = vpop.f32.mrf.mxu0
  %5219 = vdwg.mxu0
  %v5220 = vadd.f32 %v4541, %v5212
  %v5221 = vadd.f32 %v4546, %v5217
  %s5222 = scalar_lea.vmem %s4, 480
  %v5223 = vld [vmem:[%s5222] sm:$0xff]
  %v5224 = vld [vmem:[%s5222 + $0x8] sm:$0xff]
  %v5225 = vld [vmem:[%s5222 + $0x10] sm:$0xff]
  %v5226 = vld [vmem:[%s5222 + $0x18] sm:$0xff]
  %s5227 = scalar_lea.vmem %s5, 15
  %v5228 = vld [vmem:[%s5227] sm:$0x1]
  %v5230 = vlaneseq
  %v5231 = vshrl.u32 %v5230, 7
  %v5232 = vsub.s32 0, %v5231
  %v5233 = vrot.slane %v5228, %v5232
  %5235 = vmatprep.subr.mxu0 0.0
  %5236 = vmatpush1.msra.mxu0 0.0
  %5237 = vmatprep.subr.mxu0 0.0
  %5238 = vmatpush1.msra.mxu0 0.0
  %5239 = vmatprep.subr.mxu0 0.0
  %5240 = vmatpush1.msra.mxu0 0.0
  %5241 = vmatprep.subr.mxu0 0.0
  %5242 = vmatpush1.msra.mxu0 0.0
  %5243 = vmatprep.subr.mxu0 0.0
  %5244 = vmatpush1.msra.mxu0 0.0
  %5245 = vmatprep.subr.mxu0 0.0
  %5246 = vmatpush1.msra.mxu0 0.0
  %5247 = vmatprep.subr.mxu0 0.0
  %5248 = vmatpush1.msra.mxu0 0.0
  %5249 = vmatprep.subr.mxu0 0.0
  %5250 = vmatpush1.msra.mxu0 0.0
  %5251 = vmatprep.subr.mxu0 0.0
  %5252 = vmatpush1.msra.mxu0 0.0
  %5253 = vmatprep.subr.mxu0 0.0
  %5254 = vmatpush1.msra.mxu0 0.0
  %5255 = vmatprep.subr.mxu0 0.0
  %5256 = vmatpush1.msra.mxu0 0.0
  %5257 = vmatprep.subr.mxu0 0.0
  %5258 = vmatpush1.msra.mxu0 0.0
  %5259 = vmatprep.subr.mxu0 0.0
  %5260 = vmatpush1.msra.mxu0 %v5226
  %5261 = vmatprep.subr.mxu0 0.0
  %5262 = vmatpush1.msra.mxu0 %v5225
  %5263 = vmatprep.subr.mxu0 0.0
  %5264 = vmatpush1.msra.mxu0 %v5224
  %5265 = vmatprep.subr.mxu0 0.0
  %5266 = vmatpush1.msra.mxu0 %v5223
  %5267 = vmatprep.subr.mxu0 0.0
  %5268 = vmatpush2.msra.mxu0 0.0
  %5269 = vmatprep.subr.mxu0 0.0
  %5270 = vmatpush2.msra.mxu0 0.0
  %5271 = vmatprep.subr.mxu0 0.0
  %5272 = vmatpush2.msra.mxu0 0.0
  %5273 = vmatprep.subr.mxu0 0.0
  %5274 = vmatpush2.msra.mxu0 0.0
  %5275 = vmatprep.subr.mxu0 0.0
  %5276 = vmatpush2.msra.mxu0 0.0
  %5277 = vmatprep.subr.mxu0 0.0
  %5278 = vmatpush2.msra.mxu0 0.0
  %5279 = vmatprep.subr.mxu0 0.0
  %5280 = vmatpush2.msra.mxu0 0.0
  %5281 = vmatprep.subr.mxu0 0.0
  %5282 = vmatpush2.msra.mxu0 0.0
  %5283 = vmatprep.subr.mxu0 0.0
  %5284 = vmatpush2.msra.mxu0 0.0
  %5285 = vmatprep.subr.mxu0 0.0
  %5286 = vmatpush2.msra.mxu0 0.0
  %5287 = vmatprep.subr.mxu0 0.0
  %5288 = vmatpush2.msra.mxu0 0.0
  %5289 = vmatprep.subr.mxu0 0.0
  %5290 = vmatpush2.msra.mxu0 0.0
  %5291 = vmatprep.subr.mxu0 0.0
  %5292 = vmatpush2.msra.mxu0 0.0
  %5293 = vmatprep.subr.mxu0 0.0
  %5294 = vmatpush2.msra.mxu0 0.0
  %5295 = vmatprep.subr.mxu0 0.0
  %5296 = vmatpush2.msra.mxu0 0.0
  %5297 = vmatprep.subr.mxu0 0.0
  %5298 = vmatpush2.msra.mxu0 0.0
  %5299 = vmatprep.mubr.f32.mxu0 0.0
  %5300 = vmatmul.mubr.f32.gmra.mxu0 %v3215
  %v5301 = vpop.f32.mrf.mxu0
  %v5302 = vadd.f32 %v5233, %v5301
  %v5303 = vpop.f32.mrf.mxu0
  %5304 = vmatprep.mubr.f32.mxu0 0.0
  %5305 = vmatmul.mubr.f32.gmra.mxu0 %v3218
  %v5306 = vpop.f32.mrf.mxu0
  %v5307 = vadd.f32 %v5233, %v5306
  %v5308 = vpop.f32.mrf.mxu0
  %5309 = vdwg.mxu0
  %s5310 = scalar_lea.vmem %s4, 608
  %v5311 = vld [vmem:[%s5310] sm:$0xff]
  %v5312 = vld [vmem:[%s5310 + $0x8] sm:$0xff]
  %v5313 = vld [vmem:[%s5310 + $0x10] sm:$0xff]
  %v5314 = vld [vmem:[%s5310 + $0x18] sm:$0xff]
  %s5315 = scalar_lea.vmem %s5, 19
  %v5316 = vld [vmem:[%s5315] sm:$0x1]
  %v5318 = vlaneseq
  %v5319 = vshrl.u32 %v5318, 7
  %v5320 = vsub.s32 0, %v5319
  %v5321 = vrot.slane %v5316, %v5320
  %5323 = vmatprep.subr.mxu0 0.0
  %5324 = vmatpush1.msra.mxu0 0.0
  %5325 = vmatprep.subr.mxu0 0.0
  %5326 = vmatpush1.msra.mxu0 0.0
  %5327 = vmatprep.subr.mxu0 0.0
  %5328 = vmatpush1.msra.mxu0 0.0
  %5329 = vmatprep.subr.mxu0 0.0
  %5330 = vmatpush1.msra.mxu0 0.0
  %5331 = vmatprep.subr.mxu0 0.0
  %5332 = vmatpush1.msra.mxu0 0.0
  %5333 = vmatprep.subr.mxu0 0.0
  %5334 = vmatpush1.msra.mxu0 0.0
  %5335 = vmatprep.subr.mxu0 0.0
  %5336 = vmatpush1.msra.mxu0 0.0
  %5337 = vmatprep.subr.mxu0 0.0
  %5338 = vmatpush1.msra.mxu0 0.0
  %5339 = vmatprep.subr.mxu0 0.0
  %5340 = vmatpush1.msra.mxu0 0.0
  %5341 = vmatprep.subr.mxu0 0.0
  %5342 = vmatpush1.msra.mxu0 0.0
  %5343 = vmatprep.subr.mxu0 0.0
  %5344 = vmatpush1.msra.mxu0 0.0
  %5345 = vmatprep.subr.mxu0 0.0
  %5346 = vmatpush1.msra.mxu0 0.0
  %5347 = vmatprep.subr.mxu0 0.0
  %5348 = vmatpush1.msra.mxu0 %v5314
  %5349 = vmatprep.subr.mxu0 0.0
  %5350 = vmatpush1.msra.mxu0 %v5313
  %5351 = vmatprep.subr.mxu0 0.0
  %5352 = vmatpush1.msra.mxu0 %v5312
  %5353 = vmatprep.subr.mxu0 0.0
  %5354 = vmatpush1.msra.mxu0 %v5311
  %5355 = vmatprep.subr.mxu0 0.0
  %5356 = vmatpush2.msra.mxu0 0.0
  %5357 = vmatprep.subr.mxu0 0.0
  %5358 = vmatpush2.msra.mxu0 0.0
  %5359 = vmatprep.subr.mxu0 0.0
  %5360 = vmatpush2.msra.mxu0 0.0
  %5361 = vmatprep.subr.mxu0 0.0
  %5362 = vmatpush2.msra.mxu0 0.0
  %5363 = vmatprep.subr.mxu0 0.0
  %5364 = vmatpush2.msra.mxu0 0.0
  %5365 = vmatprep.subr.mxu0 0.0
  %5366 = vmatpush2.msra.mxu0 0.0
  %5367 = vmatprep.subr.mxu0 0.0
  %5368 = vmatpush2.msra.mxu0 0.0
  %5369 = vmatprep.subr.mxu0 0.0
  %5370 = vmatpush2.msra.mxu0 0.0
  %5371 = vmatprep.subr.mxu0 0.0
  %5372 = vmatpush2.msra.mxu0 0.0
  %5373 = vmatprep.subr.mxu0 0.0
  %5374 = vmatpush2.msra.mxu0 0.0
  %5375 = vmatprep.subr.mxu0 0.0
  %5376 = vmatpush2.msra.mxu0 0.0
  %5377 = vmatprep.subr.mxu0 0.0
  %5378 = vmatpush2.msra.mxu0 0.0
  %5379 = vmatprep.subr.mxu0 0.0
  %5380 = vmatpush2.msra.mxu0 0.0
  %5381 = vmatprep.subr.mxu0 0.0
  %5382 = vmatpush2.msra.mxu0 0.0
  %5383 = vmatprep.subr.mxu0 0.0
  %5384 = vmatpush2.msra.mxu0 0.0
  %5385 = vmatprep.subr.mxu0 0.0
  %5386 = vmatpush2.msra.mxu0 0.0
  %5387 = vmatprep.mubr.f32.mxu0 0.0
  %5388 = vmatmul.mubr.f32.gmra.mxu0 %v3215
  %v5389 = vpop.f32.mrf.mxu0
  %v5390 = vadd.f32 %v5321, %v5389
  %v5391 = vpop.f32.mrf.mxu0
  %5392 = vmatprep.mubr.f32.mxu0 0.0
  %5393 = vmatmul.mubr.f32.gmra.mxu0 %v3218
  %v5394 = vpop.f32.mrf.mxu0
  %v5395 = vadd.f32 %v5321, %v5394
  %v5396 = vpop.f32.mrf.mxu0
  %5397 = vdwg.mxu0
  %s5398 = scalar_lea.vmem %s4, 736
  %v5399 = vld [vmem:[%s5398] sm:$0xff]
  %v5400 = vld [vmem:[%s5398 + $0x8] sm:$0xff]
  %v5401 = vld [vmem:[%s5398 + $0x10] sm:$0xff]
  %v5402 = vld [vmem:[%s5398 + $0x18] sm:$0xff]
  %s5403 = scalar_lea.vmem %s5, 23
  %v5404 = vld [vmem:[%s5403] sm:$0x1]
  %v5406 = vlaneseq
  %v5407 = vshrl.u32 %v5406, 7
  %v5408 = vsub.s32 0, %v5407
  %v5409 = vrot.slane %v5404, %v5408
  %5411 = vmatprep.subr.mxu0 0.0
  %5412 = vmatpush1.msra.mxu0 0.0
  %5413 = vmatprep.subr.mxu0 0.0
  %5414 = vmatpush1.msra.mxu0 0.0
  %5415 = vmatprep.subr.mxu0 0.0
  %5416 = vmatpush1.msra.mxu0 0.0
  %5417 = vmatprep.subr.mxu0 0.0
  %5418 = vmatpush1.msra.mxu0 0.0
  %5419 = vmatprep.subr.mxu0 0.0
  %5420 = vmatpush1.msra.mxu0 0.0
  %5421 = vmatprep.subr.mxu0 0.0
  %5422 = vmatpush1.msra.mxu0 0.0
  %5423 = vmatprep.subr.mxu0 0.0
  %5424 = vmatpush1.msra.mxu0 0.0
  %5425 = vmatprep.subr.mxu0 0.0
  %5426 = vmatpush1.msra.mxu0 0.0
  %5427 = vmatprep.subr.mxu0 0.0
  %5428 = vmatpush1.msra.mxu0 0.0
  %5429 = vmatprep.subr.mxu0 0.0
  %5430 = vmatpush1.msra.mxu0 0.0
  %5431 = vmatprep.subr.mxu0 0.0
  %5432 = vmatpush1.msra.mxu0 0.0
  %5433 = vmatprep.subr.mxu0 0.0
  %5434 = vmatpush1.msra.mxu0 0.0
  %5435 = vmatprep.subr.mxu0 0.0
  %5436 = vmatpush1.msra.mxu0 %v5402
  %5437 = vmatprep.subr.mxu0 0.0
  %5438 = vmatpush1.msra.mxu0 %v5401
  %5439 = vmatprep.subr.mxu0 0.0
  %5440 = vmatpush1.msra.mxu0 %v5400
  %5441 = vmatprep.subr.mxu0 0.0
  %5442 = vmatpush1.msra.mxu0 %v5399
  %5443 = vmatprep.subr.mxu0 0.0
  %5444 = vmatpush2.msra.mxu0 0.0
  %5445 = vmatprep.subr.mxu0 0.0
  %5446 = vmatpush2.msra.mxu0 0.0
  %5447 = vmatprep.subr.mxu0 0.0
  %5448 = vmatpush2.msra.mxu0 0.0
  %5449 = vmatprep.subr.mxu0 0.0
  %5450 = vmatpush2.msra.mxu0 0.0
  %5451 = vmatprep.subr.mxu0 0.0
  %5452 = vmatpush2.msra.mxu0 0.0
  %5453 = vmatprep.subr.mxu0 0.0
  %5454 = vmatpush2.msra.mxu0 0.0
  %5455 = vmatprep.subr.mxu0 0.0
  %5456 = vmatpush2.msra.mxu0 0.0
  %5457 = vmatprep.subr.mxu0 0.0
  %5458 = vmatpush2.msra.mxu0 0.0
  %5459 = vmatprep.subr.mxu0 0.0
  %5460 = vmatpush2.msra.mxu0 0.0
  %5461 = vmatprep.subr.mxu0 0.0
  %5462 = vmatpush2.msra.mxu0 0.0
  %5463 = vmatprep.subr.mxu0 0.0
  %5464 = vmatpush2.msra.mxu0 0.0
  %5465 = vmatprep.subr.mxu0 0.0
  %5466 = vmatpush2.msra.mxu0 0.0
  %5467 = vmatprep.subr.mxu0 0.0
  %5468 = vmatpush2.msra.mxu0 0.0
  %5469 = vmatprep.subr.mxu0 0.0
  %5470 = vmatpush2.msra.mxu0 0.0
  %5471 = vmatprep.subr.mxu0 0.0
  %5472 = vmatpush2.msra.mxu0 0.0
  %5473 = vmatprep.subr.mxu0 0.0
  %5474 = vmatpush2.msra.mxu0 0.0
  %5475 = vmatprep.mubr.f32.mxu0 0.0
  %5476 = vmatmul.mubr.f32.gmra.mxu0 %v3215
  %v5477 = vpop.f32.mrf.mxu0
  %v5478 = vadd.f32 %v5409, %v5477
  %v5479 = vpop.f32.mrf.mxu0
  %5480 = vmatprep.mubr.f32.mxu0 0.0
  %5481 = vmatmul.mubr.f32.gmra.mxu0 %v3218
  %v5482 = vpop.f32.mrf.mxu0
  %v5483 = vadd.f32 %v5409, %v5482
  %v5484 = vpop.f32.mrf.mxu0
  %5485 = vdwg.mxu0
  %v5487 = vsel %vm480, %v5302, 0
  %v5490 = vsel %vm480, %v5390, 0
  %5492 = vmatprep.subr.mxu0 0.0
  %5493 = vmatpush1.xpose.msra.mxu0 0.0
  %5494 = vmatprep.subr.mxu0 0.0
  %5495 = vmatpush1.xpose.msra.mxu0 0.0
  %5496 = vmatprep.subr.mxu0 0.0
  %5497 = vmatpush1.xpose.msra.mxu0 0.0
  %5498 = vmatprep.subr.mxu0 0.0
  %5499 = vmatpush1.xpose.msra.mxu0 0.0
  %5500 = vmatprep.subr.mxu0 0.0
  %5501 = vmatpush1.xpose.msra.mxu0 0.0
  %5502 = vmatprep.subr.mxu0 0.0
  %5503 = vmatpush1.xpose.msra.mxu0 0.0
  %5504 = vmatprep.subr.mxu0 0.0
  %5505 = vmatpush1.xpose.msra.mxu0 0.0
  %5506 = vmatprep.subr.mxu0 0.0
  %5507 = vmatpush1.xpose.msra.mxu0 0.0
  %5508 = vmatprep.subr.mxu0 0.0
  %5509 = vmatpush1.xpose.msra.mxu0 0.0
  %5510 = vmatprep.subr.mxu0 0.0
  %5511 = vmatpush1.xpose.msra.mxu0 0.0
  %5512 = vmatprep.subr.mxu0 0.0
  %5513 = vmatpush1.xpose.msra.mxu0 0.0
  %5514 = vmatprep.subr.mxu0 0.0
  %5515 = vmatpush1.xpose.msra.mxu0 0.0
  %5516 = vmatprep.subr.mxu0 0.0
  %5517 = vmatpush1.xpose.msra.mxu0 0.0
  %5518 = vmatprep.subr.mxu0 0.0
  %5519 = vmatpush1.xpose.msra.mxu0 0.0
  %5520 = vmatprep.subr.mxu0 0.0
  %5521 = vmatpush1.xpose.msra.mxu0 0.0
  %5522 = vmatprep.subr.mxu0 0.0
  %5523 = vmatpush1.xpose.msra.mxu0 %v5490
  %5524 = vmatprep.subr.mxu0 0.0
  %5525 = vmatpush2.xpose.msra.mxu0 0.0
  %5526 = vmatprep.subr.mxu0 0.0
  %5527 = vmatpush2.xpose.msra.mxu0 0.0
  %5528 = vmatprep.subr.mxu0 0.0
  %5529 = vmatpush2.xpose.msra.mxu0 0.0
  %5530 = vmatprep.subr.mxu0 0.0
  %5531 = vmatpush2.xpose.msra.mxu0 0.0
  %5532 = vmatprep.subr.mxu0 0.0
  %5533 = vmatpush2.xpose.msra.mxu0 0.0
  %5534 = vmatprep.subr.mxu0 0.0
  %5535 = vmatpush2.xpose.msra.mxu0 0.0
  %5536 = vmatprep.subr.mxu0 0.0
  %5537 = vmatpush2.xpose.msra.mxu0 0.0
  %5538 = vmatprep.subr.mxu0 0.0
  %5539 = vmatpush2.xpose.msra.mxu0 0.0
  %5540 = vmatprep.subr.mxu0 0.0
  %5541 = vmatpush2.xpose.msra.mxu0 0.0
  %5542 = vmatprep.subr.mxu0 0.0
  %5543 = vmatpush2.xpose.msra.mxu0 0.0
  %5544 = vmatprep.subr.mxu0 0.0
  %5545 = vmatpush2.xpose.msra.mxu0 0.0
  %5546 = vmatprep.subr.mxu0 0.0
  %5547 = vmatpush2.xpose.msra.mxu0 0.0
  %5548 = vmatprep.subr.mxu0 0.0
  %5549 = vmatpush2.xpose.msra.mxu0 0.0
  %5550 = vmatprep.subr.mxu0 0.0
  %5551 = vmatpush2.xpose.msra.mxu0 0.0
  %5552 = vmatprep.subr.mxu0 0.0
  %5553 = vmatpush2.xpose.msra.mxu0 0.0
  %5554 = vmatprep.subr.mxu0 0.0
  %5555 = vmatpush2.xpose.msra.mxu0 0.0
  %5556 = vmatprep.mubr.f32.mxu0 0.0
  %5557 = vmatmul.mubr.f32.gmra.mxu0 %v5487
  %v5558 = vpop.f32.mrf.mxu0
  %v5559 = vadd.f32 0.0, %v5558
  %v5560 = vpop.f32.mrf.mxu0
  %5561 = vdwg.mxu0
  %v5563 = vsel %vm480, %v5307, 0
  %v5566 = vsel %vm480, %v5395, 0
  %5568 = vmatprep.subr.mxu0 0.0
  %5569 = vmatpush1.xpose.msra.mxu0 0.0
  %5570 = vmatprep.subr.mxu0 0.0
  %5571 = vmatpush1.xpose.msra.mxu0 0.0
  %5572 = vmatprep.subr.mxu0 0.0
  %5573 = vmatpush1.xpose.msra.mxu0 0.0
  %5574 = vmatprep.subr.mxu0 0.0
  %5575 = vmatpush1.xpose.msra.mxu0 0.0
  %5576 = vmatprep.subr.mxu0 0.0
  %5577 = vmatpush1.xpose.msra.mxu0 0.0
  %5578 = vmatprep.subr.mxu0 0.0
  %5579 = vmatpush1.xpose.msra.mxu0 0.0
  %5580 = vmatprep.subr.mxu0 0.0
  %5581 = vmatpush1.xpose.msra.mxu0 0.0
  %5582 = vmatprep.subr.mxu0 0.0
  %5583 = vmatpush1.xpose.msra.mxu0 0.0
  %5584 = vmatprep.subr.mxu0 0.0
  %5585 = vmatpush1.xpose.msra.mxu0 0.0
  %5586 = vmatprep.subr.mxu0 0.0
  %5587 = vmatpush1.xpose.msra.mxu0 0.0
  %5588 = vmatprep.subr.mxu0 0.0
  %5589 = vmatpush1.xpose.msra.mxu0 0.0
  %5590 = vmatprep.subr.mxu0 0.0
  %5591 = vmatpush1.xpose.msra.mxu0 0.0
  %5592 = vmatprep.subr.mxu0 0.0
  %5593 = vmatpush1.xpose.msra.mxu0 0.0
  %5594 = vmatprep.subr.mxu0 0.0
  %5595 = vmatpush1.xpose.msra.mxu0 0.0
  %5596 = vmatprep.subr.mxu0 0.0
  %5597 = vmatpush1.xpose.msra.mxu0 0.0
  %5598 = vmatprep.subr.mxu0 0.0
  %5599 = vmatpush1.xpose.msra.mxu0 %v5566
  %5600 = vmatprep.subr.mxu0 0.0
  %5601 = vmatpush2.xpose.msra.mxu0 0.0
  %5602 = vmatprep.subr.mxu0 0.0
  %5603 = vmatpush2.xpose.msra.mxu0 0.0
  %5604 = vmatprep.subr.mxu0 0.0
  %5605 = vmatpush2.xpose.msra.mxu0 0.0
  %5606 = vmatprep.subr.mxu0 0.0
  %5607 = vmatpush2.xpose.msra.mxu0 0.0
  %5608 = vmatprep.subr.mxu0 0.0
  %5609 = vmatpush2.xpose.msra.mxu0 0.0
  %5610 = vmatprep.subr.mxu0 0.0
  %5611 = vmatpush2.xpose.msra.mxu0 0.0
  %5612 = vmatprep.subr.mxu0 0.0
  %5613 = vmatpush2.xpose.msra.mxu0 0.0
  %5614 = vmatprep.subr.mxu0 0.0
  %5615 = vmatpush2.xpose.msra.mxu0 0.0
  %5616 = vmatprep.subr.mxu0 0.0
  %5617 = vmatpush2.xpose.msra.mxu0 0.0
  %5618 = vmatprep.subr.mxu0 0.0
  %5619 = vmatpush2.xpose.msra.mxu0 0.0
  %5620 = vmatprep.subr.mxu0 0.0
  %5621 = vmatpush2.xpose.msra.mxu0 0.0
  %5622 = vmatprep.subr.mxu0 0.0
  %5623 = vmatpush2.xpose.msra.mxu0 0.0
  %5624 = vmatprep.subr.mxu0 0.0
  %5625 = vmatpush2.xpose.msra.mxu0 0.0
  %5626 = vmatprep.subr.mxu0 0.0
  %5627 = vmatpush2.xpose.msra.mxu0 0.0
  %5628 = vmatprep.subr.mxu0 0.0
  %5629 = vmatpush2.xpose.msra.mxu0 0.0
  %5630 = vmatprep.subr.mxu0 0.0
  %5631 = vmatpush2.xpose.msra.mxu0 0.0
  %5632 = vmatprep.mubr.f32.mxu0 0.0
  %5633 = vmatmul.mubr.f32.gmra.mxu0 %v5563
  %v5634 = vpop.f32.mrf.mxu0
  %v5635 = vadd.f32 0.0, %v5634
  %v5636 = vpop.f32.mrf.mxu0
  %5637 = vdwg.mxu0
  %v5638 = vmul.f32 %v5559, 0.35355338
  %v5639 = vmul.f32 %v5635, 0.35355338
  %v5640 = vadd.f32 %v5638, %v168
  %v5641 = vadd.f32 %v5639, %v169
  %v5642 = vsel %vm480, %v5640, -inf
  %5643 = vmax.xlane.f32.xlu0 %v5642
  %v5644 = vpop.xlane.xlu0 %5643
  %v5645 = vsel %vm480, %v5641, -inf
  %5646 = vmax.xlane.f32.xlu0 %v5645
  %v5647 = vpop.xlane.xlu0 %5646
  %v5648 = vsub.f32 %v5640, %v5644
  %v5649 = vsub.f32 %v5641, %v5647
  %v5650 = vmul.f32 %v5648, 1.442695
  %v5651 = vpow.pop %v5650
  %v5652 = vmul.f32 %v5649, 1.442695
  %v5653 = vpow.pop %v5652
  %v5654 = vsel %vm480, %v5651, 0.0
  %5655 = vadd.xlane.f32.xlu0 %v5654
  %v5656 = vpop.xlane.xlu0 %5655
  %v5657 = vsel %vm480, %v5653, 0.0
  %5658 = vadd.xlane.f32.xlu0 %v5657
  %v5659 = vpop.xlane.xlu0 %5658
  %v5660 = vrcp.pop %v5656
  %v5661 = vrcp.pop %v5659
  %v5662 = vmul.f32 %v5651, %v5660
  %v5663 = vmul.f32 %v5653, %v5661
  %v5665 = vsel %vm480, %v5662, 0
  %5667 = vmatprep.subr.mxu0 0.0
  %5668 = vmatpush1.msra.mxu0 0.0
  %5669 = vmatprep.subr.mxu0 0.0
  %5670 = vmatpush1.msra.mxu0 0.0
  %5671 = vmatprep.subr.mxu0 0.0
  %5672 = vmatpush1.msra.mxu0 0.0
  %5673 = vmatprep.subr.mxu0 0.0
  %5674 = vmatpush1.msra.mxu0 0.0
  %5675 = vmatprep.subr.mxu0 0.0
  %5676 = vmatpush1.msra.mxu0 0.0
  %5677 = vmatprep.subr.mxu0 0.0
  %5678 = vmatpush1.msra.mxu0 0.0
  %5679 = vmatprep.subr.mxu0 0.0
  %5680 = vmatpush1.msra.mxu0 0.0
  %5681 = vmatprep.subr.mxu0 0.0
  %5682 = vmatpush1.msra.mxu0 0.0
  %5683 = vmatprep.subr.mxu0 0.0
  %5684 = vmatpush1.msra.mxu0 0.0
  %5685 = vmatprep.subr.mxu0 0.0
  %5686 = vmatpush1.msra.mxu0 0.0
  %5687 = vmatprep.subr.mxu0 0.0
  %5688 = vmatpush1.msra.mxu0 0.0
  %5689 = vmatprep.subr.mxu0 0.0
  %5690 = vmatpush1.msra.mxu0 0.0
  %5691 = vmatprep.subr.mxu0 0.0
  %5692 = vmatpush1.msra.mxu0 0.0
  %5693 = vmatprep.subr.mxu0 0.0
  %5694 = vmatpush1.msra.mxu0 0.0
  %5695 = vmatprep.subr.mxu0 0.0
  %5696 = vmatpush1.msra.mxu0 0.0
  %5697 = vmatprep.subr.mxu0 0.0
  %5698 = vmatpush1.msra.mxu0 %v5478
  %5699 = vmatprep.subr.mxu0 0.0
  %5700 = vmatpush2.msra.mxu0 0.0
  %5701 = vmatprep.subr.mxu0 0.0
  %5702 = vmatpush2.msra.mxu0 0.0
  %5703 = vmatprep.subr.mxu0 0.0
  %5704 = vmatpush2.msra.mxu0 0.0
  %5705 = vmatprep.subr.mxu0 0.0
  %5706 = vmatpush2.msra.mxu0 0.0
  %5707 = vmatprep.subr.mxu0 0.0
  %5708 = vmatpush2.msra.mxu0 0.0
  %5709 = vmatprep.subr.mxu0 0.0
  %5710 = vmatpush2.msra.mxu0 0.0
  %5711 = vmatprep.subr.mxu0 0.0
  %5712 = vmatpush2.msra.mxu0 0.0
  %5713 = vmatprep.subr.mxu0 0.0
  %5714 = vmatpush2.msra.mxu0 0.0
  %5715 = vmatprep.subr.mxu0 0.0
  %5716 = vmatpush2.msra.mxu0 0.0
  %5717 = vmatprep.subr.mxu0 0.0
  %5718 = vmatpush2.msra.mxu0 0.0
  %5719 = vmatprep.subr.mxu0 0.0
  %5720 = vmatpush2.msra.mxu0 0.0
  %5721 = vmatprep.subr.mxu0 0.0
  %5722 = vmatpush2.msra.mxu0 0.0
  %5723 = vmatprep.subr.mxu0 0.0
  %5724 = vmatpush2.msra.mxu0 0.0
  %5725 = vmatprep.subr.mxu0 0.0
  %5726 = vmatpush2.msra.mxu0 0.0
  %5727 = vmatprep.subr.mxu0 0.0
  %5728 = vmatpush2.msra.mxu0 0.0
  %5729 = vmatprep.subr.mxu0 0.0
  %5730 = vmatpush2.msra.mxu0 0.0
  %5731 = vmatprep.mubr.f32.mxu0 0.0
  %5732 = vmatmul.mubr.f32.gmra.mxu0 %v5665
  %v5733 = vpop.f32.mrf.mxu0
  %v5734 = vadd.f32 0.0, %v5733
  %v5735 = vpop.f32.mrf.mxu0
  %5736 = vdwg.mxu0
  %v5738 = vsel %vm480, %v5663, 0
  %5740 = vmatprep.subr.mxu0 0.0
  %5741 = vmatpush1.msra.mxu0 0.0
  %5742 = vmatprep.subr.mxu0 0.0
  %5743 = vmatpush1.msra.mxu0 0.0
  %5744 = vmatprep.subr.mxu0 0.0
  %5745 = vmatpush1.msra.mxu0 0.0
  %5746 = vmatprep.subr.mxu0 0.0
  %5747 = vmatpush1.msra.mxu0 0.0
  %5748 = vmatprep.subr.mxu0 0.0
  %5749 = vmatpush1.msra.mxu0 0.0
  %5750 = vmatprep.subr.mxu0 0.0
  %5751 = vmatpush1.msra.mxu0 0.0
  %5752 = vmatprep.subr.mxu0 0.0
  %5753 = vmatpush1.msra.mxu0 0.0
  %5754 = vmatprep.subr.mxu0 0.0
  %5755 = vmatpush1.msra.mxu0 0.0
  %5756 = vmatprep.subr.mxu0 0.0
  %5757 = vmatpush1.msra.mxu0 0.0
  %5758 = vmatprep.subr.mxu0 0.0
  %5759 = vmatpush1.msra.mxu0 0.0
  %5760 = vmatprep.subr.mxu0 0.0
  %5761 = vmatpush1.msra.mxu0 0.0
  %5762 = vmatprep.subr.mxu0 0.0
  %5763 = vmatpush1.msra.mxu0 0.0
  %5764 = vmatprep.subr.mxu0 0.0
  %5765 = vmatpush1.msra.mxu0 0.0
  %5766 = vmatprep.subr.mxu0 0.0
  %5767 = vmatpush1.msra.mxu0 0.0
  %5768 = vmatprep.subr.mxu0 0.0
  %5769 = vmatpush1.msra.mxu0 0.0
  %5770 = vmatprep.subr.mxu0 0.0
  %5771 = vmatpush1.msra.mxu0 %v5483
  %5772 = vmatprep.subr.mxu0 0.0
  %5773 = vmatpush2.msra.mxu0 0.0
  %5774 = vmatprep.subr.mxu0 0.0
  %5775 = vmatpush2.msra.mxu0 0.0
  %5776 = vmatprep.subr.mxu0 0.0
  %5777 = vmatpush2.msra.mxu0 0.0
  %5778 = vmatprep.subr.mxu0 0.0
  %5779 = vmatpush2.msra.mxu0 0.0
  %5780 = vmatprep.subr.mxu0 0.0
  %5781 = vmatpush2.msra.mxu0 0.0
  %5782 = vmatprep.subr.mxu0 0.0
  %5783 = vmatpush2.msra.mxu0 0.0
  %5784 = vmatprep.subr.mxu0 0.0
  %5785 = vmatpush2.msra.mxu0 0.0
  %5786 = vmatprep.subr.mxu0 0.0
  %5787 = vmatpush2.msra.mxu0 0.0
  %5788 = vmatprep.subr.mxu0 0.0
  %5789 = vmatpush2.msra.mxu0 0.0
  %5790 = vmatprep.subr.mxu0 0.0
  %5791 = vmatpush2.msra.mxu0 0.0
  %5792 = vmatprep.subr.mxu0 0.0
  %5793 = vmatpush2.msra.mxu0 0.0
  %5794 = vmatprep.subr.mxu0 0.0
  %5795 = vmatpush2.msra.mxu0 0.0
  %5796 = vmatprep.subr.mxu0 0.0
  %5797 = vmatpush2.msra.mxu0 0.0
  %5798 = vmatprep.subr.mxu0 0.0
  %5799 = vmatpush2.msra.mxu0 0.0
  %5800 = vmatprep.subr.mxu0 0.0
  %5801 = vmatpush2.msra.mxu0 0.0
  %5802 = vmatprep.subr.mxu0 0.0
  %5803 = vmatpush2.msra.mxu0 0.0
  %5804 = vmatprep.mubr.f32.mxu0 0.0
  %5805 = vmatmul.mubr.f32.gmra.mxu0 %v5738
  %v5806 = vpop.f32.mrf.mxu0
  %v5807 = vadd.f32 0.0, %v5806
  %v5808 = vpop.f32.mrf.mxu0
  %5809 = vdwg.mxu0
  %s5810 = scalar_lea.vmem %s6, 56
  %v5811 = vld [vmem:[%s5810] sm:$0xff]
  %v5813 = vsel %vm480, %v5734, 0
  %v5816 = vsel %vm480, %v5807, 0
  %5818 = vmatprep.subr.mxu0 0.0
  %5819 = vmatpush1.msra.mxu0 0.0
  %5820 = vmatprep.subr.mxu0 0.0
  %5821 = vmatpush1.msra.mxu0 0.0
  %5822 = vmatprep.subr.mxu0 0.0
  %5823 = vmatpush1.msra.mxu0 0.0
  %5824 = vmatprep.subr.mxu0 0.0
  %5825 = vmatpush1.msra.mxu0 0.0
  %5826 = vmatprep.subr.mxu0 0.0
  %5827 = vmatpush1.msra.mxu0 0.0
  %5828 = vmatprep.subr.mxu0 0.0
  %5829 = vmatpush1.msra.mxu0 0.0
  %5830 = vmatprep.subr.mxu0 0.0
  %5831 = vmatpush1.msra.mxu0 0.0
  %5832 = vmatprep.subr.mxu0 0.0
  %5833 = vmatpush1.msra.mxu0 0.0
  %5834 = vmatprep.subr.mxu0 0.0
  %5835 = vmatpush1.msra.mxu0 0.0
  %5836 = vmatprep.subr.mxu0 0.0
  %5837 = vmatpush1.msra.mxu0 0.0
  %5838 = vmatprep.subr.mxu0 0.0
  %5839 = vmatpush1.msra.mxu0 0.0
  %5840 = vmatprep.subr.mxu0 0.0
  %5841 = vmatpush1.msra.mxu0 0.0
  %5842 = vmatprep.subr.mxu0 0.0
  %5843 = vmatpush1.msra.mxu0 0.0
  %5844 = vmatprep.subr.mxu0 0.0
  %5845 = vmatpush1.msra.mxu0 0.0
  %5846 = vmatprep.subr.mxu0 0.0
  %5847 = vmatpush1.msra.mxu0 0.0
  %5848 = vmatprep.subr.mxu0 0.0
  %5849 = vmatpush1.msra.mxu0 %v5811
  %5850 = vmatprep.subr.mxu0 0.0
  %5851 = vmatpush2.msra.mxu0 0.0
  %5852 = vmatprep.subr.mxu0 0.0
  %5853 = vmatpush2.msra.mxu0 0.0
  %5854 = vmatprep.subr.mxu0 0.0
  %5855 = vmatpush2.msra.mxu0 0.0
  %5856 = vmatprep.subr.mxu0 0.0
  %5857 = vmatpush2.msra.mxu0 0.0
  %5858 = vmatprep.subr.mxu0 0.0
  %5859 = vmatpush2.msra.mxu0 0.0
  %5860 = vmatprep.subr.mxu0 0.0
  %5861 = vmatpush2.msra.mxu0 0.0
  %5862 = vmatprep.subr.mxu0 0.0
  %5863 = vmatpush2.msra.mxu0 0.0
  %5864 = vmatprep.subr.mxu0 0.0
  %5865 = vmatpush2.msra.mxu0 0.0
  %5866 = vmatprep.subr.mxu0 0.0
  %5867 = vmatpush2.msra.mxu0 0.0
  %5868 = vmatprep.subr.mxu0 0.0
  %5869 = vmatpush2.msra.mxu0 0.0
  %5870 = vmatprep.subr.mxu0 0.0
  %5871 = vmatpush2.msra.mxu0 0.0
  %5872 = vmatprep.subr.mxu0 0.0
  %5873 = vmatpush2.msra.mxu0 0.0
  %5874 = vmatprep.subr.mxu0 0.0
  %5875 = vmatpush2.msra.mxu0 0.0
  %5876 = vmatprep.subr.mxu0 0.0
  %5877 = vmatpush2.msra.mxu0 0.0
  %5878 = vmatprep.subr.mxu0 0.0
  %5879 = vmatpush2.msra.mxu0 0.0
  %5880 = vmatprep.subr.mxu0 0.0
  %5881 = vmatpush2.msra.mxu0 0.0
  %5882 = vmatprep.mubr.f32.mxu0 0.0
  %5883 = vmatmul.mubr.f32.gmra.mxu0 %v5813
  %v5884 = vpop.f32.mrf.mxu0
  %v5885 = vadd.f32 0.0, %v5884
  %v5886 = vpop.f32.mrf.mxu0
  %5887 = vmatprep.mubr.f32.mxu0 0.0
  %5888 = vmatmul.mubr.f32.gmra.mxu0 %v5816
  %v5889 = vpop.f32.mrf.mxu0
  %v5890 = vadd.f32 0.0, %v5889
  %v5891 = vpop.f32.mrf.mxu0
  %5892 = vdwg.mxu0
  %v5893 = vadd.f32 %v5220, %v5885
  %v5894 = vadd.f32 %v5221, %v5890
  %v5895 = vadd.f32 %v3159, %v5893
  %v5896 = vadd.f32 %v3160, %v5894
  %v5897 = vld [vmem:[%s3 + $0xc] sm:$0x1]
  %v5898 = vlaneseq
  %v5899 = vshrl.u32 %v5898, 7
  %v5900 = vsub.s32 0, %v5899
  %v5901 = vrot.slane %v5897, %v5900
  %v5902 = vadd.f32 %v5895, %v5901
  %v5903 = vadd.f32 %v5896, %v5901
  %v5904 = vld [vmem:[%s3 + $0xa] sm:$0x1]
  %v5905 = vld [vmem:[%s3 + $0xb] sm:$0x1]
  %v5906 = vsel %vm172, %v5902, 0.0
  %5907 = vadd.xlane.f32.xlu0 %v5906
  %v5908 = vpop.xlane.xlu0 %5907
  %v5909 = vsel %vm172, %v5903, 0.0
  %5910 = vadd.xlane.f32.xlu0 %v5909
  %v5911 = vpop.xlane.xlu0 %5910
  %v5912 = vmul.f32 %v5908, %v179
  %v5913 = vmul.f32 %v5911, %v179
  %v5914 = vsub.f32 %v5902, %v5912
  %v5915 = vsub.f32 %v5903, %v5913
  %v5916 = vmul.f32 %v5914, %v5914
  %v5917 = vmul.f32 %v5915, %v5915
  %v5918 = vsel %vm172, %v5916, 0.0
  %5919 = vadd.xlane.f32.xlu0 %v5918
  %v5920 = vpop.xlane.xlu0 %5919
  %v5921 = vsel %vm172, %v5917, 0.0
  %5922 = vadd.xlane.f32.xlu0 %v5921
  %v5923 = vpop.xlane.xlu0 %5922
  %v5924 = vmul.f32 %v5920, %v179
  %v5925 = vmul.f32 %v5923, %v179
  %v5926 = vadd.f32 %v5924, 1e-05
  %v5927 = vadd.f32 %v5925, 1e-05
  %v5928 = vrsqrt.pop %v5926
  %v5929 = vrsqrt.pop %v5927
  %v5930 = vmul.f32 %v5914, %v5928
  %v5931 = vmul.f32 %v5915, %v5929
  %v5932 = vlaneseq
  %v5933 = vshrl.u32 %v5932, 7
  %v5934 = vsub.s32 0, %v5933
  %v5935 = vrot.slane %v5904, %v5934
  %v5936 = vmul.f32 %v5930, %v5935
  %v5937 = vmul.f32 %v5931, %v5935
  %v5938 = vlaneseq
  %v5939 = vshrl.u32 %v5938, 7
  %v5940 = vsub.s32 0, %v5939
  %v5941 = vrot.slane %v5905, %v5940
  %v5942 = vadd.f32 %v5936, %v5941
  %v5943 = vadd.f32 %v5937, %v5941
  %s5944 = scalar_lea.vmem %s7, 32
  %v5945 = vld [vmem:[%s5944] sm:$0xff]
  %v5946 = vld [vmem:[%s5944 + $0x8] sm:$0xff]
  %v5947 = vld [vmem:[%s5944 + $0x10] sm:$0xff]
  %v5948 = vld [vmem:[%s5944 + $0x18] sm:$0xff]
  %v5949 = vld [vmem:[%s3 + $0xe] sm:$0x1]
  %v5950 = vlaneseq
  %v5951 = vshrl.u32 %v5950, 7
  %v5952 = vsub.s32 0, %v5951
  %v5953 = vrot.slane %v5949, %v5952
  %v5955 = vsel %vm172, %v5942, 0
  %v5958 = vsel %vm172, %v5943, 0
  %5960 = vmatprep.subr.mxu0 0.0
  %5961 = vmatpush1.msra.mxu0 0.0
  %5962 = vmatprep.subr.mxu0 0.0
  %5963 = vmatpush1.msra.mxu0 0.0
  %5964 = vmatprep.subr.mxu0 0.0
  %5965 = vmatpush1.msra.mxu0 0.0
  %5966 = vmatprep.subr.mxu0 0.0
  %5967 = vmatpush1.msra.mxu0 0.0
  %5968 = vmatprep.subr.mxu0 0.0
  %5969 = vmatpush1.msra.mxu0 0.0
  %5970 = vmatprep.subr.mxu0 0.0
  %5971 = vmatpush1.msra.mxu0 0.0
  %5972 = vmatprep.subr.mxu0 0.0
  %5973 = vmatpush1.msra.mxu0 0.0
  %5974 = vmatprep.subr.mxu0 0.0
  %5975 = vmatpush1.msra.mxu0 0.0
  %5976 = vmatprep.subr.mxu0 0.0
  %5977 = vmatpush1.msra.mxu0 0.0
  %5978 = vmatprep.subr.mxu0 0.0
  %5979 = vmatpush1.msra.mxu0 0.0
  %5980 = vmatprep.subr.mxu0 0.0
  %5981 = vmatpush1.msra.mxu0 0.0
  %5982 = vmatprep.subr.mxu0 0.0
  %5983 = vmatpush1.msra.mxu0 0.0
  %5984 = vmatprep.subr.mxu0 0.0
  %5985 = vmatpush1.msra.mxu0 %v5948
  %5986 = vmatprep.subr.mxu0 0.0
  %5987 = vmatpush1.msra.mxu0 %v5947
  %5988 = vmatprep.subr.mxu0 0.0
  %5989 = vmatpush1.msra.mxu0 %v5946
  %5990 = vmatprep.subr.mxu0 0.0
  %5991 = vmatpush1.msra.mxu0 %v5945
  %5992 = vmatprep.subr.mxu0 0.0
  %5993 = vmatpush2.msra.mxu0 0.0
  %5994 = vmatprep.subr.mxu0 0.0
  %5995 = vmatpush2.msra.mxu0 0.0
  %5996 = vmatprep.subr.mxu0 0.0
  %5997 = vmatpush2.msra.mxu0 0.0
  %5998 = vmatprep.subr.mxu0 0.0
  %5999 = vmatpush2.msra.mxu0 0.0
  %6000 = vmatprep.subr.mxu0 0.0
  %6001 = vmatpush2.msra.mxu0 0.0
  %6002 = vmatprep.subr.mxu0 0.0
  %6003 = vmatpush2.msra.mxu0 0.0
  %6004 = vmatprep.subr.mxu0 0.0
  %6005 = vmatpush2.msra.mxu0 0.0
  %6006 = vmatprep.subr.mxu0 0.0
  %6007 = vmatpush2.msra.mxu0 0.0
  %6008 = vmatprep.subr.mxu0 0.0
  %6009 = vmatpush2.msra.mxu0 0.0
  %6010 = vmatprep.subr.mxu0 0.0
  %6011 = vmatpush2.msra.mxu0 0.0
  %6012 = vmatprep.subr.mxu0 0.0
  %6013 = vmatpush2.msra.mxu0 0.0
  %6014 = vmatprep.subr.mxu0 0.0
  %6015 = vmatpush2.msra.mxu0 0.0
  %6016 = vmatprep.subr.mxu0 0.0
  %6017 = vmatpush2.msra.mxu0 0.0
  %6018 = vmatprep.subr.mxu0 0.0
  %6019 = vmatpush2.msra.mxu0 0.0
  %6020 = vmatprep.subr.mxu0 0.0
  %6021 = vmatpush2.msra.mxu0 0.0
  %6022 = vmatprep.subr.mxu0 0.0
  %6023 = vmatpush2.msra.mxu0 0.0
  %6024 = vmatprep.mubr.f32.mxu0 0.0
  %6025 = vmatmul.mubr.f32.gmra.mxu0 %v5955
  %v6026 = vpop.f32.mrf.mxu0
  %v6027 = vadd.f32 %v5953, %v6026
  %v6028 = vpop.f32.mrf.mxu0
  %6029 = vmatprep.mubr.f32.mxu0 0.0
  %6030 = vmatmul.mubr.f32.gmra.mxu0 %v5958
  %v6031 = vpop.f32.mrf.mxu0
  %v6032 = vadd.f32 %v5953, %v6031
  %v6033 = vpop.f32.mrf.mxu0
  %6034 = vdwg.mxu0
  %v6035 = vmul.f32 %v6027, 0.5
  %v6036 = vmul.f32 %v6032, 0.5
  %v6037 = vmul.f32 %v6027, 0.044715
  %v6038 = vmul.f32 %v6032, 0.044715
  %v6039 = vmul.f32 %v6037, %v6027
  %v6040 = vmul.f32 %v6038, %v6032
  %v6041 = vmul.f32 %v6039, %v6027
  %v6042 = vmul.f32 %v6040, %v6032
  %v6043 = vadd.f32 %v6027, %v6041
  %v6044 = vadd.f32 %v6032, %v6042
  %v6045 = vmul.f32 %v6043, 0.7978846
  %v6046 = vmul.f32 %v6044, 0.7978846
  %v6047 = vtanh.pop %v6045
  %v6048 = vtanh.pop %v6046
  %v6049 = vadd.f32 %v6047, 1.0
  %v6050 = vadd.f32 %v6048, 1.0
  %v6051 = vmul.f32 %v6035, %v6049
  %v6052 = vmul.f32 %v6036, %v6050
  %s6053 = scalar_lea.vmem %s8, 128
  %v6054 = vld [vmem:[%s6053] sm:$0xff]
  %v6055 = vld [vmem:[%s6053 + $0x8] sm:$0xff]
  %v6056 = vld [vmem:[%s6053 + $0x10] sm:$0xff]
  %v6057 = vld [vmem:[%s6053 + $0x18] sm:$0xff]
  %v6058 = vld [vmem:[%s6053 + $0x20] sm:$0xff]
  %v6059 = vld [vmem:[%s6053 + $0x28] sm:$0xff]
  %v6060 = vld [vmem:[%s6053 + $0x30] sm:$0xff]
  %v6061 = vld [vmem:[%s6053 + $0x38] sm:$0xff]
  %v6062 = vld [vmem:[%s6053 + $0x40] sm:$0xff]
  %v6063 = vld [vmem:[%s6053 + $0x48] sm:$0xff]
  %v6064 = vld [vmem:[%s6053 + $0x50] sm:$0xff]
  %v6065 = vld [vmem:[%s6053 + $0x58] sm:$0xff]
  %v6066 = vld [vmem:[%s6053 + $0x60] sm:$0xff]
  %v6067 = vld [vmem:[%s6053 + $0x68] sm:$0xff]
  %v6068 = vld [vmem:[%s6053 + $0x70] sm:$0xff]
  %v6069 = vld [vmem:[%s6053 + $0x78] sm:$0xff]
  %6070 = vmatprep.subr.mxu0 0.0
  %6071 = vmatpush1.msra.mxu0 %v6069
  %6072 = vmatprep.subr.mxu0 0.0
  %6073 = vmatpush1.msra.mxu0 %v6068
  %6074 = vmatprep.subr.mxu0 0.0
  %6075 = vmatpush1.msra.mxu0 %v6067
  %6076 = vmatprep.subr.mxu0 0.0
  %6077 = vmatpush1.msra.mxu0 %v6066
  %6078 = vmatprep.subr.mxu0 0.0
  %6079 = vmatpush1.msra.mxu0 %v6065
  %6080 = vmatprep.subr.mxu0 0.0
  %6081 = vmatpush1.msra.mxu0 %v6064
  %6082 = vmatprep.subr.mxu0 0.0
  %6083 = vmatpush1.msra.mxu0 %v6063
  %6084 = vmatprep.subr.mxu0 0.0
  %6085 = vmatpush1.msra.mxu0 %v6062
  %6086 = vmatprep.subr.mxu0 0.0
  %6087 = vmatpush1.msra.mxu0 %v6061
  %6088 = vmatprep.subr.mxu0 0.0
  %6089 = vmatpush1.msra.mxu0 %v6060
  %6090 = vmatprep.subr.mxu0 0.0
  %6091 = vmatpush1.msra.mxu0 %v6059
  %6092 = vmatprep.subr.mxu0 0.0
  %6093 = vmatpush1.msra.mxu0 %v6058
  %6094 = vmatprep.subr.mxu0 0.0
  %6095 = vmatpush1.msra.mxu0 %v6057
  %6096 = vmatprep.subr.mxu0 0.0
  %6097 = vmatpush1.msra.mxu0 %v6056
  %6098 = vmatprep.subr.mxu0 0.0
  %6099 = vmatpush1.msra.mxu0 %v6055
  %6100 = vmatprep.subr.mxu0 0.0
  %6101 = vmatpush1.msra.mxu0 %v6054
  %6102 = vmatprep.subr.mxu0 0.0
  %6103 = vmatpush2.msra.mxu0 0.0
  %6104 = vmatprep.subr.mxu0 0.0
  %6105 = vmatpush2.msra.mxu0 0.0
  %6106 = vmatprep.subr.mxu0 0.0
  %6107 = vmatpush2.msra.mxu0 0.0
  %6108 = vmatprep.subr.mxu0 0.0
  %6109 = vmatpush2.msra.mxu0 0.0
  %6110 = vmatprep.subr.mxu0 0.0
  %6111 = vmatpush2.msra.mxu0 0.0
  %6112 = vmatprep.subr.mxu0 0.0
  %6113 = vmatpush2.msra.mxu0 0.0
  %6114 = vmatprep.subr.mxu0 0.0
  %6115 = vmatpush2.msra.mxu0 0.0
  %6116 = vmatprep.subr.mxu0 0.0
  %6117 = vmatpush2.msra.mxu0 0.0
  %6118 = vmatprep.subr.mxu0 0.0
  %6119 = vmatpush2.msra.mxu0 0.0
  %6120 = vmatprep.subr.mxu0 0.0
  %6121 = vmatpush2.msra.mxu0 0.0
  %6122 = vmatprep.subr.mxu0 0.0
  %6123 = vmatpush2.msra.mxu0 0.0
  %6124 = vmatprep.subr.mxu0 0.0
  %6125 = vmatpush2.msra.mxu0 0.0
  %6126 = vmatprep.subr.mxu0 0.0
  %6127 = vmatpush2.msra.mxu0 0.0
  %6128 = vmatprep.subr.mxu0 0.0
  %6129 = vmatpush2.msra.mxu0 0.0
  %6130 = vmatprep.subr.mxu0 0.0
  %6131 = vmatpush2.msra.mxu0 0.0
  %6132 = vmatprep.subr.mxu0 0.0
  %6133 = vmatpush2.msra.mxu0 0.0
  %6134 = vmatprep.mubr.f32.mxu0 0.0
  %6135 = vmatmul.mubr.f32.gmra.mxu0 %v6051
  %v6136 = vpop.f32.mrf.mxu0
  %v6137 = vadd.f32 0.0, %v6136
  %v6138 = vpop.f32.mrf.mxu0
  %6139 = vmatprep.mubr.f32.mxu0 0.0
  %6140 = vmatmul.mubr.f32.gmra.mxu0 %v6052
  %v6141 = vpop.f32.mrf.mxu0
  %v6142 = vadd.f32 0.0, %v6141
  %v6143 = vpop.f32.mrf.mxu0
  %6144 = vdwg.mxu0
  %v6145 = vadd.f32 %v5902, %v6137
  %v6146 = vadd.f32 %v5903, %v6142
  %v6147 = vld [vmem:[%s3 + $0xd] sm:$0x1]
  %v6148 = vlaneseq
  %v6149 = vshrl.u32 %v6148, 7
  %v6150 = vsub.s32 0, %v6149
  %v6151 = vrot.slane %v6147, %v6150
  %v6152 = vadd.f32 %v6145, %v6151
  %v6153 = vadd.f32 %v6146, %v6151
  %v6154 = vld [vmem:[%s3 + $0x10] sm:$0x1]
  %v6155 = vld [vmem:[%s3 + $0x11] sm:$0x1]
  %v6156 = vsel %vm172, %v6152, 0.0
  %6157 = vadd.xlane.f32.xlu0 %v6156
  %v6158 = vpop.xlane.xlu0 %6157
  %v6159 = vsel %vm172, %v6153, 0.0
  %6160 = vadd.xlane.f32.xlu0 %v6159
  %v6161 = vpop.xlane.xlu0 %6160
  %v6162 = vmul.f32 %v6158, %v179
  %v6163 = vmul.f32 %v6161, %v179
  %v6164 = vsub.f32 %v6152, %v6162
  %v6165 = vsub.f32 %v6153, %v6163
  %v6166 = vmul.f32 %v6164, %v6164
  %v6167 = vmul.f32 %v6165, %v6165
  %v6168 = vsel %vm172, %v6166, 0.0
  %6169 = vadd.xlane.f32.xlu0 %v6168
  %v6170 = vpop.xlane.xlu0 %6169
  %v6171 = vsel %vm172, %v6167, 0.0
  %6172 = vadd.xlane.f32.xlu0 %v6171
  %v6173 = vpop.xlane.xlu0 %6172
  %v6174 = vmul.f32 %v6170, %v179
  %v6175 = vmul.f32 %v6173, %v179
  %v6176 = vadd.f32 %v6174, 1e-05
  %v6177 = vadd.f32 %v6175, 1e-05
  %v6178 = vrsqrt.pop %v6176
  %v6179 = vrsqrt.pop %v6177
  %v6180 = vmul.f32 %v6164, %v6178
  %v6181 = vmul.f32 %v6165, %v6179
  %v6182 = vlaneseq
  %v6183 = vshrl.u32 %v6182, 7
  %v6184 = vsub.s32 0, %v6183
  %v6185 = vrot.slane %v6154, %v6184
  %v6186 = vmul.f32 %v6180, %v6185
  %v6187 = vmul.f32 %v6181, %v6185
  %v6188 = vlaneseq
  %v6189 = vshrl.u32 %v6188, 7
  %v6190 = vsub.s32 0, %v6189
  %v6191 = vrot.slane %v6155, %v6190
  %v6192 = vadd.f32 %v6186, %v6191
  %v6193 = vadd.f32 %v6187, %v6191
  %v6194 = vld [vmem:[%s9] sm:$0xff]
  %v6195 = vld [vmem:[%s9 + $0x8] sm:$0xff]
  %v6196 = vld [vmem:[%s9 + $0x10] sm:$0xff]
  %v6197 = vld [vmem:[%s9 + $0x18] sm:$0xff]
  %v6199 = vsel %vm172, %v6192, 0
  %v6202 = vsel %vm172, %v6193, 0
  %6204 = vmatprep.subr.mxu0 0.0
  %6205 = vmatpush1.msra.mxu0 0.0
  %6206 = vmatprep.subr.mxu0 0.0
  %6207 = vmatpush1.msra.mxu0 0.0
  %6208 = vmatprep.subr.mxu0 0.0
  %6209 = vmatpush1.msra.mxu0 0.0
  %6210 = vmatprep.subr.mxu0 0.0
  %6211 = vmatpush1.msra.mxu0 0.0
  %6212 = vmatprep.subr.mxu0 0.0
  %6213 = vmatpush1.msra.mxu0 0.0
  %6214 = vmatprep.subr.mxu0 0.0
  %6215 = vmatpush1.msra.mxu0 0.0
  %6216 = vmatprep.subr.mxu0 0.0
  %6217 = vmatpush1.msra.mxu0 0.0
  %6218 = vmatprep.subr.mxu0 0.0
  %6219 = vmatpush1.msra.mxu0 0.0
  %6220 = vmatprep.subr.mxu0 0.0
  %6221 = vmatpush1.msra.mxu0 0.0
  %6222 = vmatprep.subr.mxu0 0.0
  %6223 = vmatpush1.msra.mxu0 0.0
  %6224 = vmatprep.subr.mxu0 0.0
  %6225 = vmatpush1.msra.mxu0 0.0
  %6226 = vmatprep.subr.mxu0 0.0
  %6227 = vmatpush1.msra.mxu0 0.0
  %6228 = vmatprep.subr.mxu0 0.0
  %6229 = vmatpush1.msra.mxu0 %v6197
  %6230 = vmatprep.subr.mxu0 0.0
  %6231 = vmatpush1.msra.mxu0 %v6196
  %6232 = vmatprep.subr.mxu0 0.0
  %6233 = vmatpush1.msra.mxu0 %v6195
  %6234 = vmatprep.subr.mxu0 0.0
  %6235 = vmatpush1.msra.mxu0 %v6194
  %6236 = vmatprep.subr.mxu0 0.0
  %6237 = vmatpush2.msra.mxu0 0.0
  %6238 = vmatprep.subr.mxu0 0.0
  %6239 = vmatpush2.msra.mxu0 0.0
  %6240 = vmatprep.subr.mxu0 0.0
  %6241 = vmatpush2.msra.mxu0 0.0
  %6242 = vmatprep.subr.mxu0 0.0
  %6243 = vmatpush2.msra.mxu0 0.0
  %6244 = vmatprep.subr.mxu0 0.0
  %6245 = vmatpush2.msra.mxu0 0.0
  %6246 = vmatprep.subr.mxu0 0.0
  %6247 = vmatpush2.msra.mxu0 0.0
  %6248 = vmatprep.subr.mxu0 0.0
  %6249 = vmatpush2.msra.mxu0 0.0
  %6250 = vmatprep.subr.mxu0 0.0
  %6251 = vmatpush2.msra.mxu0 0.0
  %6252 = vmatprep.subr.mxu0 0.0
  %6253 = vmatpush2.msra.mxu0 0.0
  %6254 = vmatprep.subr.mxu0 0.0
  %6255 = vmatpush2.msra.mxu0 0.0
  %6256 = vmatprep.subr.mxu0 0.0
  %6257 = vmatpush2.msra.mxu0 0.0
  %6258 = vmatprep.subr.mxu0 0.0
  %6259 = vmatpush2.msra.mxu0 0.0
  %6260 = vmatprep.subr.mxu0 0.0
  %6261 = vmatpush2.msra.mxu0 0.0
  %6262 = vmatprep.subr.mxu0 0.0
  %6263 = vmatpush2.msra.mxu0 0.0
  %6264 = vmatprep.subr.mxu0 0.0
  %6265 = vmatpush2.msra.mxu0 0.0
  %6266 = vmatprep.subr.mxu0 0.0
  %6267 = vmatpush2.msra.mxu0 0.0
  %6268 = vmatprep.mubr.f32.mxu0 0.0
  %6269 = vmatmul.mubr.f32.gmra.mxu0 %v6199
  %v6270 = vpop.f32.mrf.mxu0
  %v6271 = vadd.f32 0.0, %v6270
  %v6272 = vpop.f32.mrf.mxu0
  %6273 = vmatprep.mubr.f32.mxu0 0.0
  %6274 = vmatmul.mubr.f32.gmra.mxu0 %v6202
  %v6275 = vpop.f32.mrf.mxu0
  %v6276 = vadd.f32 0.0, %v6275
  %v6277 = vpop.f32.mrf.mxu0
  %6278 = vdwg.mxu0
  %6279 = vst [vmem:[%s10] sm:$0xff] %v6271
  %6280 = vst [vmem:[%s10 + $0x8] sm:$0xff] %v6276
  // Predicated region
  $region42: #{gpt2_decoder_forward.1} parent=0 // pred_check
    _
  $region43: #{gpt2_decoder_forward.1} parent=0 // pred_check_branch
    %6282 = sbr.rel (0) target = $region45
  $region44: #{gpt2_decoder_forward.1} parent=0 // pred_region
    _
  $region45: #{gpt2_decoder_forward.1} parent=0 // pred_fallthru
    _
  // Predicated region
  $region46: #{gpt2_decoder_forward.1} parent=0 // pred_check
    _
  $region47: #{gpt2_decoder_forward.1} parent=0 // pred_check_branch
    %6284 = sbr.rel (0) target = $region49
  $region48: #{gpt2_decoder_forward.1} parent=0 // pred_region
    _
  $region49: #{gpt2_decoder_forward.1} parent=0 // pred_fallthru
    _

</llo_original>
